<compile_context>
chip_gen: v7x
topology: tpu7x:2x2x1
jax: 0.10.0
libtpu: 0.0.40
codegen_flags: <defaults>
</compile_context>

<pallas_src>
import functools

import jax
import jax.numpy as jnp
import numpy as np
from jax.experimental import pallas as pl
from jax.experimental.pallas import tpu as pltpu

CONV_SPECS = ((8, 4), (4, 2), (3, 1))   # (kernel, stride) of the 3 conv layers
CONV_CHANNELS = (32, 64, 64)            # out channels of the 3 conv layers


def _out_sz(s, k, st):
    return (s - k) // st + 1


def conv_out_hw(h, w):
    for k, st in CONV_SPECS:
        h, w = _out_sz(h, k, st), _out_sz(w, k, st)
    return h, w


# ----------------------------------------------------------------------------
# Fused Pallas kernel: conv1 -> conv2 -> conv3 -> FC -> dueling head
# ----------------------------------------------------------------------------
def _fused_dueling_kernel(x_ref, w1_ref, b1_ref, w2_ref, b2_ref, w3_ref, b3_ref,
                          wh_ref, bh_ref, wav_ref, bav_ref, o_ref,
                          *, oh1, kh1, s1, oh2, kh2, s2, n_actions):
    """x_ref: [H, bt, W*C] bf16 rows.  wN_ref: [KH_N, IWC_N, OWC_N] banded bf16.
    Computes q = value + adv - mean(adv) for one batch tile."""
    f32 = jnp.float32

    # conv1: rows of the [oh1, ow1*32] feature map, lane order (ox, oc).
    rows1 = []
    for oy in range(oh1):
        acc = b1_ref[...]                                   # [1, ow1*32] f32
        for ky in range(kh1):
            acc = acc + jnp.dot(x_ref[s1 * oy + ky], w1_ref[ky],
                                preferred_element_type=f32)
        rows1.append(jnp.maximum(acc, 0.0).astype(jnp.bfloat16))

    # conv2 rows fused directly into the (1x1-output) conv3 accumulation.
    acc3 = b3_ref[...]                                      # [1, 64] f32
    for oy in range(oh2):
        acc2 = b2_ref[...]                                  # [1, ow2*64] f32
        for ky in range(kh2):
            acc2 = acc2 + jnp.dot(rows1[s2 * oy + ky], w2_ref[ky],
                                  preferred_element_type=f32)
        row2 = jnp.maximum(acc2, 0.0).astype(jnp.bfloat16)  # [bt, ow2*64]
        acc3 = acc3 + jnp.dot(row2, w3_ref[oy], preferred_element_type=f32)
    h3 = jnp.maximum(acc3, 0.0).astype(jnp.bfloat16)        # [bt, 64] = flatten

    # hidden FC + ReLU
    h = jnp.dot(h3, wh_ref[...], preferred_element_type=f32) + bh_ref[...]
    h = jnp.maximum(h, 0.0).astype(jnp.bfloat16)            # [bt, hidden]

    # fused advantage|value head
    z = jnp.dot(h, wav_ref[...], preferred_element_type=f32) + bav_ref[...]
    adv = z[:, :n_actions]
    val = z[:, n_actions:n_actions + 1]
    o_ref[...] = val + adv - jnp.mean(adv, axis=1, keepdims=True)


def _pick_batch_tile(b, max_tile=256):
    """Largest tile <= max_tile that divides b (multiple of 8 when possible),
    preferring >=2 blocks so v7x's two TensorCores both get work."""
    if b <= 8 or b % 8 != 0:
        return b
    best = b
    for t in range(8, min(b, max_tile) + 1, 8):
        if b % t == 0:
            best = t
    if best == b and b <= max_tile and b % 16 == 0:
        best = b // 2
    return best


def forward(kp, x, *, max_batch_tile=256):
    """x: [B, C, H, W] (PyTorch NCHW) -> q: [B, n_actions] f32."""
    b, c, h, w = x.shape
    oh1, ow1 = _out_sz(h, 8, 4), _out_sz(w, 8, 4)
    oh2, ow2 = _out_sz(oh1, 4, 2), _out_sz(ow1, 4, 2)
    oh3, ow3 = _out_sz(oh2, 3, 1), _out_sz(ow2, 3, 1)
    assert oh3 == 1 and ow3 == 1, "fused tail assumes a 1x1 conv3 output"
    # TODO(synk): generalize the fused conv3/FC tail to conv3 outputs larger than 1x1.

    n_actions = kp["bav"].shape[1] - 1
    hidden = kp["wh"].shape[1]
    wc = w * c
    n1 = ow1 * CONV_CHANNELS[0]
    n2 = ow2 * CONV_CHANNELS[1]

    # Cast to bf16 BEFORE the layout transpose (halves its HBM traffic),
    # then lay out as per-image rows [H, B, W*C] (lane order = (x, channel)).
    xr = x.astype(jnp.bfloat16).transpose(2, 0, 3, 1).reshape(h, b, wc)

    bt = _pick_batch_tile(b, max_batch_tile)
    grid = (pl.cdiv(b, bt),)

    kern = functools.partial(_fused_dueling_kernel, oh1=oh1, kh1=8, s1=4,
                             oh2=oh2, kh2=4, s2=2, n_actions=n_actions)

    weight_keys = ("w1", "b1", "w2", "b2", "w3", "b3", "wh", "bh", "wav", "bav")
    in_specs = [pl.BlockSpec((h, bt, wc), lambda i: (0, i, 0))]
    for k in weight_keys:
        shp = kp[k].shape
        in_specs.append(pl.BlockSpec(shp, (lambda r: (lambda i: (0,) * r))(len(shp))))
    out_spec = pl.BlockSpec((bt, n_actions), lambda i: (i, 0))

    flops = 2 * b * (oh1 * 8 * wc * n1 + oh2 * 4 * n1 * n2 + oh2 * n2 * 64
                     + 64 * hidden + hidden * (n_actions + 1))
    bytes_accessed = (xr.size * 2 + b * n_actions * 4
                      + sum(int(np.prod(kp[k].shape)) * kp[k].dtype.itemsize
                            for k in weight_keys))

    return pl.pallas_call(
        kern,
        out_shape=jax.ShapeDtypeStruct((b, n_actions), jnp.float32),
        grid=grid,
        in_specs=in_specs,
        out_specs=out_spec,
        compiler_params=pltpu.CompilerParams(
            dimension_semantics=("parallel",),
            vmem_limit_bytes=48 * 1024 * 1024),
        cost_estimate=pl.CostEstimate(flops=int(flops), transcendentals=0,
                                      bytes_accessed=int(bytes_accessed)),
    )(xr, *[kp[k] for k in weight_keys])


# ----------------------------------------------------------------------------
# Parameter init (PyTorch layout) + one-time relayout for the kernel
# ----------------------------------------------------------------------------
def _init_layer(key, w_shape, fan_in):
    kw_, kb_ = jax.random.split(key)
    bound = 1.0 / np.sqrt(fan_in)
    w = jax.random.uniform(kw_, w_shape, jnp.float32, -bound, bound)
    b = jax.random.uniform(kb_, (w_shape[0],), jnp.float32, -bound, bound)
    return w, b


def init_params(key, obs_shape, hidden_layer, n_actions):
    c, h, w = obs_shape
    keys = jax.random.split(key, 6)
    w1, b1 = _init_layer(keys[0], (CONV_CHANNELS[0], c, 8, 8), c * 8 * 8)
    w2, b2 = _init_layer(keys[1], (CONV_CHANNELS[1], CONV_CHANNELS[0], 4, 4),
                         CONV_CHANNELS[0] * 4 * 4)
    w3, b3 = _init_layer(keys[2], (CONV_CHANNELS[2], CONV_CHANNELS[1], 3, 3),
                         CONV_CHANNELS[1] * 3 * 3)
    hc, wc = conv_out_hw(h, w)
    conv_out = CONV_CHANNELS[2] * hc * wc
    wh, bh = _init_layer(keys[3], (hidden_layer, conv_out), conv_out)
    wa, ba = _init_layer(keys[4], (n_actions, hidden_layer), hidden_layer)
    wv, bv = _init_layer(keys[5], (1, hidden_layer), hidden_layer)
    return dict(w1=w1, b1=b1, w2=w2, b2=b2, w3=w3, b3=b3,
                wh=wh, bh=bh, wa=wa, ba=ba, wv=wv, bv=bv)


def _banded_conv_weight(w, stride, in_w):
    """w: [OC, C, KH, KW] (PyTorch).  Returns [KH, in_w*C, OW*OC] bf16 where
    out_row[oy] = sum_ky in_row[stride*oy+ky] @ W[ky] implements the conv with
    lane orders  in: (x, c)  /  out: (ox, oc)."""
    oc, cin, kh, kw = (int(s) for s in w.shape)
    ow = (in_w - kw) // stride + 1
    w_np = np.asarray(w, dtype=np.float32)
    out = np.zeros((kh, in_w * cin, ow * oc), dtype=np.float32)
    for ky in range(kh):
        for ox in range(ow):
            for kx in range(kw):
                r0 = (stride * ox + kx) * cin
                out[ky, r0:r0 + cin, ox * oc:(ox + 1) * oc] = w_np[:, :, ky, kx].T
    return jnp.asarray(out, dtype=jnp.bfloat16)


def prepare_params(p, obs_shape, hidden_layer, n_actions):
    """One-time relayout of PyTorch-style params into kernel-friendly form."""
    c, h, w = obs_shape
    oh1, ow1 = _out_sz(h, 8, 4), _out_sz(w, 8, 4)
    oh2, ow2 = _out_sz(oh1, 4, 2), _out_sz(ow1, 4, 2)
    oh3, ow3 = _out_sz(oh2, 3, 1), _out_sz(ow2, 3, 1)
    assert oh3 == 1 and ow3 == 1, "fused tail assumes a 1x1 conv3 output"

    kp = {}
    kp["w1"] = _banded_conv_weight(p["w1"], 4, w)            # [8, w*c, ow1*32]
    kp["b1"] = jnp.tile(p["b1"], ow1).reshape(1, -1).astype(jnp.float32)
    kp["w2"] = _banded_conv_weight(p["w2"], 2, ow1)          # [4, ow1*32, ow2*64]
    kp["b2"] = jnp.tile(p["b2"], ow2).reshape(1, -1).astype(jnp.float32)
    kp["w3"] = _banded_conv_weight(p["w3"], 1, ow2)          # [3, ow2*64, 64]
    kp["b3"] = p["b3"].reshape(1, -1).astype(jnp.float32)
    # conv3 output is 1x1 so the PyTorch NCHW flatten order == channel order.
    kp["wh"] = p["wh"].T.astype(jnp.bfloat16)                # [64, hidden]
    kp["bh"] = p["bh"].reshape(1, -1).astype(jnp.float32)
    # Fuse advantage/value heads into a single [hidden, A+1] bf16 matmul.
    kp["wav"] = jnp.concatenate([p["wa"].T, p["wv"].T], axis=1).astype(jnp.bfloat16)
    kp["bav"] = jnp.concatenate([p["ba"], p["bv"]]).reshape(1, n_actions + 1).astype(jnp.float32)
    return kp


# ----------------------------------------------------------------------------
# Pure-JAX f32 reference with the original PyTorch semantics/layout
# ----------------------------------------------------------------------------
def forward_ref(params, x):
    x = x.astype(jnp.float32)
    for wk, bk, st in (("w1", "b1", 4), ("w2", "b2", 2), ("w3", "b3", 1)):
        x = jax.lax.conv_general_dilated(
            x, params[wk], (st, st), "VALID",
            dimension_numbers=("NCHW", "OIHW", "NCHW"))
        x = jnp.maximum(x + params[bk][None, :, None, None], 0.0)
    x = x.reshape(x.shape[0], -1)
    h = jnp.maximum(x @ params["wh"].T + params["bh"], 0.0)
    adv = h @ params["wa"].T + params["ba"]
    val = h @ params["wv"].T + params["bv"]
    return val + adv - jnp.mean(adv, axis=1, keepdims=True)


if __name__ == "__main__":
    # 36x36 is the smallest spatial size the 8/4 -> 4/2 -> 3/1 conv stack accepts
    # (and gives the 1x1 conv3 output the fused tail assumes).
    obs_shape = (4, 36, 36)
    batch = 2
    hidden_layer = 32
    n_actions = 6

    key = jax.random.PRNGKey(0)
    kx, kprm = jax.random.split(key)
    x = jax.random.normal(kx, (batch, *obs_shape), dtype=jnp.float32)
    raw_params = init_params(kprm, obs_shape, hidden_layer, n_actions)
    kern_params = prepare_params(raw_params, obs_shape, hidden_layer, n_actions)

    q = jax.jit(forward)(kern_params, x)
    q = jax.block_until_ready(q)

    q_ref = forward_ref(raw_params, x)
    np.testing.assert_allclose(np.asarray(q), np.asarray(q_ref), rtol=5e-2, atol=2e-2)
    assert q.shape == (batch, n_actions)

    print("KERNEL_OK")
</pallas_src>

<mosaic_0001>
module attributes {stable_mosaic.version = 11 : i64} {
  func.func @_fused_dueling_kernel(%arg0: i32, %arg1: memref<36x2x144xbf16, #tpu.memory_space<vmem>>, %arg2: memref<8x144x256xbf16, #tpu.memory_space<vmem>>, %arg3: memref<1x256xf32, #tpu.memory_space<vmem>>, %arg4: memref<4x256x192xbf16, #tpu.memory_space<vmem>>, %arg5: memref<1x192xf32, #tpu.memory_space<vmem>>, %arg6: memref<3x192x64xbf16, #tpu.memory_space<vmem>>, %arg7: memref<1x64xf32, #tpu.memory_space<vmem>>, %arg8: memref<64x32xbf16, #tpu.memory_space<vmem>>, %arg9: memref<1x32xf32, #tpu.memory_space<vmem>>, %arg10: memref<32x7xbf16, #tpu.memory_space<vmem>>, %arg11: memref<1x7xf32, #tpu.memory_space<vmem>>, %arg12: memref<2x6xf32, #tpu.memory_space<vmem>>) attributes {dimension_semantics = [#tpu.dimension_semantics<parallel>], iteration_bounds = array<i64: 1>, scalar_prefetch = 0 : i64, scratch_operands = 0 : i64, tpu.core_type = #tpu.core_type<tc>, window_params = [{transform_indices = @transform_0, window_bounds = array<i64: 36, 2, 144>}, {pipeline_mode = #tpu.pipeline_mode<synchronous>, transform_indices = @transform_1, window_bounds = array<i64: 8, 144, 256>}, {pipeline_mode = #tpu.pipeline_mode<synchronous>, transform_indices = @transform_2, window_bounds = array<i64: 1, 256>}, {pipeline_mode = #tpu.pipeline_mode<synchronous>, transform_indices = @transform_3, window_bounds = array<i64: 4, 256, 192>}, {pipeline_mode = #tpu.pipeline_mode<synchronous>, transform_indices = @transform_4, window_bounds = array<i64: 1, 192>}, {pipeline_mode = #tpu.pipeline_mode<synchronous>, transform_indices = @transform_5, window_bounds = array<i64: 3, 192, 64>}, {pipeline_mode = #tpu.pipeline_mode<synchronous>, transform_indices = @transform_6, window_bounds = array<i64: 1, 64>}, {pipeline_mode = #tpu.pipeline_mode<synchronous>, transform_indices = @transform_7, window_bounds = array<i64: 64, 32>}, {pipeline_mode = #tpu.pipeline_mode<synchronous>, transform_indices = @transform_8, window_bounds = array<i64: 1, 32>}, {pipeline_mode = #tpu.pipeline_mode<synchronous>, transform_indices = @transform_9, window_bounds = array<i64: 32, 7>}, {pipeline_mode = #tpu.pipeline_mode<synchronous>, transform_indices = @transform_10, window_bounds = array<i64: 1, 7>}, {transform_indices = @transform_11, window_bounds = array<i64: 2, 6>}]} {
    %c0 = arith.constant 0 : index
    %c0_0 = arith.constant 0 : index
    %0 = vector.load %arg3[%c0, %c0_0] : memref<1x256xf32, #tpu.memory_space<vmem>>, vector<1x256xf32>
    %c0_1 = arith.constant 0 : index
    %c0_2 = arith.constant 0 : index
    %c0_3 = arith.constant 0 : index
    %1 = vector.load %arg1[%c0_1, %c0_2, %c0_3] : memref<36x2x144xbf16, #tpu.memory_space<vmem>>, vector<1x2x144xbf16>
    %2 = vector.shape_cast %1 : vector<1x2x144xbf16> to vector<2x144xbf16>
    %c0_4 = arith.constant 0 : index
    %c0_5 = arith.constant 0 : index
    %c0_6 = arith.constant 0 : index
    %3 = vector.load %arg2[%c0_4, %c0_5, %c0_6] : memref<8x144x256xbf16, #tpu.memory_space<vmem>>, vector<1x144x256xbf16>
    %4 = vector.shape_cast %3 : vector<1x144x256xbf16> to vector<144x256xbf16>
    %cst = arith.constant dense<0.000000e+00> : vector<2x256xf32>
    %5 = tpu.matmul %2, %4, %cst {dimension_numbers = #tpu.dot_dimension_numbers<[1], [0], [0], [1], [0, 0, 1, 1], [], []>} : vector<2x144xbf16>, vector<144x256xbf16>, vector<2x256xf32> -> vector<2x256xf32>
    %6 = vector.broadcast %0 : vector<1x256xf32> to vector<2x256xf32>
    %7 = arith.addf %6, %5 : vector<2x256xf32>
    %c1 = arith.constant 1 : index
    %c0_7 = arith.constant 0 : index
    %c0_8 = arith.constant 0 : index
    %8 = vector.load %arg1[%c1, %c0_7, %c0_8] : memref<36x2x144xbf16, #tpu.memory_space<vmem>>, vector<1x2x144xbf16>
    %9 = vector.shape_cast %8 : vector<1x2x144xbf16> to vector<2x144xbf16>
    %c1_9 = arith.constant 1 : index
    %c0_10 = arith.constant 0 : index
    %c0_11 = arith.constant 0 : index
    %10 = vector.load %arg2[%c1_9, %c0_10, %c0_11] : memref<8x144x256xbf16, #tpu.memory_space<vmem>>, vector<1x144x256xbf16>
    %11 = vector.shape_cast %10 : vector<1x144x256xbf16> to vector<144x256xbf16>
    %cst_12 = arith.constant dense<0.000000e+00> : vector<2x256xf32>
    %12 = tpu.matmul %9, %11, %cst_12 {dimension_numbers = #tpu.dot_dimension_numbers<[1], [0], [0], [1], [0, 0, 1, 1], [], []>} : vector<2x144xbf16>, vector<144x256xbf16>, vector<2x256xf32> -> vector<2x256xf32>
    %13 = arith.addf %7, %12 : vector<2x256xf32>
    %c2 = arith.constant 2 : index
    %c0_13 = arith.constant 0 : index
    %c0_14 = arith.constant 0 : index
    %14 = vector.load %arg1[%c2, %c0_13, %c0_14] : memref<36x2x144xbf16, #tpu.memory_space<vmem>>, vector<1x2x144xbf16>
    %15 = vector.shape_cast %14 : vector<1x2x144xbf16> to vector<2x144xbf16>
    %c2_15 = arith.constant 2 : index
    %c0_16 = arith.constant 0 : index
    %c0_17 = arith.constant 0 : index
    %16 = vector.load %arg2[%c2_15, %c0_16, %c0_17] : memref<8x144x256xbf16, #tpu.memory_space<vmem>>, vector<1x144x256xbf16>
    %17 = vector.shape_cast %16 : vector<1x144x256xbf16> to vector<144x256xbf16>
    %cst_18 = arith.constant dense<0.000000e+00> : vector<2x256xf32>
    %18 = tpu.matmul %15, %17, %cst_18 {dimension_numbers = #tpu.dot_dimension_numbers<[1], [0], [0], [1], [0, 0, 1, 1], [], []>} : vector<2x144xbf16>, vector<144x256xbf16>, vector<2x256xf32> -> vector<2x256xf32>
    %19 = arith.addf %13, %18 : vector<2x256xf32>
    %c3 = arith.constant 3 : index
    %c0_19 = arith.constant 0 : index
    %c0_20 = arith.constant 0 : index
    %20 = vector.load %arg1[%c3, %c0_19, %c0_20] : memref<36x2x144xbf16, #tpu.memory_space<vmem>>, vector<1x2x144xbf16>
    %21 = vector.shape_cast %20 : vector<1x2x144xbf16> to vector<2x144xbf16>
    %c3_21 = arith.constant 3 : index
    %c0_22 = arith.constant 0 : index
    %c0_23 = arith.constant 0 : index
    %22 = vector.load %arg2[%c3_21, %c0_22, %c0_23] : memref<8x144x256xbf16, #tpu.memory_space<vmem>>, vector<1x144x256xbf16>
    %23 = vector.shape_cast %22 : vector<1x144x256xbf16> to vector<144x256xbf16>
    %cst_24 = arith.constant dense<0.000000e+00> : vector<2x256xf32>
    %24 = tpu.matmul %21, %23, %cst_24 {dimension_numbers = #tpu.dot_dimension_numbers<[1], [0], [0], [1], [0, 0, 1, 1], [], []>} : vector<2x144xbf16>, vector<144x256xbf16>, vector<2x256xf32> -> vector<2x256xf32>
    %25 = arith.addf %19, %24 : vector<2x256xf32>
    %c4 = arith.constant 4 : index
    %c0_25 = arith.constant 0 : index
    %c0_26 = arith.constant 0 : index
    %26 = vector.load %arg1[%c4, %c0_25, %c0_26] : memref<36x2x144xbf16, #tpu.memory_space<vmem>>, vector<1x2x144xbf16>
    %27 = vector.shape_cast %26 : vector<1x2x144xbf16> to vector<2x144xbf16>
    %c4_27 = arith.constant 4 : index
    %c0_28 = arith.constant 0 : index
    %c0_29 = arith.constant 0 : index
    %28 = vector.load %arg2[%c4_27, %c0_28, %c0_29] : memref<8x144x256xbf16, #tpu.memory_space<vmem>>, vector<1x144x256xbf16>
    %29 = vector.shape_cast %28 : vector<1x144x256xbf16> to vector<144x256xbf16>
    %cst_30 = arith.constant dense<0.000000e+00> : vector<2x256xf32>
    %30 = tpu.matmul %27, %29, %cst_30 {dimension_numbers = #tpu.dot_dimension_numbers<[1], [0], [0], [1], [0, 0, 1, 1], [], []>} : vector<2x144xbf16>, vector<144x256xbf16>, vector<2x256xf32> -> vector<2x256xf32>
    %31 = arith.addf %25, %30 : vector<2x256xf32>
    %c5 = arith.constant 5 : index
    %c0_31 = arith.constant 0 : index
    %c0_32 = arith.constant 0 : index
    %32 = vector.load %arg1[%c5, %c0_31, %c0_32] : memref<36x2x144xbf16, #tpu.memory_space<vmem>>, vector<1x2x144xbf16>
    %33 = vector.shape_cast %32 : vector<1x2x144xbf16> to vector<2x144xbf16>
    %c5_33 = arith.constant 5 : index
    %c0_34 = arith.constant 0 : index
    %c0_35 = arith.constant 0 : index
    %34 = vector.load %arg2[%c5_33, %c0_34, %c0_35] : memref<8x144x256xbf16, #tpu.memory_space<vmem>>, vector<1x144x256xbf16>
    %35 = vector.shape_cast %34 : vector<1x144x256xbf16> to vector<144x256xbf16>
    %cst_36 = arith.constant dense<0.000000e+00> : vector<2x256xf32>
    %36 = tpu.matmul %33, %35, %cst_36 {dimension_numbers = #tpu.dot_dimension_numbers<[1], [0], [0], [1], [0, 0, 1, 1], [], []>} : vector<2x144xbf16>, vector<144x256xbf16>, vector<2x256xf32> -> vector<2x256xf32>
    %37 = arith.addf %31, %36 : vector<2x256xf32>
    %c6 = arith.constant 6 : index
    %c0_37 = arith.constant 0 : index
    %c0_38 = arith.constant 0 : index
    %38 = vector.load %arg1[%c6, %c0_37, %c0_38] : memref<36x2x144xbf16, #tpu.memory_space<vmem>>, vector<1x2x144xbf16>
    %39 = vector.shape_cast %38 : vector<1x2x144xbf16> to vector<2x144xbf16>
    %c6_39 = arith.constant 6 : index
    %c0_40 = arith.constant 0 : index
    %c0_41 = arith.constant 0 : index
    %40 = vector.load %arg2[%c6_39, %c0_40, %c0_41] : memref<8x144x256xbf16, #tpu.memory_space<vmem>>, vector<1x144x256xbf16>
    %41 = vector.shape_cast %40 : vector<1x144x256xbf16> to vector<144x256xbf16>
    %cst_42 = arith.constant dense<0.000000e+00> : vector<2x256xf32>
    %42 = tpu.matmul %39, %41, %cst_42 {dimension_numbers = #tpu.dot_dimension_numbers<[1], [0], [0], [1], [0, 0, 1, 1], [], []>} : vector<2x144xbf16>, vector<144x256xbf16>, vector<2x256xf32> -> vector<2x256xf32>
    %43 = arith.addf %37, %42 : vector<2x256xf32>
    %c7 = arith.constant 7 : index
    %c0_43 = arith.constant 0 : index
    %c0_44 = arith.constant 0 : index
    %44 = vector.load %arg1[%c7, %c0_43, %c0_44] : memref<36x2x144xbf16, #tpu.memory_space<vmem>>, vector<1x2x144xbf16>
    %45 = vector.shape_cast %44 : vector<1x2x144xbf16> to vector<2x144xbf16>
    %c7_45 = arith.constant 7 : index
    %c0_46 = arith.constant 0 : index
    %c0_47 = arith.constant 0 : index
    %46 = vector.load %arg2[%c7_45, %c0_46, %c0_47] : memref<8x144x256xbf16, #tpu.memory_space<vmem>>, vector<1x144x256xbf16>
    %47 = vector.shape_cast %46 : vector<1x144x256xbf16> to vector<144x256xbf16>
    %cst_48 = arith.constant dense<0.000000e+00> : vector<2x256xf32>
    %48 = tpu.matmul %45, %47, %cst_48 {dimension_numbers = #tpu.dot_dimension_numbers<[1], [0], [0], [1], [0, 0, 1, 1], [], []>} : vector<2x144xbf16>, vector<144x256xbf16>, vector<2x256xf32> -> vector<2x256xf32>
    %49 = arith.addf %43, %48 : vector<2x256xf32>
    %cst_49 = arith.constant 0.000000e+00 : f32
    %50 = vector.broadcast %cst_49 : f32 to vector<2x256xf32>
    %51 = arith.maximumf %49, %50 : vector<2x256xf32>
    %52 = arith.truncf %51 : vector<2x256xf32> to vector<2x256xbf16>
    %c0_50 = arith.constant 0 : index
    %c0_51 = arith.constant 0 : index
    %53 = vector.load %arg3[%c0_50, %c0_51] : memref<1x256xf32, #tpu.memory_space<vmem>>, vector<1x256xf32>
    %c4_52 = arith.constant 4 : index
    %c0_53 = arith.constant 0 : index
    %c0_54 = arith.constant 0 : index
    %54 = vector.load %arg1[%c4_52, %c0_53, %c0_54] : memref<36x2x144xbf16, #tpu.memory_space<vmem>>, vector<1x2x144xbf16>
    %55 = vector.shape_cast %54 : vector<1x2x144xbf16> to vector<2x144xbf16>
    %c0_55 = arith.constant 0 : index
    %c0_56 = arith.constant 0 : index
    %c0_57 = arith.constant 0 : index
    %56 = vector.load %arg2[%c0_55, %c0_56, %c0_57] : memref<8x144x256xbf16, #tpu.memory_space<vmem>>, vector<1x144x256xbf16>
    %57 = vector.shape_cast %56 : vector<1x144x256xbf16> to vector<144x256xbf16>
    %cst_58 = arith.constant dense<0.000000e+00> : vector<2x256xf32>
    %58 = tpu.matmul %55, %57, %cst_58 {dimension_numbers = #tpu.dot_dimension_numbers<[1], [0], [0], [1], [0, 0, 1, 1], [], []>} : vector<2x144xbf16>, vector<144x256xbf16>, vector<2x256xf32> -> vector<2x256xf32>
    %59 = vector.broadcast %53 : vector<1x256xf32> to vector<2x256xf32>
    %60 = arith.addf %59, %58 : vector<2x256xf32>
    %c5_59 = arith.constant 5 : index
    %c0_60 = arith.constant 0 : index
    %c0_61 = arith.constant 0 : index
    %61 = vector.load %arg1[%c5_59, %c0_60, %c0_61] : memref<36x2x144xbf16, #tpu.memory_space<vmem>>, vector<1x2x144xbf16>
    %62 = vector.shape_cast %61 : vector<1x2x144xbf16> to vector<2x144xbf16>
    %c1_62 = arith.constant 1 : index
    %c0_63 = arith.constant 0 : index
    %c0_64 = arith.constant 0 : index
    %63 = vector.load %arg2[%c1_62, %c0_63, %c0_64] : memref<8x144x256xbf16, #tpu.memory_space<vmem>>, vector<1x144x256xbf16>
    %64 = vector.shape_cast %63 : vector<1x144x256xbf16> to vector<144x256xbf16>
    %cst_65 = arith.constant dense<0.000000e+00> : vector<2x256xf32>
    %65 = tpu.matmul %62, %64, %cst_65 {dimension_numbers = #tpu.dot_dimension_numbers<[1], [0], [0], [1], [0, 0, 1, 1], [], []>} : vector<2x144xbf16>, vector<144x256xbf16>, vector<2x256xf32> -> vector<2x256xf32>
    %66 = arith.addf %60, %65 : vector<2x256xf32>
    %c6_66 = arith.constant 6 : index
    %c0_67 = arith.constant 0 : index
    %c0_68 = arith.constant 0 : index
    %67 = vector.load %arg1[%c6_66, %c0_67, %c0_68] : memref<36x2x144xbf16, #tpu.memory_space<vmem>>, vector<1x2x144xbf16>
    %68 = vector.shape_cast %67 : vector<1x2x144xbf16> to vector<2x144xbf16>
    %c2_69 = arith.constant 2 : index
    %c0_70 = arith.constant 0 : index
    %c0_71 = arith.constant 0 : index
    %69 = vector.load %arg2[%c2_69, %c0_70, %c0_71] : memref<8x144x256xbf16, #tpu.memory_space<vmem>>, vector<1x144x256xbf16>
    %70 = vector.shape_cast %69 : vector<1x144x256xbf16> to vector<144x256xbf16>
    %cst_72 = arith.constant dense<0.000000e+00> : vector<2x256xf32>
    %71 = tpu.matmul %68, %70, %cst_72 {dimension_numbers = #tpu.dot_dimension_numbers<[1], [0], [0], [1], [0, 0, 1, 1], [], []>} : vector<2x144xbf16>, vector<144x256xbf16>, vector<2x256xf32> -> vector<2x256xf32>
    %72 = arith.addf %66, %71 : vector<2x256xf32>
    %c7_73 = arith.constant 7 : index
    %c0_74 = arith.constant 0 : index
    %c0_75 = arith.constant 0 : index
    %73 = vector.load %arg1[%c7_73, %c0_74, %c0_75] : memref<36x2x144xbf16, #tpu.memory_space<vmem>>, vector<1x2x144xbf16>
    %74 = vector.shape_cast %73 : vector<1x2x144xbf16> to vector<2x144xbf16>
    %c3_76 = arith.constant 3 : index
    %c0_77 = arith.constant 0 : index
    %c0_78 = arith.constant 0 : index
    %75 = vector.load %arg2[%c3_76, %c0_77, %c0_78] : memref<8x144x256xbf16, #tpu.memory_space<vmem>>, vector<1x144x256xbf16>
    %76 = vector.shape_cast %75 : vector<1x144x256xbf16> to vector<144x256xbf16>
    %cst_79 = arith.constant dense<0.000000e+00> : vector<2x256xf32>
    %77 = tpu.matmul %74, %76, %cst_79 {dimension_numbers = #tpu.dot_dimension_numbers<[1], [0], [0], [1], [0, 0, 1, 1], [], []>} : vector<2x144xbf16>, vector<144x256xbf16>, vector<2x256xf32> -> vector<2x256xf32>
    %78 = arith.addf %72, %77 : vector<2x256xf32>
    %c8 = arith.constant 8 : index
    %c0_80 = arith.constant 0 : index
    %c0_81 = arith.constant 0 : index
    %79 = vector.load %arg1[%c8, %c0_80, %c0_81] : memref<36x2x144xbf16, #tpu.memory_space<vmem>>, vector<1x2x144xbf16>
    %80 = vector.shape_cast %79 : vector<1x2x144xbf16> to vector<2x144xbf16>
    %c4_82 = arith.constant 4 : index
    %c0_83 = arith.constant 0 : index
    %c0_84 = arith.constant 0 : index
    %81 = vector.load %arg2[%c4_82, %c0_83, %c0_84] : memref<8x144x256xbf16, #tpu.memory_space<vmem>>, vector<1x144x256xbf16>
    %82 = vector.shape_cast %81 : vector<1x144x256xbf16> to vector<144x256xbf16>
    %cst_85 = arith.constant dense<0.000000e+00> : vector<2x256xf32>
    %83 = tpu.matmul %80, %82, %cst_85 {dimension_numbers = #tpu.dot_dimension_numbers<[1], [0], [0], [1], [0, 0, 1, 1], [], []>} : vector<2x144xbf16>, vector<144x256xbf16>, vector<2x256xf32> -> vector<2x256xf32>
    %84 = arith.addf %78, %83 : vector<2x256xf32>
    %c9 = arith.constant 9 : index
    %c0_86 = arith.constant 0 : index
    %c0_87 = arith.constant 0 : index
    %85 = vector.load %arg1[%c9, %c0_86, %c0_87] : memref<36x2x144xbf16, #tpu.memory_space<vmem>>, vector<1x2x144xbf16>
    %86 = vector.shape_cast %85 : vector<1x2x144xbf16> to vector<2x144xbf16>
    %c5_88 = arith.constant 5 : index
    %c0_89 = arith.constant 0 : index
    %c0_90 = arith.constant 0 : index
    %87 = vector.load %arg2[%c5_88, %c0_89, %c0_90] : memref<8x144x256xbf16, #tpu.memory_space<vmem>>, vector<1x144x256xbf16>
    %88 = vector.shape_cast %87 : vector<1x144x256xbf16> to vector<144x256xbf16>
    %cst_91 = arith.constant dense<0.000000e+00> : vector<2x256xf32>
    %89 = tpu.matmul %86, %88, %cst_91 {dimension_numbers = #tpu.dot_dimension_numbers<[1], [0], [0], [1], [0, 0, 1, 1], [], []>} : vector<2x144xbf16>, vector<144x256xbf16>, vector<2x256xf32> -> vector<2x256xf32>
    %90 = arith.addf %84, %89 : vector<2x256xf32>
    %c10 = arith.constant 10 : index
    %c0_92 = arith.constant 0 : index
    %c0_93 = arith.constant 0 : index
    %91 = vector.load %arg1[%c10, %c0_92, %c0_93] : memref<36x2x144xbf16, #tpu.memory_space<vmem>>, vector<1x2x144xbf16>
    %92 = vector.shape_cast %91 : vector<1x2x144xbf16> to vector<2x144xbf16>
    %c6_94 = arith.constant 6 : index
    %c0_95 = arith.constant 0 : index
    %c0_96 = arith.constant 0 : index
    %93 = vector.load %arg2[%c6_94, %c0_95, %c0_96] : memref<8x144x256xbf16, #tpu.memory_space<vmem>>, vector<1x144x256xbf16>
    %94 = vector.shape_cast %93 : vector<1x144x256xbf16> to vector<144x256xbf16>
    %cst_97 = arith.constant dense<0.000000e+00> : vector<2x256xf32>
    %95 = tpu.matmul %92, %94, %cst_97 {dimension_numbers = #tpu.dot_dimension_numbers<[1], [0], [0], [1], [0, 0, 1, 1], [], []>} : vector<2x144xbf16>, vector<144x256xbf16>, vector<2x256xf32> -> vector<2x256xf32>
    %96 = arith.addf %90, %95 : vector<2x256xf32>
    %c11 = arith.constant 11 : index
    %c0_98 = arith.constant 0 : index
    %c0_99 = arith.constant 0 : index
    %97 = vector.load %arg1[%c11, %c0_98, %c0_99] : memref<36x2x144xbf16, #tpu.memory_space<vmem>>, vector<1x2x144xbf16>
    %98 = vector.shape_cast %97 : vector<1x2x144xbf16> to vector<2x144xbf16>
    %c7_100 = arith.constant 7 : index
    %c0_101 = arith.constant 0 : index
    %c0_102 = arith.constant 0 : index
    %99 = vector.load %arg2[%c7_100, %c0_101, %c0_102] : memref<8x144x256xbf16, #tpu.memory_space<vmem>>, vector<1x144x256xbf16>
    %100 = vector.shape_cast %99 : vector<1x144x256xbf16> to vector<144x256xbf16>
    %cst_103 = arith.constant dense<0.000000e+00> : vector<2x256xf32>
    %101 = tpu.matmul %98, %100, %cst_103 {dimension_numbers = #tpu.dot_dimension_numbers<[1], [0], [0], [1], [0, 0, 1, 1], [], []>} : vector<2x144xbf16>, vector<144x256xbf16>, vector<2x256xf32> -> vector<2x256xf32>
    %102 = arith.addf %96, %101 : vector<2x256xf32>
    %cst_104 = arith.constant 0.000000e+00 : f32
    %103 = vector.broadcast %cst_104 : f32 to vector<2x256xf32>
    %104 = arith.maximumf %102, %103 : vector<2x256xf32>
    %105 = arith.truncf %104 : vector<2x256xf32> to vector<2x256xbf16>
    %c0_105 = arith.constant 0 : index
    %c0_106 = arith.constant 0 : index
    %106 = vector.load %arg3[%c0_105, %c0_106] : memref<1x256xf32, #tpu.memory_space<vmem>>, vector<1x256xf32>
    %c8_107 = arith.constant 8 : index
    %c0_108 = arith.constant 0 : index
    %c0_109 = arith.constant 0 : index
    %107 = vector.load %arg1[%c8_107, %c0_108, %c0_109] : memref<36x2x144xbf16, #tpu.memory_space<vmem>>, vector<1x2x144xbf16>
    %108 = vector.shape_cast %107 : vector<1x2x144xbf16> to vector<2x144xbf16>
    %c0_110 = arith.constant 0 : index
    %c0_111 = arith.constant 0 : index
    %c0_112 = arith.constant 0 : index
    %109 = vector.load %arg2[%c0_110, %c0_111, %c0_112] : memref<8x144x256xbf16, #tpu.memory_space<vmem>>, vector<1x144x256xbf16>
    %110 = vector.shape_cast %109 : vector<1x144x256xbf16> to vector<144x256xbf16>
    %cst_113 = arith.constant dense<0.000000e+00> : vector<2x256xf32>
    %111 = tpu.matmul %108, %110, %cst_113 {dimension_numbers = #tpu.dot_dimension_numbers<[1], [0], [0], [1], [0, 0, 1, 1], [], []>} : vector<2x144xbf16>, vector<144x256xbf16>, vector<2x256xf32> -> vector<2x256xf32>
    %112 = vector.broadcast %106 : vector<1x256xf32> to vector<2x256xf32>
    %113 = arith.addf %112, %111 : vector<2x256xf32>
    %c9_114 = arith.constant 9 : index
    %c0_115 = arith.constant 0 : index
    %c0_116 = arith.constant 0 : index
    %114 = vector.load %arg1[%c9_114, %c0_115, %c0_116] : memref<36x2x144xbf16, #tpu.memory_space<vmem>>, vector<1x2x144xbf16>
    %115 = vector.shape_cast %114 : vector<1x2x144xbf16> to vector<2x144xbf16>
    %c1_117 = arith.constant 1 : index
    %c0_118 = arith.constant 0 : index
    %c0_119 = arith.constant 0 : index
    %116 = vector.load %arg2[%c1_117, %c0_118, %c0_119] : memref<8x144x256xbf16, #tpu.memory_space<vmem>>, vector<1x144x256xbf16>
    %117 = vector.shape_cast %116 : vector<1x144x256xbf16> to vector<144x256xbf16>
    %cst_120 = arith.constant dense<0.000000e+00> : vector<2x256xf32>
    %118 = tpu.matmul %115, %117, %cst_120 {dimension_numbers = #tpu.dot_dimension_numbers<[1], [0], [0], [1], [0, 0, 1, 1], [], []>} : vector<2x144xbf16>, vector<144x256xbf16>, vector<2x256xf32> -> vector<2x256xf32>
    %119 = arith.addf %113, %118 : vector<2x256xf32>
    %c10_121 = arith.constant 10 : index
    %c0_122 = arith.constant 0 : index
    %c0_123 = arith.constant 0 : index
    %120 = vector.load %arg1[%c10_121, %c0_122, %c0_123] : memref<36x2x144xbf16, #tpu.memory_space<vmem>>, vector<1x2x144xbf16>
    %121 = vector.shape_cast %120 : vector<1x2x144xbf16> to vector<2x144xbf16>
    %c2_124 = arith.constant 2 : index
    %c0_125 = arith.constant 0 : index
    %c0_126 = arith.constant 0 : index
    %122 = vector.load %arg2[%c2_124, %c0_125, %c0_126] : memref<8x144x256xbf16, #tpu.memory_space<vmem>>, vector<1x144x256xbf16>
    %123 = vector.shape_cast %122 : vector<1x144x256xbf16> to vector<144x256xbf16>
    %cst_127 = arith.constant dense<0.000000e+00> : vector<2x256xf32>
    %124 = tpu.matmul %121, %123, %cst_127 {dimension_numbers = #tpu.dot_dimension_numbers<[1], [0], [0], [1], [0, 0, 1, 1], [], []>} : vector<2x144xbf16>, vector<144x256xbf16>, vector<2x256xf32> -> vector<2x256xf32>
    %125 = arith.addf %119, %124 : vector<2x256xf32>
    %c11_128 = arith.constant 11 : index
    %c0_129 = arith.constant 0 : index
    %c0_130 = arith.constant 0 : index
    %126 = vector.load %arg1[%c11_128, %c0_129, %c0_130] : memref<36x2x144xbf16, #tpu.memory_space<vmem>>, vector<1x2x144xbf16>
    %127 = vector.shape_cast %126 : vector<1x2x144xbf16> to vector<2x144xbf16>
    %c3_131 = arith.constant 3 : index
    %c0_132 = arith.constant 0 : index
    %c0_133 = arith.constant 0 : index
    %128 = vector.load %arg2[%c3_131, %c0_132, %c0_133] : memref<8x144x256xbf16, #tpu.memory_space<vmem>>, vector<1x144x256xbf16>
    %129 = vector.shape_cast %128 : vector<1x144x256xbf16> to vector<144x256xbf16>
    %cst_134 = arith.constant dense<0.000000e+00> : vector<2x256xf32>
    %130 = tpu.matmul %127, %129, %cst_134 {dimension_numbers = #tpu.dot_dimension_numbers<[1], [0], [0], [1], [0, 0, 1, 1], [], []>} : vector<2x144xbf16>, vector<144x256xbf16>, vector<2x256xf32> -> vector<2x256xf32>
    %131 = arith.addf %125, %130 : vector<2x256xf32>
    %c12 = arith.constant 12 : index
    %c0_135 = arith.constant 0 : index
    %c0_136 = arith.constant 0 : index
    %132 = vector.load %arg1[%c12, %c0_135, %c0_136] : memref<36x2x144xbf16, #tpu.memory_space<vmem>>, vector<1x2x144xbf16>
    %133 = vector.shape_cast %132 : vector<1x2x144xbf16> to vector<2x144xbf16>
    %c4_137 = arith.constant 4 : index
    %c0_138 = arith.constant 0 : index
    %c0_139 = arith.constant 0 : index
    %134 = vector.load %arg2[%c4_137, %c0_138, %c0_139] : memref<8x144x256xbf16, #tpu.memory_space<vmem>>, vector<1x144x256xbf16>
    %135 = vector.shape_cast %134 : vector<1x144x256xbf16> to vector<144x256xbf16>
    %cst_140 = arith.constant dense<0.000000e+00> : vector<2x256xf32>
    %136 = tpu.matmul %133, %135, %cst_140 {dimension_numbers = #tpu.dot_dimension_numbers<[1], [0], [0], [1], [0, 0, 1, 1], [], []>} : vector<2x144xbf16>, vector<144x256xbf16>, vector<2x256xf32> -> vector<2x256xf32>
    %137 = arith.addf %131, %136 : vector<2x256xf32>
    %c13 = arith.constant 13 : index
    %c0_141 = arith.constant 0 : index
    %c0_142 = arith.constant 0 : index
    %138 = vector.load %arg1[%c13, %c0_141, %c0_142] : memref<36x2x144xbf16, #tpu.memory_space<vmem>>, vector<1x2x144xbf16>
    %139 = vector.shape_cast %138 : vector<1x2x144xbf16> to vector<2x144xbf16>
    %c5_143 = arith.constant 5 : index
    %c0_144 = arith.constant 0 : index
    %c0_145 = arith.constant 0 : index
    %140 = vector.load %arg2[%c5_143, %c0_144, %c0_145] : memref<8x144x256xbf16, #tpu.memory_space<vmem>>, vector<1x144x256xbf16>
    %141 = vector.shape_cast %140 : vector<1x144x256xbf16> to vector<144x256xbf16>
    %cst_146 = arith.constant dense<0.000000e+00> : vector<2x256xf32>
    %142 = tpu.matmul %139, %141, %cst_146 {dimension_numbers = #tpu.dot_dimension_numbers<[1], [0], [0], [1], [0, 0, 1, 1], [], []>} : vector<2x144xbf16>, vector<144x256xbf16>, vector<2x256xf32> -> vector<2x256xf32>
    %143 = arith.addf %137, %142 : vector<2x256xf32>
    %c14 = arith.constant 14 : index
    %c0_147 = arith.constant 0 : index
    %c0_148 = arith.constant 0 : index
    %144 = vector.load %arg1[%c14, %c0_147, %c0_148] : memref<36x2x144xbf16, #tpu.memory_space<vmem>>, vector<1x2x144xbf16>
    %145 = vector.shape_cast %144 : vector<1x2x144xbf16> to vector<2x144xbf16>
    %c6_149 = arith.constant 6 : index
    %c0_150 = arith.constant 0 : index
    %c0_151 = arith.constant 0 : index
    %146 = vector.load %arg2[%c6_149, %c0_150, %c0_151] : memref<8x144x256xbf16, #tpu.memory_space<vmem>>, vector<1x144x256xbf16>
    %147 = vector.shape_cast %146 : vector<1x144x256xbf16> to vector<144x256xbf16>
    %cst_152 = arith.constant dense<0.000000e+00> : vector<2x256xf32>
    %148 = tpu.matmul %145, %147, %cst_152 {dimension_numbers = #tpu.dot_dimension_numbers<[1], [0], [0], [1], [0, 0, 1, 1], [], []>} : vector<2x144xbf16>, vector<144x256xbf16>, vector<2x256xf32> -> vector<2x256xf32>
    %149 = arith.addf %143, %148 : vector<2x256xf32>
    %c15 = arith.constant 15 : index
    %c0_153 = arith.constant 0 : index
    %c0_154 = arith.constant 0 : index
    %150 = vector.load %arg1[%c15, %c0_153, %c0_154] : memref<36x2x144xbf16, #tpu.memory_space<vmem>>, vector<1x2x144xbf16>
    %151 = vector.shape_cast %150 : vector<1x2x144xbf16> to vector<2x144xbf16>
    %c7_155 = arith.constant 7 : index
    %c0_156 = arith.constant 0 : index
    %c0_157 = arith.constant 0 : index
    %152 = vector.load %arg2[%c7_155, %c0_156, %c0_157] : memref<8x144x256xbf16, #tpu.memory_space<vmem>>, vector<1x144x256xbf16>
    %153 = vector.shape_cast %152 : vector<1x144x256xbf16> to vector<144x256xbf16>
    %cst_158 = arith.constant dense<0.000000e+00> : vector<2x256xf32>
    %154 = tpu.matmul %151, %153, %cst_158 {dimension_numbers = #tpu.dot_dimension_numbers<[1], [0], [0], [1], [0, 0, 1, 1], [], []>} : vector<2x144xbf16>, vector<144x256xbf16>, vector<2x256xf32> -> vector<2x256xf32>
    %155 = arith.addf %149, %154 : vector<2x256xf32>
    %cst_159 = arith.constant 0.000000e+00 : f32
    %156 = vector.broadcast %cst_159 : f32 to vector<2x256xf32>
    %157 = arith.maximumf %155, %156 : vector<2x256xf32>
    %158 = arith.truncf %157 : vector<2x256xf32> to vector<2x256xbf16>
    %c0_160 = arith.constant 0 : index
    %c0_161 = arith.constant 0 : index
    %159 = vector.load %arg3[%c0_160, %c0_161] : memref<1x256xf32, #tpu.memory_space<vmem>>, vector<1x256xf32>
    %c12_162 = arith.constant 12 : index
    %c0_163 = arith.constant 0 : index
    %c0_164 = arith.constant 0 : index
    %160 = vector.load %arg1[%c12_162, %c0_163, %c0_164] : memref<36x2x144xbf16, #tpu.memory_space<vmem>>, vector<1x2x144xbf16>
    %161 = vector.shape_cast %160 : vector<1x2x144xbf16> to vector<2x144xbf16>
    %c0_165 = arith.constant 0 : index
    %c0_166 = arith.constant 0 : index
    %c0_167 = arith.constant 0 : index
    %162 = vector.load %arg2[%c0_165, %c0_166, %c0_167] : memref<8x144x256xbf16, #tpu.memory_space<vmem>>, vector<1x144x256xbf16>
    %163 = vector.shape_cast %162 : vector<1x144x256xbf16> to vector<144x256xbf16>
    %cst_168 = arith.constant dense<0.000000e+00> : vector<2x256xf32>
    %164 = tpu.matmul %161, %163, %cst_168 {dimension_numbers = #tpu.dot_dimension_numbers<[1], [0], [0], [1], [0, 0, 1, 1], [], []>} : vector<2x144xbf16>, vector<144x256xbf16>, vector<2x256xf32> -> vector<2x256xf32>
    %165 = vector.broadcast %159 : vector<1x256xf32> to vector<2x256xf32>
    %166 = arith.addf %165, %164 : vector<2x256xf32>
    %c13_169 = arith.constant 13 : index
    %c0_170 = arith.constant 0 : index
    %c0_171 = arith.constant 0 : index
    %167 = vector.load %arg1[%c13_169, %c0_170, %c0_171] : memref<36x2x144xbf16, #tpu.memory_space<vmem>>, vector<1x2x144xbf16>
    %168 = vector.shape_cast %167 : vector<1x2x144xbf16> to vector<2x144xbf16>
    %c1_172 = arith.constant 1 : index
    %c0_173 = arith.constant 0 : index
    %c0_174 = arith.constant 0 : index
    %169 = vector.load %arg2[%c1_172, %c0_173, %c0_174] : memref<8x144x256xbf16, #tpu.memory_space<vmem>>, vector<1x144x256xbf16>
    %170 = vector.shape_cast %169 : vector<1x144x256xbf16> to vector<144x256xbf16>
    %cst_175 = arith.constant dense<0.000000e+00> : vector<2x256xf32>
    %171 = tpu.matmul %168, %170, %cst_175 {dimension_numbers = #tpu.dot_dimension_numbers<[1], [0], [0], [1], [0, 0, 1, 1], [], []>} : vector<2x144xbf16>, vector<144x256xbf16>, vector<2x256xf32> -> vector<2x256xf32>
    %172 = arith.addf %166, %171 : vector<2x256xf32>
    %c14_176 = arith.constant 14 : index
    %c0_177 = arith.constant 0 : index
    %c0_178 = arith.constant 0 : index
    %173 = vector.load %arg1[%c14_176, %c0_177, %c0_178] : memref<36x2x144xbf16, #tpu.memory_space<vmem>>, vector<1x2x144xbf16>
    %174 = vector.shape_cast %173 : vector<1x2x144xbf16> to vector<2x144xbf16>
    %c2_179 = arith.constant 2 : index
    %c0_180 = arith.constant 0 : index
    %c0_181 = arith.constant 0 : index
    %175 = vector.load %arg2[%c2_179, %c0_180, %c0_181] : memref<8x144x256xbf16, #tpu.memory_space<vmem>>, vector<1x144x256xbf16>
    %176 = vector.shape_cast %175 : vector<1x144x256xbf16> to vector<144x256xbf16>
    %cst_182 = arith.constant dense<0.000000e+00> : vector<2x256xf32>
    %177 = tpu.matmul %174, %176, %cst_182 {dimension_numbers = #tpu.dot_dimension_numbers<[1], [0], [0], [1], [0, 0, 1, 1], [], []>} : vector<2x144xbf16>, vector<144x256xbf16>, vector<2x256xf32> -> vector<2x256xf32>
    %178 = arith.addf %172, %177 : vector<2x256xf32>
    %c15_183 = arith.constant 15 : index
    %c0_184 = arith.constant 0 : index
    %c0_185 = arith.constant 0 : index
    %179 = vector.load %arg1[%c15_183, %c0_184, %c0_185] : memref<36x2x144xbf16, #tpu.memory_space<vmem>>, vector<1x2x144xbf16>
    %180 = vector.shape_cast %179 : vector<1x2x144xbf16> to vector<2x144xbf16>
    %c3_186 = arith.constant 3 : index
    %c0_187 = arith.constant 0 : index
    %c0_188 = arith.constant 0 : index
    %181 = vector.load %arg2[%c3_186, %c0_187, %c0_188] : memref<8x144x256xbf16, #tpu.memory_space<vmem>>, vector<1x144x256xbf16>
    %182 = vector.shape_cast %181 : vector<1x144x256xbf16> to vector<144x256xbf16>
    %cst_189 = arith.constant dense<0.000000e+00> : vector<2x256xf32>
    %183 = tpu.matmul %180, %182, %cst_189 {dimension_numbers = #tpu.dot_dimension_numbers<[1], [0], [0], [1], [0, 0, 1, 1], [], []>} : vector<2x144xbf16>, vector<144x256xbf16>, vector<2x256xf32> -> vector<2x256xf32>
    %184 = arith.addf %178, %183 : vector<2x256xf32>
    %c16 = arith.constant 16 : index
    %c0_190 = arith.constant 0 : index
    %c0_191 = arith.constant 0 : index
    %185 = vector.load %arg1[%c16, %c0_190, %c0_191] : memref<36x2x144xbf16, #tpu.memory_space<vmem>>, vector<1x2x144xbf16>
    %186 = vector.shape_cast %185 : vector<1x2x144xbf16> to vector<2x144xbf16>
    %c4_192 = arith.constant 4 : index
    %c0_193 = arith.constant 0 : index
    %c0_194 = arith.constant 0 : index
    %187 = vector.load %arg2[%c4_192, %c0_193, %c0_194] : memref<8x144x256xbf16, #tpu.memory_space<vmem>>, vector<1x144x256xbf16>
    %188 = vector.shape_cast %187 : vector<1x144x256xbf16> to vector<144x256xbf16>
    %cst_195 = arith.constant dense<0.000000e+00> : vector<2x256xf32>
    %189 = tpu.matmul %186, %188, %cst_195 {dimension_numbers = #tpu.dot_dimension_numbers<[1], [0], [0], [1], [0, 0, 1, 1], [], []>} : vector<2x144xbf16>, vector<144x256xbf16>, vector<2x256xf32> -> vector<2x256xf32>
    %190 = arith.addf %184, %189 : vector<2x256xf32>
    %c17 = arith.constant 17 : index
    %c0_196 = arith.constant 0 : index
    %c0_197 = arith.constant 0 : index
    %191 = vector.load %arg1[%c17, %c0_196, %c0_197] : memref<36x2x144xbf16, #tpu.memory_space<vmem>>, vector<1x2x144xbf16>
    %192 = vector.shape_cast %191 : vector<1x2x144xbf16> to vector<2x144xbf16>
    %c5_198 = arith.constant 5 : index
    %c0_199 = arith.constant 0 : index
    %c0_200 = arith.constant 0 : index
    %193 = vector.load %arg2[%c5_198, %c0_199, %c0_200] : memref<8x144x256xbf16, #tpu.memory_space<vmem>>, vector<1x144x256xbf16>
    %194 = vector.shape_cast %193 : vector<1x144x256xbf16> to vector<144x256xbf16>
    %cst_201 = arith.constant dense<0.000000e+00> : vector<2x256xf32>
    %195 = tpu.matmul %192, %194, %cst_201 {dimension_numbers = #tpu.dot_dimension_numbers<[1], [0], [0], [1], [0, 0, 1, 1], [], []>} : vector<2x144xbf16>, vector<144x256xbf16>, vector<2x256xf32> -> vector<2x256xf32>
    %196 = arith.addf %190, %195 : vector<2x256xf32>
    %c18 = arith.constant 18 : index
    %c0_202 = arith.constant 0 : index
    %c0_203 = arith.constant 0 : index
    %197 = vector.load %arg1[%c18, %c0_202, %c0_203] : memref<36x2x144xbf16, #tpu.memory_space<vmem>>, vector<1x2x144xbf16>
    %198 = vector.shape_cast %197 : vector<1x2x144xbf16> to vector<2x144xbf16>
    %c6_204 = arith.constant 6 : index
    %c0_205 = arith.constant 0 : index
    %c0_206 = arith.constant 0 : index
    %199 = vector.load %arg2[%c6_204, %c0_205, %c0_206] : memref<8x144x256xbf16, #tpu.memory_space<vmem>>, vector<1x144x256xbf16>
    %200 = vector.shape_cast %199 : vector<1x144x256xbf16> to vector<144x256xbf16>
    %cst_207 = arith.constant dense<0.000000e+00> : vector<2x256xf32>
    %201 = tpu.matmul %198, %200, %cst_207 {dimension_numbers = #tpu.dot_dimension_numbers<[1], [0], [0], [1], [0, 0, 1, 1], [], []>} : vector<2x144xbf16>, vector<144x256xbf16>, vector<2x256xf32> -> vector<2x256xf32>
    %202 = arith.addf %196, %201 : vector<2x256xf32>
    %c19 = arith.constant 19 : index
    %c0_208 = arith.constant 0 : index
    %c0_209 = arith.constant 0 : index
    %203 = vector.load %arg1[%c19, %c0_208, %c0_209] : memref<36x2x144xbf16, #tpu.memory_space<vmem>>, vector<1x2x144xbf16>
    %204 = vector.shape_cast %203 : vector<1x2x144xbf16> to vector<2x144xbf16>
    %c7_210 = arith.constant 7 : index
    %c0_211 = arith.constant 0 : index
    %c0_212 = arith.constant 0 : index
    %205 = vector.load %arg2[%c7_210, %c0_211, %c0_212] : memref<8x144x256xbf16, #tpu.memory_space<vmem>>, vector<1x144x256xbf16>
    %206 = vector.shape_cast %205 : vector<1x144x256xbf16> to vector<144x256xbf16>
    %cst_213 = arith.constant dense<0.000000e+00> : vector<2x256xf32>
    %207 = tpu.matmul %204, %206, %cst_213 {dimension_numbers = #tpu.dot_dimension_numbers<[1], [0], [0], [1], [0, 0, 1, 1], [], []>} : vector<2x144xbf16>, vector<144x256xbf16>, vector<2x256xf32> -> vector<2x256xf32>
    %208 = arith.addf %202, %207 : vector<2x256xf32>
    %cst_214 = arith.constant 0.000000e+00 : f32
    %209 = vector.broadcast %cst_214 : f32 to vector<2x256xf32>
    %210 = arith.maximumf %208, %209 : vector<2x256xf32>
    %211 = arith.truncf %210 : vector<2x256xf32> to vector<2x256xbf16>
    %c0_215 = arith.constant 0 : index
    %c0_216 = arith.constant 0 : index
    %212 = vector.load %arg3[%c0_215, %c0_216] : memref<1x256xf32, #tpu.memory_space<vmem>>, vector<1x256xf32>
    %c16_217 = arith.constant 16 : index
    %c0_218 = arith.constant 0 : index
    %c0_219 = arith.constant 0 : index
    %213 = vector.load %arg1[%c16_217, %c0_218, %c0_219] : memref<36x2x144xbf16, #tpu.memory_space<vmem>>, vector<1x2x144xbf16>
    %214 = vector.shape_cast %213 : vector<1x2x144xbf16> to vector<2x144xbf16>
    %c0_220 = arith.constant 0 : index
    %c0_221 = arith.constant 0 : index
    %c0_222 = arith.constant 0 : index
    %215 = vector.load %arg2[%c0_220, %c0_221, %c0_222] : memref<8x144x256xbf16, #tpu.memory_space<vmem>>, vector<1x144x256xbf16>
    %216 = vector.shape_cast %215 : vector<1x144x256xbf16> to vector<144x256xbf16>
    %cst_223 = arith.constant dense<0.000000e+00> : vector<2x256xf32>
    %217 = tpu.matmul %214, %216, %cst_223 {dimension_numbers = #tpu.dot_dimension_numbers<[1], [0], [0], [1], [0, 0, 1, 1], [], []>} : vector<2x144xbf16>, vector<144x256xbf16>, vector<2x256xf32> -> vector<2x256xf32>
    %218 = vector.broadcast %212 : vector<1x256xf32> to vector<2x256xf32>
    %219 = arith.addf %218, %217 : vector<2x256xf32>
    %c17_224 = arith.constant 17 : index
    %c0_225 = arith.constant 0 : index
    %c0_226 = arith.constant 0 : index
    %220 = vector.load %arg1[%c17_224, %c0_225, %c0_226] : memref<36x2x144xbf16, #tpu.memory_space<vmem>>, vector<1x2x144xbf16>
    %221 = vector.shape_cast %220 : vector<1x2x144xbf16> to vector<2x144xbf16>
    %c1_227 = arith.constant 1 : index
    %c0_228 = arith.constant 0 : index
    %c0_229 = arith.constant 0 : index
    %222 = vector.load %arg2[%c1_227, %c0_228, %c0_229] : memref<8x144x256xbf16, #tpu.memory_space<vmem>>, vector<1x144x256xbf16>
    %223 = vector.shape_cast %222 : vector<1x144x256xbf16> to vector<144x256xbf16>
    %cst_230 = arith.constant dense<0.000000e+00> : vector<2x256xf32>
    %224 = tpu.matmul %221, %223, %cst_230 {dimension_numbers = #tpu.dot_dimension_numbers<[1], [0], [0], [1], [0, 0, 1, 1], [], []>} : vector<2x144xbf16>, vector<144x256xbf16>, vector<2x256xf32> -> vector<2x256xf32>
    %225 = arith.addf %219, %224 : vector<2x256xf32>
    %c18_231 = arith.constant 18 : index
    %c0_232 = arith.constant 0 : index
    %c0_233 = arith.constant 0 : index
    %226 = vector.load %arg1[%c18_231, %c0_232, %c0_233] : memref<36x2x144xbf16, #tpu.memory_space<vmem>>, vector<1x2x144xbf16>
    %227 = vector.shape_cast %226 : vector<1x2x144xbf16> to vector<2x144xbf16>
    %c2_234 = arith.constant 2 : index
    %c0_235 = arith.constant 0 : index
    %c0_236 = arith.constant 0 : index
    %228 = vector.load %arg2[%c2_234, %c0_235, %c0_236] : memref<8x144x256xbf16, #tpu.memory_space<vmem>>, vector<1x144x256xbf16>
    %229 = vector.shape_cast %228 : vector<1x144x256xbf16> to vector<144x256xbf16>
    %cst_237 = arith.constant dense<0.000000e+00> : vector<2x256xf32>
    %230 = tpu.matmul %227, %229, %cst_237 {dimension_numbers = #tpu.dot_dimension_numbers<[1], [0], [0], [1], [0, 0, 1, 1], [], []>} : vector<2x144xbf16>, vector<144x256xbf16>, vector<2x256xf32> -> vector<2x256xf32>
    %231 = arith.addf %225, %230 : vector<2x256xf32>
    %c19_238 = arith.constant 19 : index
    %c0_239 = arith.constant 0 : index
    %c0_240 = arith.constant 0 : index
    %232 = vector.load %arg1[%c19_238, %c0_239, %c0_240] : memref<36x2x144xbf16, #tpu.memory_space<vmem>>, vector<1x2x144xbf16>
    %233 = vector.shape_cast %232 : vector<1x2x144xbf16> to vector<2x144xbf16>
    %c3_241 = arith.constant 3 : index
    %c0_242 = arith.constant 0 : index
    %c0_243 = arith.constant 0 : index
    %234 = vector.load %arg2[%c3_241, %c0_242, %c0_243] : memref<8x144x256xbf16, #tpu.memory_space<vmem>>, vector<1x144x256xbf16>
    %235 = vector.shape_cast %234 : vector<1x144x256xbf16> to vector<144x256xbf16>
    %cst_244 = arith.constant dense<0.000000e+00> : vector<2x256xf32>
    %236 = tpu.matmul %233, %235, %cst_244 {dimension_numbers = #tpu.dot_dimension_numbers<[1], [0], [0], [1], [0, 0, 1, 1], [], []>} : vector<2x144xbf16>, vector<144x256xbf16>, vector<2x256xf32> -> vector<2x256xf32>
    %237 = arith.addf %231, %236 : vector<2x256xf32>
    %c20 = arith.constant 20 : index
    %c0_245 = arith.constant 0 : index
    %c0_246 = arith.constant 0 : index
    %238 = vector.load %arg1[%c20, %c0_245, %c0_246] : memref<36x2x144xbf16, #tpu.memory_space<vmem>>, vector<1x2x144xbf16>
    %239 = vector.shape_cast %238 : vector<1x2x144xbf16> to vector<2x144xbf16>
    %c4_247 = arith.constant 4 : index
    %c0_248 = arith.constant 0 : index
    %c0_249 = arith.constant 0 : index
    %240 = vector.load %arg2[%c4_247, %c0_248, %c0_249] : memref<8x144x256xbf16, #tpu.memory_space<vmem>>, vector<1x144x256xbf16>
    %241 = vector.shape_cast %240 : vector<1x144x256xbf16> to vector<144x256xbf16>
    %cst_250 = arith.constant dense<0.000000e+00> : vector<2x256xf32>
    %242 = tpu.matmul %239, %241, %cst_250 {dimension_numbers = #tpu.dot_dimension_numbers<[1], [0], [0], [1], [0, 0, 1, 1], [], []>} : vector<2x144xbf16>, vector<144x256xbf16>, vector<2x256xf32> -> vector<2x256xf32>
    %243 = arith.addf %237, %242 : vector<2x256xf32>
    %c21 = arith.constant 21 : index
    %c0_251 = arith.constant 0 : index
    %c0_252 = arith.constant 0 : index
    %244 = vector.load %arg1[%c21, %c0_251, %c0_252] : memref<36x2x144xbf16, #tpu.memory_space<vmem>>, vector<1x2x144xbf16>
    %245 = vector.shape_cast %244 : vector<1x2x144xbf16> to vector<2x144xbf16>
    %c5_253 = arith.constant 5 : index
    %c0_254 = arith.constant 0 : index
    %c0_255 = arith.constant 0 : index
    %246 = vector.load %arg2[%c5_253, %c0_254, %c0_255] : memref<8x144x256xbf16, #tpu.memory_space<vmem>>, vector<1x144x256xbf16>
    %247 = vector.shape_cast %246 : vector<1x144x256xbf16> to vector<144x256xbf16>
    %cst_256 = arith.constant dense<0.000000e+00> : vector<2x256xf32>
    %248 = tpu.matmul %245, %247, %cst_256 {dimension_numbers = #tpu.dot_dimension_numbers<[1], [0], [0], [1], [0, 0, 1, 1], [], []>} : vector<2x144xbf16>, vector<144x256xbf16>, vector<2x256xf32> -> vector<2x256xf32>
    %249 = arith.addf %243, %248 : vector<2x256xf32>
    %c22 = arith.constant 22 : index
    %c0_257 = arith.constant 0 : index
    %c0_258 = arith.constant 0 : index
    %250 = vector.load %arg1[%c22, %c0_257, %c0_258] : memref<36x2x144xbf16, #tpu.memory_space<vmem>>, vector<1x2x144xbf16>
    %251 = vector.shape_cast %250 : vector<1x2x144xbf16> to vector<2x144xbf16>
    %c6_259 = arith.constant 6 : index
    %c0_260 = arith.constant 0 : index
    %c0_261 = arith.constant 0 : index
    %252 = vector.load %arg2[%c6_259, %c0_260, %c0_261] : memref<8x144x256xbf16, #tpu.memory_space<vmem>>, vector<1x144x256xbf16>
    %253 = vector.shape_cast %252 : vector<1x144x256xbf16> to vector<144x256xbf16>
    %cst_262 = arith.constant dense<0.000000e+00> : vector<2x256xf32>
    %254 = tpu.matmul %251, %253, %cst_262 {dimension_numbers = #tpu.dot_dimension_numbers<[1], [0], [0], [1], [0, 0, 1, 1], [], []>} : vector<2x144xbf16>, vector<144x256xbf16>, vector<2x256xf32> -> vector<2x256xf32>
    %255 = arith.addf %249, %254 : vector<2x256xf32>
    %c23 = arith.constant 23 : index
    %c0_263 = arith.constant 0 : index
    %c0_264 = arith.constant 0 : index
    %256 = vector.load %arg1[%c23, %c0_263, %c0_264] : memref<36x2x144xbf16, #tpu.memory_space<vmem>>, vector<1x2x144xbf16>
    %257 = vector.shape_cast %256 : vector<1x2x144xbf16> to vector<2x144xbf16>
    %c7_265 = arith.constant 7 : index
    %c0_266 = arith.constant 0 : index
    %c0_267 = arith.constant 0 : index
    %258 = vector.load %arg2[%c7_265, %c0_266, %c0_267] : memref<8x144x256xbf16, #tpu.memory_space<vmem>>, vector<1x144x256xbf16>
    %259 = vector.shape_cast %258 : vector<1x144x256xbf16> to vector<144x256xbf16>
    %cst_268 = arith.constant dense<0.000000e+00> : vector<2x256xf32>
    %260 = tpu.matmul %257, %259, %cst_268 {dimension_numbers = #tpu.dot_dimension_numbers<[1], [0], [0], [1], [0, 0, 1, 1], [], []>} : vector<2x144xbf16>, vector<144x256xbf16>, vector<2x256xf32> -> vector<2x256xf32>
    %261 = arith.addf %255, %260 : vector<2x256xf32>
    %cst_269 = arith.constant 0.000000e+00 : f32
    %262 = vector.broadcast %cst_269 : f32 to vector<2x256xf32>
    %263 = arith.maximumf %261, %262 : vector<2x256xf32>
    %264 = arith.truncf %263 : vector<2x256xf32> to vector<2x256xbf16>
    %c0_270 = arith.constant 0 : index
    %c0_271 = arith.constant 0 : index
    %265 = vector.load %arg3[%c0_270, %c0_271] : memref<1x256xf32, #tpu.memory_space<vmem>>, vector<1x256xf32>
    %c20_272 = arith.constant 20 : index
    %c0_273 = arith.constant 0 : index
    %c0_274 = arith.constant 0 : index
    %266 = vector.load %arg1[%c20_272, %c0_273, %c0_274] : memref<36x2x144xbf16, #tpu.memory_space<vmem>>, vector<1x2x144xbf16>
    %267 = vector.shape_cast %266 : vector<1x2x144xbf16> to vector<2x144xbf16>
    %c0_275 = arith.constant 0 : index
    %c0_276 = arith.constant 0 : index
    %c0_277 = arith.constant 0 : index
    %268 = vector.load %arg2[%c0_275, %c0_276, %c0_277] : memref<8x144x256xbf16, #tpu.memory_space<vmem>>, vector<1x144x256xbf16>
    %269 = vector.shape_cast %268 : vector<1x144x256xbf16> to vector<144x256xbf16>
    %cst_278 = arith.constant dense<0.000000e+00> : vector<2x256xf32>
    %270 = tpu.matmul %267, %269, %cst_278 {dimension_numbers = #tpu.dot_dimension_numbers<[1], [0], [0], [1], [0, 0, 1, 1], [], []>} : vector<2x144xbf16>, vector<144x256xbf16>, vector<2x256xf32> -> vector<2x256xf32>
    %271 = vector.broadcast %265 : vector<1x256xf32> to vector<2x256xf32>
    %272 = arith.addf %271, %270 : vector<2x256xf32>
    %c21_279 = arith.constant 21 : index
    %c0_280 = arith.constant 0 : index
    %c0_281 = arith.constant 0 : index
    %273 = vector.load %arg1[%c21_279, %c0_280, %c0_281] : memref<36x2x144xbf16, #tpu.memory_space<vmem>>, vector<1x2x144xbf16>
    %274 = vector.shape_cast %273 : vector<1x2x144xbf16> to vector<2x144xbf16>
    %c1_282 = arith.constant 1 : index
    %c0_283 = arith.constant 0 : index
    %c0_284 = arith.constant 0 : index
    %275 = vector.load %arg2[%c1_282, %c0_283, %c0_284] : memref<8x144x256xbf16, #tpu.memory_space<vmem>>, vector<1x144x256xbf16>
    %276 = vector.shape_cast %275 : vector<1x144x256xbf16> to vector<144x256xbf16>
    %cst_285 = arith.constant dense<0.000000e+00> : vector<2x256xf32>
    %277 = tpu.matmul %274, %276, %cst_285 {dimension_numbers = #tpu.dot_dimension_numbers<[1], [0], [0], [1], [0, 0, 1, 1], [], []>} : vector<2x144xbf16>, vector<144x256xbf16>, vector<2x256xf32> -> vector<2x256xf32>
    %278 = arith.addf %272, %277 : vector<2x256xf32>
    %c22_286 = arith.constant 22 : index
    %c0_287 = arith.constant 0 : index
    %c0_288 = arith.constant 0 : index
    %279 = vector.load %arg1[%c22_286, %c0_287, %c0_288] : memref<36x2x144xbf16, #tpu.memory_space<vmem>>, vector<1x2x144xbf16>
    %280 = vector.shape_cast %279 : vector<1x2x144xbf16> to vector<2x144xbf16>
    %c2_289 = arith.constant 2 : index
    %c0_290 = arith.constant 0 : index
    %c0_291 = arith.constant 0 : index
    %281 = vector.load %arg2[%c2_289, %c0_290, %c0_291] : memref<8x144x256xbf16, #tpu.memory_space<vmem>>, vector<1x144x256xbf16>
    %282 = vector.shape_cast %281 : vector<1x144x256xbf16> to vector<144x256xbf16>
    %cst_292 = arith.constant dense<0.000000e+00> : vector<2x256xf32>
    %283 = tpu.matmul %280, %282, %cst_292 {dimension_numbers = #tpu.dot_dimension_numbers<[1], [0], [0], [1], [0, 0, 1, 1], [], []>} : vector<2x144xbf16>, vector<144x256xbf16>, vector<2x256xf32> -> vector<2x256xf32>
    %284 = arith.addf %278, %283 : vector<2x256xf32>
    %c23_293 = arith.constant 23 : index
    %c0_294 = arith.constant 0 : index
    %c0_295 = arith.constant 0 : index
    %285 = vector.load %arg1[%c23_293, %c0_294, %c0_295] : memref<36x2x144xbf16, #tpu.memory_space<vmem>>, vector<1x2x144xbf16>
    %286 = vector.shape_cast %285 : vector<1x2x144xbf16> to vector<2x144xbf16>
    %c3_296 = arith.constant 3 : index
    %c0_297 = arith.constant 0 : index
    %c0_298 = arith.constant 0 : index
    %287 = vector.load %arg2[%c3_296, %c0_297, %c0_298] : memref<8x144x256xbf16, #tpu.memory_space<vmem>>, vector<1x144x256xbf16>
    %288 = vector.shape_cast %287 : vector<1x144x256xbf16> to vector<144x256xbf16>
    %cst_299 = arith.constant dense<0.000000e+00> : vector<2x256xf32>
    %289 = tpu.matmul %286, %288, %cst_299 {dimension_numbers = #tpu.dot_dimension_numbers<[1], [0], [0], [1], [0, 0, 1, 1], [], []>} : vector<2x144xbf16>, vector<144x256xbf16>, vector<2x256xf32> -> vector<2x256xf32>
    %290 = arith.addf %284, %289 : vector<2x256xf32>
    %c24 = arith.constant 24 : index
    %c0_300 = arith.constant 0 : index
    %c0_301 = arith.constant 0 : index
    %291 = vector.load %arg1[%c24, %c0_300, %c0_301] : memref<36x2x144xbf16, #tpu.memory_space<vmem>>, vector<1x2x144xbf16>
    %292 = vector.shape_cast %291 : vector<1x2x144xbf16> to vector<2x144xbf16>
    %c4_302 = arith.constant 4 : index
    %c0_303 = arith.constant 0 : index
    %c0_304 = arith.constant 0 : index
    %293 = vector.load %arg2[%c4_302, %c0_303, %c0_304] : memref<8x144x256xbf16, #tpu.memory_space<vmem>>, vector<1x144x256xbf16>
    %294 = vector.shape_cast %293 : vector<1x144x256xbf16> to vector<144x256xbf16>
    %cst_305 = arith.constant dense<0.000000e+00> : vector<2x256xf32>
    %295 = tpu.matmul %292, %294, %cst_305 {dimension_numbers = #tpu.dot_dimension_numbers<[1], [0], [0], [1], [0, 0, 1, 1], [], []>} : vector<2x144xbf16>, vector<144x256xbf16>, vector<2x256xf32> -> vector<2x256xf32>
    %296 = arith.addf %290, %295 : vector<2x256xf32>
    %c25 = arith.constant 25 : index
    %c0_306 = arith.constant 0 : index
    %c0_307 = arith.constant 0 : index
    %297 = vector.load %arg1[%c25, %c0_306, %c0_307] : memref<36x2x144xbf16, #tpu.memory_space<vmem>>, vector<1x2x144xbf16>
    %298 = vector.shape_cast %297 : vector<1x2x144xbf16> to vector<2x144xbf16>
    %c5_308 = arith.constant 5 : index
    %c0_309 = arith.constant 0 : index
    %c0_310 = arith.constant 0 : index
    %299 = vector.load %arg2[%c5_308, %c0_309, %c0_310] : memref<8x144x256xbf16, #tpu.memory_space<vmem>>, vector<1x144x256xbf16>
    %300 = vector.shape_cast %299 : vector<1x144x256xbf16> to vector<144x256xbf16>
    %cst_311 = arith.constant dense<0.000000e+00> : vector<2x256xf32>
    %301 = tpu.matmul %298, %300, %cst_311 {dimension_numbers = #tpu.dot_dimension_numbers<[1], [0], [0], [1], [0, 0, 1, 1], [], []>} : vector<2x144xbf16>, vector<144x256xbf16>, vector<2x256xf32> -> vector<2x256xf32>
    %302 = arith.addf %296, %301 : vector<2x256xf32>
    %c26 = arith.constant 26 : index
    %c0_312 = arith.constant 0 : index
    %c0_313 = arith.constant 0 : index
    %303 = vector.load %arg1[%c26, %c0_312, %c0_313] : memref<36x2x144xbf16, #tpu.memory_space<vmem>>, vector<1x2x144xbf16>
    %304 = vector.shape_cast %303 : vector<1x2x144xbf16> to vector<2x144xbf16>
    %c6_314 = arith.constant 6 : index
    %c0_315 = arith.constant 0 : index
    %c0_316 = arith.constant 0 : index
    %305 = vector.load %arg2[%c6_314, %c0_315, %c0_316] : memref<8x144x256xbf16, #tpu.memory_space<vmem>>, vector<1x144x256xbf16>
    %306 = vector.shape_cast %305 : vector<1x144x256xbf16> to vector<144x256xbf16>
    %cst_317 = arith.constant dense<0.000000e+00> : vector<2x256xf32>
    %307 = tpu.matmul %304, %306, %cst_317 {dimension_numbers = #tpu.dot_dimension_numbers<[1], [0], [0], [1], [0, 0, 1, 1], [], []>} : vector<2x144xbf16>, vector<144x256xbf16>, vector<2x256xf32> -> vector<2x256xf32>
    %308 = arith.addf %302, %307 : vector<2x256xf32>
    %c27 = arith.constant 27 : index
    %c0_318 = arith.constant 0 : index
    %c0_319 = arith.constant 0 : index
    %309 = vector.load %arg1[%c27, %c0_318, %c0_319] : memref<36x2x144xbf16, #tpu.memory_space<vmem>>, vector<1x2x144xbf16>
    %310 = vector.shape_cast %309 : vector<1x2x144xbf16> to vector<2x144xbf16>
    %c7_320 = arith.constant 7 : index
    %c0_321 = arith.constant 0 : index
    %c0_322 = arith.constant 0 : index
    %311 = vector.load %arg2[%c7_320, %c0_321, %c0_322] : memref<8x144x256xbf16, #tpu.memory_space<vmem>>, vector<1x144x256xbf16>
    %312 = vector.shape_cast %311 : vector<1x144x256xbf16> to vector<144x256xbf16>
    %cst_323 = arith.constant dense<0.000000e+00> : vector<2x256xf32>
    %313 = tpu.matmul %310, %312, %cst_323 {dimension_numbers = #tpu.dot_dimension_numbers<[1], [0], [0], [1], [0, 0, 1, 1], [], []>} : vector<2x144xbf16>, vector<144x256xbf16>, vector<2x256xf32> -> vector<2x256xf32>
    %314 = arith.addf %308, %313 : vector<2x256xf32>
    %cst_324 = arith.constant 0.000000e+00 : f32
    %315 = vector.broadcast %cst_324 : f32 to vector<2x256xf32>
    %316 = arith.maximumf %314, %315 : vector<2x256xf32>
    %317 = arith.truncf %316 : vector<2x256xf32> to vector<2x256xbf16>
    %c0_325 = arith.constant 0 : index
    %c0_326 = arith.constant 0 : index
    %318 = vector.load %arg3[%c0_325, %c0_326] : memref<1x256xf32, #tpu.memory_space<vmem>>, vector<1x256xf32>
    %c24_327 = arith.constant 24 : index
    %c0_328 = arith.constant 0 : index
    %c0_329 = arith.constant 0 : index
    %319 = vector.load %arg1[%c24_327, %c0_328, %c0_329] : memref<36x2x144xbf16, #tpu.memory_space<vmem>>, vector<1x2x144xbf16>
    %320 = vector.shape_cast %319 : vector<1x2x144xbf16> to vector<2x144xbf16>
    %c0_330 = arith.constant 0 : index
    %c0_331 = arith.constant 0 : index
    %c0_332 = arith.constant 0 : index
    %321 = vector.load %arg2[%c0_330, %c0_331, %c0_332] : memref<8x144x256xbf16, #tpu.memory_space<vmem>>, vector<1x144x256xbf16>
    %322 = vector.shape_cast %321 : vector<1x144x256xbf16> to vector<144x256xbf16>
    %cst_333 = arith.constant dense<0.000000e+00> : vector<2x256xf32>
    %323 = tpu.matmul %320, %322, %cst_333 {dimension_numbers = #tpu.dot_dimension_numbers<[1], [0], [0], [1], [0, 0, 1, 1], [], []>} : vector<2x144xbf16>, vector<144x256xbf16>, vector<2x256xf32> -> vector<2x256xf32>
    %324 = vector.broadcast %318 : vector<1x256xf32> to vector<2x256xf32>
    %325 = arith.addf %324, %323 : vector<2x256xf32>
    %c25_334 = arith.constant 25 : index
    %c0_335 = arith.constant 0 : index
    %c0_336 = arith.constant 0 : index
    %326 = vector.load %arg1[%c25_334, %c0_335, %c0_336] : memref<36x2x144xbf16, #tpu.memory_space<vmem>>, vector<1x2x144xbf16>
    %327 = vector.shape_cast %326 : vector<1x2x144xbf16> to vector<2x144xbf16>
    %c1_337 = arith.constant 1 : index
    %c0_338 = arith.constant 0 : index
    %c0_339 = arith.constant 0 : index
    %328 = vector.load %arg2[%c1_337, %c0_338, %c0_339] : memref<8x144x256xbf16, #tpu.memory_space<vmem>>, vector<1x144x256xbf16>
    %329 = vector.shape_cast %328 : vector<1x144x256xbf16> to vector<144x256xbf16>
    %cst_340 = arith.constant dense<0.000000e+00> : vector<2x256xf32>
    %330 = tpu.matmul %327, %329, %cst_340 {dimension_numbers = #tpu.dot_dimension_numbers<[1], [0], [0], [1], [0, 0, 1, 1], [], []>} : vector<2x144xbf16>, vector<144x256xbf16>, vector<2x256xf32> -> vector<2x256xf32>
    %331 = arith.addf %325, %330 : vector<2x256xf32>
    %c26_341 = arith.constant 26 : index
    %c0_342 = arith.constant 0 : index
    %c0_343 = arith.constant 0 : index
    %332 = vector.load %arg1[%c26_341, %c0_342, %c0_343] : memref<36x2x144xbf16, #tpu.memory_space<vmem>>, vector<1x2x144xbf16>
    %333 = vector.shape_cast %332 : vector<1x2x144xbf16> to vector<2x144xbf16>
    %c2_344 = arith.constant 2 : index
    %c0_345 = arith.constant 0 : index
    %c0_346 = arith.constant 0 : index
    %334 = vector.load %arg2[%c2_344, %c0_345, %c0_346] : memref<8x144x256xbf16, #tpu.memory_space<vmem>>, vector<1x144x256xbf16>
    %335 = vector.shape_cast %334 : vector<1x144x256xbf16> to vector<144x256xbf16>
    %cst_347 = arith.constant dense<0.000000e+00> : vector<2x256xf32>
    %336 = tpu.matmul %333, %335, %cst_347 {dimension_numbers = #tpu.dot_dimension_numbers<[1], [0], [0], [1], [0, 0, 1, 1], [], []>} : vector<2x144xbf16>, vector<144x256xbf16>, vector<2x256xf32> -> vector<2x256xf32>
    %337 = arith.addf %331, %336 : vector<2x256xf32>
    %c27_348 = arith.constant 27 : index
    %c0_349 = arith.constant 0 : index
    %c0_350 = arith.constant 0 : index
    %338 = vector.load %arg1[%c27_348, %c0_349, %c0_350] : memref<36x2x144xbf16, #tpu.memory_space<vmem>>, vector<1x2x144xbf16>
    %339 = vector.shape_cast %338 : vector<1x2x144xbf16> to vector<2x144xbf16>
    %c3_351 = arith.constant 3 : index
    %c0_352 = arith.constant 0 : index
    %c0_353 = arith.constant 0 : index
    %340 = vector.load %arg2[%c3_351, %c0_352, %c0_353] : memref<8x144x256xbf16, #tpu.memory_space<vmem>>, vector<1x144x256xbf16>
    %341 = vector.shape_cast %340 : vector<1x144x256xbf16> to vector<144x256xbf16>
    %cst_354 = arith.constant dense<0.000000e+00> : vector<2x256xf32>
    %342 = tpu.matmul %339, %341, %cst_354 {dimension_numbers = #tpu.dot_dimension_numbers<[1], [0], [0], [1], [0, 0, 1, 1], [], []>} : vector<2x144xbf16>, vector<144x256xbf16>, vector<2x256xf32> -> vector<2x256xf32>
    %343 = arith.addf %337, %342 : vector<2x256xf32>
    %c28 = arith.constant 28 : index
    %c0_355 = arith.constant 0 : index
    %c0_356 = arith.constant 0 : index
    %344 = vector.load %arg1[%c28, %c0_355, %c0_356] : memref<36x2x144xbf16, #tpu.memory_space<vmem>>, vector<1x2x144xbf16>
    %345 = vector.shape_cast %344 : vector<1x2x144xbf16> to vector<2x144xbf16>
    %c4_357 = arith.constant 4 : index
    %c0_358 = arith.constant 0 : index
    %c0_359 = arith.constant 0 : index
    %346 = vector.load %arg2[%c4_357, %c0_358, %c0_359] : memref<8x144x256xbf16, #tpu.memory_space<vmem>>, vector<1x144x256xbf16>
    %347 = vector.shape_cast %346 : vector<1x144x256xbf16> to vector<144x256xbf16>
    %cst_360 = arith.constant dense<0.000000e+00> : vector<2x256xf32>
    %348 = tpu.matmul %345, %347, %cst_360 {dimension_numbers = #tpu.dot_dimension_numbers<[1], [0], [0], [1], [0, 0, 1, 1], [], []>} : vector<2x144xbf16>, vector<144x256xbf16>, vector<2x256xf32> -> vector<2x256xf32>
    %349 = arith.addf %343, %348 : vector<2x256xf32>
    %c29 = arith.constant 29 : index
    %c0_361 = arith.constant 0 : index
    %c0_362 = arith.constant 0 : index
    %350 = vector.load %arg1[%c29, %c0_361, %c0_362] : memref<36x2x144xbf16, #tpu.memory_space<vmem>>, vector<1x2x144xbf16>
    %351 = vector.shape_cast %350 : vector<1x2x144xbf16> to vector<2x144xbf16>
    %c5_363 = arith.constant 5 : index
    %c0_364 = arith.constant 0 : index
    %c0_365 = arith.constant 0 : index
    %352 = vector.load %arg2[%c5_363, %c0_364, %c0_365] : memref<8x144x256xbf16, #tpu.memory_space<vmem>>, vector<1x144x256xbf16>
    %353 = vector.shape_cast %352 : vector<1x144x256xbf16> to vector<144x256xbf16>
    %cst_366 = arith.constant dense<0.000000e+00> : vector<2x256xf32>
    %354 = tpu.matmul %351, %353, %cst_366 {dimension_numbers = #tpu.dot_dimension_numbers<[1], [0], [0], [1], [0, 0, 1, 1], [], []>} : vector<2x144xbf16>, vector<144x256xbf16>, vector<2x256xf32> -> vector<2x256xf32>
    %355 = arith.addf %349, %354 : vector<2x256xf32>
    %c30 = arith.constant 30 : index
    %c0_367 = arith.constant 0 : index
    %c0_368 = arith.constant 0 : index
    %356 = vector.load %arg1[%c30, %c0_367, %c0_368] : memref<36x2x144xbf16, #tpu.memory_space<vmem>>, vector<1x2x144xbf16>
    %357 = vector.shape_cast %356 : vector<1x2x144xbf16> to vector<2x144xbf16>
    %c6_369 = arith.constant 6 : index
    %c0_370 = arith.constant 0 : index
    %c0_371 = arith.constant 0 : index
    %358 = vector.load %arg2[%c6_369, %c0_370, %c0_371] : memref<8x144x256xbf16, #tpu.memory_space<vmem>>, vector<1x144x256xbf16>
    %359 = vector.shape_cast %358 : vector<1x144x256xbf16> to vector<144x256xbf16>
    %cst_372 = arith.constant dense<0.000000e+00> : vector<2x256xf32>
    %360 = tpu.matmul %357, %359, %cst_372 {dimension_numbers = #tpu.dot_dimension_numbers<[1], [0], [0], [1], [0, 0, 1, 1], [], []>} : vector<2x144xbf16>, vector<144x256xbf16>, vector<2x256xf32> -> vector<2x256xf32>
    %361 = arith.addf %355, %360 : vector<2x256xf32>
    %c31 = arith.constant 31 : index
    %c0_373 = arith.constant 0 : index
    %c0_374 = arith.constant 0 : index
    %362 = vector.load %arg1[%c31, %c0_373, %c0_374] : memref<36x2x144xbf16, #tpu.memory_space<vmem>>, vector<1x2x144xbf16>
    %363 = vector.shape_cast %362 : vector<1x2x144xbf16> to vector<2x144xbf16>
    %c7_375 = arith.constant 7 : index
    %c0_376 = arith.constant 0 : index
    %c0_377 = arith.constant 0 : index
    %364 = vector.load %arg2[%c7_375, %c0_376, %c0_377] : memref<8x144x256xbf16, #tpu.memory_space<vmem>>, vector<1x144x256xbf16>
    %365 = vector.shape_cast %364 : vector<1x144x256xbf16> to vector<144x256xbf16>
    %cst_378 = arith.constant dense<0.000000e+00> : vector<2x256xf32>
    %366 = tpu.matmul %363, %365, %cst_378 {dimension_numbers = #tpu.dot_dimension_numbers<[1], [0], [0], [1], [0, 0, 1, 1], [], []>} : vector<2x144xbf16>, vector<144x256xbf16>, vector<2x256xf32> -> vector<2x256xf32>
    %367 = arith.addf %361, %366 : vector<2x256xf32>
    %cst_379 = arith.constant 0.000000e+00 : f32
    %368 = vector.broadcast %cst_379 : f32 to vector<2x256xf32>
    %369 = arith.maximumf %367, %368 : vector<2x256xf32>
    %370 = arith.truncf %369 : vector<2x256xf32> to vector<2x256xbf16>
    %c0_380 = arith.constant 0 : index
    %c0_381 = arith.constant 0 : index
    %371 = vector.load %arg3[%c0_380, %c0_381] : memref<1x256xf32, #tpu.memory_space<vmem>>, vector<1x256xf32>
    %c28_382 = arith.constant 28 : index
    %c0_383 = arith.constant 0 : index
    %c0_384 = arith.constant 0 : index
    %372 = vector.load %arg1[%c28_382, %c0_383, %c0_384] : memref<36x2x144xbf16, #tpu.memory_space<vmem>>, vector<1x2x144xbf16>
    %373 = vector.shape_cast %372 : vector<1x2x144xbf16> to vector<2x144xbf16>
    %c0_385 = arith.constant 0 : index
    %c0_386 = arith.constant 0 : index
    %c0_387 = arith.constant 0 : index
    %374 = vector.load %arg2[%c0_385, %c0_386, %c0_387] : memref<8x144x256xbf16, #tpu.memory_space<vmem>>, vector<1x144x256xbf16>
    %375 = vector.shape_cast %374 : vector<1x144x256xbf16> to vector<144x256xbf16>
    %cst_388 = arith.constant dense<0.000000e+00> : vector<2x256xf32>
    %376 = tpu.matmul %373, %375, %cst_388 {dimension_numbers = #tpu.dot_dimension_numbers<[1], [0], [0], [1], [0, 0, 1, 1], [], []>} : vector<2x144xbf16>, vector<144x256xbf16>, vector<2x256xf32> -> vector<2x256xf32>
    %377 = vector.broadcast %371 : vector<1x256xf32> to vector<2x256xf32>
    %378 = arith.addf %377, %376 : vector<2x256xf32>
    %c29_389 = arith.constant 29 : index
    %c0_390 = arith.constant 0 : index
    %c0_391 = arith.constant 0 : index
    %379 = vector.load %arg1[%c29_389, %c0_390, %c0_391] : memref<36x2x144xbf16, #tpu.memory_space<vmem>>, vector<1x2x144xbf16>
    %380 = vector.shape_cast %379 : vector<1x2x144xbf16> to vector<2x144xbf16>
    %c1_392 = arith.constant 1 : index
    %c0_393 = arith.constant 0 : index
    %c0_394 = arith.constant 0 : index
    %381 = vector.load %arg2[%c1_392, %c0_393, %c0_394] : memref<8x144x256xbf16, #tpu.memory_space<vmem>>, vector<1x144x256xbf16>
    %382 = vector.shape_cast %381 : vector<1x144x256xbf16> to vector<144x256xbf16>
    %cst_395 = arith.constant dense<0.000000e+00> : vector<2x256xf32>
    %383 = tpu.matmul %380, %382, %cst_395 {dimension_numbers = #tpu.dot_dimension_numbers<[1], [0], [0], [1], [0, 0, 1, 1], [], []>} : vector<2x144xbf16>, vector<144x256xbf16>, vector<2x256xf32> -> vector<2x256xf32>
    %384 = arith.addf %378, %383 : vector<2x256xf32>
    %c30_396 = arith.constant 30 : index
    %c0_397 = arith.constant 0 : index
    %c0_398 = arith.constant 0 : index
    %385 = vector.load %arg1[%c30_396, %c0_397, %c0_398] : memref<36x2x144xbf16, #tpu.memory_space<vmem>>, vector<1x2x144xbf16>
    %386 = vector.shape_cast %385 : vector<1x2x144xbf16> to vector<2x144xbf16>
    %c2_399 = arith.constant 2 : index
    %c0_400 = arith.constant 0 : index
    %c0_401 = arith.constant 0 : index
    %387 = vector.load %arg2[%c2_399, %c0_400, %c0_401] : memref<8x144x256xbf16, #tpu.memory_space<vmem>>, vector<1x144x256xbf16>
    %388 = vector.shape_cast %387 : vector<1x144x256xbf16> to vector<144x256xbf16>
    %cst_402 = arith.constant dense<0.000000e+00> : vector<2x256xf32>
    %389 = tpu.matmul %386, %388, %cst_402 {dimension_numbers = #tpu.dot_dimension_numbers<[1], [0], [0], [1], [0, 0, 1, 1], [], []>} : vector<2x144xbf16>, vector<144x256xbf16>, vector<2x256xf32> -> vector<2x256xf32>
    %390 = arith.addf %384, %389 : vector<2x256xf32>
    %c31_403 = arith.constant 31 : index
    %c0_404 = arith.constant 0 : index
    %c0_405 = arith.constant 0 : index
    %391 = vector.load %arg1[%c31_403, %c0_404, %c0_405] : memref<36x2x144xbf16, #tpu.memory_space<vmem>>, vector<1x2x144xbf16>
    %392 = vector.shape_cast %391 : vector<1x2x144xbf16> to vector<2x144xbf16>
    %c3_406 = arith.constant 3 : index
    %c0_407 = arith.constant 0 : index
    %c0_408 = arith.constant 0 : index
    %393 = vector.load %arg2[%c3_406, %c0_407, %c0_408] : memref<8x144x256xbf16, #tpu.memory_space<vmem>>, vector<1x144x256xbf16>
    %394 = vector.shape_cast %393 : vector<1x144x256xbf16> to vector<144x256xbf16>
    %cst_409 = arith.constant dense<0.000000e+00> : vector<2x256xf32>
    %395 = tpu.matmul %392, %394, %cst_409 {dimension_numbers = #tpu.dot_dimension_numbers<[1], [0], [0], [1], [0, 0, 1, 1], [], []>} : vector<2x144xbf16>, vector<144x256xbf16>, vector<2x256xf32> -> vector<2x256xf32>
    %396 = arith.addf %390, %395 : vector<2x256xf32>
    %c32 = arith.constant 32 : index
    %c0_410 = arith.constant 0 : index
    %c0_411 = arith.constant 0 : index
    %397 = vector.load %arg1[%c32, %c0_410, %c0_411] : memref<36x2x144xbf16, #tpu.memory_space<vmem>>, vector<1x2x144xbf16>
    %398 = vector.shape_cast %397 : vector<1x2x144xbf16> to vector<2x144xbf16>
    %c4_412 = arith.constant 4 : index
    %c0_413 = arith.constant 0 : index
    %c0_414 = arith.constant 0 : index
    %399 = vector.load %arg2[%c4_412, %c0_413, %c0_414] : memref<8x144x256xbf16, #tpu.memory_space<vmem>>, vector<1x144x256xbf16>
    %400 = vector.shape_cast %399 : vector<1x144x256xbf16> to vector<144x256xbf16>
    %cst_415 = arith.constant dense<0.000000e+00> : vector<2x256xf32>
    %401 = tpu.matmul %398, %400, %cst_415 {dimension_numbers = #tpu.dot_dimension_numbers<[1], [0], [0], [1], [0, 0, 1, 1], [], []>} : vector<2x144xbf16>, vector<144x256xbf16>, vector<2x256xf32> -> vector<2x256xf32>
    %402 = arith.addf %396, %401 : vector<2x256xf32>
    %c33 = arith.constant 33 : index
    %c0_416 = arith.constant 0 : index
    %c0_417 = arith.constant 0 : index
    %403 = vector.load %arg1[%c33, %c0_416, %c0_417] : memref<36x2x144xbf16, #tpu.memory_space<vmem>>, vector<1x2x144xbf16>
    %404 = vector.shape_cast %403 : vector<1x2x144xbf16> to vector<2x144xbf16>
    %c5_418 = arith.constant 5 : index
    %c0_419 = arith.constant 0 : index
    %c0_420 = arith.constant 0 : index
    %405 = vector.load %arg2[%c5_418, %c0_419, %c0_420] : memref<8x144x256xbf16, #tpu.memory_space<vmem>>, vector<1x144x256xbf16>
    %406 = vector.shape_cast %405 : vector<1x144x256xbf16> to vector<144x256xbf16>
    %cst_421 = arith.constant dense<0.000000e+00> : vector<2x256xf32>
    %407 = tpu.matmul %404, %406, %cst_421 {dimension_numbers = #tpu.dot_dimension_numbers<[1], [0], [0], [1], [0, 0, 1, 1], [], []>} : vector<2x144xbf16>, vector<144x256xbf16>, vector<2x256xf32> -> vector<2x256xf32>
    %408 = arith.addf %402, %407 : vector<2x256xf32>
    %c34 = arith.constant 34 : index
    %c0_422 = arith.constant 0 : index
    %c0_423 = arith.constant 0 : index
    %409 = vector.load %arg1[%c34, %c0_422, %c0_423] : memref<36x2x144xbf16, #tpu.memory_space<vmem>>, vector<1x2x144xbf16>
    %410 = vector.shape_cast %409 : vector<1x2x144xbf16> to vector<2x144xbf16>
    %c6_424 = arith.constant 6 : index
    %c0_425 = arith.constant 0 : index
    %c0_426 = arith.constant 0 : index
    %411 = vector.load %arg2[%c6_424, %c0_425, %c0_426] : memref<8x144x256xbf16, #tpu.memory_space<vmem>>, vector<1x144x256xbf16>
    %412 = vector.shape_cast %411 : vector<1x144x256xbf16> to vector<144x256xbf16>
    %cst_427 = arith.constant dense<0.000000e+00> : vector<2x256xf32>
    %413 = tpu.matmul %410, %412, %cst_427 {dimension_numbers = #tpu.dot_dimension_numbers<[1], [0], [0], [1], [0, 0, 1, 1], [], []>} : vector<2x144xbf16>, vector<144x256xbf16>, vector<2x256xf32> -> vector<2x256xf32>
    %414 = arith.addf %408, %413 : vector<2x256xf32>
    %c35 = arith.constant 35 : index
    %c0_428 = arith.constant 0 : index
    %c0_429 = arith.constant 0 : index
    %415 = vector.load %arg1[%c35, %c0_428, %c0_429] : memref<36x2x144xbf16, #tpu.memory_space<vmem>>, vector<1x2x144xbf16>
    %416 = vector.shape_cast %415 : vector<1x2x144xbf16> to vector<2x144xbf16>
    %c7_430 = arith.constant 7 : index
    %c0_431 = arith.constant 0 : index
    %c0_432 = arith.constant 0 : index
    %417 = vector.load %arg2[%c7_430, %c0_431, %c0_432] : memref<8x144x256xbf16, #tpu.memory_space<vmem>>, vector<1x144x256xbf16>
    %418 = vector.shape_cast %417 : vector<1x144x256xbf16> to vector<144x256xbf16>
    %cst_433 = arith.constant dense<0.000000e+00> : vector<2x256xf32>
    %419 = tpu.matmul %416, %418, %cst_433 {dimension_numbers = #tpu.dot_dimension_numbers<[1], [0], [0], [1], [0, 0, 1, 1], [], []>} : vector<2x144xbf16>, vector<144x256xbf16>, vector<2x256xf32> -> vector<2x256xf32>
    %420 = arith.addf %414, %419 : vector<2x256xf32>
    %cst_434 = arith.constant 0.000000e+00 : f32
    %421 = vector.broadcast %cst_434 : f32 to vector<2x256xf32>
    %422 = arith.maximumf %420, %421 : vector<2x256xf32>
    %423 = arith.truncf %422 : vector<2x256xf32> to vector<2x256xbf16>
    %c0_435 = arith.constant 0 : index
    %c0_436 = arith.constant 0 : index
    %424 = vector.load %arg7[%c0_435, %c0_436] : memref<1x64xf32, #tpu.memory_space<vmem>>, vector<1x64xf32>
    %c0_437 = arith.constant 0 : index
    %c0_438 = arith.constant 0 : index
    %425 = vector.load %arg5[%c0_437, %c0_438] : memref<1x192xf32, #tpu.memory_space<vmem>>, vector<1x192xf32>
    %c0_439 = arith.constant 0 : index
    %c0_440 = arith.constant 0 : index
    %c0_441 = arith.constant 0 : index
    %426 = vector.load %arg4[%c0_439, %c0_440, %c0_441] : memref<4x256x192xbf16, #tpu.memory_space<vmem>>, vector<1x256x192xbf16>
    %427 = vector.shape_cast %426 : vector<1x256x192xbf16> to vector<256x192xbf16>
    %cst_442 = arith.constant dense<0.000000e+00> : vector<2x192xf32>
    %428 = tpu.matmul %52, %427, %cst_442 {dimension_numbers = #tpu.dot_dimension_numbers<[1], [0], [0], [1], [0, 0, 1, 1], [], []>} : vector<2x256xbf16>, vector<256x192xbf16>, vector<2x192xf32> -> vector<2x192xf32>
    %429 = vector.broadcast %425 : vector<1x192xf32> to vector<2x192xf32>
    %430 = arith.addf %429, %428 : vector<2x192xf32>
    %c1_443 = arith.constant 1 : index
    %c0_444 = arith.constant 0 : index
    %c0_445 = arith.constant 0 : index
    %431 = vector.load %arg4[%c1_443, %c0_444, %c0_445] : memref<4x256x192xbf16, #tpu.memory_space<vmem>>, vector<1x256x192xbf16>
    %432 = vector.shape_cast %431 : vector<1x256x192xbf16> to vector<256x192xbf16>
    %cst_446 = arith.constant dense<0.000000e+00> : vector<2x192xf32>
    %433 = tpu.matmul %105, %432, %cst_446 {dimension_numbers = #tpu.dot_dimension_numbers<[1], [0], [0], [1], [0, 0, 1, 1], [], []>} : vector<2x256xbf16>, vector<256x192xbf16>, vector<2x192xf32> -> vector<2x192xf32>
    %434 = arith.addf %430, %433 : vector<2x192xf32>
    %c2_447 = arith.constant 2 : index
    %c0_448 = arith.constant 0 : index
    %c0_449 = arith.constant 0 : index
    %435 = vector.load %arg4[%c2_447, %c0_448, %c0_449] : memref<4x256x192xbf16, #tpu.memory_space<vmem>>, vector<1x256x192xbf16>
    %436 = vector.shape_cast %435 : vector<1x256x192xbf16> to vector<256x192xbf16>
    %cst_450 = arith.constant dense<0.000000e+00> : vector<2x192xf32>
    %437 = tpu.matmul %158, %436, %cst_450 {dimension_numbers = #tpu.dot_dimension_numbers<[1], [0], [0], [1], [0, 0, 1, 1], [], []>} : vector<2x256xbf16>, vector<256x192xbf16>, vector<2x192xf32> -> vector<2x192xf32>
    %438 = arith.addf %434, %437 : vector<2x192xf32>
    %c3_451 = arith.constant 3 : index
    %c0_452 = arith.constant 0 : index
    %c0_453 = arith.constant 0 : index
    %439 = vector.load %arg4[%c3_451, %c0_452, %c0_453] : memref<4x256x192xbf16, #tpu.memory_space<vmem>>, vector<1x256x192xbf16>
    %440 = vector.shape_cast %439 : vector<1x256x192xbf16> to vector<256x192xbf16>
    %cst_454 = arith.constant dense<0.000000e+00> : vector<2x192xf32>
    %441 = tpu.matmul %211, %440, %cst_454 {dimension_numbers = #tpu.dot_dimension_numbers<[1], [0], [0], [1], [0, 0, 1, 1], [], []>} : vector<2x256xbf16>, vector<256x192xbf16>, vector<2x192xf32> -> vector<2x192xf32>
    %442 = arith.addf %438, %441 : vector<2x192xf32>
    %cst_455 = arith.constant 0.000000e+00 : f32
    %443 = vector.broadcast %cst_455 : f32 to vector<2x192xf32>
    %444 = arith.maximumf %442, %443 : vector<2x192xf32>
    %445 = arith.truncf %444 : vector<2x192xf32> to vector<2x192xbf16>
    %c0_456 = arith.constant 0 : index
    %c0_457 = arith.constant 0 : index
    %c0_458 = arith.constant 0 : index
    %446 = vector.load %arg6[%c0_456, %c0_457, %c0_458] : memref<3x192x64xbf16, #tpu.memory_space<vmem>>, vector<1x192x64xbf16>
    %447 = vector.shape_cast %446 : vector<1x192x64xbf16> to vector<192x64xbf16>
    %cst_459 = arith.constant dense<0.000000e+00> : vector<2x64xf32>
    %448 = tpu.matmul %445, %447, %cst_459 {dimension_numbers = #tpu.dot_dimension_numbers<[1], [0], [0], [1], [0, 0, 1, 1], [], []>} : vector<2x192xbf16>, vector<192x64xbf16>, vector<2x64xf32> -> vector<2x64xf32>
    %449 = vector.broadcast %424 : vector<1x64xf32> to vector<2x64xf32>
    %450 = arith.addf %449, %448 : vector<2x64xf32>
    %c0_460 = arith.constant 0 : index
    %c0_461 = arith.constant 0 : index
    %451 = vector.load %arg5[%c0_460, %c0_461] : memref<1x192xf32, #tpu.memory_space<vmem>>, vector<1x192xf32>
    %c0_462 = arith.constant 0 : index
    %c0_463 = arith.constant 0 : index
    %c0_464 = arith.constant 0 : index
    %452 = vector.load %arg4[%c0_462, %c0_463, %c0_464] : memref<4x256x192xbf16, #tpu.memory_space<vmem>>, vector<1x256x192xbf16>
    %453 = vector.shape_cast %452 : vector<1x256x192xbf16> to vector<256x192xbf16>
    %cst_465 = arith.constant dense<0.000000e+00> : vector<2x192xf32>
    %454 = tpu.matmul %158, %453, %cst_465 {dimension_numbers = #tpu.dot_dimension_numbers<[1], [0], [0], [1], [0, 0, 1, 1], [], []>} : vector<2x256xbf16>, vector<256x192xbf16>, vector<2x192xf32> -> vector<2x192xf32>
    %455 = vector.broadcast %451 : vector<1x192xf32> to vector<2x192xf32>
    %456 = arith.addf %455, %454 : vector<2x192xf32>
    %c1_466 = arith.constant 1 : index
    %c0_467 = arith.constant 0 : index
    %c0_468 = arith.constant 0 : index
    %457 = vector.load %arg4[%c1_466, %c0_467, %c0_468] : memref<4x256x192xbf16, #tpu.memory_space<vmem>>, vector<1x256x192xbf16>
    %458 = vector.shape_cast %457 : vector<1x256x192xbf16> to vector<256x192xbf16>
    %cst_469 = arith.constant dense<0.000000e+00> : vector<2x192xf32>
    %459 = tpu.matmul %211, %458, %cst_469 {dimension_numbers = #tpu.dot_dimension_numbers<[1], [0], [0], [1], [0, 0, 1, 1], [], []>} : vector<2x256xbf16>, vector<256x192xbf16>, vector<2x192xf32> -> vector<2x192xf32>
    %460 = arith.addf %456, %459 : vector<2x192xf32>
    %c2_470 = arith.constant 2 : index
    %c0_471 = arith.constant 0 : index
    %c0_472 = arith.constant 0 : index
    %461 = vector.load %arg4[%c2_470, %c0_471, %c0_472] : memref<4x256x192xbf16, #tpu.memory_space<vmem>>, vector<1x256x192xbf16>
    %462 = vector.shape_cast %461 : vector<1x256x192xbf16> to vector<256x192xbf16>
    %cst_473 = arith.constant dense<0.000000e+00> : vector<2x192xf32>
    %463 = tpu.matmul %264, %462, %cst_473 {dimension_numbers = #tpu.dot_dimension_numbers<[1], [0], [0], [1], [0, 0, 1, 1], [], []>} : vector<2x256xbf16>, vector<256x192xbf16>, vector<2x192xf32> -> vector<2x192xf32>
    %464 = arith.addf %460, %463 : vector<2x192xf32>
    %c3_474 = arith.constant 3 : index
    %c0_475 = arith.constant 0 : index
    %c0_476 = arith.constant 0 : index
    %465 = vector.load %arg4[%c3_474, %c0_475, %c0_476] : memref<4x256x192xbf16, #tpu.memory_space<vmem>>, vector<1x256x192xbf16>
    %466 = vector.shape_cast %465 : vector<1x256x192xbf16> to vector<256x192xbf16>
    %cst_477 = arith.constant dense<0.000000e+00> : vector<2x192xf32>
    %467 = tpu.matmul %317, %466, %cst_477 {dimension_numbers = #tpu.dot_dimension_numbers<[1], [0], [0], [1], [0, 0, 1, 1], [], []>} : vector<2x256xbf16>, vector<256x192xbf16>, vector<2x192xf32> -> vector<2x192xf32>
    %468 = arith.addf %464, %467 : vector<2x192xf32>
    %cst_478 = arith.constant 0.000000e+00 : f32
    %469 = vector.broadcast %cst_478 : f32 to vector<2x192xf32>
    %470 = arith.maximumf %468, %469 : vector<2x192xf32>
    %471 = arith.truncf %470 : vector<2x192xf32> to vector<2x192xbf16>
    %c1_479 = arith.constant 1 : index
    %c0_480 = arith.constant 0 : index
    %c0_481 = arith.constant 0 : index
    %472 = vector.load %arg6[%c1_479, %c0_480, %c0_481] : memref<3x192x64xbf16, #tpu.memory_space<vmem>>, vector<1x192x64xbf16>
    %473 = vector.shape_cast %472 : vector<1x192x64xbf16> to vector<192x64xbf16>
    %cst_482 = arith.constant dense<0.000000e+00> : vector<2x64xf32>
    %474 = tpu.matmul %471, %473, %cst_482 {dimension_numbers = #tpu.dot_dimension_numbers<[1], [0], [0], [1], [0, 0, 1, 1], [], []>} : vector<2x192xbf16>, vector<192x64xbf16>, vector<2x64xf32> -> vector<2x64xf32>
    %475 = arith.addf %450, %474 : vector<2x64xf32>
    %c0_483 = arith.constant 0 : index
    %c0_484 = arith.constant 0 : index
    %476 = vector.load %arg5[%c0_483, %c0_484] : memref<1x192xf32, #tpu.memory_space<vmem>>, vector<1x192xf32>
    %c0_485 = arith.constant 0 : index
    %c0_486 = arith.constant 0 : index
    %c0_487 = arith.constant 0 : index
    %477 = vector.load %arg4[%c0_485, %c0_486, %c0_487] : memref<4x256x192xbf16, #tpu.memory_space<vmem>>, vector<1x256x192xbf16>
    %478 = vector.shape_cast %477 : vector<1x256x192xbf16> to vector<256x192xbf16>
    %cst_488 = arith.constant dense<0.000000e+00> : vector<2x192xf32>
    %479 = tpu.matmul %264, %478, %cst_488 {dimension_numbers = #tpu.dot_dimension_numbers<[1], [0], [0], [1], [0, 0, 1, 1], [], []>} : vector<2x256xbf16>, vector<256x192xbf16>, vector<2x192xf32> -> vector<2x192xf32>
    %480 = vector.broadcast %476 : vector<1x192xf32> to vector<2x192xf32>
    %481 = arith.addf %480, %479 : vector<2x192xf32>
    %c1_489 = arith.constant 1 : index
    %c0_490 = arith.constant 0 : index
    %c0_491 = arith.constant 0 : index
    %482 = vector.load %arg4[%c1_489, %c0_490, %c0_491] : memref<4x256x192xbf16, #tpu.memory_space<vmem>>, vector<1x256x192xbf16>
    %483 = vector.shape_cast %482 : vector<1x256x192xbf16> to vector<256x192xbf16>
    %cst_492 = arith.constant dense<0.000000e+00> : vector<2x192xf32>
    %484 = tpu.matmul %317, %483, %cst_492 {dimension_numbers = #tpu.dot_dimension_numbers<[1], [0], [0], [1], [0, 0, 1, 1], [], []>} : vector<2x256xbf16>, vector<256x192xbf16>, vector<2x192xf32> -> vector<2x192xf32>
    %485 = arith.addf %481, %484 : vector<2x192xf32>
    %c2_493 = arith.constant 2 : index
    %c0_494 = arith.constant 0 : index
    %c0_495 = arith.constant 0 : index
    %486 = vector.load %arg4[%c2_493, %c0_494, %c0_495] : memref<4x256x192xbf16, #tpu.memory_space<vmem>>, vector<1x256x192xbf16>
    %487 = vector.shape_cast %486 : vector<1x256x192xbf16> to vector<256x192xbf16>
    %cst_496 = arith.constant dense<0.000000e+00> : vector<2x192xf32>
    %488 = tpu.matmul %370, %487, %cst_496 {dimension_numbers = #tpu.dot_dimension_numbers<[1], [0], [0], [1], [0, 0, 1, 1], [], []>} : vector<2x256xbf16>, vector<256x192xbf16>, vector<2x192xf32> -> vector<2x192xf32>
    %489 = arith.addf %485, %488 : vector<2x192xf32>
    %c3_497 = arith.constant 3 : index
    %c0_498 = arith.constant 0 : index
    %c0_499 = arith.constant 0 : index
    %490 = vector.load %arg4[%c3_497, %c0_498, %c0_499] : memref<4x256x192xbf16, #tpu.memory_space<vmem>>, vector<1x256x192xbf16>
    %491 = vector.shape_cast %490 : vector<1x256x192xbf16> to vector<256x192xbf16>
    %cst_500 = arith.constant dense<0.000000e+00> : vector<2x192xf32>
    %492 = tpu.matmul %423, %491, %cst_500 {dimension_numbers = #tpu.dot_dimension_numbers<[1], [0], [0], [1], [0, 0, 1, 1], [], []>} : vector<2x256xbf16>, vector<256x192xbf16>, vector<2x192xf32> -> vector<2x192xf32>
    %493 = arith.addf %489, %492 : vector<2x192xf32>
    %cst_501 = arith.constant 0.000000e+00 : f32
    %494 = vector.broadcast %cst_501 : f32 to vector<2x192xf32>
    %495 = arith.maximumf %493, %494 : vector<2x192xf32>
    %496 = arith.truncf %495 : vector<2x192xf32> to vector<2x192xbf16>
    %c2_502 = arith.constant 2 : index
    %c0_503 = arith.constant 0 : index
    %c0_504 = arith.constant 0 : index
    %497 = vector.load %arg6[%c2_502, %c0_503, %c0_504] : memref<3x192x64xbf16, #tpu.memory_space<vmem>>, vector<1x192x64xbf16>
    %498 = vector.shape_cast %497 : vector<1x192x64xbf16> to vector<192x64xbf16>
    %cst_505 = arith.constant dense<0.000000e+00> : vector<2x64xf32>
    %499 = tpu.matmul %496, %498, %cst_505 {dimension_numbers = #tpu.dot_dimension_numbers<[1], [0], [0], [1], [0, 0, 1, 1], [], []>} : vector<2x192xbf16>, vector<192x64xbf16>, vector<2x64xf32> -> vector<2x64xf32>
    %500 = arith.addf %475, %499 : vector<2x64xf32>
    %cst_506 = arith.constant 0.000000e+00 : f32
    %501 = vector.broadcast %cst_506 : f32 to vector<2x64xf32>
    %502 = arith.maximumf %500, %501 : vector<2x64xf32>
    %503 = arith.truncf %502 : vector<2x64xf32> to vector<2x64xbf16>
    %c0_507 = arith.constant 0 : index
    %c0_508 = arith.constant 0 : index
    %504 = vector.load %arg8[%c0_507, %c0_508] : memref<64x32xbf16, #tpu.memory_space<vmem>>, vector<64x32xbf16>
    %cst_509 = arith.constant dense<0.000000e+00> : vector<2x32xf32>
    %505 = tpu.matmul %503, %504, %cst_509 {dimension_numbers = #tpu.dot_dimension_numbers<[1], [0], [0], [1], [0, 0, 1, 1], [], []>} : vector<2x64xbf16>, vector<64x32xbf16>, vector<2x32xf32> -> vector<2x32xf32>
    %c0_510 = arith.constant 0 : index
    %c0_511 = arith.constant 0 : index
    %506 = vector.load %arg9[%c0_510, %c0_511] : memref<1x32xf32, #tpu.memory_space<vmem>>, vector<1x32xf32>
    %507 = vector.broadcast %506 : vector<1x32xf32> to vector<2x32xf32>
    %508 = arith.addf %505, %507 : vector<2x32xf32>
    %cst_512 = arith.constant 0.000000e+00 : f32
    %509 = vector.broadcast %cst_512 : f32 to vector<2x32xf32>
    %510 = arith.maximumf %508, %509 : vector<2x32xf32>
    %511 = arith.truncf %510 : vector<2x32xf32> to vector<2x32xbf16>
    %c0_513 = arith.constant 0 : index
    %c0_514 = arith.constant 0 : index
    %512 = vector.load %arg10[%c0_513, %c0_514] : memref<32x7xbf16, #tpu.memory_space<vmem>>, vector<32x7xbf16>
    %cst_515 = arith.constant dense<0.000000e+00> : vector<2x7xf32>
    %513 = tpu.matmul %511, %512, %cst_515 {dimension_numbers = #tpu.dot_dimension_numbers<[1], [0], [0], [1], [0, 0, 1, 1], [], []>} : vector<2x32xbf16>, vector<32x7xbf16>, vector<2x7xf32> -> vector<2x7xf32>
    %c0_516 = arith.constant 0 : index
    %c0_517 = arith.constant 0 : index
    %514 = vector.load %arg11[%c0_516, %c0_517] : memref<1x7xf32, #tpu.memory_space<vmem>>, vector<1x7xf32>
    %515 = vector.broadcast %514 : vector<1x7xf32> to vector<2x7xf32>
    %516 = arith.addf %513, %515 : vector<2x7xf32>
    %517 = vector.extract_strided_slice %516 {offsets = [0, 0], sizes = [2, 6], strides = [1, 1]} : vector<2x7xf32> to vector<2x6xf32>
    %518 = vector.extract_strided_slice %516 {offsets = [0, 6], sizes = [2, 1], strides = [1, 1]} : vector<2x7xf32> to vector<2x1xf32>
    %519 = vector.broadcast %518 : vector<2x1xf32> to vector<2x6xf32>
    %520 = arith.addf %519, %517 : vector<2x6xf32>
    %cst_518 = arith.constant dense<0.000000e+00> : vector<2xf32>
    %521 = vector.multi_reduction <add>, %517, %cst_518 [1] : vector<2x6xf32> to vector<2xf32>
    %522 = vector.shape_cast %521 : vector<2xf32> to vector<2x1xf32>
    %cst_519 = arith.constant 6.000000e+00 : f32
    %523 = vector.broadcast %cst_519 : f32 to vector<2x1xf32>
    %524 = arith.divf %522, %523 : vector<2x1xf32>
    %525 = vector.broadcast %524 : vector<2x1xf32> to vector<2x6xf32>
    %526 = arith.subf %520, %525 : vector<2x6xf32>
    %c0_520 = arith.constant 0 : index
    %c0_521 = arith.constant 0 : index
    %527 = vector.load %arg12[%c0_520, %c0_521] : memref<2x6xf32, #tpu.memory_space<vmem>>, vector<2x6xf32>
    tpu.vector_store %arg12[%c0_520, %c0_521], %526 {strides = array<i32>} : memref<2x6xf32, #tpu.memory_space<vmem>>, vector<2x6xf32>,
    return
  }
  func.func @transform_0(%arg0: i32) -> (i32, i32, i32) {
    %c0_i32 = arith.constant 0 : i32
    %c0_i32_0 = arith.constant 0 : i32
    %c0_i32_1 = arith.constant 0 : i32
    return %c0_i32, %arg0, %c0_i32_0 : i32, i32, i32
  }
  func.func @transform_1(%arg0: i32) -> (i32, i32, i32) {
    %c0_i32 = arith.constant 0 : i32
    %c0_i32_0 = arith.constant 0 : i32
    %c0_i32_1 = arith.constant 0 : i32
    %c0_i32_2 = arith.constant 0 : i32
    return %c0_i32, %c0_i32_0, %c0_i32_1 : i32, i32, i32
  }
  func.func @transform_2(%arg0: i32) -> (i32, i32) {
    %c0_i32 = arith.constant 0 : i32
    %c0_i32_0 = arith.constant 0 : i32
    %c0_i32_1 = arith.constant 0 : i32
    return %c0_i32, %c0_i32_0 : i32, i32
  }
  func.func @transform_3(%arg0: i32) -> (i32, i32, i32) {
    %c0_i32 = arith.constant 0 : i32
    %c0_i32_0 = arith.constant 0 : i32
    %c0_i32_1 = arith.constant 0 : i32
    %c0_i32_2 = arith.constant 0 : i32
    return %c0_i32, %c0_i32_0, %c0_i32_1 : i32, i32, i32
  }
  func.func @transform_4(%arg0: i32) -> (i32, i32) {
    %c0_i32 = arith.constant 0 : i32
    %c0_i32_0 = arith.constant 0 : i32
    %c0_i32_1 = arith.constant 0 : i32
    return %c0_i32, %c0_i32_0 : i32, i32
  }
  func.func @transform_5(%arg0: i32) -> (i32, i32, i32) {
    %c0_i32 = arith.constant 0 : i32
    %c0_i32_0 = arith.constant 0 : i32
    %c0_i32_1 = arith.constant 0 : i32
    %c0_i32_2 = arith.constant 0 : i32
    return %c0_i32, %c0_i32_0, %c0_i32_1 : i32, i32, i32
  }
  func.func @transform_6(%arg0: i32) -> (i32, i32) {
    %c0_i32 = arith.constant 0 : i32
    %c0_i32_0 = arith.constant 0 : i32
    %c0_i32_1 = arith.constant 0 : i32
    return %c0_i32, %c0_i32_0 : i32, i32
  }
  func.func @transform_7(%arg0: i32) -> (i32, i32) {
    %c0_i32 = arith.constant 0 : i32
    %c0_i32_0 = arith.constant 0 : i32
    %c0_i32_1 = arith.constant 0 : i32
    return %c0_i32, %c0_i32_0 : i32, i32
  }
  func.func @transform_8(%arg0: i32) -> (i32, i32) {
    %c0_i32 = arith.constant 0 : i32
    %c0_i32_0 = arith.constant 0 : i32
    %c0_i32_1 = arith.constant 0 : i32
    return %c0_i32, %c0_i32_0 : i32, i32
  }
  func.func @transform_9(%arg0: i32) -> (i32, i32) {
    %c0_i32 = arith.constant 0 : i32
    %c0_i32_0 = arith.constant 0 : i32
    %c0_i32_1 = arith.constant 0 : i32
    return %c0_i32, %c0_i32_0 : i32, i32
  }
  func.func @transform_10(%arg0: i32) -> (i32, i32) {
    %c0_i32 = arith.constant 0 : i32
    %c0_i32_0 = arith.constant 0 : i32
    %c0_i32_1 = arith.constant 0 : i32
    return %c0_i32, %c0_i32_0 : i32, i32
  }
  func.func @transform_11(%arg0: i32) -> (i32, i32) {
    %c0_i32 = arith.constant 0 : i32
    %c0_i32_0 = arith.constant 0 : i32
    return %arg0, %c0_i32 : i32, i32
  }
}

</mosaic_0001>

<llo_original>
// kernel: forward.1
$region0: #{forward.1}
  #allocation0 [shape = 'u32[]', space=smem, size = 0x4, offset = 0x4, fixed_abs, tag = 'smem constant byte address 0x4 - core index']
  #allocation1 [shape = 'u32[144,128]{1,0:T(1,128)}', space=vmem, size = 0x12000, scoped, tag = 'internal scratch']
  %s0 = inlined_call_operand.vmem [shape: bf16[36,2,144], index: 0, kind: input, shape index: {}]
  %s1 = inlined_call_operand.vmem [shape: bf16[8,144,256], index: 1, kind: input, shape index: {}]
  %s2 = inlined_call_operand.vmem [shape: f32[1,256], index: 2, kind: input, shape index: {}]
  %s3 = inlined_call_operand.vmem [shape: bf16[4,256,192], index: 3, kind: input, shape index: {}]
  %s4 = inlined_call_operand.vmem [shape: f32[1,192], index: 4, kind: input, shape index: {}]
  %s5 = inlined_call_operand.vmem [shape: bf16[3,192,64], index: 5, kind: input, shape index: {}]
  %s6 = inlined_call_operand.vmem [shape: f32[1,64], index: 6, kind: input, shape index: {}]
  %s7 = inlined_call_operand.vmem [shape: bf16[64,32], index: 7, kind: input, shape index: {}]
  %s8 = inlined_call_operand.vmem [shape: f32[1,32], index: 8, kind: input, shape index: {}]
  %s9 = inlined_call_operand.vmem [shape: bf16[32,7], index: 9, kind: input, shape index: {}]
  %s10 = inlined_call_operand.vmem [shape: f32[1,7], index: 10, kind: input, shape index: {}]
  %s11 = inlined_call_operand.hbm [shape: f32[2,6], index: 11, kind: output, shape index: {}]
  %s12 = sld [smem:[#allocation0]]
  $region54: #{forward.1} parent=0
    _
  %s14 = ssub.s32 1, %s12
  %s15 = scalar_select 0, %s14, %s12
  $region1: #{forward.1} parent=0
    #allocation2 [shape = 'u8[1024]{0}', space=vmem, size = 0x400, scoped, tag = 'output window, operand 0, single buffered']
    #allocation3 [shape = 's32[1]{0}', space=sflag, size = 0x4, scoped, tag = 'scoped memory for forward.1']
    %16 = vsyncpa [#allocation3], 0
    // Predicated region
    $region2: #{forward.1} parent=1 // pred_check
      _
    $region3: #{forward.1} parent=1 // pred_check_branch
      %18 = sbr.rel (0) target = $region5
    $region4: #{forward.1} parent=1 // pred_region
      _
    $region5: #{forward.1} parent=1 // pred_fallthru
      _
    // Predicated region
    $region6: #{forward.1} parent=1 // pred_check
      _
    $region7: #{forward.1} parent=1 // pred_check_branch
      %20 = sbr.rel (0) target = $region9
    $region8: #{forward.1} parent=1 // pred_region
      _
    $region9: #{forward.1} parent=1 // pred_fallthru
      _
    // Predicated region
    $region10: #{forward.1} parent=1 // pred_check
      _
    $region11: #{forward.1} parent=1 // pred_check_branch
      %22 = sbr.rel (0) target = $region13
    $region12: #{forward.1} parent=1 // pred_region
      _
    $region13: #{forward.1} parent=1 // pred_fallthru
      _
    // Predicated region
    $region14: #{forward.1} parent=1 // pred_check
      _
    $region15: #{forward.1} parent=1 // pred_check_branch
      %24 = sbr.rel (0) target = $region17
    $region16: #{forward.1} parent=1 // pred_region
      _
    $region17: #{forward.1} parent=1 // pred_fallthru
      _
    // Predicated region
    $region18: #{forward.1} parent=1 // pred_check
      _
    $region19: #{forward.1} parent=1 // pred_check_branch
      %26 = sbr.rel (0) target = $region21
    $region20: #{forward.1} parent=1 // pred_region
      _
    $region21: #{forward.1} parent=1 // pred_fallthru
      _
    // Predicated region
    $region22: #{forward.1} parent=1 // pred_check
      _
    $region23: #{forward.1} parent=1 // pred_check_branch
      %28 = sbr.rel (0) target = $region25
    $region24: #{forward.1} parent=1 // pred_region
      _
    $region25: #{forward.1} parent=1 // pred_fallthru
      _
    // Predicated region
    $region26: #{forward.1} parent=1 // pred_check
      _
    $region27: #{forward.1} parent=1 // pred_check_branch
      %30 = sbr.rel (0) target = $region29
    $region28: #{forward.1} parent=1 // pred_region
      _
    $region29: #{forward.1} parent=1 // pred_fallthru
      _
    // Predicated region
    $region30: #{forward.1} parent=1 // pred_check
      _
    $region31: #{forward.1} parent=1 // pred_check_branch
      %32 = sbr.rel (0) target = $region33
    $region32: #{forward.1} parent=1 // pred_region
      _
    $region33: #{forward.1} parent=1 // pred_fallthru
      _
    // Predicated region
    $region34: #{forward.1} parent=1 // pred_check
      _
    $region35: #{forward.1} parent=1 // pred_check_branch
      %34 = sbr.rel (0) target = $region37
    $region36: #{forward.1} parent=1 // pred_region
      _
    $region37: #{forward.1} parent=1 // pred_fallthru
      _
    // Predicated region
    $region38: #{forward.1} parent=1 // pred_check
      _
    $region39: #{forward.1} parent=1 // pred_check_branch
      %36 = sbr.rel (0) target = $region41
    $region40: #{forward.1} parent=1 // pred_region
      _
    $region41: #{forward.1} parent=1 // pred_fallthru
      _
    // Predicated region
    $region42: #{forward.1} parent=1 // pred_check
      _
    $region43: #{forward.1} parent=1 // pred_check_branch
      %38 = sbr.rel (0) target = $region45
    $region44: #{forward.1} parent=1 // pred_region
      _
    $region45: #{forward.1} parent=1 // pred_fallthru
      _
    %v40 = vld [vmem:[%s2] sm:$0x3]
    %v41 = vld [vmem:[%s0] sm:$0x3]
    %v42 = vld [vmem:[%s1] sm:$0xff]
    %v43 = vld [vmem:[%s1 + $0x8] sm:$0xff]
    %v44 = vld [vmem:[%s1 + $0x10] sm:$0xff]
    %v45 = vld [vmem:[%s1 + $0x18] sm:$0xff]
    %v46 = vld [vmem:[%s1 + $0x20] sm:$0xff]
    %v47 = vld [vmem:[%s1 + $0x28] sm:$0xff]
    %v48 = vld [vmem:[%s1 + $0x30] sm:$0xff]
    %v49 = vld [vmem:[%s1 + $0x38] sm:$0xff]
    %v50 = vld [vmem:[%s1 + $0x40] sm:$0xff]
    %v51 = vld [vmem:[%s1 + $0x48] sm:$0xff]
    %v52 = vld [vmem:[%s1 + $0x50] sm:$0xff]
    %v53 = vld [vmem:[%s1 + $0x58] sm:$0xff]
    %v54 = vld [vmem:[%s1 + $0x60] sm:$0xff]
    %v55 = vld [vmem:[%s1 + $0x68] sm:$0xff]
    %v56 = vld [vmem:[%s1 + $0x70] sm:$0xff]
    %v57 = vld [vmem:[%s1 + $0x78] sm:$0xff]
    %v58 = vld [vmem:[%s1 + $0x80] sm:$0xff]
    %v59 = vld [vmem:[%s1 + $0x88] sm:$0xff]
    %v62 = vunpack.c.l.s4 1966171168
    %v63 = vunpack.c.0.s8 %v62
    %v64 = vlaneseq
    %v65 = vshrl.u32 %v64, 7
    %v66 = vsub.s32 %v63, %v65
    %v67 = vrot.slane %v41, %v66
    %v68 = vcombine.high %v67, %v67
    %v70 = vunpack.c.l.s4 1966171168
    %v71 = vunpack.c.0.s8 %v70
    %v72 = vlaneseq
    %v73 = vshrl.u32 %v72, 7
    %v74 = vsub.s32 %v71, %v73
    %v75 = vrot.slane %v67, %v74
    %v77 = vunpack.c.l.s4 1966171168
    %v78 = vunpack.c.0.s8 %v77
    %v79 = vlaneseq
    %v80 = vshrl.u32 %v79, 7
    %v81 = vsub.s32 %v78, %v80
    %v82 = vrot.slane %v68, %v81
    %v102 = vunpack.c.l.b16 %v42
    %v103 = vunpack.c.h.b16 %v42
    %v104 = vunpack.c.l.b16 %v43
    %v105 = vunpack.c.h.b16 %v43
    %v106 = vunpack.c.l.b16 %v44
    %v107 = vunpack.c.h.b16 %v44
    %v108 = vunpack.c.l.b16 %v45
    %v109 = vunpack.c.h.b16 %v45
    %v110 = vunpack.c.l.b16 %v46
    %v111 = vunpack.c.h.b16 %v46
    %v112 = vunpack.c.l.b16 %v47
    %v113 = vunpack.c.h.b16 %v47
    %v114 = vunpack.c.l.b16 %v48
    %v115 = vunpack.c.h.b16 %v48
    %v116 = vunpack.c.l.b16 %v49
    %v117 = vunpack.c.h.b16 %v49
    %v118 = vunpack.c.l.b16 %v50
    %v119 = vunpack.c.h.b16 %v50
    %v120 = vunpack.c.l.b16 %v51
    %v121 = vunpack.c.h.b16 %v51
    %v122 = vunpack.c.l.b16 %v52
    %v123 = vunpack.c.h.b16 %v52
    %v124 = vunpack.c.l.b16 %v53
    %v125 = vunpack.c.h.b16 %v53
    %v126 = vunpack.c.l.b16 %v54
    %v127 = vunpack.c.h.b16 %v54
    %v128 = vunpack.c.l.b16 %v55
    %v129 = vunpack.c.h.b16 %v55
    %v130 = vunpack.c.l.b16 %v56
    %v131 = vunpack.c.h.b16 %v56
    %v132 = vunpack.c.l.b16 %v57
    %v133 = vunpack.c.h.b16 %v57
    %v134 = vunpack.c.l.b16 %v58
    %v135 = vunpack.c.h.b16 %v58
    %v136 = vunpack.c.l.b16 %v59
    %v137 = vunpack.c.h.b16 %v59
    %v138 = vpack.c.b16 %v104, %v102
    %v139 = vpack.c.b16 %v105, %v103
    %v140 = vpack.c.b16 %v108, %v106
    %v141 = vpack.c.b16 %v109, %v107
    %v142 = vpack.c.b16 %v112, %v110
    %v143 = vpack.c.b16 %v113, %v111
    %v144 = vpack.c.b16 %v116, %v114
    %v145 = vpack.c.b16 %v117, %v115
    %v146 = vpack.c.b16 %v120, %v118
    %v147 = vpack.c.b16 %v121, %v119
    %v148 = vpack.c.b16 %v124, %v122
    %v149 = vpack.c.b16 %v125, %v123
    %v150 = vpack.c.b16 %v128, %v126
    %v151 = vpack.c.b16 %v129, %v127
    %v152 = vpack.c.b16 %v132, %v130
    %v153 = vpack.c.b16 %v133, %v131
    %v154 = vpack.c.b16 %v136, %v134
    %v155 = vpack.c.b16 %v137, %v135
    %vm174 = vcmask 130048
    %v176 = vsel %vm174, %v82, 0
    %178 = vmatprep.subr.bf16.mxu0 %v139
    %179 = vmatpush1.bf16.msra.mxu0 %v138
    %180 = vmatprep.subr.bf16.mxu0 %v141
    %181 = vmatpush1.bf16.msra.mxu0 %v140
    %182 = vmatprep.subr.bf16.mxu0 %v143
    %183 = vmatpush1.bf16.msra.mxu0 %v142
    %184 = vmatprep.subr.bf16.mxu0 %v145
    %185 = vmatpush1.bf16.msra.mxu0 %v144
    %186 = vmatprep.subr.bf16.mxu0 %v147
    %187 = vmatpush1.bf16.msra.mxu0 %v146
    %188 = vmatprep.subr.bf16.mxu0 %v149
    %189 = vmatpush1.bf16.msra.mxu0 %v148
    %190 = vmatprep.subr.bf16.mxu0 %v151
    %191 = vmatpush1.bf16.msra.mxu0 %v150
    %192 = vmatprep.subr.bf16.mxu0 %v153
    %193 = vmatpush1.bf16.msra.mxu0 %v152
    %194 = vmatprep.subr.bf16.mxu0 %v155
    %195 = vmatpush1.bf16.msra.mxu0 %v154
    %196 = vmatprep.subr.bf16.mxu0 0
    %197 = vmatpush1.bf16.msra.mxu0 0
    %198 = vmatprep.subr.bf16.mxu0 0
    %199 = vmatpush1.bf16.msra.mxu0 0
    %200 = vmatprep.subr.bf16.mxu0 0
    %201 = vmatpush1.bf16.msra.mxu0 0
    %202 = vmatprep.subr.bf16.mxu0 0
    %203 = vmatpush1.bf16.msra.mxu0 0
    %204 = vmatprep.subr.bf16.mxu0 0
    %205 = vmatpush1.bf16.msra.mxu0 0
    %206 = vmatprep.subr.bf16.mxu0 0
    %207 = vmatpush1.bf16.msra.mxu0 0
    %208 = vmatprep.subr.bf16.mxu0 0
    %209 = vmatpush1.bf16.msra.mxu0 0
    %210 = vmatprep.mubr.bf16.mxu0 %v176
    %211 = vmatmul.mubr.bf16.gmra.mrb[0].mxu0 %v75
    %v212 = vpop.f32.mrb[0].mxu0
    %v213 = vadd.f32 0.0, %v212
    %v214 = vpop.f32.mrb[0].mxu0
    %v215 = vadd.f32 0.0, %v214
    %v216 = vpop.f32.mrb[0].mxu0
    %v217 = vpop.f32.mrb[0].mxu0
    %218 = vdwg.mxu0
    %v220 = vlaneseq
    %v221 = vshrl.u32 %v220, 7
    %v222 = vsub.s32 0, %v221
    %v223 = vrot.slane %v40, %v222
    %v224 = vlaneseq
    %v225 = vshrl.u32 %v224, 7
    %v226 = vsub.s32 1, %v225
    %v227 = vrot.slane %v40, %v226
    %v230 = vadd.f32 %v223, %v213
    %v231 = vadd.f32 %v227, %v215
    %s232 = scalar_lea.vmem %s0, 2
    %v233 = vld [vmem:[%s232] sm:$0x3]
    %s234 = scalar_lea.vmem %s1, 144
    %v235 = vld [vmem:[%s234] sm:$0xff]
    %v236 = vld [vmem:[%s234 + $0x8] sm:$0xff]
    %v237 = vld [vmem:[%s234 + $0x10] sm:$0xff]
    %v238 = vld [vmem:[%s234 + $0x18] sm:$0xff]
    %v239 = vld [vmem:[%s234 + $0x20] sm:$0xff]
    %v240 = vld [vmem:[%s234 + $0x28] sm:$0xff]
    %v241 = vld [vmem:[%s234 + $0x30] sm:$0xff]
    %v242 = vld [vmem:[%s234 + $0x38] sm:$0xff]
    %v243 = vld [vmem:[%s234 + $0x40] sm:$0xff]
    %v244 = vld [vmem:[%s234 + $0x48] sm:$0xff]
    %v245 = vld [vmem:[%s234 + $0x50] sm:$0xff]
    %v246 = vld [vmem:[%s234 + $0x58] sm:$0xff]
    %v247 = vld [vmem:[%s234 + $0x60] sm:$0xff]
    %v248 = vld [vmem:[%s234 + $0x68] sm:$0xff]
    %v249 = vld [vmem:[%s234 + $0x70] sm:$0xff]
    %v250 = vld [vmem:[%s234 + $0x78] sm:$0xff]
    %v251 = vld [vmem:[%s234 + $0x80] sm:$0xff]
    %v252 = vld [vmem:[%s234 + $0x88] sm:$0xff]
    %v255 = vunpack.c.l.s4 1966171168
    %v256 = vunpack.c.0.s8 %v255
    %v257 = vlaneseq
    %v258 = vshrl.u32 %v257, 7
    %v259 = vsub.s32 %v256, %v258
    %v260 = vrot.slane %v233, %v259
    %v261 = vcombine.high %v260, %v260
    %v263 = vunpack.c.l.s4 1966171168
    %v264 = vunpack.c.0.s8 %v263
    %v265 = vlaneseq
    %v266 = vshrl.u32 %v265, 7
    %v267 = vsub.s32 %v264, %v266
    %v268 = vrot.slane %v260, %v267
    %v270 = vunpack.c.l.s4 1966171168
    %v271 = vunpack.c.0.s8 %v270
    %v272 = vlaneseq
    %v273 = vshrl.u32 %v272, 7
    %v274 = vsub.s32 %v271, %v273
    %v275 = vrot.slane %v261, %v274
    %v295 = vunpack.c.l.b16 %v235
    %v296 = vunpack.c.h.b16 %v235
    %v297 = vunpack.c.l.b16 %v236
    %v298 = vunpack.c.h.b16 %v236
    %v299 = vunpack.c.l.b16 %v237
    %v300 = vunpack.c.h.b16 %v237
    %v301 = vunpack.c.l.b16 %v238
    %v302 = vunpack.c.h.b16 %v238
    %v303 = vunpack.c.l.b16 %v239
    %v304 = vunpack.c.h.b16 %v239
    %v305 = vunpack.c.l.b16 %v240
    %v306 = vunpack.c.h.b16 %v240
    %v307 = vunpack.c.l.b16 %v241
    %v308 = vunpack.c.h.b16 %v241
    %v309 = vunpack.c.l.b16 %v242
    %v310 = vunpack.c.h.b16 %v242
    %v311 = vunpack.c.l.b16 %v243
    %v312 = vunpack.c.h.b16 %v243
    %v313 = vunpack.c.l.b16 %v244
    %v314 = vunpack.c.h.b16 %v244
    %v315 = vunpack.c.l.b16 %v245
    %v316 = vunpack.c.h.b16 %v245
    %v317 = vunpack.c.l.b16 %v246
    %v318 = vunpack.c.h.b16 %v246
    %v319 = vunpack.c.l.b16 %v247
    %v320 = vunpack.c.h.b16 %v247
    %v321 = vunpack.c.l.b16 %v248
    %v322 = vunpack.c.h.b16 %v248
    %v323 = vunpack.c.l.b16 %v249
    %v324 = vunpack.c.h.b16 %v249
    %v325 = vunpack.c.l.b16 %v250
    %v326 = vunpack.c.h.b16 %v250
    %v327 = vunpack.c.l.b16 %v251
    %v328 = vunpack.c.h.b16 %v251
    %v329 = vunpack.c.l.b16 %v252
    %v330 = vunpack.c.h.b16 %v252
    %v331 = vpack.c.b16 %v297, %v295
    %v332 = vpack.c.b16 %v298, %v296
    %v333 = vpack.c.b16 %v301, %v299
    %v334 = vpack.c.b16 %v302, %v300
    %v335 = vpack.c.b16 %v305, %v303
    %v336 = vpack.c.b16 %v306, %v304
    %v337 = vpack.c.b16 %v309, %v307
    %v338 = vpack.c.b16 %v310, %v308
    %v339 = vpack.c.b16 %v313, %v311
    %v340 = vpack.c.b16 %v314, %v312
    %v341 = vpack.c.b16 %v317, %v315
    %v342 = vpack.c.b16 %v318, %v316
    %v343 = vpack.c.b16 %v321, %v319
    %v344 = vpack.c.b16 %v322, %v320
    %v345 = vpack.c.b16 %v325, %v323
    %v346 = vpack.c.b16 %v326, %v324
    %v347 = vpack.c.b16 %v329, %v327
    %v348 = vpack.c.b16 %v330, %v328
    %v368 = vsel %vm174, %v275, 0
    %370 = vmatprep.subr.bf16.mxu0 %v332
    %371 = vmatpush1.bf16.msra.mxu0 %v331
    %372 = vmatprep.subr.bf16.mxu0 %v334
    %373 = vmatpush1.bf16.msra.mxu0 %v333
    %374 = vmatprep.subr.bf16.mxu0 %v336
    %375 = vmatpush1.bf16.msra.mxu0 %v335
    %376 = vmatprep.subr.bf16.mxu0 %v338
    %377 = vmatpush1.bf16.msra.mxu0 %v337
    %378 = vmatprep.subr.bf16.mxu0 %v340
    %379 = vmatpush1.bf16.msra.mxu0 %v339
    %380 = vmatprep.subr.bf16.mxu0 %v342
    %381 = vmatpush1.bf16.msra.mxu0 %v341
    %382 = vmatprep.subr.bf16.mxu0 %v344
    %383 = vmatpush1.bf16.msra.mxu0 %v343
    %384 = vmatprep.subr.bf16.mxu0 %v346
    %385 = vmatpush1.bf16.msra.mxu0 %v345
    %386 = vmatprep.subr.bf16.mxu0 %v348
    %387 = vmatpush1.bf16.msra.mxu0 %v347
    %388 = vmatprep.subr.bf16.mxu0 0
    %389 = vmatpush1.bf16.msra.mxu0 0
    %390 = vmatprep.subr.bf16.mxu0 0
    %391 = vmatpush1.bf16.msra.mxu0 0
    %392 = vmatprep.subr.bf16.mxu0 0
    %393 = vmatpush1.bf16.msra.mxu0 0
    %394 = vmatprep.subr.bf16.mxu0 0
    %395 = vmatpush1.bf16.msra.mxu0 0
    %396 = vmatprep.subr.bf16.mxu0 0
    %397 = vmatpush1.bf16.msra.mxu0 0
    %398 = vmatprep.subr.bf16.mxu0 0
    %399 = vmatpush1.bf16.msra.mxu0 0
    %400 = vmatprep.subr.bf16.mxu0 0
    %401 = vmatpush1.bf16.msra.mxu0 0
    %402 = vmatprep.mubr.bf16.mxu0 %v368
    %403 = vmatmul.mubr.bf16.gmra.mrb[0].mxu0 %v268
    %v404 = vpop.f32.mrb[0].mxu0
    %v405 = vadd.f32 0.0, %v404
    %v406 = vpop.f32.mrb[0].mxu0
    %v407 = vadd.f32 0.0, %v406
    %v408 = vpop.f32.mrb[0].mxu0
    %v409 = vpop.f32.mrb[0].mxu0
    %410 = vdwg.mxu0
    %v411 = vadd.f32 %v230, %v405
    %v412 = vadd.f32 %v231, %v407
    %s413 = scalar_lea.vmem %s0, 4
    %v414 = vld [vmem:[%s413] sm:$0x3]
    %s415 = scalar_lea.vmem %s1, 288
    %v416 = vld [vmem:[%s415] sm:$0xff]
    %v417 = vld [vmem:[%s415 + $0x8] sm:$0xff]
    %v418 = vld [vmem:[%s415 + $0x10] sm:$0xff]
    %v419 = vld [vmem:[%s415 + $0x18] sm:$0xff]
    %v420 = vld [vmem:[%s415 + $0x20] sm:$0xff]
    %v421 = vld [vmem:[%s415 + $0x28] sm:$0xff]
    %v422 = vld [vmem:[%s415 + $0x30] sm:$0xff]
    %v423 = vld [vmem:[%s415 + $0x38] sm:$0xff]
    %v424 = vld [vmem:[%s415 + $0x40] sm:$0xff]
    %v425 = vld [vmem:[%s415 + $0x48] sm:$0xff]
    %v426 = vld [vmem:[%s415 + $0x50] sm:$0xff]
    %v427 = vld [vmem:[%s415 + $0x58] sm:$0xff]
    %v428 = vld [vmem:[%s415 + $0x60] sm:$0xff]
    %v429 = vld [vmem:[%s415 + $0x68] sm:$0xff]
    %v430 = vld [vmem:[%s415 + $0x70] sm:$0xff]
    %v431 = vld [vmem:[%s415 + $0x78] sm:$0xff]
    %v432 = vld [vmem:[%s415 + $0x80] sm:$0xff]
    %v433 = vld [vmem:[%s415 + $0x88] sm:$0xff]
    %v436 = vunpack.c.l.s4 1966171168
    %v437 = vunpack.c.0.s8 %v436
    %v438 = vlaneseq
    %v439 = vshrl.u32 %v438, 7
    %v440 = vsub.s32 %v437, %v439
    %v441 = vrot.slane %v414, %v440
    %v442 = vcombine.high %v441, %v441
    %v444 = vunpack.c.l.s4 1966171168
    %v445 = vunpack.c.0.s8 %v444
    %v446 = vlaneseq
    %v447 = vshrl.u32 %v446, 7
    %v448 = vsub.s32 %v445, %v447
    %v449 = vrot.slane %v441, %v448
    %v451 = vunpack.c.l.s4 1966171168
    %v452 = vunpack.c.0.s8 %v451
    %v453 = vlaneseq
    %v454 = vshrl.u32 %v453, 7
    %v455 = vsub.s32 %v452, %v454
    %v456 = vrot.slane %v442, %v455
    %v476 = vunpack.c.l.b16 %v416
    %v477 = vunpack.c.h.b16 %v416
    %v478 = vunpack.c.l.b16 %v417
    %v479 = vunpack.c.h.b16 %v417
    %v480 = vunpack.c.l.b16 %v418
    %v481 = vunpack.c.h.b16 %v418
    %v482 = vunpack.c.l.b16 %v419
    %v483 = vunpack.c.h.b16 %v419
    %v484 = vunpack.c.l.b16 %v420
    %v485 = vunpack.c.h.b16 %v420
    %v486 = vunpack.c.l.b16 %v421
    %v487 = vunpack.c.h.b16 %v421
    %v488 = vunpack.c.l.b16 %v422
    %v489 = vunpack.c.h.b16 %v422
    %v490 = vunpack.c.l.b16 %v423
    %v491 = vunpack.c.h.b16 %v423
    %v492 = vunpack.c.l.b16 %v424
    %v493 = vunpack.c.h.b16 %v424
    %v494 = vunpack.c.l.b16 %v425
    %v495 = vunpack.c.h.b16 %v425
    %v496 = vunpack.c.l.b16 %v426
    %v497 = vunpack.c.h.b16 %v426
    %v498 = vunpack.c.l.b16 %v427
    %v499 = vunpack.c.h.b16 %v427
    %v500 = vunpack.c.l.b16 %v428
    %v501 = vunpack.c.h.b16 %v428
    %v502 = vunpack.c.l.b16 %v429
    %v503 = vunpack.c.h.b16 %v429
    %v504 = vunpack.c.l.b16 %v430
    %v505 = vunpack.c.h.b16 %v430
    %v506 = vunpack.c.l.b16 %v431
    %v507 = vunpack.c.h.b16 %v431
    %v508 = vunpack.c.l.b16 %v432
    %v509 = vunpack.c.h.b16 %v432
    %v510 = vunpack.c.l.b16 %v433
    %v511 = vunpack.c.h.b16 %v433
    %v512 = vpack.c.b16 %v478, %v476
    %v513 = vpack.c.b16 %v479, %v477
    %v514 = vpack.c.b16 %v482, %v480
    %v515 = vpack.c.b16 %v483, %v481
    %v516 = vpack.c.b16 %v486, %v484
    %v517 = vpack.c.b16 %v487, %v485
    %v518 = vpack.c.b16 %v490, %v488
    %v519 = vpack.c.b16 %v491, %v489
    %v520 = vpack.c.b16 %v494, %v492
    %v521 = vpack.c.b16 %v495, %v493
    %v522 = vpack.c.b16 %v498, %v496
    %v523 = vpack.c.b16 %v499, %v497
    %v524 = vpack.c.b16 %v502, %v500
    %v525 = vpack.c.b16 %v503, %v501
    %v526 = vpack.c.b16 %v506, %v504
    %v527 = vpack.c.b16 %v507, %v505
    %v528 = vpack.c.b16 %v510, %v508
    %v529 = vpack.c.b16 %v511, %v509
    %v549 = vsel %vm174, %v456, 0
    %551 = vmatprep.subr.bf16.mxu0 %v513
    %552 = vmatpush1.bf16.msra.mxu0 %v512
    %553 = vmatprep.subr.bf16.mxu0 %v515
    %554 = vmatpush1.bf16.msra.mxu0 %v514
    %555 = vmatprep.subr.bf16.mxu0 %v517
    %556 = vmatpush1.bf16.msra.mxu0 %v516
    %557 = vmatprep.subr.bf16.mxu0 %v519
    %558 = vmatpush1.bf16.msra.mxu0 %v518
    %559 = vmatprep.subr.bf16.mxu0 %v521
    %560 = vmatpush1.bf16.msra.mxu0 %v520
    %561 = vmatprep.subr.bf16.mxu0 %v523
    %562 = vmatpush1.bf16.msra.mxu0 %v522
    %563 = vmatprep.subr.bf16.mxu0 %v525
    %564 = vmatpush1.bf16.msra.mxu0 %v524
    %565 = vmatprep.subr.bf16.mxu0 %v527
    %566 = vmatpush1.bf16.msra.mxu0 %v526
    %567 = vmatprep.subr.bf16.mxu0 %v529
    %568 = vmatpush1.bf16.msra.mxu0 %v528
    %569 = vmatprep.subr.bf16.mxu0 0
    %570 = vmatpush1.bf16.msra.mxu0 0
    %571 = vmatprep.subr.bf16.mxu0 0
    %572 = vmatpush1.bf16.msra.mxu0 0
    %573 = vmatprep.subr.bf16.mxu0 0
    %574 = vmatpush1.bf16.msra.mxu0 0
    %575 = vmatprep.subr.bf16.mxu0 0
    %576 = vmatpush1.bf16.msra.mxu0 0
    %577 = vmatprep.subr.bf16.mxu0 0
    %578 = vmatpush1.bf16.msra.mxu0 0
    %579 = vmatprep.subr.bf16.mxu0 0
    %580 = vmatpush1.bf16.msra.mxu0 0
    %581 = vmatprep.subr.bf16.mxu0 0
    %582 = vmatpush1.bf16.msra.mxu0 0
    %583 = vmatprep.mubr.bf16.mxu0 %v549
    %584 = vmatmul.mubr.bf16.gmra.mrb[0].mxu0 %v449
    %v585 = vpop.f32.mrb[0].mxu0
    %v586 = vadd.f32 0.0, %v585
    %v587 = vpop.f32.mrb[0].mxu0
    %v588 = vadd.f32 0.0, %v587
    %v589 = vpop.f32.mrb[0].mxu0
    %v590 = vpop.f32.mrb[0].mxu0
    %591 = vdwg.mxu0
    %v592 = vadd.f32 %v411, %v586
    %v593 = vadd.f32 %v412, %v588
    %s594 = scalar_lea.vmem %s0, 6
    %v595 = vld [vmem:[%s594] sm:$0x3]
    %s596 = scalar_lea.vmem %s1, 432
    %v597 = vld [vmem:[%s596] sm:$0xff]
    %v598 = vld [vmem:[%s596 + $0x8] sm:$0xff]
    %v599 = vld [vmem:[%s596 + $0x10] sm:$0xff]
    %v600 = vld [vmem:[%s596 + $0x18] sm:$0xff]
    %v601 = vld [vmem:[%s596 + $0x20] sm:$0xff]
    %v602 = vld [vmem:[%s596 + $0x28] sm:$0xff]
    %v603 = vld [vmem:[%s596 + $0x30] sm:$0xff]
    %v604 = vld [vmem:[%s596 + $0x38] sm:$0xff]
    %v605 = vld [vmem:[%s596 + $0x40] sm:$0xff]
    %v606 = vld [vmem:[%s596 + $0x48] sm:$0xff]
    %v607 = vld [vmem:[%s596 + $0x50] sm:$0xff]
    %v608 = vld [vmem:[%s596 + $0x58] sm:$0xff]
    %v609 = vld [vmem:[%s596 + $0x60] sm:$0xff]
    %v610 = vld [vmem:[%s596 + $0x68] sm:$0xff]
    %v611 = vld [vmem:[%s596 + $0x70] sm:$0xff]
    %v612 = vld [vmem:[%s596 + $0x78] sm:$0xff]
    %v613 = vld [vmem:[%s596 + $0x80] sm:$0xff]
    %v614 = vld [vmem:[%s596 + $0x88] sm:$0xff]
    %v617 = vunpack.c.l.s4 1966171168
    %v618 = vunpack.c.0.s8 %v617
    %v619 = vlaneseq
    %v620 = vshrl.u32 %v619, 7
    %v621 = vsub.s32 %v618, %v620
    %v622 = vrot.slane %v595, %v621
    %v623 = vcombine.high %v622, %v622
    %v625 = vunpack.c.l.s4 1966171168
    %v626 = vunpack.c.0.s8 %v625
    %v627 = vlaneseq
    %v628 = vshrl.u32 %v627, 7
    %v629 = vsub.s32 %v626, %v628
    %v630 = vrot.slane %v622, %v629
    %v632 = vunpack.c.l.s4 1966171168
    %v633 = vunpack.c.0.s8 %v632
    %v634 = vlaneseq
    %v635 = vshrl.u32 %v634, 7
    %v636 = vsub.s32 %v633, %v635
    %v637 = vrot.slane %v623, %v636
    %v657 = vunpack.c.l.b16 %v597
    %v658 = vunpack.c.h.b16 %v597
    %v659 = vunpack.c.l.b16 %v598
    %v660 = vunpack.c.h.b16 %v598
    %v661 = vunpack.c.l.b16 %v599
    %v662 = vunpack.c.h.b16 %v599
    %v663 = vunpack.c.l.b16 %v600
    %v664 = vunpack.c.h.b16 %v600
    %v665 = vunpack.c.l.b16 %v601
    %v666 = vunpack.c.h.b16 %v601
    %v667 = vunpack.c.l.b16 %v602
    %v668 = vunpack.c.h.b16 %v602
    %v669 = vunpack.c.l.b16 %v603
    %v670 = vunpack.c.h.b16 %v603
    %v671 = vunpack.c.l.b16 %v604
    %v672 = vunpack.c.h.b16 %v604
    %v673 = vunpack.c.l.b16 %v605
    %v674 = vunpack.c.h.b16 %v605
    %v675 = vunpack.c.l.b16 %v606
    %v676 = vunpack.c.h.b16 %v606
    %v677 = vunpack.c.l.b16 %v607
    %v678 = vunpack.c.h.b16 %v607
    %v679 = vunpack.c.l.b16 %v608
    %v680 = vunpack.c.h.b16 %v608
    %v681 = vunpack.c.l.b16 %v609
    %v682 = vunpack.c.h.b16 %v609
    %v683 = vunpack.c.l.b16 %v610
    %v684 = vunpack.c.h.b16 %v610
    %v685 = vunpack.c.l.b16 %v611
    %v686 = vunpack.c.h.b16 %v611
    %v687 = vunpack.c.l.b16 %v612
    %v688 = vunpack.c.h.b16 %v612
    %v689 = vunpack.c.l.b16 %v613
    %v690 = vunpack.c.h.b16 %v613
    %v691 = vunpack.c.l.b16 %v614
    %v692 = vunpack.c.h.b16 %v614
    %v693 = vpack.c.b16 %v659, %v657
    %v694 = vpack.c.b16 %v660, %v658
    %v695 = vpack.c.b16 %v663, %v661
    %v696 = vpack.c.b16 %v664, %v662
    %v697 = vpack.c.b16 %v667, %v665
    %v698 = vpack.c.b16 %v668, %v666
    %v699 = vpack.c.b16 %v671, %v669
    %v700 = vpack.c.b16 %v672, %v670
    %v701 = vpack.c.b16 %v675, %v673
    %v702 = vpack.c.b16 %v676, %v674
    %v703 = vpack.c.b16 %v679, %v677
    %v704 = vpack.c.b16 %v680, %v678
    %v705 = vpack.c.b16 %v683, %v681
    %v706 = vpack.c.b16 %v684, %v682
    %v707 = vpack.c.b16 %v687, %v685
    %v708 = vpack.c.b16 %v688, %v686
    %v709 = vpack.c.b16 %v691, %v689
    %v710 = vpack.c.b16 %v692, %v690
    %v730 = vsel %vm174, %v637, 0
    %732 = vmatprep.subr.bf16.mxu0 %v694
    %733 = vmatpush1.bf16.msra.mxu0 %v693
    %734 = vmatprep.subr.bf16.mxu0 %v696
    %735 = vmatpush1.bf16.msra.mxu0 %v695
    %736 = vmatprep.subr.bf16.mxu0 %v698
    %737 = vmatpush1.bf16.msra.mxu0 %v697
    %738 = vmatprep.subr.bf16.mxu0 %v700
    %739 = vmatpush1.bf16.msra.mxu0 %v699
    %740 = vmatprep.subr.bf16.mxu0 %v702
    %741 = vmatpush1.bf16.msra.mxu0 %v701
    %742 = vmatprep.subr.bf16.mxu0 %v704
    %743 = vmatpush1.bf16.msra.mxu0 %v703
    %744 = vmatprep.subr.bf16.mxu0 %v706
    %745 = vmatpush1.bf16.msra.mxu0 %v705
    %746 = vmatprep.subr.bf16.mxu0 %v708
    %747 = vmatpush1.bf16.msra.mxu0 %v707
    %748 = vmatprep.subr.bf16.mxu0 %v710
    %749 = vmatpush1.bf16.msra.mxu0 %v709
    %750 = vmatprep.subr.bf16.mxu0 0
    %751 = vmatpush1.bf16.msra.mxu0 0
    %752 = vmatprep.subr.bf16.mxu0 0
    %753 = vmatpush1.bf16.msra.mxu0 0
    %754 = vmatprep.subr.bf16.mxu0 0
    %755 = vmatpush1.bf16.msra.mxu0 0
    %756 = vmatprep.subr.bf16.mxu0 0
    %757 = vmatpush1.bf16.msra.mxu0 0
    %758 = vmatprep.subr.bf16.mxu0 0
    %759 = vmatpush1.bf16.msra.mxu0 0
    %760 = vmatprep.subr.bf16.mxu0 0
    %761 = vmatpush1.bf16.msra.mxu0 0
    %762 = vmatprep.subr.bf16.mxu0 0
    %763 = vmatpush1.bf16.msra.mxu0 0
    %764 = vmatprep.mubr.bf16.mxu0 %v730
    %765 = vmatmul.mubr.bf16.gmra.mrb[0].mxu0 %v630
    %v766 = vpop.f32.mrb[0].mxu0
    %v767 = vadd.f32 0.0, %v766
    %v768 = vpop.f32.mrb[0].mxu0
    %v769 = vadd.f32 0.0, %v768
    %v770 = vpop.f32.mrb[0].mxu0
    %v771 = vpop.f32.mrb[0].mxu0
    %772 = vdwg.mxu0
    %v773 = vadd.f32 %v592, %v767
    %v774 = vadd.f32 %v593, %v769
    %s775 = scalar_lea.vmem %s0, 8
    %v776 = vld [vmem:[%s775] sm:$0x3]
    %s777 = scalar_lea.vmem %s1, 576
    %v778 = vld [vmem:[%s777] sm:$0xff]
    %v779 = vld [vmem:[%s777 + $0x8] sm:$0xff]
    %v780 = vld [vmem:[%s777 + $0x10] sm:$0xff]
    %v781 = vld [vmem:[%s777 + $0x18] sm:$0xff]
    %v782 = vld [vmem:[%s777 + $0x20] sm:$0xff]
    %v783 = vld [vmem:[%s777 + $0x28] sm:$0xff]
    %v784 = vld [vmem:[%s777 + $0x30] sm:$0xff]
    %v785 = vld [vmem:[%s777 + $0x38] sm:$0xff]
    %v786 = vld [vmem:[%s777 + $0x40] sm:$0xff]
    %v787 = vld [vmem:[%s777 + $0x48] sm:$0xff]
    %v788 = vld [vmem:[%s777 + $0x50] sm:$0xff]
    %v789 = vld [vmem:[%s777 + $0x58] sm:$0xff]
    %v790 = vld [vmem:[%s777 + $0x60] sm:$0xff]
    %v791 = vld [vmem:[%s777 + $0x68] sm:$0xff]
    %v792 = vld [vmem:[%s777 + $0x70] sm:$0xff]
    %v793 = vld [vmem:[%s777 + $0x78] sm:$0xff]
    %v794 = vld [vmem:[%s777 + $0x80] sm:$0xff]
    %v795 = vld [vmem:[%s777 + $0x88] sm:$0xff]
    %v798 = vunpack.c.l.s4 1966171168
    %v799 = vunpack.c.0.s8 %v798
    %v800 = vlaneseq
    %v801 = vshrl.u32 %v800, 7
    %v802 = vsub.s32 %v799, %v801
    %v803 = vrot.slane %v776, %v802
    %v804 = vcombine.high %v803, %v803
    %v806 = vunpack.c.l.s4 1966171168
    %v807 = vunpack.c.0.s8 %v806
    %v808 = vlaneseq
    %v809 = vshrl.u32 %v808, 7
    %v810 = vsub.s32 %v807, %v809
    %v811 = vrot.slane %v803, %v810
    %v813 = vunpack.c.l.s4 1966171168
    %v814 = vunpack.c.0.s8 %v813
    %v815 = vlaneseq
    %v816 = vshrl.u32 %v815, 7
    %v817 = vsub.s32 %v814, %v816
    %v818 = vrot.slane %v804, %v817
    %v838 = vunpack.c.l.b16 %v778
    %v839 = vunpack.c.h.b16 %v778
    %v840 = vunpack.c.l.b16 %v779
    %v841 = vunpack.c.h.b16 %v779
    %v842 = vunpack.c.l.b16 %v780
    %v843 = vunpack.c.h.b16 %v780
    %v844 = vunpack.c.l.b16 %v781
    %v845 = vunpack.c.h.b16 %v781
    %v846 = vunpack.c.l.b16 %v782
    %v847 = vunpack.c.h.b16 %v782
    %v848 = vunpack.c.l.b16 %v783
    %v849 = vunpack.c.h.b16 %v783
    %v850 = vunpack.c.l.b16 %v784
    %v851 = vunpack.c.h.b16 %v784
    %v852 = vunpack.c.l.b16 %v785
    %v853 = vunpack.c.h.b16 %v785
    %v854 = vunpack.c.l.b16 %v786
    %v855 = vunpack.c.h.b16 %v786
    %v856 = vunpack.c.l.b16 %v787
    %v857 = vunpack.c.h.b16 %v787
    %v858 = vunpack.c.l.b16 %v788
    %v859 = vunpack.c.h.b16 %v788
    %v860 = vunpack.c.l.b16 %v789
    %v861 = vunpack.c.h.b16 %v789
    %v862 = vunpack.c.l.b16 %v790
    %v863 = vunpack.c.h.b16 %v790
    %v864 = vunpack.c.l.b16 %v791
    %v865 = vunpack.c.h.b16 %v791
    %v866 = vunpack.c.l.b16 %v792
    %v867 = vunpack.c.h.b16 %v792
    %v868 = vunpack.c.l.b16 %v793
    %v869 = vunpack.c.h.b16 %v793
    %v870 = vunpack.c.l.b16 %v794
    %v871 = vunpack.c.h.b16 %v794
    %v872 = vunpack.c.l.b16 %v795
    %v873 = vunpack.c.h.b16 %v795
    %v874 = vpack.c.b16 %v840, %v838
    %v875 = vpack.c.b16 %v841, %v839
    %v876 = vpack.c.b16 %v844, %v842
    %v877 = vpack.c.b16 %v845, %v843
    %v878 = vpack.c.b16 %v848, %v846
    %v879 = vpack.c.b16 %v849, %v847
    %v880 = vpack.c.b16 %v852, %v850
    %v881 = vpack.c.b16 %v853, %v851
    %v882 = vpack.c.b16 %v856, %v854
    %v883 = vpack.c.b16 %v857, %v855
    %v884 = vpack.c.b16 %v860, %v858
    %v885 = vpack.c.b16 %v861, %v859
    %v886 = vpack.c.b16 %v864, %v862
    %v887 = vpack.c.b16 %v865, %v863
    %v888 = vpack.c.b16 %v868, %v866
    %v889 = vpack.c.b16 %v869, %v867
    %v890 = vpack.c.b16 %v872, %v870
    %v891 = vpack.c.b16 %v873, %v871
    %v911 = vsel %vm174, %v818, 0
    %913 = vmatprep.subr.bf16.mxu0 %v875
    %914 = vmatpush1.bf16.msra.mxu0 %v874
    %915 = vmatprep.subr.bf16.mxu0 %v877
    %916 = vmatpush1.bf16.msra.mxu0 %v876
    %917 = vmatprep.subr.bf16.mxu0 %v879
    %918 = vmatpush1.bf16.msra.mxu0 %v878
    %919 = vmatprep.subr.bf16.mxu0 %v881
    %920 = vmatpush1.bf16.msra.mxu0 %v880
    %921 = vmatprep.subr.bf16.mxu0 %v883
    %922 = vmatpush1.bf16.msra.mxu0 %v882
    %923 = vmatprep.subr.bf16.mxu0 %v885
    %924 = vmatpush1.bf16.msra.mxu0 %v884
    %925 = vmatprep.subr.bf16.mxu0 %v887
    %926 = vmatpush1.bf16.msra.mxu0 %v886
    %927 = vmatprep.subr.bf16.mxu0 %v889
    %928 = vmatpush1.bf16.msra.mxu0 %v888
    %929 = vmatprep.subr.bf16.mxu0 %v891
    %930 = vmatpush1.bf16.msra.mxu0 %v890
    %931 = vmatprep.subr.bf16.mxu0 0
    %932 = vmatpush1.bf16.msra.mxu0 0
    %933 = vmatprep.subr.bf16.mxu0 0
    %934 = vmatpush1.bf16.msra.mxu0 0
    %935 = vmatprep.subr.bf16.mxu0 0
    %936 = vmatpush1.bf16.msra.mxu0 0
    %937 = vmatprep.subr.bf16.mxu0 0
    %938 = vmatpush1.bf16.msra.mxu0 0
    %939 = vmatprep.subr.bf16.mxu0 0
    %940 = vmatpush1.bf16.msra.mxu0 0
    %941 = vmatprep.subr.bf16.mxu0 0
    %942 = vmatpush1.bf16.msra.mxu0 0
    %943 = vmatprep.subr.bf16.mxu0 0
    %944 = vmatpush1.bf16.msra.mxu0 0
    %945 = vmatprep.mubr.bf16.mxu0 %v911
    %946 = vmatmul.mubr.bf16.gmra.mrb[0].mxu0 %v811
    %v947 = vpop.f32.mrb[0].mxu0
    %v948 = vadd.f32 0.0, %v947
    %v949 = vpop.f32.mrb[0].mxu0
    %v950 = vadd.f32 0.0, %v949
    %v951 = vpop.f32.mrb[0].mxu0
    %v952 = vpop.f32.mrb[0].mxu0
    %953 = vdwg.mxu0
    %v954 = vadd.f32 %v773, %v948
    %v955 = vadd.f32 %v774, %v950
    %s956 = scalar_lea.vmem %s0, 10
    %v957 = vld [vmem:[%s956] sm:$0x3]
    %s958 = scalar_lea.vmem %s1, 720
    %v959 = vld [vmem:[%s958] sm:$0xff]
    %v960 = vld [vmem:[%s958 + $0x8] sm:$0xff]
    %v961 = vld [vmem:[%s958 + $0x10] sm:$0xff]
    %v962 = vld [vmem:[%s958 + $0x18] sm:$0xff]
    %v963 = vld [vmem:[%s958 + $0x20] sm:$0xff]
    %v964 = vld [vmem:[%s958 + $0x28] sm:$0xff]
    %v965 = vld [vmem:[%s958 + $0x30] sm:$0xff]
    %v966 = vld [vmem:[%s958 + $0x38] sm:$0xff]
    %v967 = vld [vmem:[%s958 + $0x40] sm:$0xff]
    %v968 = vld [vmem:[%s958 + $0x48] sm:$0xff]
    %v969 = vld [vmem:[%s958 + $0x50] sm:$0xff]
    %v970 = vld [vmem:[%s958 + $0x58] sm:$0xff]
    %v971 = vld [vmem:[%s958 + $0x60] sm:$0xff]
    %v972 = vld [vmem:[%s958 + $0x68] sm:$0xff]
    %v973 = vld [vmem:[%s958 + $0x70] sm:$0xff]
    %v974 = vld [vmem:[%s958 + $0x78] sm:$0xff]
    %v975 = vld [vmem:[%s958 + $0x80] sm:$0xff]
    %v976 = vld [vmem:[%s958 + $0x88] sm:$0xff]
    %v979 = vunpack.c.l.s4 1966171168
    %v980 = vunpack.c.0.s8 %v979
    %v981 = vlaneseq
    %v982 = vshrl.u32 %v981, 7
    %v983 = vsub.s32 %v980, %v982
    %v984 = vrot.slane %v957, %v983
    %v985 = vcombine.high %v984, %v984
    %v987 = vunpack.c.l.s4 1966171168
    %v988 = vunpack.c.0.s8 %v987
    %v989 = vlaneseq
    %v990 = vshrl.u32 %v989, 7
    %v991 = vsub.s32 %v988, %v990
    %v992 = vrot.slane %v984, %v991
    %v994 = vunpack.c.l.s4 1966171168
    %v995 = vunpack.c.0.s8 %v994
    %v996 = vlaneseq
    %v997 = vshrl.u32 %v996, 7
    %v998 = vsub.s32 %v995, %v997
    %v999 = vrot.slane %v985, %v998
    %v1019 = vunpack.c.l.b16 %v959
    %v1020 = vunpack.c.h.b16 %v959
    %v1021 = vunpack.c.l.b16 %v960
    %v1022 = vunpack.c.h.b16 %v960
    %v1023 = vunpack.c.l.b16 %v961
    %v1024 = vunpack.c.h.b16 %v961
    %v1025 = vunpack.c.l.b16 %v962
    %v1026 = vunpack.c.h.b16 %v962
    %v1027 = vunpack.c.l.b16 %v963
    %v1028 = vunpack.c.h.b16 %v963
    %v1029 = vunpack.c.l.b16 %v964
    %v1030 = vunpack.c.h.b16 %v964
    %v1031 = vunpack.c.l.b16 %v965
    %v1032 = vunpack.c.h.b16 %v965
    %v1033 = vunpack.c.l.b16 %v966
    %v1034 = vunpack.c.h.b16 %v966
    %v1035 = vunpack.c.l.b16 %v967
    %v1036 = vunpack.c.h.b16 %v967
    %v1037 = vunpack.c.l.b16 %v968
    %v1038 = vunpack.c.h.b16 %v968
    %v1039 = vunpack.c.l.b16 %v969
    %v1040 = vunpack.c.h.b16 %v969
    %v1041 = vunpack.c.l.b16 %v970
    %v1042 = vunpack.c.h.b16 %v970
    %v1043 = vunpack.c.l.b16 %v971
    %v1044 = vunpack.c.h.b16 %v971
    %v1045 = vunpack.c.l.b16 %v972
    %v1046 = vunpack.c.h.b16 %v972
    %v1047 = vunpack.c.l.b16 %v973
    %v1048 = vunpack.c.h.b16 %v973
    %v1049 = vunpack.c.l.b16 %v974
    %v1050 = vunpack.c.h.b16 %v974
    %v1051 = vunpack.c.l.b16 %v975
    %v1052 = vunpack.c.h.b16 %v975
    %v1053 = vunpack.c.l.b16 %v976
    %v1054 = vunpack.c.h.b16 %v976
    %v1055 = vpack.c.b16 %v1021, %v1019
    %v1056 = vpack.c.b16 %v1022, %v1020
    %v1057 = vpack.c.b16 %v1025, %v1023
    %v1058 = vpack.c.b16 %v1026, %v1024
    %v1059 = vpack.c.b16 %v1029, %v1027
    %v1060 = vpack.c.b16 %v1030, %v1028
    %v1061 = vpack.c.b16 %v1033, %v1031
    %v1062 = vpack.c.b16 %v1034, %v1032
    %v1063 = vpack.c.b16 %v1037, %v1035
    %v1064 = vpack.c.b16 %v1038, %v1036
    %v1065 = vpack.c.b16 %v1041, %v1039
    %v1066 = vpack.c.b16 %v1042, %v1040
    %v1067 = vpack.c.b16 %v1045, %v1043
    %v1068 = vpack.c.b16 %v1046, %v1044
    %v1069 = vpack.c.b16 %v1049, %v1047
    %v1070 = vpack.c.b16 %v1050, %v1048
    %v1071 = vpack.c.b16 %v1053, %v1051
    %v1072 = vpack.c.b16 %v1054, %v1052
    %v1092 = vsel %vm174, %v999, 0
    %1094 = vmatprep.subr.bf16.mxu0 %v1056
    %1095 = vmatpush1.bf16.msra.mxu0 %v1055
    %1096 = vmatprep.subr.bf16.mxu0 %v1058
    %1097 = vmatpush1.bf16.msra.mxu0 %v1057
    %1098 = vmatprep.subr.bf16.mxu0 %v1060
    %1099 = vmatpush1.bf16.msra.mxu0 %v1059
    %1100 = vmatprep.subr.bf16.mxu0 %v1062
    %1101 = vmatpush1.bf16.msra.mxu0 %v1061
    %1102 = vmatprep.subr.bf16.mxu0 %v1064
    %1103 = vmatpush1.bf16.msra.mxu0 %v1063
    %1104 = vmatprep.subr.bf16.mxu0 %v1066
    %1105 = vmatpush1.bf16.msra.mxu0 %v1065
    %1106 = vmatprep.subr.bf16.mxu0 %v1068
    %1107 = vmatpush1.bf16.msra.mxu0 %v1067
    %1108 = vmatprep.subr.bf16.mxu0 %v1070
    %1109 = vmatpush1.bf16.msra.mxu0 %v1069
    %1110 = vmatprep.subr.bf16.mxu0 %v1072
    %1111 = vmatpush1.bf16.msra.mxu0 %v1071
    %1112 = vmatprep.subr.bf16.mxu0 0
    %1113 = vmatpush1.bf16.msra.mxu0 0
    %1114 = vmatprep.subr.bf16.mxu0 0
    %1115 = vmatpush1.bf16.msra.mxu0 0
    %1116 = vmatprep.subr.bf16.mxu0 0
    %1117 = vmatpush1.bf16.msra.mxu0 0
    %1118 = vmatprep.subr.bf16.mxu0 0
    %1119 = vmatpush1.bf16.msra.mxu0 0
    %1120 = vmatprep.subr.bf16.mxu0 0
    %1121 = vmatpush1.bf16.msra.mxu0 0
    %1122 = vmatprep.subr.bf16.mxu0 0
    %1123 = vmatpush1.bf16.msra.mxu0 0
    %1124 = vmatprep.subr.bf16.mxu0 0
    %1125 = vmatpush1.bf16.msra.mxu0 0
    %1126 = vmatprep.mubr.bf16.mxu0 %v1092
    %1127 = vmatmul.mubr.bf16.gmra.mrb[0].mxu0 %v992
    %v1128 = vpop.f32.mrb[0].mxu0
    %v1129 = vadd.f32 0.0, %v1128
    %v1130 = vpop.f32.mrb[0].mxu0
    %v1131 = vadd.f32 0.0, %v1130
    %v1132 = vpop.f32.mrb[0].mxu0
    %v1133 = vpop.f32.mrb[0].mxu0
    %1134 = vdwg.mxu0
    %v1135 = vadd.f32 %v954, %v1129
    %v1136 = vadd.f32 %v955, %v1131
    %s1137 = scalar_lea.vmem %s0, 12
    %v1138 = vld [vmem:[%s1137] sm:$0x3]
    %s1139 = scalar_lea.vmem %s1, 864
    %v1140 = vld [vmem:[%s1139] sm:$0xff]
    %v1141 = vld [vmem:[%s1139 + $0x8] sm:$0xff]
    %v1142 = vld [vmem:[%s1139 + $0x10] sm:$0xff]
    %v1143 = vld [vmem:[%s1139 + $0x18] sm:$0xff]
    %v1144 = vld [vmem:[%s1139 + $0x20] sm:$0xff]
    %v1145 = vld [vmem:[%s1139 + $0x28] sm:$0xff]
    %v1146 = vld [vmem:[%s1139 + $0x30] sm:$0xff]
    %v1147 = vld [vmem:[%s1139 + $0x38] sm:$0xff]
    %v1148 = vld [vmem:[%s1139 + $0x40] sm:$0xff]
    %v1149 = vld [vmem:[%s1139 + $0x48] sm:$0xff]
    %v1150 = vld [vmem:[%s1139 + $0x50] sm:$0xff]
    %v1151 = vld [vmem:[%s1139 + $0x58] sm:$0xff]
    %v1152 = vld [vmem:[%s1139 + $0x60] sm:$0xff]
    %v1153 = vld [vmem:[%s1139 + $0x68] sm:$0xff]
    %v1154 = vld [vmem:[%s1139 + $0x70] sm:$0xff]
    %v1155 = vld [vmem:[%s1139 + $0x78] sm:$0xff]
    %v1156 = vld [vmem:[%s1139 + $0x80] sm:$0xff]
    %v1157 = vld [vmem:[%s1139 + $0x88] sm:$0xff]
    %v1160 = vunpack.c.l.s4 1966171168
    %v1161 = vunpack.c.0.s8 %v1160
    %v1162 = vlaneseq
    %v1163 = vshrl.u32 %v1162, 7
    %v1164 = vsub.s32 %v1161, %v1163
    %v1165 = vrot.slane %v1138, %v1164
    %v1166 = vcombine.high %v1165, %v1165
    %v1168 = vunpack.c.l.s4 1966171168
    %v1169 = vunpack.c.0.s8 %v1168
    %v1170 = vlaneseq
    %v1171 = vshrl.u32 %v1170, 7
    %v1172 = vsub.s32 %v1169, %v1171
    %v1173 = vrot.slane %v1165, %v1172
    %v1175 = vunpack.c.l.s4 1966171168
    %v1176 = vunpack.c.0.s8 %v1175
    %v1177 = vlaneseq
    %v1178 = vshrl.u32 %v1177, 7
    %v1179 = vsub.s32 %v1176, %v1178
    %v1180 = vrot.slane %v1166, %v1179
    %v1200 = vunpack.c.l.b16 %v1140
    %v1201 = vunpack.c.h.b16 %v1140
    %v1202 = vunpack.c.l.b16 %v1141
    %v1203 = vunpack.c.h.b16 %v1141
    %v1204 = vunpack.c.l.b16 %v1142
    %v1205 = vunpack.c.h.b16 %v1142
    %v1206 = vunpack.c.l.b16 %v1143
    %v1207 = vunpack.c.h.b16 %v1143
    %v1208 = vunpack.c.l.b16 %v1144
    %v1209 = vunpack.c.h.b16 %v1144
    %v1210 = vunpack.c.l.b16 %v1145
    %v1211 = vunpack.c.h.b16 %v1145
    %v1212 = vunpack.c.l.b16 %v1146
    %v1213 = vunpack.c.h.b16 %v1146
    %v1214 = vunpack.c.l.b16 %v1147
    %v1215 = vunpack.c.h.b16 %v1147
    %v1216 = vunpack.c.l.b16 %v1148
    %v1217 = vunpack.c.h.b16 %v1148
    %v1218 = vunpack.c.l.b16 %v1149
    %v1219 = vunpack.c.h.b16 %v1149
    %v1220 = vunpack.c.l.b16 %v1150
    %v1221 = vunpack.c.h.b16 %v1150
    %v1222 = vunpack.c.l.b16 %v1151
    %v1223 = vunpack.c.h.b16 %v1151
    %v1224 = vunpack.c.l.b16 %v1152
    %v1225 = vunpack.c.h.b16 %v1152
    %v1226 = vunpack.c.l.b16 %v1153
    %v1227 = vunpack.c.h.b16 %v1153
    %v1228 = vunpack.c.l.b16 %v1154
    %v1229 = vunpack.c.h.b16 %v1154
    %v1230 = vunpack.c.l.b16 %v1155
    %v1231 = vunpack.c.h.b16 %v1155
    %v1232 = vunpack.c.l.b16 %v1156
    %v1233 = vunpack.c.h.b16 %v1156
    %v1234 = vunpack.c.l.b16 %v1157
    %v1235 = vunpack.c.h.b16 %v1157
    %v1236 = vpack.c.b16 %v1202, %v1200
    %v1237 = vpack.c.b16 %v1203, %v1201
    %v1238 = vpack.c.b16 %v1206, %v1204
    %v1239 = vpack.c.b16 %v1207, %v1205
    %v1240 = vpack.c.b16 %v1210, %v1208
    %v1241 = vpack.c.b16 %v1211, %v1209
    %v1242 = vpack.c.b16 %v1214, %v1212
    %v1243 = vpack.c.b16 %v1215, %v1213
    %v1244 = vpack.c.b16 %v1218, %v1216
    %v1245 = vpack.c.b16 %v1219, %v1217
    %v1246 = vpack.c.b16 %v1222, %v1220
    %v1247 = vpack.c.b16 %v1223, %v1221
    %v1248 = vpack.c.b16 %v1226, %v1224
    %v1249 = vpack.c.b16 %v1227, %v1225
    %v1250 = vpack.c.b16 %v1230, %v1228
    %v1251 = vpack.c.b16 %v1231, %v1229
    %v1252 = vpack.c.b16 %v1234, %v1232
    %v1253 = vpack.c.b16 %v1235, %v1233
    %v1273 = vsel %vm174, %v1180, 0
    %1275 = vmatprep.subr.bf16.mxu0 %v1237
    %1276 = vmatpush1.bf16.msra.mxu0 %v1236
    %1277 = vmatprep.subr.bf16.mxu0 %v1239
    %1278 = vmatpush1.bf16.msra.mxu0 %v1238
    %1279 = vmatprep.subr.bf16.mxu0 %v1241
    %1280 = vmatpush1.bf16.msra.mxu0 %v1240
    %1281 = vmatprep.subr.bf16.mxu0 %v1243
    %1282 = vmatpush1.bf16.msra.mxu0 %v1242
    %1283 = vmatprep.subr.bf16.mxu0 %v1245
    %1284 = vmatpush1.bf16.msra.mxu0 %v1244
    %1285 = vmatprep.subr.bf16.mxu0 %v1247
    %1286 = vmatpush1.bf16.msra.mxu0 %v1246
    %1287 = vmatprep.subr.bf16.mxu0 %v1249
    %1288 = vmatpush1.bf16.msra.mxu0 %v1248
    %1289 = vmatprep.subr.bf16.mxu0 %v1251
    %1290 = vmatpush1.bf16.msra.mxu0 %v1250
    %1291 = vmatprep.subr.bf16.mxu0 %v1253
    %1292 = vmatpush1.bf16.msra.mxu0 %v1252
    %1293 = vmatprep.subr.bf16.mxu0 0
    %1294 = vmatpush1.bf16.msra.mxu0 0
    %1295 = vmatprep.subr.bf16.mxu0 0
    %1296 = vmatpush1.bf16.msra.mxu0 0
    %1297 = vmatprep.subr.bf16.mxu0 0
    %1298 = vmatpush1.bf16.msra.mxu0 0
    %1299 = vmatprep.subr.bf16.mxu0 0
    %1300 = vmatpush1.bf16.msra.mxu0 0
    %1301 = vmatprep.subr.bf16.mxu0 0
    %1302 = vmatpush1.bf16.msra.mxu0 0
    %1303 = vmatprep.subr.bf16.mxu0 0
    %1304 = vmatpush1.bf16.msra.mxu0 0
    %1305 = vmatprep.subr.bf16.mxu0 0
    %1306 = vmatpush1.bf16.msra.mxu0 0
    %1307 = vmatprep.mubr.bf16.mxu0 %v1273
    %1308 = vmatmul.mubr.bf16.gmra.mrb[0].mxu0 %v1173
    %v1309 = vpop.f32.mrb[0].mxu0
    %v1310 = vadd.f32 0.0, %v1309
    %v1311 = vpop.f32.mrb[0].mxu0
    %v1312 = vadd.f32 0.0, %v1311
    %v1313 = vpop.f32.mrb[0].mxu0
    %v1314 = vpop.f32.mrb[0].mxu0
    %1315 = vdwg.mxu0
    %v1316 = vadd.f32 %v1135, %v1310
    %v1317 = vadd.f32 %v1136, %v1312
    %s1318 = scalar_lea.vmem %s0, 14
    %v1319 = vld [vmem:[%s1318] sm:$0x3]
    %s1320 = scalar_lea.vmem %s1, 1008
    %v1321 = vld [vmem:[%s1320] sm:$0xff]
    %v1322 = vld [vmem:[%s1320 + $0x8] sm:$0xff]
    %v1323 = vld [vmem:[%s1320 + $0x10] sm:$0xff]
    %v1324 = vld [vmem:[%s1320 + $0x18] sm:$0xff]
    %v1325 = vld [vmem:[%s1320 + $0x20] sm:$0xff]
    %v1326 = vld [vmem:[%s1320 + $0x28] sm:$0xff]
    %v1327 = vld [vmem:[%s1320 + $0x30] sm:$0xff]
    %v1328 = vld [vmem:[%s1320 + $0x38] sm:$0xff]
    %v1329 = vld [vmem:[%s1320 + $0x40] sm:$0xff]
    %v1330 = vld [vmem:[%s1320 + $0x48] sm:$0xff]
    %v1331 = vld [vmem:[%s1320 + $0x50] sm:$0xff]
    %v1332 = vld [vmem:[%s1320 + $0x58] sm:$0xff]
    %v1333 = vld [vmem:[%s1320 + $0x60] sm:$0xff]
    %v1334 = vld [vmem:[%s1320 + $0x68] sm:$0xff]
    %v1335 = vld [vmem:[%s1320 + $0x70] sm:$0xff]
    %v1336 = vld [vmem:[%s1320 + $0x78] sm:$0xff]
    %v1337 = vld [vmem:[%s1320 + $0x80] sm:$0xff]
    %v1338 = vld [vmem:[%s1320 + $0x88] sm:$0xff]
    %v1341 = vunpack.c.l.s4 1966171168
    %v1342 = vunpack.c.0.s8 %v1341
    %v1343 = vlaneseq
    %v1344 = vshrl.u32 %v1343, 7
    %v1345 = vsub.s32 %v1342, %v1344
    %v1346 = vrot.slane %v1319, %v1345
    %v1347 = vcombine.high %v1346, %v1346
    %v1349 = vunpack.c.l.s4 1966171168
    %v1350 = vunpack.c.0.s8 %v1349
    %v1351 = vlaneseq
    %v1352 = vshrl.u32 %v1351, 7
    %v1353 = vsub.s32 %v1350, %v1352
    %v1354 = vrot.slane %v1346, %v1353
    %v1356 = vunpack.c.l.s4 1966171168
    %v1357 = vunpack.c.0.s8 %v1356
    %v1358 = vlaneseq
    %v1359 = vshrl.u32 %v1358, 7
    %v1360 = vsub.s32 %v1357, %v1359
    %v1361 = vrot.slane %v1347, %v1360
    %v1381 = vunpack.c.l.b16 %v1321
    %v1382 = vunpack.c.h.b16 %v1321
    %v1383 = vunpack.c.l.b16 %v1322
    %v1384 = vunpack.c.h.b16 %v1322
    %v1385 = vunpack.c.l.b16 %v1323
    %v1386 = vunpack.c.h.b16 %v1323
    %v1387 = vunpack.c.l.b16 %v1324
    %v1388 = vunpack.c.h.b16 %v1324
    %v1389 = vunpack.c.l.b16 %v1325
    %v1390 = vunpack.c.h.b16 %v1325
    %v1391 = vunpack.c.l.b16 %v1326
    %v1392 = vunpack.c.h.b16 %v1326
    %v1393 = vunpack.c.l.b16 %v1327
    %v1394 = vunpack.c.h.b16 %v1327
    %v1395 = vunpack.c.l.b16 %v1328
    %v1396 = vunpack.c.h.b16 %v1328
    %v1397 = vunpack.c.l.b16 %v1329
    %v1398 = vunpack.c.h.b16 %v1329
    %v1399 = vunpack.c.l.b16 %v1330
    %v1400 = vunpack.c.h.b16 %v1330
    %v1401 = vunpack.c.l.b16 %v1331
    %v1402 = vunpack.c.h.b16 %v1331
    %v1403 = vunpack.c.l.b16 %v1332
    %v1404 = vunpack.c.h.b16 %v1332
    %v1405 = vunpack.c.l.b16 %v1333
    %v1406 = vunpack.c.h.b16 %v1333
    %v1407 = vunpack.c.l.b16 %v1334
    %v1408 = vunpack.c.h.b16 %v1334
    %v1409 = vunpack.c.l.b16 %v1335
    %v1410 = vunpack.c.h.b16 %v1335
    %v1411 = vunpack.c.l.b16 %v1336
    %v1412 = vunpack.c.h.b16 %v1336
    %v1413 = vunpack.c.l.b16 %v1337
    %v1414 = vunpack.c.h.b16 %v1337
    %v1415 = vunpack.c.l.b16 %v1338
    %v1416 = vunpack.c.h.b16 %v1338
    %v1417 = vpack.c.b16 %v1383, %v1381
    %v1418 = vpack.c.b16 %v1384, %v1382
    %v1419 = vpack.c.b16 %v1387, %v1385
    %v1420 = vpack.c.b16 %v1388, %v1386
    %v1421 = vpack.c.b16 %v1391, %v1389
    %v1422 = vpack.c.b16 %v1392, %v1390
    %v1423 = vpack.c.b16 %v1395, %v1393
    %v1424 = vpack.c.b16 %v1396, %v1394
    %v1425 = vpack.c.b16 %v1399, %v1397
    %v1426 = vpack.c.b16 %v1400, %v1398
    %v1427 = vpack.c.b16 %v1403, %v1401
    %v1428 = vpack.c.b16 %v1404, %v1402
    %v1429 = vpack.c.b16 %v1407, %v1405
    %v1430 = vpack.c.b16 %v1408, %v1406
    %v1431 = vpack.c.b16 %v1411, %v1409
    %v1432 = vpack.c.b16 %v1412, %v1410
    %v1433 = vpack.c.b16 %v1415, %v1413
    %v1434 = vpack.c.b16 %v1416, %v1414
    %v1454 = vsel %vm174, %v1361, 0
    %1456 = vmatprep.subr.bf16.mxu0 %v1418
    %1457 = vmatpush1.bf16.msra.mxu0 %v1417
    %1458 = vmatprep.subr.bf16.mxu0 %v1420
    %1459 = vmatpush1.bf16.msra.mxu0 %v1419
    %1460 = vmatprep.subr.bf16.mxu0 %v1422
    %1461 = vmatpush1.bf16.msra.mxu0 %v1421
    %1462 = vmatprep.subr.bf16.mxu0 %v1424
    %1463 = vmatpush1.bf16.msra.mxu0 %v1423
    %1464 = vmatprep.subr.bf16.mxu0 %v1426
    %1465 = vmatpush1.bf16.msra.mxu0 %v1425
    %1466 = vmatprep.subr.bf16.mxu0 %v1428
    %1467 = vmatpush1.bf16.msra.mxu0 %v1427
    %1468 = vmatprep.subr.bf16.mxu0 %v1430
    %1469 = vmatpush1.bf16.msra.mxu0 %v1429
    %1470 = vmatprep.subr.bf16.mxu0 %v1432
    %1471 = vmatpush1.bf16.msra.mxu0 %v1431
    %1472 = vmatprep.subr.bf16.mxu0 %v1434
    %1473 = vmatpush1.bf16.msra.mxu0 %v1433
    %1474 = vmatprep.subr.bf16.mxu0 0
    %1475 = vmatpush1.bf16.msra.mxu0 0
    %1476 = vmatprep.subr.bf16.mxu0 0
    %1477 = vmatpush1.bf16.msra.mxu0 0
    %1478 = vmatprep.subr.bf16.mxu0 0
    %1479 = vmatpush1.bf16.msra.mxu0 0
    %1480 = vmatprep.subr.bf16.mxu0 0
    %1481 = vmatpush1.bf16.msra.mxu0 0
    %1482 = vmatprep.subr.bf16.mxu0 0
    %1483 = vmatpush1.bf16.msra.mxu0 0
    %1484 = vmatprep.subr.bf16.mxu0 0
    %1485 = vmatpush1.bf16.msra.mxu0 0
    %1486 = vmatprep.subr.bf16.mxu0 0
    %1487 = vmatpush1.bf16.msra.mxu0 0
    %1488 = vmatprep.mubr.bf16.mxu0 %v1454
    %1489 = vmatmul.mubr.bf16.gmra.mrb[0].mxu0 %v1354
    %v1490 = vpop.f32.mrb[0].mxu0
    %v1491 = vadd.f32 0.0, %v1490
    %v1492 = vpop.f32.mrb[0].mxu0
    %v1493 = vadd.f32 0.0, %v1492
    %v1494 = vpop.f32.mrb[0].mxu0
    %v1495 = vpop.f32.mrb[0].mxu0
    %1496 = vdwg.mxu0
    %v1497 = vadd.f32 %v1316, %v1491
    %v1498 = vadd.f32 %v1317, %v1493
    %v1499 = vmax.f32 %v1497, 0.0
    %v1500 = vmax.f32 %v1498, 0.0
    %v1501 = vpack.c.bf16 %v1499, %v1499
    %v1502 = vpack.c.bf16 %v1500, %v1500
    %1503 = vmatprep.subr.bf16.mxu0 %v139
    %1504 = vmatpush1.bf16.msra.mxu0 %v138
    %1505 = vmatprep.subr.bf16.mxu0 %v141
    %1506 = vmatpush1.bf16.msra.mxu0 %v140
    %1507 = vmatprep.subr.bf16.mxu0 %v143
    %1508 = vmatpush1.bf16.msra.mxu0 %v142
    %1509 = vmatprep.subr.bf16.mxu0 %v145
    %1510 = vmatpush1.bf16.msra.mxu0 %v144
    %1511 = vmatprep.subr.bf16.mxu0 %v147
    %1512 = vmatpush1.bf16.msra.mxu0 %v146
    %1513 = vmatprep.subr.bf16.mxu0 %v149
    %1514 = vmatpush1.bf16.msra.mxu0 %v148
    %1515 = vmatprep.subr.bf16.mxu0 %v151
    %1516 = vmatpush1.bf16.msra.mxu0 %v150
    %1517 = vmatprep.subr.bf16.mxu0 %v153
    %1518 = vmatpush1.bf16.msra.mxu0 %v152
    %1519 = vmatprep.subr.bf16.mxu0 %v155
    %1520 = vmatpush1.bf16.msra.mxu0 %v154
    %1521 = vmatprep.subr.bf16.mxu0 0
    %1522 = vmatpush1.bf16.msra.mxu0 0
    %1523 = vmatprep.subr.bf16.mxu0 0
    %1524 = vmatpush1.bf16.msra.mxu0 0
    %1525 = vmatprep.subr.bf16.mxu0 0
    %1526 = vmatpush1.bf16.msra.mxu0 0
    %1527 = vmatprep.subr.bf16.mxu0 0
    %1528 = vmatpush1.bf16.msra.mxu0 0
    %1529 = vmatprep.subr.bf16.mxu0 0
    %1530 = vmatpush1.bf16.msra.mxu0 0
    %1531 = vmatprep.subr.bf16.mxu0 0
    %1532 = vmatpush1.bf16.msra.mxu0 0
    %1533 = vmatprep.subr.bf16.mxu0 0
    %1534 = vmatpush1.bf16.msra.mxu0 0
    %1535 = vmatprep.mubr.bf16.mxu0 %v911
    %1536 = vmatmul.mubr.bf16.gmra.mrb[0].mxu0 %v811
    %v1537 = vpop.f32.mrb[0].mxu0
    %v1538 = vadd.f32 0.0, %v1537
    %v1539 = vpop.f32.mrb[0].mxu0
    %v1540 = vadd.f32 0.0, %v1539
    %v1541 = vpop.f32.mrb[0].mxu0
    %v1542 = vpop.f32.mrb[0].mxu0
    %1543 = vdwg.mxu0
    %v1544 = vadd.f32 %v223, %v1538
    %v1545 = vadd.f32 %v227, %v1540
    %1546 = vmatprep.subr.bf16.mxu0 %v332
    %1547 = vmatpush1.bf16.msra.mxu0 %v331
    %1548 = vmatprep.subr.bf16.mxu0 %v334
    %1549 = vmatpush1.bf16.msra.mxu0 %v333
    %1550 = vmatprep.subr.bf16.mxu0 %v336
    %1551 = vmatpush1.bf16.msra.mxu0 %v335
    %1552 = vmatprep.subr.bf16.mxu0 %v338
    %1553 = vmatpush1.bf16.msra.mxu0 %v337
    %1554 = vmatprep.subr.bf16.mxu0 %v340
    %1555 = vmatpush1.bf16.msra.mxu0 %v339
    %1556 = vmatprep.subr.bf16.mxu0 %v342
    %1557 = vmatpush1.bf16.msra.mxu0 %v341
    %1558 = vmatprep.subr.bf16.mxu0 %v344
    %1559 = vmatpush1.bf16.msra.mxu0 %v343
    %1560 = vmatprep.subr.bf16.mxu0 %v346
    %1561 = vmatpush1.bf16.msra.mxu0 %v345
    %1562 = vmatprep.subr.bf16.mxu0 %v348
    %1563 = vmatpush1.bf16.msra.mxu0 %v347
    %1564 = vmatprep.subr.bf16.mxu0 0
    %1565 = vmatpush1.bf16.msra.mxu0 0
    %1566 = vmatprep.subr.bf16.mxu0 0
    %1567 = vmatpush1.bf16.msra.mxu0 0
    %1568 = vmatprep.subr.bf16.mxu0 0
    %1569 = vmatpush1.bf16.msra.mxu0 0
    %1570 = vmatprep.subr.bf16.mxu0 0
    %1571 = vmatpush1.bf16.msra.mxu0 0
    %1572 = vmatprep.subr.bf16.mxu0 0
    %1573 = vmatpush1.bf16.msra.mxu0 0
    %1574 = vmatprep.subr.bf16.mxu0 0
    %1575 = vmatpush1.bf16.msra.mxu0 0
    %1576 = vmatprep.subr.bf16.mxu0 0
    %1577 = vmatpush1.bf16.msra.mxu0 0
    %1578 = vmatprep.mubr.bf16.mxu0 %v1092
    %1579 = vmatmul.mubr.bf16.gmra.mrb[0].mxu0 %v992
    %v1580 = vpop.f32.mrb[0].mxu0
    %v1581 = vadd.f32 0.0, %v1580
    %v1582 = vpop.f32.mrb[0].mxu0
    %v1583 = vadd.f32 0.0, %v1582
    %v1584 = vpop.f32.mrb[0].mxu0
    %v1585 = vpop.f32.mrb[0].mxu0
    %1586 = vdwg.mxu0
    %v1587 = vadd.f32 %v1544, %v1581
    %v1588 = vadd.f32 %v1545, %v1583
    %1589 = vmatprep.subr.bf16.mxu0 %v513
    %1590 = vmatpush1.bf16.msra.mxu0 %v512
    %1591 = vmatprep.subr.bf16.mxu0 %v515
    %1592 = vmatpush1.bf16.msra.mxu0 %v514
    %1593 = vmatprep.subr.bf16.mxu0 %v517
    %1594 = vmatpush1.bf16.msra.mxu0 %v516
    %1595 = vmatprep.subr.bf16.mxu0 %v519
    %1596 = vmatpush1.bf16.msra.mxu0 %v518
    %1597 = vmatprep.subr.bf16.mxu0 %v521
    %1598 = vmatpush1.bf16.msra.mxu0 %v520
    %1599 = vmatprep.subr.bf16.mxu0 %v523
    %1600 = vmatpush1.bf16.msra.mxu0 %v522
    %1601 = vmatprep.subr.bf16.mxu0 %v525
    %1602 = vmatpush1.bf16.msra.mxu0 %v524
    %1603 = vmatprep.subr.bf16.mxu0 %v527
    %1604 = vmatpush1.bf16.msra.mxu0 %v526
    %1605 = vmatprep.subr.bf16.mxu0 %v529
    %1606 = vmatpush1.bf16.msra.mxu0 %v528
    %1607 = vmatprep.subr.bf16.mxu0 0
    %1608 = vmatpush1.bf16.msra.mxu0 0
    %1609 = vmatprep.subr.bf16.mxu0 0
    %1610 = vmatpush1.bf16.msra.mxu0 0
    %1611 = vmatprep.subr.bf16.mxu0 0
    %1612 = vmatpush1.bf16.msra.mxu0 0
    %1613 = vmatprep.subr.bf16.mxu0 0
    %1614 = vmatpush1.bf16.msra.mxu0 0
    %1615 = vmatprep.subr.bf16.mxu0 0
    %1616 = vmatpush1.bf16.msra.mxu0 0
    %1617 = vmatprep.subr.bf16.mxu0 0
    %1618 = vmatpush1.bf16.msra.mxu0 0
    %1619 = vmatprep.subr.bf16.mxu0 0
    %1620 = vmatpush1.bf16.msra.mxu0 0
    %1621 = vmatprep.mubr.bf16.mxu0 %v1273
    %1622 = vmatmul.mubr.bf16.gmra.mrb[0].mxu0 %v1173
    %v1623 = vpop.f32.mrb[0].mxu0
    %v1624 = vadd.f32 0.0, %v1623
    %v1625 = vpop.f32.mrb[0].mxu0
    %v1626 = vadd.f32 0.0, %v1625
    %v1627 = vpop.f32.mrb[0].mxu0
    %v1628 = vpop.f32.mrb[0].mxu0
    %1629 = vdwg.mxu0
    %v1630 = vadd.f32 %v1587, %v1624
    %v1631 = vadd.f32 %v1588, %v1626
    %1632 = vmatprep.subr.bf16.mxu0 %v694
    %1633 = vmatpush1.bf16.msra.mxu0 %v693
    %1634 = vmatprep.subr.bf16.mxu0 %v696
    %1635 = vmatpush1.bf16.msra.mxu0 %v695
    %1636 = vmatprep.subr.bf16.mxu0 %v698
    %1637 = vmatpush1.bf16.msra.mxu0 %v697
    %1638 = vmatprep.subr.bf16.mxu0 %v700
    %1639 = vmatpush1.bf16.msra.mxu0 %v699
    %1640 = vmatprep.subr.bf16.mxu0 %v702
    %1641 = vmatpush1.bf16.msra.mxu0 %v701
    %1642 = vmatprep.subr.bf16.mxu0 %v704
    %1643 = vmatpush1.bf16.msra.mxu0 %v703
    %1644 = vmatprep.subr.bf16.mxu0 %v706
    %1645 = vmatpush1.bf16.msra.mxu0 %v705
    %1646 = vmatprep.subr.bf16.mxu0 %v708
    %1647 = vmatpush1.bf16.msra.mxu0 %v707
    %1648 = vmatprep.subr.bf16.mxu0 %v710
    %1649 = vmatpush1.bf16.msra.mxu0 %v709
    %1650 = vmatprep.subr.bf16.mxu0 0
    %1651 = vmatpush1.bf16.msra.mxu0 0
    %1652 = vmatprep.subr.bf16.mxu0 0
    %1653 = vmatpush1.bf16.msra.mxu0 0
    %1654 = vmatprep.subr.bf16.mxu0 0
    %1655 = vmatpush1.bf16.msra.mxu0 0
    %1656 = vmatprep.subr.bf16.mxu0 0
    %1657 = vmatpush1.bf16.msra.mxu0 0
    %1658 = vmatprep.subr.bf16.mxu0 0
    %1659 = vmatpush1.bf16.msra.mxu0 0
    %1660 = vmatprep.subr.bf16.mxu0 0
    %1661 = vmatpush1.bf16.msra.mxu0 0
    %1662 = vmatprep.subr.bf16.mxu0 0
    %1663 = vmatpush1.bf16.msra.mxu0 0
    %1664 = vmatprep.mubr.bf16.mxu0 %v1454
    %1665 = vmatmul.mubr.bf16.gmra.mrb[0].mxu0 %v1354
    %v1666 = vpop.f32.mrb[0].mxu0
    %v1667 = vadd.f32 0.0, %v1666
    %v1668 = vpop.f32.mrb[0].mxu0
    %v1669 = vadd.f32 0.0, %v1668
    %v1670 = vpop.f32.mrb[0].mxu0
    %v1671 = vpop.f32.mrb[0].mxu0
    %1672 = vdwg.mxu0
    %v1673 = vadd.f32 %v1630, %v1667
    %v1674 = vadd.f32 %v1631, %v1669
    %s1675 = scalar_lea.vmem %s0, 16
    %v1676 = vld [vmem:[%s1675] sm:$0x3]
    %v1679 = vunpack.c.l.s4 1966171168
    %v1680 = vunpack.c.0.s8 %v1679
    %v1681 = vlaneseq
    %v1682 = vshrl.u32 %v1681, 7
    %v1683 = vsub.s32 %v1680, %v1682
    %v1684 = vrot.slane %v1676, %v1683
    %v1685 = vcombine.high %v1684, %v1684
    %v1687 = vunpack.c.l.s4 1966171168
    %v1688 = vunpack.c.0.s8 %v1687
    %v1689 = vlaneseq
    %v1690 = vshrl.u32 %v1689, 7
    %v1691 = vsub.s32 %v1688, %v1690
    %v1692 = vrot.slane %v1684, %v1691
    %v1694 = vunpack.c.l.s4 1966171168
    %v1695 = vunpack.c.0.s8 %v1694
    %v1696 = vlaneseq
    %v1697 = vshrl.u32 %v1696, 7
    %v1698 = vsub.s32 %v1695, %v1697
    %v1699 = vrot.slane %v1685, %v1698
    %v1702 = vsel %vm174, %v1699, 0
    %1704 = vmatprep.subr.bf16.mxu0 %v875
    %1705 = vmatpush1.bf16.msra.mxu0 %v874
    %1706 = vmatprep.subr.bf16.mxu0 %v877
    %1707 = vmatpush1.bf16.msra.mxu0 %v876
    %1708 = vmatprep.subr.bf16.mxu0 %v879
    %1709 = vmatpush1.bf16.msra.mxu0 %v878
    %1710 = vmatprep.subr.bf16.mxu0 %v881
    %1711 = vmatpush1.bf16.msra.mxu0 %v880
    %1712 = vmatprep.subr.bf16.mxu0 %v883
    %1713 = vmatpush1.bf16.msra.mxu0 %v882
    %1714 = vmatprep.subr.bf16.mxu0 %v885
    %1715 = vmatpush1.bf16.msra.mxu0 %v884
    %1716 = vmatprep.subr.bf16.mxu0 %v887
    %1717 = vmatpush1.bf16.msra.mxu0 %v886
    %1718 = vmatprep.subr.bf16.mxu0 %v889
    %1719 = vmatpush1.bf16.msra.mxu0 %v888
    %1720 = vmatprep.subr.bf16.mxu0 %v891
    %1721 = vmatpush1.bf16.msra.mxu0 %v890
    %1722 = vmatprep.subr.bf16.mxu0 0
    %1723 = vmatpush1.bf16.msra.mxu0 0
    %1724 = vmatprep.subr.bf16.mxu0 0
    %1725 = vmatpush1.bf16.msra.mxu0 0
    %1726 = vmatprep.subr.bf16.mxu0 0
    %1727 = vmatpush1.bf16.msra.mxu0 0
    %1728 = vmatprep.subr.bf16.mxu0 0
    %1729 = vmatpush1.bf16.msra.mxu0 0
    %1730 = vmatprep.subr.bf16.mxu0 0
    %1731 = vmatpush1.bf16.msra.mxu0 0
    %1732 = vmatprep.subr.bf16.mxu0 0
    %1733 = vmatpush1.bf16.msra.mxu0 0
    %1734 = vmatprep.subr.bf16.mxu0 0
    %1735 = vmatpush1.bf16.msra.mxu0 0
    %1736 = vmatprep.mubr.bf16.mxu0 %v1702
    %1737 = vmatmul.mubr.bf16.gmra.mrb[0].mxu0 %v1692
    %v1738 = vpop.f32.mrb[0].mxu0
    %v1739 = vadd.f32 0.0, %v1738
    %v1740 = vpop.f32.mrb[0].mxu0
    %v1741 = vadd.f32 0.0, %v1740
    %v1742 = vpop.f32.mrb[0].mxu0
    %v1743 = vpop.f32.mrb[0].mxu0
    %1744 = vdwg.mxu0
    %v1745 = vadd.f32 %v1673, %v1739
    %v1746 = vadd.f32 %v1674, %v1741
    %s1747 = scalar_lea.vmem %s0, 18
    %v1748 = vld [vmem:[%s1747] sm:$0x3]
    %v1751 = vunpack.c.l.s4 1966171168
    %v1752 = vunpack.c.0.s8 %v1751
    %v1753 = vlaneseq
    %v1754 = vshrl.u32 %v1753, 7
    %v1755 = vsub.s32 %v1752, %v1754
    %v1756 = vrot.slane %v1748, %v1755
    %v1757 = vcombine.high %v1756, %v1756
    %v1759 = vunpack.c.l.s4 1966171168
    %v1760 = vunpack.c.0.s8 %v1759
    %v1761 = vlaneseq
    %v1762 = vshrl.u32 %v1761, 7
    %v1763 = vsub.s32 %v1760, %v1762
    %v1764 = vrot.slane %v1756, %v1763
    %v1766 = vunpack.c.l.s4 1966171168
    %v1767 = vunpack.c.0.s8 %v1766
    %v1768 = vlaneseq
    %v1769 = vshrl.u32 %v1768, 7
    %v1770 = vsub.s32 %v1767, %v1769
    %v1771 = vrot.slane %v1757, %v1770
    %v1774 = vsel %vm174, %v1771, 0
    %1776 = vmatprep.subr.bf16.mxu0 %v1056
    %1777 = vmatpush1.bf16.msra.mxu0 %v1055
    %1778 = vmatprep.subr.bf16.mxu0 %v1058
    %1779 = vmatpush1.bf16.msra.mxu0 %v1057
    %1780 = vmatprep.subr.bf16.mxu0 %v1060
    %1781 = vmatpush1.bf16.msra.mxu0 %v1059
    %1782 = vmatprep.subr.bf16.mxu0 %v1062
    %1783 = vmatpush1.bf16.msra.mxu0 %v1061
    %1784 = vmatprep.subr.bf16.mxu0 %v1064
    %1785 = vmatpush1.bf16.msra.mxu0 %v1063
    %1786 = vmatprep.subr.bf16.mxu0 %v1066
    %1787 = vmatpush1.bf16.msra.mxu0 %v1065
    %1788 = vmatprep.subr.bf16.mxu0 %v1068
    %1789 = vmatpush1.bf16.msra.mxu0 %v1067
    %1790 = vmatprep.subr.bf16.mxu0 %v1070
    %1791 = vmatpush1.bf16.msra.mxu0 %v1069
    %1792 = vmatprep.subr.bf16.mxu0 %v1072
    %1793 = vmatpush1.bf16.msra.mxu0 %v1071
    %1794 = vmatprep.subr.bf16.mxu0 0
    %1795 = vmatpush1.bf16.msra.mxu0 0
    %1796 = vmatprep.subr.bf16.mxu0 0
    %1797 = vmatpush1.bf16.msra.mxu0 0
    %1798 = vmatprep.subr.bf16.mxu0 0
    %1799 = vmatpush1.bf16.msra.mxu0 0
    %1800 = vmatprep.subr.bf16.mxu0 0
    %1801 = vmatpush1.bf16.msra.mxu0 0
    %1802 = vmatprep.subr.bf16.mxu0 0
    %1803 = vmatpush1.bf16.msra.mxu0 0
    %1804 = vmatprep.subr.bf16.mxu0 0
    %1805 = vmatpush1.bf16.msra.mxu0 0
    %1806 = vmatprep.subr.bf16.mxu0 0
    %1807 = vmatpush1.bf16.msra.mxu0 0
    %1808 = vmatprep.mubr.bf16.mxu0 %v1774
    %1809 = vmatmul.mubr.bf16.gmra.mrb[0].mxu0 %v1764
    %v1810 = vpop.f32.mrb[0].mxu0
    %v1811 = vadd.f32 0.0, %v1810
    %v1812 = vpop.f32.mrb[0].mxu0
    %v1813 = vadd.f32 0.0, %v1812
    %v1814 = vpop.f32.mrb[0].mxu0
    %v1815 = vpop.f32.mrb[0].mxu0
    %1816 = vdwg.mxu0
    %v1817 = vadd.f32 %v1745, %v1811
    %v1818 = vadd.f32 %v1746, %v1813
    %s1819 = scalar_lea.vmem %s0, 20
    %v1820 = vld [vmem:[%s1819] sm:$0x3]
    %v1823 = vunpack.c.l.s4 1966171168
    %v1824 = vunpack.c.0.s8 %v1823
    %v1825 = vlaneseq
    %v1826 = vshrl.u32 %v1825, 7
    %v1827 = vsub.s32 %v1824, %v1826
    %v1828 = vrot.slane %v1820, %v1827
    %v1829 = vcombine.high %v1828, %v1828
    %v1831 = vunpack.c.l.s4 1966171168
    %v1832 = vunpack.c.0.s8 %v1831
    %v1833 = vlaneseq
    %v1834 = vshrl.u32 %v1833, 7
    %v1835 = vsub.s32 %v1832, %v1834
    %v1836 = vrot.slane %v1828, %v1835
    %v1838 = vunpack.c.l.s4 1966171168
    %v1839 = vunpack.c.0.s8 %v1838
    %v1840 = vlaneseq
    %v1841 = vshrl.u32 %v1840, 7
    %v1842 = vsub.s32 %v1839, %v1841
    %v1843 = vrot.slane %v1829, %v1842
    %v1846 = vsel %vm174, %v1843, 0
    %1848 = vmatprep.subr.bf16.mxu0 %v1237
    %1849 = vmatpush1.bf16.msra.mxu0 %v1236
    %1850 = vmatprep.subr.bf16.mxu0 %v1239
    %1851 = vmatpush1.bf16.msra.mxu0 %v1238
    %1852 = vmatprep.subr.bf16.mxu0 %v1241
    %1853 = vmatpush1.bf16.msra.mxu0 %v1240
    %1854 = vmatprep.subr.bf16.mxu0 %v1243
    %1855 = vmatpush1.bf16.msra.mxu0 %v1242
    %1856 = vmatprep.subr.bf16.mxu0 %v1245
    %1857 = vmatpush1.bf16.msra.mxu0 %v1244
    %1858 = vmatprep.subr.bf16.mxu0 %v1247
    %1859 = vmatpush1.bf16.msra.mxu0 %v1246
    %1860 = vmatprep.subr.bf16.mxu0 %v1249
    %1861 = vmatpush1.bf16.msra.mxu0 %v1248
    %1862 = vmatprep.subr.bf16.mxu0 %v1251
    %1863 = vmatpush1.bf16.msra.mxu0 %v1250
    %1864 = vmatprep.subr.bf16.mxu0 %v1253
    %1865 = vmatpush1.bf16.msra.mxu0 %v1252
    %1866 = vmatprep.subr.bf16.mxu0 0
    %1867 = vmatpush1.bf16.msra.mxu0 0
    %1868 = vmatprep.subr.bf16.mxu0 0
    %1869 = vmatpush1.bf16.msra.mxu0 0
    %1870 = vmatprep.subr.bf16.mxu0 0
    %1871 = vmatpush1.bf16.msra.mxu0 0
    %1872 = vmatprep.subr.bf16.mxu0 0
    %1873 = vmatpush1.bf16.msra.mxu0 0
    %1874 = vmatprep.subr.bf16.mxu0 0
    %1875 = vmatpush1.bf16.msra.mxu0 0
    %1876 = vmatprep.subr.bf16.mxu0 0
    %1877 = vmatpush1.bf16.msra.mxu0 0
    %1878 = vmatprep.subr.bf16.mxu0 0
    %1879 = vmatpush1.bf16.msra.mxu0 0
    %1880 = vmatprep.mubr.bf16.mxu0 %v1846
    %1881 = vmatmul.mubr.bf16.gmra.mrb[0].mxu0 %v1836
    %v1882 = vpop.f32.mrb[0].mxu0
    %v1883 = vadd.f32 0.0, %v1882
    %v1884 = vpop.f32.mrb[0].mxu0
    %v1885 = vadd.f32 0.0, %v1884
    %v1886 = vpop.f32.mrb[0].mxu0
    %v1887 = vpop.f32.mrb[0].mxu0
    %1888 = vdwg.mxu0
    %v1889 = vadd.f32 %v1817, %v1883
    %v1890 = vadd.f32 %v1818, %v1885
    %s1891 = scalar_lea.vmem %s0, 22
    %v1892 = vld [vmem:[%s1891] sm:$0x3]
    %v1895 = vunpack.c.l.s4 1966171168
    %v1896 = vunpack.c.0.s8 %v1895
    %v1897 = vlaneseq
    %v1898 = vshrl.u32 %v1897, 7
    %v1899 = vsub.s32 %v1896, %v1898
    %v1900 = vrot.slane %v1892, %v1899
    %v1901 = vcombine.high %v1900, %v1900
    %v1903 = vunpack.c.l.s4 1966171168
    %v1904 = vunpack.c.0.s8 %v1903
    %v1905 = vlaneseq
    %v1906 = vshrl.u32 %v1905, 7
    %v1907 = vsub.s32 %v1904, %v1906
    %v1908 = vrot.slane %v1900, %v1907
    %v1910 = vunpack.c.l.s4 1966171168
    %v1911 = vunpack.c.0.s8 %v1910
    %v1912 = vlaneseq
    %v1913 = vshrl.u32 %v1912, 7
    %v1914 = vsub.s32 %v1911, %v1913
    %v1915 = vrot.slane %v1901, %v1914
    %v1918 = vsel %vm174, %v1915, 0
    %1920 = vmatprep.subr.bf16.mxu0 %v1418
    %1921 = vmatpush1.bf16.msra.mxu0 %v1417
    %1922 = vmatprep.subr.bf16.mxu0 %v1420
    %1923 = vmatpush1.bf16.msra.mxu0 %v1419
    %1924 = vmatprep.subr.bf16.mxu0 %v1422
    %1925 = vmatpush1.bf16.msra.mxu0 %v1421
    %1926 = vmatprep.subr.bf16.mxu0 %v1424
    %1927 = vmatpush1.bf16.msra.mxu0 %v1423
    %1928 = vmatprep.subr.bf16.mxu0 %v1426
    %1929 = vmatpush1.bf16.msra.mxu0 %v1425
    %1930 = vmatprep.subr.bf16.mxu0 %v1428
    %1931 = vmatpush1.bf16.msra.mxu0 %v1427
    %1932 = vmatprep.subr.bf16.mxu0 %v1430
    %1933 = vmatpush1.bf16.msra.mxu0 %v1429
    %1934 = vmatprep.subr.bf16.mxu0 %v1432
    %1935 = vmatpush1.bf16.msra.mxu0 %v1431
    %1936 = vmatprep.subr.bf16.mxu0 %v1434
    %1937 = vmatpush1.bf16.msra.mxu0 %v1433
    %1938 = vmatprep.subr.bf16.mxu0 0
    %1939 = vmatpush1.bf16.msra.mxu0 0
    %1940 = vmatprep.subr.bf16.mxu0 0
    %1941 = vmatpush1.bf16.msra.mxu0 0
    %1942 = vmatprep.subr.bf16.mxu0 0
    %1943 = vmatpush1.bf16.msra.mxu0 0
    %1944 = vmatprep.subr.bf16.mxu0 0
    %1945 = vmatpush1.bf16.msra.mxu0 0
    %1946 = vmatprep.subr.bf16.mxu0 0
    %1947 = vmatpush1.bf16.msra.mxu0 0
    %1948 = vmatprep.subr.bf16.mxu0 0
    %1949 = vmatpush1.bf16.msra.mxu0 0
    %1950 = vmatprep.subr.bf16.mxu0 0
    %1951 = vmatpush1.bf16.msra.mxu0 0
    %1952 = vmatprep.mubr.bf16.mxu0 %v1918
    %1953 = vmatmul.mubr.bf16.gmra.mrb[0].mxu0 %v1908
    %v1954 = vpop.f32.mrb[0].mxu0
    %v1955 = vadd.f32 0.0, %v1954
    %v1956 = vpop.f32.mrb[0].mxu0
    %v1957 = vadd.f32 0.0, %v1956
    %v1958 = vpop.f32.mrb[0].mxu0
    %v1959 = vpop.f32.mrb[0].mxu0
    %1960 = vdwg.mxu0
    %v1961 = vadd.f32 %v1889, %v1955
    %v1962 = vadd.f32 %v1890, %v1957
    %v1963 = vmax.f32 %v1961, 0.0
    %v1964 = vmax.f32 %v1962, 0.0
    %v1965 = vpack.c.bf16 %v1963, %v1963
    %v1966 = vpack.c.bf16 %v1964, %v1964
    %1967 = vmatprep.subr.bf16.mxu0 %v139
    %1968 = vmatpush1.bf16.msra.mxu0 %v138
    %1969 = vmatprep.subr.bf16.mxu0 %v141
    %1970 = vmatpush1.bf16.msra.mxu0 %v140
    %1971 = vmatprep.subr.bf16.mxu0 %v143
    %1972 = vmatpush1.bf16.msra.mxu0 %v142
    %1973 = vmatprep.subr.bf16.mxu0 %v145
    %1974 = vmatpush1.bf16.msra.mxu0 %v144
    %1975 = vmatprep.subr.bf16.mxu0 %v147
    %1976 = vmatpush1.bf16.msra.mxu0 %v146
    %1977 = vmatprep.subr.bf16.mxu0 %v149
    %1978 = vmatpush1.bf16.msra.mxu0 %v148
    %1979 = vmatprep.subr.bf16.mxu0 %v151
    %1980 = vmatpush1.bf16.msra.mxu0 %v150
    %1981 = vmatprep.subr.bf16.mxu0 %v153
    %1982 = vmatpush1.bf16.msra.mxu0 %v152
    %1983 = vmatprep.subr.bf16.mxu0 %v155
    %1984 = vmatpush1.bf16.msra.mxu0 %v154
    %1985 = vmatprep.subr.bf16.mxu0 0
    %1986 = vmatpush1.bf16.msra.mxu0 0
    %1987 = vmatprep.subr.bf16.mxu0 0
    %1988 = vmatpush1.bf16.msra.mxu0 0
    %1989 = vmatprep.subr.bf16.mxu0 0
    %1990 = vmatpush1.bf16.msra.mxu0 0
    %1991 = vmatprep.subr.bf16.mxu0 0
    %1992 = vmatpush1.bf16.msra.mxu0 0
    %1993 = vmatprep.subr.bf16.mxu0 0
    %1994 = vmatpush1.bf16.msra.mxu0 0
    %1995 = vmatprep.subr.bf16.mxu0 0
    %1996 = vmatpush1.bf16.msra.mxu0 0
    %1997 = vmatprep.subr.bf16.mxu0 0
    %1998 = vmatpush1.bf16.msra.mxu0 0
    %1999 = vmatprep.mubr.bf16.mxu0 %v1702
    %2000 = vmatmul.mubr.bf16.gmra.mrb[0].mxu0 %v1692
    %v2001 = vpop.f32.mrb[0].mxu0
    %v2002 = vadd.f32 0.0, %v2001
    %v2003 = vpop.f32.mrb[0].mxu0
    %v2004 = vadd.f32 0.0, %v2003
    %v2005 = vpop.f32.mrb[0].mxu0
    %v2006 = vpop.f32.mrb[0].mxu0
    %2007 = vdwg.mxu0
    %v2008 = vadd.f32 %v223, %v2002
    %v2009 = vadd.f32 %v227, %v2004
    %2010 = vmatprep.subr.bf16.mxu0 %v332
    %2011 = vmatpush1.bf16.msra.mxu0 %v331
    %2012 = vmatprep.subr.bf16.mxu0 %v334
    %2013 = vmatpush1.bf16.msra.mxu0 %v333
    %2014 = vmatprep.subr.bf16.mxu0 %v336
    %2015 = vmatpush1.bf16.msra.mxu0 %v335
    %2016 = vmatprep.subr.bf16.mxu0 %v338
    %2017 = vmatpush1.bf16.msra.mxu0 %v337
    %2018 = vmatprep.subr.bf16.mxu0 %v340
    %2019 = vmatpush1.bf16.msra.mxu0 %v339
    %2020 = vmatprep.subr.bf16.mxu0 %v342
    %2021 = vmatpush1.bf16.msra.mxu0 %v341
    %2022 = vmatprep.subr.bf16.mxu0 %v344
    %2023 = vmatpush1.bf16.msra.mxu0 %v343
    %2024 = vmatprep.subr.bf16.mxu0 %v346
    %2025 = vmatpush1.bf16.msra.mxu0 %v345
    %2026 = vmatprep.subr.bf16.mxu0 %v348
    %2027 = vmatpush1.bf16.msra.mxu0 %v347
    %2028 = vmatprep.subr.bf16.mxu0 0
    %2029 = vmatpush1.bf16.msra.mxu0 0
    %2030 = vmatprep.subr.bf16.mxu0 0
    %2031 = vmatpush1.bf16.msra.mxu0 0
    %2032 = vmatprep.subr.bf16.mxu0 0
    %2033 = vmatpush1.bf16.msra.mxu0 0
    %2034 = vmatprep.subr.bf16.mxu0 0
    %2035 = vmatpush1.bf16.msra.mxu0 0
    %2036 = vmatprep.subr.bf16.mxu0 0
    %2037 = vmatpush1.bf16.msra.mxu0 0
    %2038 = vmatprep.subr.bf16.mxu0 0
    %2039 = vmatpush1.bf16.msra.mxu0 0
    %2040 = vmatprep.subr.bf16.mxu0 0
    %2041 = vmatpush1.bf16.msra.mxu0 0
    %2042 = vmatprep.mubr.bf16.mxu0 %v1774
    %2043 = vmatmul.mubr.bf16.gmra.mrb[0].mxu0 %v1764
    %v2044 = vpop.f32.mrb[0].mxu0
    %v2045 = vadd.f32 0.0, %v2044
    %v2046 = vpop.f32.mrb[0].mxu0
    %v2047 = vadd.f32 0.0, %v2046
    %v2048 = vpop.f32.mrb[0].mxu0
    %v2049 = vpop.f32.mrb[0].mxu0
    %2050 = vdwg.mxu0
    %v2051 = vadd.f32 %v2008, %v2045
    %v2052 = vadd.f32 %v2009, %v2047
    %2053 = vmatprep.subr.bf16.mxu0 %v513
    %2054 = vmatpush1.bf16.msra.mxu0 %v512
    %2055 = vmatprep.subr.bf16.mxu0 %v515
    %2056 = vmatpush1.bf16.msra.mxu0 %v514
    %2057 = vmatprep.subr.bf16.mxu0 %v517
    %2058 = vmatpush1.bf16.msra.mxu0 %v516
    %2059 = vmatprep.subr.bf16.mxu0 %v519
    %2060 = vmatpush1.bf16.msra.mxu0 %v518
    %2061 = vmatprep.subr.bf16.mxu0 %v521
    %2062 = vmatpush1.bf16.msra.mxu0 %v520
    %2063 = vmatprep.subr.bf16.mxu0 %v523
    %2064 = vmatpush1.bf16.msra.mxu0 %v522
    %2065 = vmatprep.subr.bf16.mxu0 %v525
    %2066 = vmatpush1.bf16.msra.mxu0 %v524
    %2067 = vmatprep.subr.bf16.mxu0 %v527
    %2068 = vmatpush1.bf16.msra.mxu0 %v526
    %2069 = vmatprep.subr.bf16.mxu0 %v529
    %2070 = vmatpush1.bf16.msra.mxu0 %v528
    %2071 = vmatprep.subr.bf16.mxu0 0
    %2072 = vmatpush1.bf16.msra.mxu0 0
    %2073 = vmatprep.subr.bf16.mxu0 0
    %2074 = vmatpush1.bf16.msra.mxu0 0
    %2075 = vmatprep.subr.bf16.mxu0 0
    %2076 = vmatpush1.bf16.msra.mxu0 0
    %2077 = vmatprep.subr.bf16.mxu0 0
    %2078 = vmatpush1.bf16.msra.mxu0 0
    %2079 = vmatprep.subr.bf16.mxu0 0
    %2080 = vmatpush1.bf16.msra.mxu0 0
    %2081 = vmatprep.subr.bf16.mxu0 0
    %2082 = vmatpush1.bf16.msra.mxu0 0
    %2083 = vmatprep.subr.bf16.mxu0 0
    %2084 = vmatpush1.bf16.msra.mxu0 0
    %2085 = vmatprep.mubr.bf16.mxu0 %v1846
    %2086 = vmatmul.mubr.bf16.gmra.mrb[0].mxu0 %v1836
    %v2087 = vpop.f32.mrb[0].mxu0
    %v2088 = vadd.f32 0.0, %v2087
    %v2089 = vpop.f32.mrb[0].mxu0
    %v2090 = vadd.f32 0.0, %v2089
    %v2091 = vpop.f32.mrb[0].mxu0
    %v2092 = vpop.f32.mrb[0].mxu0
    %2093 = vdwg.mxu0
    %v2094 = vadd.f32 %v2051, %v2088
    %v2095 = vadd.f32 %v2052, %v2090
    %2096 = vmatprep.subr.bf16.mxu0 %v694
    %2097 = vmatpush1.bf16.msra.mxu0 %v693
    %2098 = vmatprep.subr.bf16.mxu0 %v696
    %2099 = vmatpush1.bf16.msra.mxu0 %v695
    %2100 = vmatprep.subr.bf16.mxu0 %v698
    %2101 = vmatpush1.bf16.msra.mxu0 %v697
    %2102 = vmatprep.subr.bf16.mxu0 %v700
    %2103 = vmatpush1.bf16.msra.mxu0 %v699
    %2104 = vmatprep.subr.bf16.mxu0 %v702
    %2105 = vmatpush1.bf16.msra.mxu0 %v701
    %2106 = vmatprep.subr.bf16.mxu0 %v704
    %2107 = vmatpush1.bf16.msra.mxu0 %v703
    %2108 = vmatprep.subr.bf16.mxu0 %v706
    %2109 = vmatpush1.bf16.msra.mxu0 %v705
    %2110 = vmatprep.subr.bf16.mxu0 %v708
    %2111 = vmatpush1.bf16.msra.mxu0 %v707
    %2112 = vmatprep.subr.bf16.mxu0 %v710
    %2113 = vmatpush1.bf16.msra.mxu0 %v709
    %2114 = vmatprep.subr.bf16.mxu0 0
    %2115 = vmatpush1.bf16.msra.mxu0 0
    %2116 = vmatprep.subr.bf16.mxu0 0
    %2117 = vmatpush1.bf16.msra.mxu0 0
    %2118 = vmatprep.subr.bf16.mxu0 0
    %2119 = vmatpush1.bf16.msra.mxu0 0
    %2120 = vmatprep.subr.bf16.mxu0 0
    %2121 = vmatpush1.bf16.msra.mxu0 0
    %2122 = vmatprep.subr.bf16.mxu0 0
    %2123 = vmatpush1.bf16.msra.mxu0 0
    %2124 = vmatprep.subr.bf16.mxu0 0
    %2125 = vmatpush1.bf16.msra.mxu0 0
    %2126 = vmatprep.subr.bf16.mxu0 0
    %2127 = vmatpush1.bf16.msra.mxu0 0
    %2128 = vmatprep.mubr.bf16.mxu0 %v1918
    %2129 = vmatmul.mubr.bf16.gmra.mrb[0].mxu0 %v1908
    %v2130 = vpop.f32.mrb[0].mxu0
    %v2131 = vadd.f32 0.0, %v2130
    %v2132 = vpop.f32.mrb[0].mxu0
    %v2133 = vadd.f32 0.0, %v2132
    %v2134 = vpop.f32.mrb[0].mxu0
    %v2135 = vpop.f32.mrb[0].mxu0
    %2136 = vdwg.mxu0
    %v2137 = vadd.f32 %v2094, %v2131
    %v2138 = vadd.f32 %v2095, %v2133
    %s2139 = scalar_lea.vmem %s0, 24
    %v2140 = vld [vmem:[%s2139] sm:$0x3]
    %v2143 = vunpack.c.l.s4 1966171168
    %v2144 = vunpack.c.0.s8 %v2143
    %v2145 = vlaneseq
    %v2146 = vshrl.u32 %v2145, 7
    %v2147 = vsub.s32 %v2144, %v2146
    %v2148 = vrot.slane %v2140, %v2147
    %v2149 = vcombine.high %v2148, %v2148
    %v2151 = vunpack.c.l.s4 1966171168
    %v2152 = vunpack.c.0.s8 %v2151
    %v2153 = vlaneseq
    %v2154 = vshrl.u32 %v2153, 7
    %v2155 = vsub.s32 %v2152, %v2154
    %v2156 = vrot.slane %v2148, %v2155
    %v2158 = vunpack.c.l.s4 1966171168
    %v2159 = vunpack.c.0.s8 %v2158
    %v2160 = vlaneseq
    %v2161 = vshrl.u32 %v2160, 7
    %v2162 = vsub.s32 %v2159, %v2161
    %v2163 = vrot.slane %v2149, %v2162
    %v2166 = vsel %vm174, %v2163, 0
    %2168 = vmatprep.subr.bf16.mxu0 %v875
    %2169 = vmatpush1.bf16.msra.mxu0 %v874
    %2170 = vmatprep.subr.bf16.mxu0 %v877
    %2171 = vmatpush1.bf16.msra.mxu0 %v876
    %2172 = vmatprep.subr.bf16.mxu0 %v879
    %2173 = vmatpush1.bf16.msra.mxu0 %v878
    %2174 = vmatprep.subr.bf16.mxu0 %v881
    %2175 = vmatpush1.bf16.msra.mxu0 %v880
    %2176 = vmatprep.subr.bf16.mxu0 %v883
    %2177 = vmatpush1.bf16.msra.mxu0 %v882
    %2178 = vmatprep.subr.bf16.mxu0 %v885
    %2179 = vmatpush1.bf16.msra.mxu0 %v884
    %2180 = vmatprep.subr.bf16.mxu0 %v887
    %2181 = vmatpush1.bf16.msra.mxu0 %v886
    %2182 = vmatprep.subr.bf16.mxu0 %v889
    %2183 = vmatpush1.bf16.msra.mxu0 %v888
    %2184 = vmatprep.subr.bf16.mxu0 %v891
    %2185 = vmatpush1.bf16.msra.mxu0 %v890
    %2186 = vmatprep.subr.bf16.mxu0 0
    %2187 = vmatpush1.bf16.msra.mxu0 0
    %2188 = vmatprep.subr.bf16.mxu0 0
    %2189 = vmatpush1.bf16.msra.mxu0 0
    %2190 = vmatprep.subr.bf16.mxu0 0
    %2191 = vmatpush1.bf16.msra.mxu0 0
    %2192 = vmatprep.subr.bf16.mxu0 0
    %2193 = vmatpush1.bf16.msra.mxu0 0
    %2194 = vmatprep.subr.bf16.mxu0 0
    %2195 = vmatpush1.bf16.msra.mxu0 0
    %2196 = vmatprep.subr.bf16.mxu0 0
    %2197 = vmatpush1.bf16.msra.mxu0 0
    %2198 = vmatprep.subr.bf16.mxu0 0
    %2199 = vmatpush1.bf16.msra.mxu0 0
    %2200 = vmatprep.mubr.bf16.mxu0 %v2166
    %2201 = vmatmul.mubr.bf16.gmra.mrb[0].mxu0 %v2156
    %v2202 = vpop.f32.mrb[0].mxu0
    %v2203 = vadd.f32 0.0, %v2202
    %v2204 = vpop.f32.mrb[0].mxu0
    %v2205 = vadd.f32 0.0, %v2204
    %v2206 = vpop.f32.mrb[0].mxu0
    %v2207 = vpop.f32.mrb[0].mxu0
    %2208 = vdwg.mxu0
    %v2209 = vadd.f32 %v2137, %v2203
    %v2210 = vadd.f32 %v2138, %v2205
    %s2211 = scalar_lea.vmem %s0, 26
    %v2212 = vld [vmem:[%s2211] sm:$0x3]
    %v2215 = vunpack.c.l.s4 1966171168
    %v2216 = vunpack.c.0.s8 %v2215
    %v2217 = vlaneseq
    %v2218 = vshrl.u32 %v2217, 7
    %v2219 = vsub.s32 %v2216, %v2218
    %v2220 = vrot.slane %v2212, %v2219
    %v2221 = vcombine.high %v2220, %v2220
    %v2223 = vunpack.c.l.s4 1966171168
    %v2224 = vunpack.c.0.s8 %v2223
    %v2225 = vlaneseq
    %v2226 = vshrl.u32 %v2225, 7
    %v2227 = vsub.s32 %v2224, %v2226
    %v2228 = vrot.slane %v2220, %v2227
    %v2230 = vunpack.c.l.s4 1966171168
    %v2231 = vunpack.c.0.s8 %v2230
    %v2232 = vlaneseq
    %v2233 = vshrl.u32 %v2232, 7
    %v2234 = vsub.s32 %v2231, %v2233
    %v2235 = vrot.slane %v2221, %v2234
    %v2238 = vsel %vm174, %v2235, 0
    %2240 = vmatprep.subr.bf16.mxu0 %v1056
    %2241 = vmatpush1.bf16.msra.mxu0 %v1055
    %2242 = vmatprep.subr.bf16.mxu0 %v1058
    %2243 = vmatpush1.bf16.msra.mxu0 %v1057
    %2244 = vmatprep.subr.bf16.mxu0 %v1060
    %2245 = vmatpush1.bf16.msra.mxu0 %v1059
    %2246 = vmatprep.subr.bf16.mxu0 %v1062
    %2247 = vmatpush1.bf16.msra.mxu0 %v1061
    %2248 = vmatprep.subr.bf16.mxu0 %v1064
    %2249 = vmatpush1.bf16.msra.mxu0 %v1063
    %2250 = vmatprep.subr.bf16.mxu0 %v1066
    %2251 = vmatpush1.bf16.msra.mxu0 %v1065
    %2252 = vmatprep.subr.bf16.mxu0 %v1068
    %2253 = vmatpush1.bf16.msra.mxu0 %v1067
    %2254 = vmatprep.subr.bf16.mxu0 %v1070
    %2255 = vmatpush1.bf16.msra.mxu0 %v1069
    %2256 = vmatprep.subr.bf16.mxu0 %v1072
    %2257 = vmatpush1.bf16.msra.mxu0 %v1071
    %2258 = vmatprep.subr.bf16.mxu0 0
    %2259 = vmatpush1.bf16.msra.mxu0 0
    %2260 = vmatprep.subr.bf16.mxu0 0
    %2261 = vmatpush1.bf16.msra.mxu0 0
    %2262 = vmatprep.subr.bf16.mxu0 0
    %2263 = vmatpush1.bf16.msra.mxu0 0
    %2264 = vmatprep.subr.bf16.mxu0 0
    %2265 = vmatpush1.bf16.msra.mxu0 0
    %2266 = vmatprep.subr.bf16.mxu0 0
    %2267 = vmatpush1.bf16.msra.mxu0 0
    %2268 = vmatprep.subr.bf16.mxu0 0
    %2269 = vmatpush1.bf16.msra.mxu0 0
    %2270 = vmatprep.subr.bf16.mxu0 0
    %2271 = vmatpush1.bf16.msra.mxu0 0
    %2272 = vmatprep.mubr.bf16.mxu0 %v2238
    %2273 = vmatmul.mubr.bf16.gmra.mrb[0].mxu0 %v2228
    %v2274 = vpop.f32.mrb[0].mxu0
    %v2275 = vadd.f32 0.0, %v2274
    %v2276 = vpop.f32.mrb[0].mxu0
    %v2277 = vadd.f32 0.0, %v2276
    %v2278 = vpop.f32.mrb[0].mxu0
    %v2279 = vpop.f32.mrb[0].mxu0
    %2280 = vdwg.mxu0
    %v2281 = vadd.f32 %v2209, %v2275
    %v2282 = vadd.f32 %v2210, %v2277
    %s2283 = scalar_lea.vmem %s0, 28
    %v2284 = vld [vmem:[%s2283] sm:$0x3]
    %v2287 = vunpack.c.l.s4 1966171168
    %v2288 = vunpack.c.0.s8 %v2287
    %v2289 = vlaneseq
    %v2290 = vshrl.u32 %v2289, 7
    %v2291 = vsub.s32 %v2288, %v2290
    %v2292 = vrot.slane %v2284, %v2291
    %v2293 = vcombine.high %v2292, %v2292
    %v2295 = vunpack.c.l.s4 1966171168
    %v2296 = vunpack.c.0.s8 %v2295
    %v2297 = vlaneseq
    %v2298 = vshrl.u32 %v2297, 7
    %v2299 = vsub.s32 %v2296, %v2298
    %v2300 = vrot.slane %v2292, %v2299
    %v2302 = vunpack.c.l.s4 1966171168
    %v2303 = vunpack.c.0.s8 %v2302
    %v2304 = vlaneseq
    %v2305 = vshrl.u32 %v2304, 7
    %v2306 = vsub.s32 %v2303, %v2305
    %v2307 = vrot.slane %v2293, %v2306
    %v2310 = vsel %vm174, %v2307, 0
    %2312 = vmatprep.subr.bf16.mxu0 %v1237
    %2313 = vmatpush1.bf16.msra.mxu0 %v1236
    %2314 = vmatprep.subr.bf16.mxu0 %v1239
    %2315 = vmatpush1.bf16.msra.mxu0 %v1238
    %2316 = vmatprep.subr.bf16.mxu0 %v1241
    %2317 = vmatpush1.bf16.msra.mxu0 %v1240
    %2318 = vmatprep.subr.bf16.mxu0 %v1243
    %2319 = vmatpush1.bf16.msra.mxu0 %v1242
    %2320 = vmatprep.subr.bf16.mxu0 %v1245
    %2321 = vmatpush1.bf16.msra.mxu0 %v1244
    %2322 = vmatprep.subr.bf16.mxu0 %v1247
    %2323 = vmatpush1.bf16.msra.mxu0 %v1246
    %2324 = vmatprep.subr.bf16.mxu0 %v1249
    %2325 = vmatpush1.bf16.msra.mxu0 %v1248
    %2326 = vmatprep.subr.bf16.mxu0 %v1251
    %2327 = vmatpush1.bf16.msra.mxu0 %v1250
    %2328 = vmatprep.subr.bf16.mxu0 %v1253
    %2329 = vmatpush1.bf16.msra.mxu0 %v1252
    %2330 = vmatprep.subr.bf16.mxu0 0
    %2331 = vmatpush1.bf16.msra.mxu0 0
    %2332 = vmatprep.subr.bf16.mxu0 0
    %2333 = vmatpush1.bf16.msra.mxu0 0
    %2334 = vmatprep.subr.bf16.mxu0 0
    %2335 = vmatpush1.bf16.msra.mxu0 0
    %2336 = vmatprep.subr.bf16.mxu0 0
    %2337 = vmatpush1.bf16.msra.mxu0 0
    %2338 = vmatprep.subr.bf16.mxu0 0
    %2339 = vmatpush1.bf16.msra.mxu0 0
    %2340 = vmatprep.subr.bf16.mxu0 0
    %2341 = vmatpush1.bf16.msra.mxu0 0
    %2342 = vmatprep.subr.bf16.mxu0 0
    %2343 = vmatpush1.bf16.msra.mxu0 0
    %2344 = vmatprep.mubr.bf16.mxu0 %v2310
    %2345 = vmatmul.mubr.bf16.gmra.mrb[0].mxu0 %v2300
    %v2346 = vpop.f32.mrb[0].mxu0
    %v2347 = vadd.f32 0.0, %v2346
    %v2348 = vpop.f32.mrb[0].mxu0
    %v2349 = vadd.f32 0.0, %v2348
    %v2350 = vpop.f32.mrb[0].mxu0
    %v2351 = vpop.f32.mrb[0].mxu0
    %2352 = vdwg.mxu0
    %v2353 = vadd.f32 %v2281, %v2347
    %v2354 = vadd.f32 %v2282, %v2349
    %s2355 = scalar_lea.vmem %s0, 30
    %v2356 = vld [vmem:[%s2355] sm:$0x3]
    %v2359 = vunpack.c.l.s4 1966171168
    %v2360 = vunpack.c.0.s8 %v2359
    %v2361 = vlaneseq
    %v2362 = vshrl.u32 %v2361, 7
    %v2363 = vsub.s32 %v2360, %v2362
    %v2364 = vrot.slane %v2356, %v2363
    %v2365 = vcombine.high %v2364, %v2364
    %v2367 = vunpack.c.l.s4 1966171168
    %v2368 = vunpack.c.0.s8 %v2367
    %v2369 = vlaneseq
    %v2370 = vshrl.u32 %v2369, 7
    %v2371 = vsub.s32 %v2368, %v2370
    %v2372 = vrot.slane %v2364, %v2371
    %v2374 = vunpack.c.l.s4 1966171168
    %v2375 = vunpack.c.0.s8 %v2374
    %v2376 = vlaneseq
    %v2377 = vshrl.u32 %v2376, 7
    %v2378 = vsub.s32 %v2375, %v2377
    %v2379 = vrot.slane %v2365, %v2378
    %v2382 = vsel %vm174, %v2379, 0
    %2384 = vmatprep.subr.bf16.mxu0 %v1418
    %2385 = vmatpush1.bf16.msra.mxu0 %v1417
    %2386 = vmatprep.subr.bf16.mxu0 %v1420
    %2387 = vmatpush1.bf16.msra.mxu0 %v1419
    %2388 = vmatprep.subr.bf16.mxu0 %v1422
    %2389 = vmatpush1.bf16.msra.mxu0 %v1421
    %2390 = vmatprep.subr.bf16.mxu0 %v1424
    %2391 = vmatpush1.bf16.msra.mxu0 %v1423
    %2392 = vmatprep.subr.bf16.mxu0 %v1426
    %2393 = vmatpush1.bf16.msra.mxu0 %v1425
    %2394 = vmatprep.subr.bf16.mxu0 %v1428
    %2395 = vmatpush1.bf16.msra.mxu0 %v1427
    %2396 = vmatprep.subr.bf16.mxu0 %v1430
    %2397 = vmatpush1.bf16.msra.mxu0 %v1429
    %2398 = vmatprep.subr.bf16.mxu0 %v1432
    %2399 = vmatpush1.bf16.msra.mxu0 %v1431
    %2400 = vmatprep.subr.bf16.mxu0 %v1434
    %2401 = vmatpush1.bf16.msra.mxu0 %v1433
    %2402 = vmatprep.subr.bf16.mxu0 0
    %2403 = vmatpush1.bf16.msra.mxu0 0
    %2404 = vmatprep.subr.bf16.mxu0 0
    %2405 = vmatpush1.bf16.msra.mxu0 0
    %2406 = vmatprep.subr.bf16.mxu0 0
    %2407 = vmatpush1.bf16.msra.mxu0 0
    %2408 = vmatprep.subr.bf16.mxu0 0
    %2409 = vmatpush1.bf16.msra.mxu0 0
    %2410 = vmatprep.subr.bf16.mxu0 0
    %2411 = vmatpush1.bf16.msra.mxu0 0
    %2412 = vmatprep.subr.bf16.mxu0 0
    %2413 = vmatpush1.bf16.msra.mxu0 0
    %2414 = vmatprep.subr.bf16.mxu0 0
    %2415 = vmatpush1.bf16.msra.mxu0 0
    %2416 = vmatprep.mubr.bf16.mxu0 %v2382
    %2417 = vmatmul.mubr.bf16.gmra.mrb[0].mxu0 %v2372
    %v2418 = vpop.f32.mrb[0].mxu0
    %v2419 = vadd.f32 0.0, %v2418
    %v2420 = vpop.f32.mrb[0].mxu0
    %v2421 = vadd.f32 0.0, %v2420
    %v2422 = vpop.f32.mrb[0].mxu0
    %v2423 = vpop.f32.mrb[0].mxu0
    %2424 = vdwg.mxu0
    %v2425 = vadd.f32 %v2353, %v2419
    %v2426 = vadd.f32 %v2354, %v2421
    %v2427 = vmax.f32 %v2425, 0.0
    %v2428 = vmax.f32 %v2426, 0.0
    %v2429 = vpack.c.bf16 %v2427, %v2427
    %v2430 = vpack.c.bf16 %v2428, %v2428
    %2431 = vmatprep.subr.bf16.mxu0 %v139
    %2432 = vmatpush1.bf16.msra.mxu0 %v138
    %2433 = vmatprep.subr.bf16.mxu0 %v141
    %2434 = vmatpush1.bf16.msra.mxu0 %v140
    %2435 = vmatprep.subr.bf16.mxu0 %v143
    %2436 = vmatpush1.bf16.msra.mxu0 %v142
    %2437 = vmatprep.subr.bf16.mxu0 %v145
    %2438 = vmatpush1.bf16.msra.mxu0 %v144
    %2439 = vmatprep.subr.bf16.mxu0 %v147
    %2440 = vmatpush1.bf16.msra.mxu0 %v146
    %2441 = vmatprep.subr.bf16.mxu0 %v149
    %2442 = vmatpush1.bf16.msra.mxu0 %v148
    %2443 = vmatprep.subr.bf16.mxu0 %v151
    %2444 = vmatpush1.bf16.msra.mxu0 %v150
    %2445 = vmatprep.subr.bf16.mxu0 %v153
    %2446 = vmatpush1.bf16.msra.mxu0 %v152
    %2447 = vmatprep.subr.bf16.mxu0 %v155
    %2448 = vmatpush1.bf16.msra.mxu0 %v154
    %2449 = vmatprep.subr.bf16.mxu0 0
    %2450 = vmatpush1.bf16.msra.mxu0 0
    %2451 = vmatprep.subr.bf16.mxu0 0
    %2452 = vmatpush1.bf16.msra.mxu0 0
    %2453 = vmatprep.subr.bf16.mxu0 0
    %2454 = vmatpush1.bf16.msra.mxu0 0
    %2455 = vmatprep.subr.bf16.mxu0 0
    %2456 = vmatpush1.bf16.msra.mxu0 0
    %2457 = vmatprep.subr.bf16.mxu0 0
    %2458 = vmatpush1.bf16.msra.mxu0 0
    %2459 = vmatprep.subr.bf16.mxu0 0
    %2460 = vmatpush1.bf16.msra.mxu0 0
    %2461 = vmatprep.subr.bf16.mxu0 0
    %2462 = vmatpush1.bf16.msra.mxu0 0
    %2463 = vmatprep.mubr.bf16.mxu0 %v2166
    %2464 = vmatmul.mubr.bf16.gmra.mrb[0].mxu0 %v2156
    %v2465 = vpop.f32.mrb[0].mxu0
    %v2466 = vadd.f32 0.0, %v2465
    %v2467 = vpop.f32.mrb[0].mxu0
    %v2468 = vadd.f32 0.0, %v2467
    %v2469 = vpop.f32.mrb[0].mxu0
    %v2470 = vpop.f32.mrb[0].mxu0
    %2471 = vdwg.mxu0
    %v2472 = vadd.f32 %v223, %v2466
    %v2473 = vadd.f32 %v227, %v2468
    %2474 = vmatprep.subr.bf16.mxu0 %v332
    %2475 = vmatpush1.bf16.msra.mxu0 %v331
    %2476 = vmatprep.subr.bf16.mxu0 %v334
    %2477 = vmatpush1.bf16.msra.mxu0 %v333
    %2478 = vmatprep.subr.bf16.mxu0 %v336
    %2479 = vmatpush1.bf16.msra.mxu0 %v335
    %2480 = vmatprep.subr.bf16.mxu0 %v338
    %2481 = vmatpush1.bf16.msra.mxu0 %v337
    %2482 = vmatprep.subr.bf16.mxu0 %v340
    %2483 = vmatpush1.bf16.msra.mxu0 %v339
    %2484 = vmatprep.subr.bf16.mxu0 %v342
    %2485 = vmatpush1.bf16.msra.mxu0 %v341
    %2486 = vmatprep.subr.bf16.mxu0 %v344
    %2487 = vmatpush1.bf16.msra.mxu0 %v343
    %2488 = vmatprep.subr.bf16.mxu0 %v346
    %2489 = vmatpush1.bf16.msra.mxu0 %v345
    %2490 = vmatprep.subr.bf16.mxu0 %v348
    %2491 = vmatpush1.bf16.msra.mxu0 %v347
    %2492 = vmatprep.subr.bf16.mxu0 0
    %2493 = vmatpush1.bf16.msra.mxu0 0
    %2494 = vmatprep.subr.bf16.mxu0 0
    %2495 = vmatpush1.bf16.msra.mxu0 0
    %2496 = vmatprep.subr.bf16.mxu0 0
    %2497 = vmatpush1.bf16.msra.mxu0 0
    %2498 = vmatprep.subr.bf16.mxu0 0
    %2499 = vmatpush1.bf16.msra.mxu0 0
    %2500 = vmatprep.subr.bf16.mxu0 0
    %2501 = vmatpush1.bf16.msra.mxu0 0
    %2502 = vmatprep.subr.bf16.mxu0 0
    %2503 = vmatpush1.bf16.msra.mxu0 0
    %2504 = vmatprep.subr.bf16.mxu0 0
    %2505 = vmatpush1.bf16.msra.mxu0 0
    %2506 = vmatprep.mubr.bf16.mxu0 %v2238
    %2507 = vmatmul.mubr.bf16.gmra.mrb[0].mxu0 %v2228
    %v2508 = vpop.f32.mrb[0].mxu0
    %v2509 = vadd.f32 0.0, %v2508
    %v2510 = vpop.f32.mrb[0].mxu0
    %v2511 = vadd.f32 0.0, %v2510
    %v2512 = vpop.f32.mrb[0].mxu0
    %v2513 = vpop.f32.mrb[0].mxu0
    %2514 = vdwg.mxu0
    %v2515 = vadd.f32 %v2472, %v2509
    %v2516 = vadd.f32 %v2473, %v2511
    %2517 = vmatprep.subr.bf16.mxu0 %v513
    %2518 = vmatpush1.bf16.msra.mxu0 %v512
    %2519 = vmatprep.subr.bf16.mxu0 %v515
    %2520 = vmatpush1.bf16.msra.mxu0 %v514
    %2521 = vmatprep.subr.bf16.mxu0 %v517
    %2522 = vmatpush1.bf16.msra.mxu0 %v516
    %2523 = vmatprep.subr.bf16.mxu0 %v519
    %2524 = vmatpush1.bf16.msra.mxu0 %v518
    %2525 = vmatprep.subr.bf16.mxu0 %v521
    %2526 = vmatpush1.bf16.msra.mxu0 %v520
    %2527 = vmatprep.subr.bf16.mxu0 %v523
    %2528 = vmatpush1.bf16.msra.mxu0 %v522
    %2529 = vmatprep.subr.bf16.mxu0 %v525
    %2530 = vmatpush1.bf16.msra.mxu0 %v524
    %2531 = vmatprep.subr.bf16.mxu0 %v527
    %2532 = vmatpush1.bf16.msra.mxu0 %v526
    %2533 = vmatprep.subr.bf16.mxu0 %v529
    %2534 = vmatpush1.bf16.msra.mxu0 %v528
    %2535 = vmatprep.subr.bf16.mxu0 0
    %2536 = vmatpush1.bf16.msra.mxu0 0
    %2537 = vmatprep.subr.bf16.mxu0 0
    %2538 = vmatpush1.bf16.msra.mxu0 0
    %2539 = vmatprep.subr.bf16.mxu0 0
    %2540 = vmatpush1.bf16.msra.mxu0 0
    %2541 = vmatprep.subr.bf16.mxu0 0
    %2542 = vmatpush1.bf16.msra.mxu0 0
    %2543 = vmatprep.subr.bf16.mxu0 0
    %2544 = vmatpush1.bf16.msra.mxu0 0
    %2545 = vmatprep.subr.bf16.mxu0 0
    %2546 = vmatpush1.bf16.msra.mxu0 0
    %2547 = vmatprep.subr.bf16.mxu0 0
    %2548 = vmatpush1.bf16.msra.mxu0 0
    %2549 = vmatprep.mubr.bf16.mxu0 %v2310
    %2550 = vmatmul.mubr.bf16.gmra.mrb[0].mxu0 %v2300
    %v2551 = vpop.f32.mrb[0].mxu0
    %v2552 = vadd.f32 0.0, %v2551
    %v2553 = vpop.f32.mrb[0].mxu0
    %v2554 = vadd.f32 0.0, %v2553
    %v2555 = vpop.f32.mrb[0].mxu0
    %v2556 = vpop.f32.mrb[0].mxu0
    %2557 = vdwg.mxu0
    %v2558 = vadd.f32 %v2515, %v2552
    %v2559 = vadd.f32 %v2516, %v2554
    %2560 = vmatprep.subr.bf16.mxu0 %v694
    %2561 = vmatpush1.bf16.msra.mxu0 %v693
    %2562 = vmatprep.subr.bf16.mxu0 %v696
    %2563 = vmatpush1.bf16.msra.mxu0 %v695
    %2564 = vmatprep.subr.bf16.mxu0 %v698
    %2565 = vmatpush1.bf16.msra.mxu0 %v697
    %2566 = vmatprep.subr.bf16.mxu0 %v700
    %2567 = vmatpush1.bf16.msra.mxu0 %v699
    %2568 = vmatprep.subr.bf16.mxu0 %v702
    %2569 = vmatpush1.bf16.msra.mxu0 %v701
    %2570 = vmatprep.subr.bf16.mxu0 %v704
    %2571 = vmatpush1.bf16.msra.mxu0 %v703
    %2572 = vmatprep.subr.bf16.mxu0 %v706
    %2573 = vmatpush1.bf16.msra.mxu0 %v705
    %2574 = vmatprep.subr.bf16.mxu0 %v708
    %2575 = vmatpush1.bf16.msra.mxu0 %v707
    %2576 = vmatprep.subr.bf16.mxu0 %v710
    %2577 = vmatpush1.bf16.msra.mxu0 %v709
    %2578 = vmatprep.subr.bf16.mxu0 0
    %2579 = vmatpush1.bf16.msra.mxu0 0
    %2580 = vmatprep.subr.bf16.mxu0 0
    %2581 = vmatpush1.bf16.msra.mxu0 0
    %2582 = vmatprep.subr.bf16.mxu0 0
    %2583 = vmatpush1.bf16.msra.mxu0 0
    %2584 = vmatprep.subr.bf16.mxu0 0
    %2585 = vmatpush1.bf16.msra.mxu0 0
    %2586 = vmatprep.subr.bf16.mxu0 0
    %2587 = vmatpush1.bf16.msra.mxu0 0
    %2588 = vmatprep.subr.bf16.mxu0 0
    %2589 = vmatpush1.bf16.msra.mxu0 0
    %2590 = vmatprep.subr.bf16.mxu0 0
    %2591 = vmatpush1.bf16.msra.mxu0 0
    %2592 = vmatprep.mubr.bf16.mxu0 %v2382
    %2593 = vmatmul.mubr.bf16.gmra.mrb[0].mxu0 %v2372
    %v2594 = vpop.f32.mrb[0].mxu0
    %v2595 = vadd.f32 0.0, %v2594
    %v2596 = vpop.f32.mrb[0].mxu0
    %v2597 = vadd.f32 0.0, %v2596
    %v2598 = vpop.f32.mrb[0].mxu0
    %v2599 = vpop.f32.mrb[0].mxu0
    %2600 = vdwg.mxu0
    %v2601 = vadd.f32 %v2558, %v2595
    %v2602 = vadd.f32 %v2559, %v2597
    %s2603 = scalar_lea.vmem %s0, 32
    %v2604 = vld [vmem:[%s2603] sm:$0x3]
    %v2607 = vunpack.c.l.s4 1966171168
    %v2608 = vunpack.c.0.s8 %v2607
    %v2609 = vlaneseq
    %v2610 = vshrl.u32 %v2609, 7
    %v2611 = vsub.s32 %v2608, %v2610
    %v2612 = vrot.slane %v2604, %v2611
    %v2613 = vcombine.high %v2612, %v2612
    %v2615 = vunpack.c.l.s4 1966171168
    %v2616 = vunpack.c.0.s8 %v2615
    %v2617 = vlaneseq
    %v2618 = vshrl.u32 %v2617, 7
    %v2619 = vsub.s32 %v2616, %v2618
    %v2620 = vrot.slane %v2612, %v2619
    %v2622 = vunpack.c.l.s4 1966171168
    %v2623 = vunpack.c.0.s8 %v2622
    %v2624 = vlaneseq
    %v2625 = vshrl.u32 %v2624, 7
    %v2626 = vsub.s32 %v2623, %v2625
    %v2627 = vrot.slane %v2613, %v2626
    %v2630 = vsel %vm174, %v2627, 0
    %2632 = vmatprep.subr.bf16.mxu0 %v875
    %2633 = vmatpush1.bf16.msra.mxu0 %v874
    %2634 = vmatprep.subr.bf16.mxu0 %v877
    %2635 = vmatpush1.bf16.msra.mxu0 %v876
    %2636 = vmatprep.subr.bf16.mxu0 %v879
    %2637 = vmatpush1.bf16.msra.mxu0 %v878
    %2638 = vmatprep.subr.bf16.mxu0 %v881
    %2639 = vmatpush1.bf16.msra.mxu0 %v880
    %2640 = vmatprep.subr.bf16.mxu0 %v883
    %2641 = vmatpush1.bf16.msra.mxu0 %v882
    %2642 = vmatprep.subr.bf16.mxu0 %v885
    %2643 = vmatpush1.bf16.msra.mxu0 %v884
    %2644 = vmatprep.subr.bf16.mxu0 %v887
    %2645 = vmatpush1.bf16.msra.mxu0 %v886
    %2646 = vmatprep.subr.bf16.mxu0 %v889
    %2647 = vmatpush1.bf16.msra.mxu0 %v888
    %2648 = vmatprep.subr.bf16.mxu0 %v891
    %2649 = vmatpush1.bf16.msra.mxu0 %v890
    %2650 = vmatprep.subr.bf16.mxu0 0
    %2651 = vmatpush1.bf16.msra.mxu0 0
    %2652 = vmatprep.subr.bf16.mxu0 0
    %2653 = vmatpush1.bf16.msra.mxu0 0
    %2654 = vmatprep.subr.bf16.mxu0 0
    %2655 = vmatpush1.bf16.msra.mxu0 0
    %2656 = vmatprep.subr.bf16.mxu0 0
    %2657 = vmatpush1.bf16.msra.mxu0 0
    %2658 = vmatprep.subr.bf16.mxu0 0
    %2659 = vmatpush1.bf16.msra.mxu0 0
    %2660 = vmatprep.subr.bf16.mxu0 0
    %2661 = vmatpush1.bf16.msra.mxu0 0
    %2662 = vmatprep.subr.bf16.mxu0 0
    %2663 = vmatpush1.bf16.msra.mxu0 0
    %2664 = vmatprep.mubr.bf16.mxu0 %v2630
    %2665 = vmatmul.mubr.bf16.gmra.mrb[0].mxu0 %v2620
    %v2666 = vpop.f32.mrb[0].mxu0
    %v2667 = vadd.f32 0.0, %v2666
    %v2668 = vpop.f32.mrb[0].mxu0
    %v2669 = vadd.f32 0.0, %v2668
    %v2670 = vpop.f32.mrb[0].mxu0
    %v2671 = vpop.f32.mrb[0].mxu0
    %2672 = vdwg.mxu0
    %v2673 = vadd.f32 %v2601, %v2667
    %v2674 = vadd.f32 %v2602, %v2669
    %s2675 = scalar_lea.vmem %s0, 34
    %v2676 = vld [vmem:[%s2675] sm:$0x3]
    %v2679 = vunpack.c.l.s4 1966171168
    %v2680 = vunpack.c.0.s8 %v2679
    %v2681 = vlaneseq
    %v2682 = vshrl.u32 %v2681, 7
    %v2683 = vsub.s32 %v2680, %v2682
    %v2684 = vrot.slane %v2676, %v2683
    %v2685 = vcombine.high %v2684, %v2684
    %v2687 = vunpack.c.l.s4 1966171168
    %v2688 = vunpack.c.0.s8 %v2687
    %v2689 = vlaneseq
    %v2690 = vshrl.u32 %v2689, 7
    %v2691 = vsub.s32 %v2688, %v2690
    %v2692 = vrot.slane %v2684, %v2691
    %v2694 = vunpack.c.l.s4 1966171168
    %v2695 = vunpack.c.0.s8 %v2694
    %v2696 = vlaneseq
    %v2697 = vshrl.u32 %v2696, 7
    %v2698 = vsub.s32 %v2695, %v2697
    %v2699 = vrot.slane %v2685, %v2698
    %v2702 = vsel %vm174, %v2699, 0
    %2704 = vmatprep.subr.bf16.mxu0 %v1056
    %2705 = vmatpush1.bf16.msra.mxu0 %v1055
    %2706 = vmatprep.subr.bf16.mxu0 %v1058
    %2707 = vmatpush1.bf16.msra.mxu0 %v1057
    %2708 = vmatprep.subr.bf16.mxu0 %v1060
    %2709 = vmatpush1.bf16.msra.mxu0 %v1059
    %2710 = vmatprep.subr.bf16.mxu0 %v1062
    %2711 = vmatpush1.bf16.msra.mxu0 %v1061
    %2712 = vmatprep.subr.bf16.mxu0 %v1064
    %2713 = vmatpush1.bf16.msra.mxu0 %v1063
    %2714 = vmatprep.subr.bf16.mxu0 %v1066
    %2715 = vmatpush1.bf16.msra.mxu0 %v1065
    %2716 = vmatprep.subr.bf16.mxu0 %v1068
    %2717 = vmatpush1.bf16.msra.mxu0 %v1067
    %2718 = vmatprep.subr.bf16.mxu0 %v1070
    %2719 = vmatpush1.bf16.msra.mxu0 %v1069
    %2720 = vmatprep.subr.bf16.mxu0 %v1072
    %2721 = vmatpush1.bf16.msra.mxu0 %v1071
    %2722 = vmatprep.subr.bf16.mxu0 0
    %2723 = vmatpush1.bf16.msra.mxu0 0
    %2724 = vmatprep.subr.bf16.mxu0 0
    %2725 = vmatpush1.bf16.msra.mxu0 0
    %2726 = vmatprep.subr.bf16.mxu0 0
    %2727 = vmatpush1.bf16.msra.mxu0 0
    %2728 = vmatprep.subr.bf16.mxu0 0
    %2729 = vmatpush1.bf16.msra.mxu0 0
    %2730 = vmatprep.subr.bf16.mxu0 0
    %2731 = vmatpush1.bf16.msra.mxu0 0
    %2732 = vmatprep.subr.bf16.mxu0 0
    %2733 = vmatpush1.bf16.msra.mxu0 0
    %2734 = vmatprep.subr.bf16.mxu0 0
    %2735 = vmatpush1.bf16.msra.mxu0 0
    %2736 = vmatprep.mubr.bf16.mxu0 %v2702
    %2737 = vmatmul.mubr.bf16.gmra.mrb[0].mxu0 %v2692
    %v2738 = vpop.f32.mrb[0].mxu0
    %v2739 = vadd.f32 0.0, %v2738
    %v2740 = vpop.f32.mrb[0].mxu0
    %v2741 = vadd.f32 0.0, %v2740
    %v2742 = vpop.f32.mrb[0].mxu0
    %v2743 = vpop.f32.mrb[0].mxu0
    %2744 = vdwg.mxu0
    %v2745 = vadd.f32 %v2673, %v2739
    %v2746 = vadd.f32 %v2674, %v2741
    %s2747 = scalar_lea.vmem %s0, 36
    %v2748 = vld [vmem:[%s2747] sm:$0x3]
    %v2751 = vunpack.c.l.s4 1966171168
    %v2752 = vunpack.c.0.s8 %v2751
    %v2753 = vlaneseq
    %v2754 = vshrl.u32 %v2753, 7
    %v2755 = vsub.s32 %v2752, %v2754
    %v2756 = vrot.slane %v2748, %v2755
    %v2757 = vcombine.high %v2756, %v2756
    %v2759 = vunpack.c.l.s4 1966171168
    %v2760 = vunpack.c.0.s8 %v2759
    %v2761 = vlaneseq
    %v2762 = vshrl.u32 %v2761, 7
    %v2763 = vsub.s32 %v2760, %v2762
    %v2764 = vrot.slane %v2756, %v2763
    %v2766 = vunpack.c.l.s4 1966171168
    %v2767 = vunpack.c.0.s8 %v2766
    %v2768 = vlaneseq
    %v2769 = vshrl.u32 %v2768, 7
    %v2770 = vsub.s32 %v2767, %v2769
    %v2771 = vrot.slane %v2757, %v2770
    %v2774 = vsel %vm174, %v2771, 0
    %2776 = vmatprep.subr.bf16.mxu0 %v1237
    %2777 = vmatpush1.bf16.msra.mxu0 %v1236
    %2778 = vmatprep.subr.bf16.mxu0 %v1239
    %2779 = vmatpush1.bf16.msra.mxu0 %v1238
    %2780 = vmatprep.subr.bf16.mxu0 %v1241
    %2781 = vmatpush1.bf16.msra.mxu0 %v1240
    %2782 = vmatprep.subr.bf16.mxu0 %v1243
    %2783 = vmatpush1.bf16.msra.mxu0 %v1242
    %2784 = vmatprep.subr.bf16.mxu0 %v1245
    %2785 = vmatpush1.bf16.msra.mxu0 %v1244
    %2786 = vmatprep.subr.bf16.mxu0 %v1247
    %2787 = vmatpush1.bf16.msra.mxu0 %v1246
    %2788 = vmatprep.subr.bf16.mxu0 %v1249
    %2789 = vmatpush1.bf16.msra.mxu0 %v1248
    %2790 = vmatprep.subr.bf16.mxu0 %v1251
    %2791 = vmatpush1.bf16.msra.mxu0 %v1250
    %2792 = vmatprep.subr.bf16.mxu0 %v1253
    %2793 = vmatpush1.bf16.msra.mxu0 %v1252
    %2794 = vmatprep.subr.bf16.mxu0 0
    %2795 = vmatpush1.bf16.msra.mxu0 0
    %2796 = vmatprep.subr.bf16.mxu0 0
    %2797 = vmatpush1.bf16.msra.mxu0 0
    %2798 = vmatprep.subr.bf16.mxu0 0
    %2799 = vmatpush1.bf16.msra.mxu0 0
    %2800 = vmatprep.subr.bf16.mxu0 0
    %2801 = vmatpush1.bf16.msra.mxu0 0
    %2802 = vmatprep.subr.bf16.mxu0 0
    %2803 = vmatpush1.bf16.msra.mxu0 0
    %2804 = vmatprep.subr.bf16.mxu0 0
    %2805 = vmatpush1.bf16.msra.mxu0 0
    %2806 = vmatprep.subr.bf16.mxu0 0
    %2807 = vmatpush1.bf16.msra.mxu0 0
    %2808 = vmatprep.mubr.bf16.mxu0 %v2774
    %2809 = vmatmul.mubr.bf16.gmra.mrb[0].mxu0 %v2764
    %v2810 = vpop.f32.mrb[0].mxu0
    %v2811 = vadd.f32 0.0, %v2810
    %v2812 = vpop.f32.mrb[0].mxu0
    %v2813 = vadd.f32 0.0, %v2812
    %v2814 = vpop.f32.mrb[0].mxu0
    %v2815 = vpop.f32.mrb[0].mxu0
    %2816 = vdwg.mxu0
    %v2817 = vadd.f32 %v2745, %v2811
    %v2818 = vadd.f32 %v2746, %v2813
    %s2819 = scalar_lea.vmem %s0, 38
    %v2820 = vld [vmem:[%s2819] sm:$0x3]
    %v2823 = vunpack.c.l.s4 1966171168
    %v2824 = vunpack.c.0.s8 %v2823
    %v2825 = vlaneseq
    %v2826 = vshrl.u32 %v2825, 7
    %v2827 = vsub.s32 %v2824, %v2826
    %v2828 = vrot.slane %v2820, %v2827
    %v2829 = vcombine.high %v2828, %v2828
    %v2831 = vunpack.c.l.s4 1966171168
    %v2832 = vunpack.c.0.s8 %v2831
    %v2833 = vlaneseq
    %v2834 = vshrl.u32 %v2833, 7
    %v2835 = vsub.s32 %v2832, %v2834
    %v2836 = vrot.slane %v2828, %v2835
    %v2838 = vunpack.c.l.s4 1966171168
    %v2839 = vunpack.c.0.s8 %v2838
    %v2840 = vlaneseq
    %v2841 = vshrl.u32 %v2840, 7
    %v2842 = vsub.s32 %v2839, %v2841
    %v2843 = vrot.slane %v2829, %v2842
    %v2846 = vsel %vm174, %v2843, 0
    %2848 = vmatprep.subr.bf16.mxu0 %v1418
    %2849 = vmatpush1.bf16.msra.mxu0 %v1417
    %2850 = vmatprep.subr.bf16.mxu0 %v1420
    %2851 = vmatpush1.bf16.msra.mxu0 %v1419
    %2852 = vmatprep.subr.bf16.mxu0 %v1422
    %2853 = vmatpush1.bf16.msra.mxu0 %v1421
    %2854 = vmatprep.subr.bf16.mxu0 %v1424
    %2855 = vmatpush1.bf16.msra.mxu0 %v1423
    %2856 = vmatprep.subr.bf16.mxu0 %v1426
    %2857 = vmatpush1.bf16.msra.mxu0 %v1425
    %2858 = vmatprep.subr.bf16.mxu0 %v1428
    %2859 = vmatpush1.bf16.msra.mxu0 %v1427
    %2860 = vmatprep.subr.bf16.mxu0 %v1430
    %2861 = vmatpush1.bf16.msra.mxu0 %v1429
    %2862 = vmatprep.subr.bf16.mxu0 %v1432
    %2863 = vmatpush1.bf16.msra.mxu0 %v1431
    %2864 = vmatprep.subr.bf16.mxu0 %v1434
    %2865 = vmatpush1.bf16.msra.mxu0 %v1433
    %2866 = vmatprep.subr.bf16.mxu0 0
    %2867 = vmatpush1.bf16.msra.mxu0 0
    %2868 = vmatprep.subr.bf16.mxu0 0
    %2869 = vmatpush1.bf16.msra.mxu0 0
    %2870 = vmatprep.subr.bf16.mxu0 0
    %2871 = vmatpush1.bf16.msra.mxu0 0
    %2872 = vmatprep.subr.bf16.mxu0 0
    %2873 = vmatpush1.bf16.msra.mxu0 0
    %2874 = vmatprep.subr.bf16.mxu0 0
    %2875 = vmatpush1.bf16.msra.mxu0 0
    %2876 = vmatprep.subr.bf16.mxu0 0
    %2877 = vmatpush1.bf16.msra.mxu0 0
    %2878 = vmatprep.subr.bf16.mxu0 0
    %2879 = vmatpush1.bf16.msra.mxu0 0
    %2880 = vmatprep.mubr.bf16.mxu0 %v2846
    %2881 = vmatmul.mubr.bf16.gmra.mrb[0].mxu0 %v2836
    %v2882 = vpop.f32.mrb[0].mxu0
    %v2883 = vadd.f32 0.0, %v2882
    %v2884 = vpop.f32.mrb[0].mxu0
    %v2885 = vadd.f32 0.0, %v2884
    %v2886 = vpop.f32.mrb[0].mxu0
    %v2887 = vpop.f32.mrb[0].mxu0
    %2888 = vdwg.mxu0
    %v2889 = vadd.f32 %v2817, %v2883
    %v2890 = vadd.f32 %v2818, %v2885
    %v2891 = vmax.f32 %v2889, 0.0
    %v2892 = vmax.f32 %v2890, 0.0
    %v2893 = vpack.c.bf16 %v2891, %v2891
    %v2894 = vpack.c.bf16 %v2892, %v2892
    %2895 = vmatprep.subr.bf16.mxu0 %v139
    %2896 = vmatpush1.bf16.msra.mxu0 %v138
    %2897 = vmatprep.subr.bf16.mxu0 %v141
    %2898 = vmatpush1.bf16.msra.mxu0 %v140
    %2899 = vmatprep.subr.bf16.mxu0 %v143
    %2900 = vmatpush1.bf16.msra.mxu0 %v142
    %2901 = vmatprep.subr.bf16.mxu0 %v145
    %2902 = vmatpush1.bf16.msra.mxu0 %v144
    %2903 = vmatprep.subr.bf16.mxu0 %v147
    %2904 = vmatpush1.bf16.msra.mxu0 %v146
    %2905 = vmatprep.subr.bf16.mxu0 %v149
    %2906 = vmatpush1.bf16.msra.mxu0 %v148
    %2907 = vmatprep.subr.bf16.mxu0 %v151
    %2908 = vmatpush1.bf16.msra.mxu0 %v150
    %2909 = vmatprep.subr.bf16.mxu0 %v153
    %2910 = vmatpush1.bf16.msra.mxu0 %v152
    %2911 = vmatprep.subr.bf16.mxu0 %v155
    %2912 = vmatpush1.bf16.msra.mxu0 %v154
    %2913 = vmatprep.subr.bf16.mxu0 0
    %2914 = vmatpush1.bf16.msra.mxu0 0
    %2915 = vmatprep.subr.bf16.mxu0 0
    %2916 = vmatpush1.bf16.msra.mxu0 0
    %2917 = vmatprep.subr.bf16.mxu0 0
    %2918 = vmatpush1.bf16.msra.mxu0 0
    %2919 = vmatprep.subr.bf16.mxu0 0
    %2920 = vmatpush1.bf16.msra.mxu0 0
    %2921 = vmatprep.subr.bf16.mxu0 0
    %2922 = vmatpush1.bf16.msra.mxu0 0
    %2923 = vmatprep.subr.bf16.mxu0 0
    %2924 = vmatpush1.bf16.msra.mxu0 0
    %2925 = vmatprep.subr.bf16.mxu0 0
    %2926 = vmatpush1.bf16.msra.mxu0 0
    %2927 = vmatprep.mubr.bf16.mxu0 %v2630
    %2928 = vmatmul.mubr.bf16.gmra.mrb[0].mxu0 %v2620
    %v2929 = vpop.f32.mrb[0].mxu0
    %v2930 = vadd.f32 0.0, %v2929
    %v2931 = vpop.f32.mrb[0].mxu0
    %v2932 = vadd.f32 0.0, %v2931
    %v2933 = vpop.f32.mrb[0].mxu0
    %v2934 = vpop.f32.mrb[0].mxu0
    %2935 = vdwg.mxu0
    %v2936 = vadd.f32 %v223, %v2930
    %v2937 = vadd.f32 %v227, %v2932
    %2938 = vmatprep.subr.bf16.mxu0 %v332
    %2939 = vmatpush1.bf16.msra.mxu0 %v331
    %2940 = vmatprep.subr.bf16.mxu0 %v334
    %2941 = vmatpush1.bf16.msra.mxu0 %v333
    %2942 = vmatprep.subr.bf16.mxu0 %v336
    %2943 = vmatpush1.bf16.msra.mxu0 %v335
    %2944 = vmatprep.subr.bf16.mxu0 %v338
    %2945 = vmatpush1.bf16.msra.mxu0 %v337
    %2946 = vmatprep.subr.bf16.mxu0 %v340
    %2947 = vmatpush1.bf16.msra.mxu0 %v339
    %2948 = vmatprep.subr.bf16.mxu0 %v342
    %2949 = vmatpush1.bf16.msra.mxu0 %v341
    %2950 = vmatprep.subr.bf16.mxu0 %v344
    %2951 = vmatpush1.bf16.msra.mxu0 %v343
    %2952 = vmatprep.subr.bf16.mxu0 %v346
    %2953 = vmatpush1.bf16.msra.mxu0 %v345
    %2954 = vmatprep.subr.bf16.mxu0 %v348
    %2955 = vmatpush1.bf16.msra.mxu0 %v347
    %2956 = vmatprep.subr.bf16.mxu0 0
    %2957 = vmatpush1.bf16.msra.mxu0 0
    %2958 = vmatprep.subr.bf16.mxu0 0
    %2959 = vmatpush1.bf16.msra.mxu0 0
    %2960 = vmatprep.subr.bf16.mxu0 0
    %2961 = vmatpush1.bf16.msra.mxu0 0
    %2962 = vmatprep.subr.bf16.mxu0 0
    %2963 = vmatpush1.bf16.msra.mxu0 0
    %2964 = vmatprep.subr.bf16.mxu0 0
    %2965 = vmatpush1.bf16.msra.mxu0 0
    %2966 = vmatprep.subr.bf16.mxu0 0
    %2967 = vmatpush1.bf16.msra.mxu0 0
    %2968 = vmatprep.subr.bf16.mxu0 0
    %2969 = vmatpush1.bf16.msra.mxu0 0
    %2970 = vmatprep.mubr.bf16.mxu0 %v2702
    %2971 = vmatmul.mubr.bf16.gmra.mrb[0].mxu0 %v2692
    %v2972 = vpop.f32.mrb[0].mxu0
    %v2973 = vadd.f32 0.0, %v2972
    %v2974 = vpop.f32.mrb[0].mxu0
    %v2975 = vadd.f32 0.0, %v2974
    %v2976 = vpop.f32.mrb[0].mxu0
    %v2977 = vpop.f32.mrb[0].mxu0
    %2978 = vdwg.mxu0
    %v2979 = vadd.f32 %v2936, %v2973
    %v2980 = vadd.f32 %v2937, %v2975
    %2981 = vmatprep.subr.bf16.mxu0 %v513
    %2982 = vmatpush1.bf16.msra.mxu0 %v512
    %2983 = vmatprep.subr.bf16.mxu0 %v515
    %2984 = vmatpush1.bf16.msra.mxu0 %v514
    %2985 = vmatprep.subr.bf16.mxu0 %v517
    %2986 = vmatpush1.bf16.msra.mxu0 %v516
    %2987 = vmatprep.subr.bf16.mxu0 %v519
    %2988 = vmatpush1.bf16.msra.mxu0 %v518
    %2989 = vmatprep.subr.bf16.mxu0 %v521
    %2990 = vmatpush1.bf16.msra.mxu0 %v520
    %2991 = vmatprep.subr.bf16.mxu0 %v523
    %2992 = vmatpush1.bf16.msra.mxu0 %v522
    %2993 = vmatprep.subr.bf16.mxu0 %v525
    %2994 = vmatpush1.bf16.msra.mxu0 %v524
    %2995 = vmatprep.subr.bf16.mxu0 %v527
    %2996 = vmatpush1.bf16.msra.mxu0 %v526
    %2997 = vmatprep.subr.bf16.mxu0 %v529
    %2998 = vmatpush1.bf16.msra.mxu0 %v528
    %2999 = vmatprep.subr.bf16.mxu0 0
    %3000 = vmatpush1.bf16.msra.mxu0 0
    %3001 = vmatprep.subr.bf16.mxu0 0
    %3002 = vmatpush1.bf16.msra.mxu0 0
    %3003 = vmatprep.subr.bf16.mxu0 0
    %3004 = vmatpush1.bf16.msra.mxu0 0
    %3005 = vmatprep.subr.bf16.mxu0 0
    %3006 = vmatpush1.bf16.msra.mxu0 0
    %3007 = vmatprep.subr.bf16.mxu0 0
    %3008 = vmatpush1.bf16.msra.mxu0 0
    %3009 = vmatprep.subr.bf16.mxu0 0
    %3010 = vmatpush1.bf16.msra.mxu0 0
    %3011 = vmatprep.subr.bf16.mxu0 0
    %3012 = vmatpush1.bf16.msra.mxu0 0
    %3013 = vmatprep.mubr.bf16.mxu0 %v2774
    %3014 = vmatmul.mubr.bf16.gmra.mrb[0].mxu0 %v2764
    %v3015 = vpop.f32.mrb[0].mxu0
    %v3016 = vadd.f32 0.0, %v3015
    %v3017 = vpop.f32.mrb[0].mxu0
    %v3018 = vadd.f32 0.0, %v3017
    %v3019 = vpop.f32.mrb[0].mxu0
    %v3020 = vpop.f32.mrb[0].mxu0
    %3021 = vdwg.mxu0
    %v3022 = vadd.f32 %v2979, %v3016
    %v3023 = vadd.f32 %v2980, %v3018
    %3024 = vmatprep.subr.bf16.mxu0 %v694
    %3025 = vmatpush1.bf16.msra.mxu0 %v693
    %3026 = vmatprep.subr.bf16.mxu0 %v696
    %3027 = vmatpush1.bf16.msra.mxu0 %v695
    %3028 = vmatprep.subr.bf16.mxu0 %v698
    %3029 = vmatpush1.bf16.msra.mxu0 %v697
    %3030 = vmatprep.subr.bf16.mxu0 %v700
    %3031 = vmatpush1.bf16.msra.mxu0 %v699
    %3032 = vmatprep.subr.bf16.mxu0 %v702
    %3033 = vmatpush1.bf16.msra.mxu0 %v701
    %3034 = vmatprep.subr.bf16.mxu0 %v704
    %3035 = vmatpush1.bf16.msra.mxu0 %v703
    %3036 = vmatprep.subr.bf16.mxu0 %v706
    %3037 = vmatpush1.bf16.msra.mxu0 %v705
    %3038 = vmatprep.subr.bf16.mxu0 %v708
    %3039 = vmatpush1.bf16.msra.mxu0 %v707
    %3040 = vmatprep.subr.bf16.mxu0 %v710
    %3041 = vmatpush1.bf16.msra.mxu0 %v709
    %3042 = vmatprep.subr.bf16.mxu0 0
    %3043 = vmatpush1.bf16.msra.mxu0 0
    %3044 = vmatprep.subr.bf16.mxu0 0
    %3045 = vmatpush1.bf16.msra.mxu0 0
    %3046 = vmatprep.subr.bf16.mxu0 0
    %3047 = vmatpush1.bf16.msra.mxu0 0
    %3048 = vmatprep.subr.bf16.mxu0 0
    %3049 = vmatpush1.bf16.msra.mxu0 0
    %3050 = vmatprep.subr.bf16.mxu0 0
    %3051 = vmatpush1.bf16.msra.mxu0 0
    %3052 = vmatprep.subr.bf16.mxu0 0
    %3053 = vmatpush1.bf16.msra.mxu0 0
    %3054 = vmatprep.subr.bf16.mxu0 0
    %3055 = vmatpush1.bf16.msra.mxu0 0
    %3056 = vmatprep.mubr.bf16.mxu0 %v2846
    %3057 = vmatmul.mubr.bf16.gmra.mrb[0].mxu0 %v2836
    %v3058 = vpop.f32.mrb[0].mxu0
    %v3059 = vadd.f32 0.0, %v3058
    %v3060 = vpop.f32.mrb[0].mxu0
    %v3061 = vadd.f32 0.0, %v3060
    %v3062 = vpop.f32.mrb[0].mxu0
    %v3063 = vpop.f32.mrb[0].mxu0
    %3064 = vdwg.mxu0
    %v3065 = vadd.f32 %v3022, %v3059
    %v3066 = vadd.f32 %v3023, %v3061
    %s3067 = scalar_lea.vmem %s0, 40
    %v3068 = vld [vmem:[%s3067] sm:$0x3]
    %v3071 = vunpack.c.l.s4 1966171168
    %v3072 = vunpack.c.0.s8 %v3071
    %v3073 = vlaneseq
    %v3074 = vshrl.u32 %v3073, 7
    %v3075 = vsub.s32 %v3072, %v3074
    %v3076 = vrot.slane %v3068, %v3075
    %v3077 = vcombine.high %v3076, %v3076
    %v3079 = vunpack.c.l.s4 1966171168
    %v3080 = vunpack.c.0.s8 %v3079
    %v3081 = vlaneseq
    %v3082 = vshrl.u32 %v3081, 7
    %v3083 = vsub.s32 %v3080, %v3082
    %v3084 = vrot.slane %v3076, %v3083
    %v3086 = vunpack.c.l.s4 1966171168
    %v3087 = vunpack.c.0.s8 %v3086
    %v3088 = vlaneseq
    %v3089 = vshrl.u32 %v3088, 7
    %v3090 = vsub.s32 %v3087, %v3089
    %v3091 = vrot.slane %v3077, %v3090
    %v3094 = vsel %vm174, %v3091, 0
    %3096 = vmatprep.subr.bf16.mxu0 %v875
    %3097 = vmatpush1.bf16.msra.mxu0 %v874
    %3098 = vmatprep.subr.bf16.mxu0 %v877
    %3099 = vmatpush1.bf16.msra.mxu0 %v876
    %3100 = vmatprep.subr.bf16.mxu0 %v879
    %3101 = vmatpush1.bf16.msra.mxu0 %v878
    %3102 = vmatprep.subr.bf16.mxu0 %v881
    %3103 = vmatpush1.bf16.msra.mxu0 %v880
    %3104 = vmatprep.subr.bf16.mxu0 %v883
    %3105 = vmatpush1.bf16.msra.mxu0 %v882
    %3106 = vmatprep.subr.bf16.mxu0 %v885
    %3107 = vmatpush1.bf16.msra.mxu0 %v884
    %3108 = vmatprep.subr.bf16.mxu0 %v887
    %3109 = vmatpush1.bf16.msra.mxu0 %v886
    %3110 = vmatprep.subr.bf16.mxu0 %v889
    %3111 = vmatpush1.bf16.msra.mxu0 %v888
    %3112 = vmatprep.subr.bf16.mxu0 %v891
    %3113 = vmatpush1.bf16.msra.mxu0 %v890
    %3114 = vmatprep.subr.bf16.mxu0 0
    %3115 = vmatpush1.bf16.msra.mxu0 0
    %3116 = vmatprep.subr.bf16.mxu0 0
    %3117 = vmatpush1.bf16.msra.mxu0 0
    %3118 = vmatprep.subr.bf16.mxu0 0
    %3119 = vmatpush1.bf16.msra.mxu0 0
    %3120 = vmatprep.subr.bf16.mxu0 0
    %3121 = vmatpush1.bf16.msra.mxu0 0
    %3122 = vmatprep.subr.bf16.mxu0 0
    %3123 = vmatpush1.bf16.msra.mxu0 0
    %3124 = vmatprep.subr.bf16.mxu0 0
    %3125 = vmatpush1.bf16.msra.mxu0 0
    %3126 = vmatprep.subr.bf16.mxu0 0
    %3127 = vmatpush1.bf16.msra.mxu0 0
    %3128 = vmatprep.mubr.bf16.mxu0 %v3094
    %3129 = vmatmul.mubr.bf16.gmra.mrb[0].mxu0 %v3084
    %v3130 = vpop.f32.mrb[0].mxu0
    %v3131 = vadd.f32 0.0, %v3130
    %v3132 = vpop.f32.mrb[0].mxu0
    %v3133 = vadd.f32 0.0, %v3132
    %v3134 = vpop.f32.mrb[0].mxu0
    %v3135 = vpop.f32.mrb[0].mxu0
    %3136 = vdwg.mxu0
    %v3137 = vadd.f32 %v3065, %v3131
    %v3138 = vadd.f32 %v3066, %v3133
    %s3139 = scalar_lea.vmem %s0, 42
    %v3140 = vld [vmem:[%s3139] sm:$0x3]
    %v3143 = vunpack.c.l.s4 1966171168
    %v3144 = vunpack.c.0.s8 %v3143
    %v3145 = vlaneseq
    %v3146 = vshrl.u32 %v3145, 7
    %v3147 = vsub.s32 %v3144, %v3146
    %v3148 = vrot.slane %v3140, %v3147
    %v3149 = vcombine.high %v3148, %v3148
    %v3151 = vunpack.c.l.s4 1966171168
    %v3152 = vunpack.c.0.s8 %v3151
    %v3153 = vlaneseq
    %v3154 = vshrl.u32 %v3153, 7
    %v3155 = vsub.s32 %v3152, %v3154
    %v3156 = vrot.slane %v3148, %v3155
    %v3158 = vunpack.c.l.s4 1966171168
    %v3159 = vunpack.c.0.s8 %v3158
    %v3160 = vlaneseq
    %v3161 = vshrl.u32 %v3160, 7
    %v3162 = vsub.s32 %v3159, %v3161
    %v3163 = vrot.slane %v3149, %v3162
    %v3166 = vsel %vm174, %v3163, 0
    %3168 = vmatprep.subr.bf16.mxu0 %v1056
    %3169 = vmatpush1.bf16.msra.mxu0 %v1055
    %3170 = vmatprep.subr.bf16.mxu0 %v1058
    %3171 = vmatpush1.bf16.msra.mxu0 %v1057
    %3172 = vmatprep.subr.bf16.mxu0 %v1060
    %3173 = vmatpush1.bf16.msra.mxu0 %v1059
    %3174 = vmatprep.subr.bf16.mxu0 %v1062
    %3175 = vmatpush1.bf16.msra.mxu0 %v1061
    %3176 = vmatprep.subr.bf16.mxu0 %v1064
    %3177 = vmatpush1.bf16.msra.mxu0 %v1063
    %3178 = vmatprep.subr.bf16.mxu0 %v1066
    %3179 = vmatpush1.bf16.msra.mxu0 %v1065
    %3180 = vmatprep.subr.bf16.mxu0 %v1068
    %3181 = vmatpush1.bf16.msra.mxu0 %v1067
    %3182 = vmatprep.subr.bf16.mxu0 %v1070
    %3183 = vmatpush1.bf16.msra.mxu0 %v1069
    %3184 = vmatprep.subr.bf16.mxu0 %v1072
    %3185 = vmatpush1.bf16.msra.mxu0 %v1071
    %3186 = vmatprep.subr.bf16.mxu0 0
    %3187 = vmatpush1.bf16.msra.mxu0 0
    %3188 = vmatprep.subr.bf16.mxu0 0
    %3189 = vmatpush1.bf16.msra.mxu0 0
    %3190 = vmatprep.subr.bf16.mxu0 0
    %3191 = vmatpush1.bf16.msra.mxu0 0
    %3192 = vmatprep.subr.bf16.mxu0 0
    %3193 = vmatpush1.bf16.msra.mxu0 0
    %3194 = vmatprep.subr.bf16.mxu0 0
    %3195 = vmatpush1.bf16.msra.mxu0 0
    %3196 = vmatprep.subr.bf16.mxu0 0
    %3197 = vmatpush1.bf16.msra.mxu0 0
    %3198 = vmatprep.subr.bf16.mxu0 0
    %3199 = vmatpush1.bf16.msra.mxu0 0
    %3200 = vmatprep.mubr.bf16.mxu0 %v3166
    %3201 = vmatmul.mubr.bf16.gmra.mrb[0].mxu0 %v3156
    %v3202 = vpop.f32.mrb[0].mxu0
    %v3203 = vadd.f32 0.0, %v3202
    %v3204 = vpop.f32.mrb[0].mxu0
    %v3205 = vadd.f32 0.0, %v3204
    %v3206 = vpop.f32.mrb[0].mxu0
    %v3207 = vpop.f32.mrb[0].mxu0
    %3208 = vdwg.mxu0
    %v3209 = vadd.f32 %v3137, %v3203
    %v3210 = vadd.f32 %v3138, %v3205
    %s3211 = scalar_lea.vmem %s0, 44
    %v3212 = vld [vmem:[%s3211] sm:$0x3]
    %v3215 = vunpack.c.l.s4 1966171168
    %v3216 = vunpack.c.0.s8 %v3215
    %v3217 = vlaneseq
    %v3218 = vshrl.u32 %v3217, 7
    %v3219 = vsub.s32 %v3216, %v3218
    %v3220 = vrot.slane %v3212, %v3219
    %v3221 = vcombine.high %v3220, %v3220
    %v3223 = vunpack.c.l.s4 1966171168
    %v3224 = vunpack.c.0.s8 %v3223
    %v3225 = vlaneseq
    %v3226 = vshrl.u32 %v3225, 7
    %v3227 = vsub.s32 %v3224, %v3226
    %v3228 = vrot.slane %v3220, %v3227
    %v3230 = vunpack.c.l.s4 1966171168
    %v3231 = vunpack.c.0.s8 %v3230
    %v3232 = vlaneseq
    %v3233 = vshrl.u32 %v3232, 7
    %v3234 = vsub.s32 %v3231, %v3233
    %v3235 = vrot.slane %v3221, %v3234
    %v3238 = vsel %vm174, %v3235, 0
    %3240 = vmatprep.subr.bf16.mxu0 %v1237
    %3241 = vmatpush1.bf16.msra.mxu0 %v1236
    %3242 = vmatprep.subr.bf16.mxu0 %v1239
    %3243 = vmatpush1.bf16.msra.mxu0 %v1238
    %3244 = vmatprep.subr.bf16.mxu0 %v1241
    %3245 = vmatpush1.bf16.msra.mxu0 %v1240
    %3246 = vmatprep.subr.bf16.mxu0 %v1243
    %3247 = vmatpush1.bf16.msra.mxu0 %v1242
    %3248 = vmatprep.subr.bf16.mxu0 %v1245
    %3249 = vmatpush1.bf16.msra.mxu0 %v1244
    %3250 = vmatprep.subr.bf16.mxu0 %v1247
    %3251 = vmatpush1.bf16.msra.mxu0 %v1246
    %3252 = vmatprep.subr.bf16.mxu0 %v1249
    %3253 = vmatpush1.bf16.msra.mxu0 %v1248
    %3254 = vmatprep.subr.bf16.mxu0 %v1251
    %3255 = vmatpush1.bf16.msra.mxu0 %v1250
    %3256 = vmatprep.subr.bf16.mxu0 %v1253
    %3257 = vmatpush1.bf16.msra.mxu0 %v1252
    %3258 = vmatprep.subr.bf16.mxu0 0
    %3259 = vmatpush1.bf16.msra.mxu0 0
    %3260 = vmatprep.subr.bf16.mxu0 0
    %3261 = vmatpush1.bf16.msra.mxu0 0
    %3262 = vmatprep.subr.bf16.mxu0 0
    %3263 = vmatpush1.bf16.msra.mxu0 0
    %3264 = vmatprep.subr.bf16.mxu0 0
    %3265 = vmatpush1.bf16.msra.mxu0 0
    %3266 = vmatprep.subr.bf16.mxu0 0
    %3267 = vmatpush1.bf16.msra.mxu0 0
    %3268 = vmatprep.subr.bf16.mxu0 0
    %3269 = vmatpush1.bf16.msra.mxu0 0
    %3270 = vmatprep.subr.bf16.mxu0 0
    %3271 = vmatpush1.bf16.msra.mxu0 0
    %3272 = vmatprep.mubr.bf16.mxu0 %v3238
    %3273 = vmatmul.mubr.bf16.gmra.mrb[0].mxu0 %v3228
    %v3274 = vpop.f32.mrb[0].mxu0
    %v3275 = vadd.f32 0.0, %v3274
    %v3276 = vpop.f32.mrb[0].mxu0
    %v3277 = vadd.f32 0.0, %v3276
    %v3278 = vpop.f32.mrb[0].mxu0
    %v3279 = vpop.f32.mrb[0].mxu0
    %3280 = vdwg.mxu0
    %v3281 = vadd.f32 %v3209, %v3275
    %v3282 = vadd.f32 %v3210, %v3277
    %s3283 = scalar_lea.vmem %s0, 46
    %v3284 = vld [vmem:[%s3283] sm:$0x3]
    %v3287 = vunpack.c.l.s4 1966171168
    %v3288 = vunpack.c.0.s8 %v3287
    %v3289 = vlaneseq
    %v3290 = vshrl.u32 %v3289, 7
    %v3291 = vsub.s32 %v3288, %v3290
    %v3292 = vrot.slane %v3284, %v3291
    %v3293 = vcombine.high %v3292, %v3292
    %v3295 = vunpack.c.l.s4 1966171168
    %v3296 = vunpack.c.0.s8 %v3295
    %v3297 = vlaneseq
    %v3298 = vshrl.u32 %v3297, 7
    %v3299 = vsub.s32 %v3296, %v3298
    %v3300 = vrot.slane %v3292, %v3299
    %v3302 = vunpack.c.l.s4 1966171168
    %v3303 = vunpack.c.0.s8 %v3302
    %v3304 = vlaneseq
    %v3305 = vshrl.u32 %v3304, 7
    %v3306 = vsub.s32 %v3303, %v3305
    %v3307 = vrot.slane %v3293, %v3306
    %v3310 = vsel %vm174, %v3307, 0
    %3312 = vmatprep.subr.bf16.mxu0 %v1418
    %3313 = vmatpush1.bf16.msra.mxu0 %v1417
    %3314 = vmatprep.subr.bf16.mxu0 %v1420
    %3315 = vmatpush1.bf16.msra.mxu0 %v1419
    %3316 = vmatprep.subr.bf16.mxu0 %v1422
    %3317 = vmatpush1.bf16.msra.mxu0 %v1421
    %3318 = vmatprep.subr.bf16.mxu0 %v1424
    %3319 = vmatpush1.bf16.msra.mxu0 %v1423
    %3320 = vmatprep.subr.bf16.mxu0 %v1426
    %3321 = vmatpush1.bf16.msra.mxu0 %v1425
    %3322 = vmatprep.subr.bf16.mxu0 %v1428
    %3323 = vmatpush1.bf16.msra.mxu0 %v1427
    %3324 = vmatprep.subr.bf16.mxu0 %v1430
    %3325 = vmatpush1.bf16.msra.mxu0 %v1429
    %3326 = vmatprep.subr.bf16.mxu0 %v1432
    %3327 = vmatpush1.bf16.msra.mxu0 %v1431
    %3328 = vmatprep.subr.bf16.mxu0 %v1434
    %3329 = vmatpush1.bf16.msra.mxu0 %v1433
    %3330 = vmatprep.subr.bf16.mxu0 0
    %3331 = vmatpush1.bf16.msra.mxu0 0
    %3332 = vmatprep.subr.bf16.mxu0 0
    %3333 = vmatpush1.bf16.msra.mxu0 0
    %3334 = vmatprep.subr.bf16.mxu0 0
    %3335 = vmatpush1.bf16.msra.mxu0 0
    %3336 = vmatprep.subr.bf16.mxu0 0
    %3337 = vmatpush1.bf16.msra.mxu0 0
    %3338 = vmatprep.subr.bf16.mxu0 0
    %3339 = vmatpush1.bf16.msra.mxu0 0
    %3340 = vmatprep.subr.bf16.mxu0 0
    %3341 = vmatpush1.bf16.msra.mxu0 0
    %3342 = vmatprep.subr.bf16.mxu0 0
    %3343 = vmatpush1.bf16.msra.mxu0 0
    %3344 = vmatprep.mubr.bf16.mxu0 %v3310
    %3345 = vmatmul.mubr.bf16.gmra.mrb[0].mxu0 %v3300
    %v3346 = vpop.f32.mrb[0].mxu0
    %v3347 = vadd.f32 0.0, %v3346
    %v3348 = vpop.f32.mrb[0].mxu0
    %v3349 = vadd.f32 0.0, %v3348
    %v3350 = vpop.f32.mrb[0].mxu0
    %v3351 = vpop.f32.mrb[0].mxu0
    %3352 = vdwg.mxu0
    %v3353 = vadd.f32 %v3281, %v3347
    %v3354 = vadd.f32 %v3282, %v3349
    %v3355 = vmax.f32 %v3353, 0.0
    %v3356 = vmax.f32 %v3354, 0.0
    %v3357 = vpack.c.bf16 %v3355, %v3355
    %v3358 = vpack.c.bf16 %v3356, %v3356
    %3359 = vmatprep.subr.bf16.mxu0 %v139
    %3360 = vmatpush1.bf16.msra.mxu0 %v138
    %3361 = vmatprep.subr.bf16.mxu0 %v141
    %3362 = vmatpush1.bf16.msra.mxu0 %v140
    %3363 = vmatprep.subr.bf16.mxu0 %v143
    %3364 = vmatpush1.bf16.msra.mxu0 %v142
    %3365 = vmatprep.subr.bf16.mxu0 %v145
    %3366 = vmatpush1.bf16.msra.mxu0 %v144
    %3367 = vmatprep.subr.bf16.mxu0 %v147
    %3368 = vmatpush1.bf16.msra.mxu0 %v146
    %3369 = vmatprep.subr.bf16.mxu0 %v149
    %3370 = vmatpush1.bf16.msra.mxu0 %v148
    %3371 = vmatprep.subr.bf16.mxu0 %v151
    %3372 = vmatpush1.bf16.msra.mxu0 %v150
    %3373 = vmatprep.subr.bf16.mxu0 %v153
    %3374 = vmatpush1.bf16.msra.mxu0 %v152
    %3375 = vmatprep.subr.bf16.mxu0 %v155
    %3376 = vmatpush1.bf16.msra.mxu0 %v154
    %3377 = vmatprep.subr.bf16.mxu0 0
    %3378 = vmatpush1.bf16.msra.mxu0 0
    %3379 = vmatprep.subr.bf16.mxu0 0
    %3380 = vmatpush1.bf16.msra.mxu0 0
    %3381 = vmatprep.subr.bf16.mxu0 0
    %3382 = vmatpush1.bf16.msra.mxu0 0
    %3383 = vmatprep.subr.bf16.mxu0 0
    %3384 = vmatpush1.bf16.msra.mxu0 0
    %3385 = vmatprep.subr.bf16.mxu0 0
    %3386 = vmatpush1.bf16.msra.mxu0 0
    %3387 = vmatprep.subr.bf16.mxu0 0
    %3388 = vmatpush1.bf16.msra.mxu0 0
    %3389 = vmatprep.subr.bf16.mxu0 0
    %3390 = vmatpush1.bf16.msra.mxu0 0
    %3391 = vmatprep.mubr.bf16.mxu0 %v3094
    %3392 = vmatmul.mubr.bf16.gmra.mrb[0].mxu0 %v3084
    %v3393 = vpop.f32.mrb[0].mxu0
    %v3394 = vadd.f32 0.0, %v3393
    %v3395 = vpop.f32.mrb[0].mxu0
    %v3396 = vadd.f32 0.0, %v3395
    %v3397 = vpop.f32.mrb[0].mxu0
    %v3398 = vpop.f32.mrb[0].mxu0
    %3399 = vdwg.mxu0
    %v3400 = vadd.f32 %v223, %v3394
    %v3401 = vadd.f32 %v227, %v3396
    %3402 = vmatprep.subr.bf16.mxu0 %v332
    %3403 = vmatpush1.bf16.msra.mxu0 %v331
    %3404 = vmatprep.subr.bf16.mxu0 %v334
    %3405 = vmatpush1.bf16.msra.mxu0 %v333
    %3406 = vmatprep.subr.bf16.mxu0 %v336
    %3407 = vmatpush1.bf16.msra.mxu0 %v335
    %3408 = vmatprep.subr.bf16.mxu0 %v338
    %3409 = vmatpush1.bf16.msra.mxu0 %v337
    %3410 = vmatprep.subr.bf16.mxu0 %v340
    %3411 = vmatpush1.bf16.msra.mxu0 %v339
    %3412 = vmatprep.subr.bf16.mxu0 %v342
    %3413 = vmatpush1.bf16.msra.mxu0 %v341
    %3414 = vmatprep.subr.bf16.mxu0 %v344
    %3415 = vmatpush1.bf16.msra.mxu0 %v343
    %3416 = vmatprep.subr.bf16.mxu0 %v346
    %3417 = vmatpush1.bf16.msra.mxu0 %v345
    %3418 = vmatprep.subr.bf16.mxu0 %v348
    %3419 = vmatpush1.bf16.msra.mxu0 %v347
    %3420 = vmatprep.subr.bf16.mxu0 0
    %3421 = vmatpush1.bf16.msra.mxu0 0
    %3422 = vmatprep.subr.bf16.mxu0 0
    %3423 = vmatpush1.bf16.msra.mxu0 0
    %3424 = vmatprep.subr.bf16.mxu0 0
    %3425 = vmatpush1.bf16.msra.mxu0 0
    %3426 = vmatprep.subr.bf16.mxu0 0
    %3427 = vmatpush1.bf16.msra.mxu0 0
    %3428 = vmatprep.subr.bf16.mxu0 0
    %3429 = vmatpush1.bf16.msra.mxu0 0
    %3430 = vmatprep.subr.bf16.mxu0 0
    %3431 = vmatpush1.bf16.msra.mxu0 0
    %3432 = vmatprep.subr.bf16.mxu0 0
    %3433 = vmatpush1.bf16.msra.mxu0 0
    %3434 = vmatprep.mubr.bf16.mxu0 %v3166
    %3435 = vmatmul.mubr.bf16.gmra.mrb[0].mxu0 %v3156
    %v3436 = vpop.f32.mrb[0].mxu0
    %v3437 = vadd.f32 0.0, %v3436
    %v3438 = vpop.f32.mrb[0].mxu0
    %v3439 = vadd.f32 0.0, %v3438
    %v3440 = vpop.f32.mrb[0].mxu0
    %v3441 = vpop.f32.mrb[0].mxu0
    %3442 = vdwg.mxu0
    %v3443 = vadd.f32 %v3400, %v3437
    %v3444 = vadd.f32 %v3401, %v3439
    %3445 = vmatprep.subr.bf16.mxu0 %v513
    %3446 = vmatpush1.bf16.msra.mxu0 %v512
    %3447 = vmatprep.subr.bf16.mxu0 %v515
    %3448 = vmatpush1.bf16.msra.mxu0 %v514
    %3449 = vmatprep.subr.bf16.mxu0 %v517
    %3450 = vmatpush1.bf16.msra.mxu0 %v516
    %3451 = vmatprep.subr.bf16.mxu0 %v519
    %3452 = vmatpush1.bf16.msra.mxu0 %v518
    %3453 = vmatprep.subr.bf16.mxu0 %v521
    %3454 = vmatpush1.bf16.msra.mxu0 %v520
    %3455 = vmatprep.subr.bf16.mxu0 %v523
    %3456 = vmatpush1.bf16.msra.mxu0 %v522
    %3457 = vmatprep.subr.bf16.mxu0 %v525
    %3458 = vmatpush1.bf16.msra.mxu0 %v524
    %3459 = vmatprep.subr.bf16.mxu0 %v527
    %3460 = vmatpush1.bf16.msra.mxu0 %v526
    %3461 = vmatprep.subr.bf16.mxu0 %v529
    %3462 = vmatpush1.bf16.msra.mxu0 %v528
    %3463 = vmatprep.subr.bf16.mxu0 0
    %3464 = vmatpush1.bf16.msra.mxu0 0
    %3465 = vmatprep.subr.bf16.mxu0 0
    %3466 = vmatpush1.bf16.msra.mxu0 0
    %3467 = vmatprep.subr.bf16.mxu0 0
    %3468 = vmatpush1.bf16.msra.mxu0 0
    %3469 = vmatprep.subr.bf16.mxu0 0
    %3470 = vmatpush1.bf16.msra.mxu0 0
    %3471 = vmatprep.subr.bf16.mxu0 0
    %3472 = vmatpush1.bf16.msra.mxu0 0
    %3473 = vmatprep.subr.bf16.mxu0 0
    %3474 = vmatpush1.bf16.msra.mxu0 0
    %3475 = vmatprep.subr.bf16.mxu0 0
    %3476 = vmatpush1.bf16.msra.mxu0 0
    %3477 = vmatprep.mubr.bf16.mxu0 %v3238
    %3478 = vmatmul.mubr.bf16.gmra.mrb[0].mxu0 %v3228
    %v3479 = vpop.f32.mrb[0].mxu0
    %v3480 = vadd.f32 0.0, %v3479
    %v3481 = vpop.f32.mrb[0].mxu0
    %v3482 = vadd.f32 0.0, %v3481
    %v3483 = vpop.f32.mrb[0].mxu0
    %v3484 = vpop.f32.mrb[0].mxu0
    %3485 = vdwg.mxu0
    %v3486 = vadd.f32 %v3443, %v3480
    %v3487 = vadd.f32 %v3444, %v3482
    %3488 = vmatprep.subr.bf16.mxu0 %v694
    %3489 = vmatpush1.bf16.msra.mxu0 %v693
    %3490 = vmatprep.subr.bf16.mxu0 %v696
    %3491 = vmatpush1.bf16.msra.mxu0 %v695
    %3492 = vmatprep.subr.bf16.mxu0 %v698
    %3493 = vmatpush1.bf16.msra.mxu0 %v697
    %3494 = vmatprep.subr.bf16.mxu0 %v700
    %3495 = vmatpush1.bf16.msra.mxu0 %v699
    %3496 = vmatprep.subr.bf16.mxu0 %v702
    %3497 = vmatpush1.bf16.msra.mxu0 %v701
    %3498 = vmatprep.subr.bf16.mxu0 %v704
    %3499 = vmatpush1.bf16.msra.mxu0 %v703
    %3500 = vmatprep.subr.bf16.mxu0 %v706
    %3501 = vmatpush1.bf16.msra.mxu0 %v705
    %3502 = vmatprep.subr.bf16.mxu0 %v708
    %3503 = vmatpush1.bf16.msra.mxu0 %v707
    %3504 = vmatprep.subr.bf16.mxu0 %v710
    %3505 = vmatpush1.bf16.msra.mxu0 %v709
    %3506 = vmatprep.subr.bf16.mxu0 0
    %3507 = vmatpush1.bf16.msra.mxu0 0
    %3508 = vmatprep.subr.bf16.mxu0 0
    %3509 = vmatpush1.bf16.msra.mxu0 0
    %3510 = vmatprep.subr.bf16.mxu0 0
    %3511 = vmatpush1.bf16.msra.mxu0 0
    %3512 = vmatprep.subr.bf16.mxu0 0
    %3513 = vmatpush1.bf16.msra.mxu0 0
    %3514 = vmatprep.subr.bf16.mxu0 0
    %3515 = vmatpush1.bf16.msra.mxu0 0
    %3516 = vmatprep.subr.bf16.mxu0 0
    %3517 = vmatpush1.bf16.msra.mxu0 0
    %3518 = vmatprep.subr.bf16.mxu0 0
    %3519 = vmatpush1.bf16.msra.mxu0 0
    %3520 = vmatprep.mubr.bf16.mxu0 %v3310
    %3521 = vmatmul.mubr.bf16.gmra.mrb[0].mxu0 %v3300
    %v3522 = vpop.f32.mrb[0].mxu0
    %v3523 = vadd.f32 0.0, %v3522
    %v3524 = vpop.f32.mrb[0].mxu0
    %v3525 = vadd.f32 0.0, %v3524
    %v3526 = vpop.f32.mrb[0].mxu0
    %v3527 = vpop.f32.mrb[0].mxu0
    %3528 = vdwg.mxu0
    %v3529 = vadd.f32 %v3486, %v3523
    %v3530 = vadd.f32 %v3487, %v3525
    %s3531 = scalar_lea.vmem %s0, 48
    %v3532 = vld [vmem:[%s3531] sm:$0x3]
    %v3535 = vunpack.c.l.s4 1966171168
    %v3536 = vunpack.c.0.s8 %v3535
    %v3537 = vlaneseq
    %v3538 = vshrl.u32 %v3537, 7
    %v3539 = vsub.s32 %v3536, %v3538
    %v3540 = vrot.slane %v3532, %v3539
    %v3541 = vcombine.high %v3540, %v3540
    %v3543 = vunpack.c.l.s4 1966171168
    %v3544 = vunpack.c.0.s8 %v3543
    %v3545 = vlaneseq
    %v3546 = vshrl.u32 %v3545, 7
    %v3547 = vsub.s32 %v3544, %v3546
    %v3548 = vrot.slane %v3540, %v3547
    %v3550 = vunpack.c.l.s4 1966171168
    %v3551 = vunpack.c.0.s8 %v3550
    %v3552 = vlaneseq
    %v3553 = vshrl.u32 %v3552, 7
    %v3554 = vsub.s32 %v3551, %v3553
    %v3555 = vrot.slane %v3541, %v3554
    %v3558 = vsel %vm174, %v3555, 0
    %3560 = vmatprep.subr.bf16.mxu0 %v875
    %3561 = vmatpush1.bf16.msra.mxu0 %v874
    %3562 = vmatprep.subr.bf16.mxu0 %v877
    %3563 = vmatpush1.bf16.msra.mxu0 %v876
    %3564 = vmatprep.subr.bf16.mxu0 %v879
    %3565 = vmatpush1.bf16.msra.mxu0 %v878
    %3566 = vmatprep.subr.bf16.mxu0 %v881
    %3567 = vmatpush1.bf16.msra.mxu0 %v880
    %3568 = vmatprep.subr.bf16.mxu0 %v883
    %3569 = vmatpush1.bf16.msra.mxu0 %v882
    %3570 = vmatprep.subr.bf16.mxu0 %v885
    %3571 = vmatpush1.bf16.msra.mxu0 %v884
    %3572 = vmatprep.subr.bf16.mxu0 %v887
    %3573 = vmatpush1.bf16.msra.mxu0 %v886
    %3574 = vmatprep.subr.bf16.mxu0 %v889
    %3575 = vmatpush1.bf16.msra.mxu0 %v888
    %3576 = vmatprep.subr.bf16.mxu0 %v891
    %3577 = vmatpush1.bf16.msra.mxu0 %v890
    %3578 = vmatprep.subr.bf16.mxu0 0
    %3579 = vmatpush1.bf16.msra.mxu0 0
    %3580 = vmatprep.subr.bf16.mxu0 0
    %3581 = vmatpush1.bf16.msra.mxu0 0
    %3582 = vmatprep.subr.bf16.mxu0 0
    %3583 = vmatpush1.bf16.msra.mxu0 0
    %3584 = vmatprep.subr.bf16.mxu0 0
    %3585 = vmatpush1.bf16.msra.mxu0 0
    %3586 = vmatprep.subr.bf16.mxu0 0
    %3587 = vmatpush1.bf16.msra.mxu0 0
    %3588 = vmatprep.subr.bf16.mxu0 0
    %3589 = vmatpush1.bf16.msra.mxu0 0
    %3590 = vmatprep.subr.bf16.mxu0 0
    %3591 = vmatpush1.bf16.msra.mxu0 0
    %3592 = vmatprep.mubr.bf16.mxu0 %v3558
    %3593 = vmatmul.mubr.bf16.gmra.mrb[0].mxu0 %v3548
    %v3594 = vpop.f32.mrb[0].mxu0
    %v3595 = vadd.f32 0.0, %v3594
    %v3596 = vpop.f32.mrb[0].mxu0
    %v3597 = vadd.f32 0.0, %v3596
    %v3598 = vpop.f32.mrb[0].mxu0
    %v3599 = vpop.f32.mrb[0].mxu0
    %3600 = vdwg.mxu0
    %v3601 = vadd.f32 %v3529, %v3595
    %v3602 = vadd.f32 %v3530, %v3597
    %s3603 = scalar_lea.vmem %s0, 50
    %v3604 = vld [vmem:[%s3603] sm:$0x3]
    %v3607 = vunpack.c.l.s4 1966171168
    %v3608 = vunpack.c.0.s8 %v3607
    %v3609 = vlaneseq
    %v3610 = vshrl.u32 %v3609, 7
    %v3611 = vsub.s32 %v3608, %v3610
    %v3612 = vrot.slane %v3604, %v3611
    %v3613 = vcombine.high %v3612, %v3612
    %v3615 = vunpack.c.l.s4 1966171168
    %v3616 = vunpack.c.0.s8 %v3615
    %v3617 = vlaneseq
    %v3618 = vshrl.u32 %v3617, 7
    %v3619 = vsub.s32 %v3616, %v3618
    %v3620 = vrot.slane %v3612, %v3619
    %v3622 = vunpack.c.l.s4 1966171168
    %v3623 = vunpack.c.0.s8 %v3622
    %v3624 = vlaneseq
    %v3625 = vshrl.u32 %v3624, 7
    %v3626 = vsub.s32 %v3623, %v3625
    %v3627 = vrot.slane %v3613, %v3626
    %v3630 = vsel %vm174, %v3627, 0
    %3632 = vmatprep.subr.bf16.mxu0 %v1056
    %3633 = vmatpush1.bf16.msra.mxu0 %v1055
    %3634 = vmatprep.subr.bf16.mxu0 %v1058
    %3635 = vmatpush1.bf16.msra.mxu0 %v1057
    %3636 = vmatprep.subr.bf16.mxu0 %v1060
    %3637 = vmatpush1.bf16.msra.mxu0 %v1059
    %3638 = vmatprep.subr.bf16.mxu0 %v1062
    %3639 = vmatpush1.bf16.msra.mxu0 %v1061
    %3640 = vmatprep.subr.bf16.mxu0 %v1064
    %3641 = vmatpush1.bf16.msra.mxu0 %v1063
    %3642 = vmatprep.subr.bf16.mxu0 %v1066
    %3643 = vmatpush1.bf16.msra.mxu0 %v1065
    %3644 = vmatprep.subr.bf16.mxu0 %v1068
    %3645 = vmatpush1.bf16.msra.mxu0 %v1067
    %3646 = vmatprep.subr.bf16.mxu0 %v1070
    %3647 = vmatpush1.bf16.msra.mxu0 %v1069
    %3648 = vmatprep.subr.bf16.mxu0 %v1072
    %3649 = vmatpush1.bf16.msra.mxu0 %v1071
    %3650 = vmatprep.subr.bf16.mxu0 0
    %3651 = vmatpush1.bf16.msra.mxu0 0
    %3652 = vmatprep.subr.bf16.mxu0 0
    %3653 = vmatpush1.bf16.msra.mxu0 0
    %3654 = vmatprep.subr.bf16.mxu0 0
    %3655 = vmatpush1.bf16.msra.mxu0 0
    %3656 = vmatprep.subr.bf16.mxu0 0
    %3657 = vmatpush1.bf16.msra.mxu0 0
    %3658 = vmatprep.subr.bf16.mxu0 0
    %3659 = vmatpush1.bf16.msra.mxu0 0
    %3660 = vmatprep.subr.bf16.mxu0 0
    %3661 = vmatpush1.bf16.msra.mxu0 0
    %3662 = vmatprep.subr.bf16.mxu0 0
    %3663 = vmatpush1.bf16.msra.mxu0 0
    %3664 = vmatprep.mubr.bf16.mxu0 %v3630
    %3665 = vmatmul.mubr.bf16.gmra.mrb[0].mxu0 %v3620
    %v3666 = vpop.f32.mrb[0].mxu0
    %v3667 = vadd.f32 0.0, %v3666
    %v3668 = vpop.f32.mrb[0].mxu0
    %v3669 = vadd.f32 0.0, %v3668
    %v3670 = vpop.f32.mrb[0].mxu0
    %v3671 = vpop.f32.mrb[0].mxu0
    %3672 = vdwg.mxu0
    %v3673 = vadd.f32 %v3601, %v3667
    %v3674 = vadd.f32 %v3602, %v3669
    %s3675 = scalar_lea.vmem %s0, 52
    %v3676 = vld [vmem:[%s3675] sm:$0x3]
    %v3679 = vunpack.c.l.s4 1966171168
    %v3680 = vunpack.c.0.s8 %v3679
    %v3681 = vlaneseq
    %v3682 = vshrl.u32 %v3681, 7
    %v3683 = vsub.s32 %v3680, %v3682
    %v3684 = vrot.slane %v3676, %v3683
    %v3685 = vcombine.high %v3684, %v3684
    %v3687 = vunpack.c.l.s4 1966171168
    %v3688 = vunpack.c.0.s8 %v3687
    %v3689 = vlaneseq
    %v3690 = vshrl.u32 %v3689, 7
    %v3691 = vsub.s32 %v3688, %v3690
    %v3692 = vrot.slane %v3684, %v3691
    %v3694 = vunpack.c.l.s4 1966171168
    %v3695 = vunpack.c.0.s8 %v3694
    %v3696 = vlaneseq
    %v3697 = vshrl.u32 %v3696, 7
    %v3698 = vsub.s32 %v3695, %v3697
    %v3699 = vrot.slane %v3685, %v3698
    %v3702 = vsel %vm174, %v3699, 0
    %3704 = vmatprep.subr.bf16.mxu0 %v1237
    %3705 = vmatpush1.bf16.msra.mxu0 %v1236
    %3706 = vmatprep.subr.bf16.mxu0 %v1239
    %3707 = vmatpush1.bf16.msra.mxu0 %v1238
    %3708 = vmatprep.subr.bf16.mxu0 %v1241
    %3709 = vmatpush1.bf16.msra.mxu0 %v1240
    %3710 = vmatprep.subr.bf16.mxu0 %v1243
    %3711 = vmatpush1.bf16.msra.mxu0 %v1242
    %3712 = vmatprep.subr.bf16.mxu0 %v1245
    %3713 = vmatpush1.bf16.msra.mxu0 %v1244
    %3714 = vmatprep.subr.bf16.mxu0 %v1247
    %3715 = vmatpush1.bf16.msra.mxu0 %v1246
    %3716 = vmatprep.subr.bf16.mxu0 %v1249
    %3717 = vmatpush1.bf16.msra.mxu0 %v1248
    %3718 = vmatprep.subr.bf16.mxu0 %v1251
    %3719 = vmatpush1.bf16.msra.mxu0 %v1250
    %3720 = vmatprep.subr.bf16.mxu0 %v1253
    %3721 = vmatpush1.bf16.msra.mxu0 %v1252
    %3722 = vmatprep.subr.bf16.mxu0 0
    %3723 = vmatpush1.bf16.msra.mxu0 0
    %3724 = vmatprep.subr.bf16.mxu0 0
    %3725 = vmatpush1.bf16.msra.mxu0 0
    %3726 = vmatprep.subr.bf16.mxu0 0
    %3727 = vmatpush1.bf16.msra.mxu0 0
    %3728 = vmatprep.subr.bf16.mxu0 0
    %3729 = vmatpush1.bf16.msra.mxu0 0
    %3730 = vmatprep.subr.bf16.mxu0 0
    %3731 = vmatpush1.bf16.msra.mxu0 0
    %3732 = vmatprep.subr.bf16.mxu0 0
    %3733 = vmatpush1.bf16.msra.mxu0 0
    %3734 = vmatprep.subr.bf16.mxu0 0
    %3735 = vmatpush1.bf16.msra.mxu0 0
    %3736 = vmatprep.mubr.bf16.mxu0 %v3702
    %3737 = vmatmul.mubr.bf16.gmra.mrb[0].mxu0 %v3692
    %v3738 = vpop.f32.mrb[0].mxu0
    %v3739 = vadd.f32 0.0, %v3738
    %v3740 = vpop.f32.mrb[0].mxu0
    %v3741 = vadd.f32 0.0, %v3740
    %v3742 = vpop.f32.mrb[0].mxu0
    %v3743 = vpop.f32.mrb[0].mxu0
    %3744 = vdwg.mxu0
    %v3745 = vadd.f32 %v3673, %v3739
    %v3746 = vadd.f32 %v3674, %v3741
    %s3747 = scalar_lea.vmem %s0, 54
    %v3748 = vld [vmem:[%s3747] sm:$0x3]
    %v3751 = vunpack.c.l.s4 1966171168
    %v3752 = vunpack.c.0.s8 %v3751
    %v3753 = vlaneseq
    %v3754 = vshrl.u32 %v3753, 7
    %v3755 = vsub.s32 %v3752, %v3754
    %v3756 = vrot.slane %v3748, %v3755
    %v3757 = vcombine.high %v3756, %v3756
    %v3759 = vunpack.c.l.s4 1966171168
    %v3760 = vunpack.c.0.s8 %v3759
    %v3761 = vlaneseq
    %v3762 = vshrl.u32 %v3761, 7
    %v3763 = vsub.s32 %v3760, %v3762
    %v3764 = vrot.slane %v3756, %v3763
    %v3766 = vunpack.c.l.s4 1966171168
    %v3767 = vunpack.c.0.s8 %v3766
    %v3768 = vlaneseq
    %v3769 = vshrl.u32 %v3768, 7
    %v3770 = vsub.s32 %v3767, %v3769
    %v3771 = vrot.slane %v3757, %v3770
    %v3774 = vsel %vm174, %v3771, 0
    %3776 = vmatprep.subr.bf16.mxu0 %v1418
    %3777 = vmatpush1.bf16.msra.mxu0 %v1417
    %3778 = vmatprep.subr.bf16.mxu0 %v1420
    %3779 = vmatpush1.bf16.msra.mxu0 %v1419
    %3780 = vmatprep.subr.bf16.mxu0 %v1422
    %3781 = vmatpush1.bf16.msra.mxu0 %v1421
    %3782 = vmatprep.subr.bf16.mxu0 %v1424
    %3783 = vmatpush1.bf16.msra.mxu0 %v1423
    %3784 = vmatprep.subr.bf16.mxu0 %v1426
    %3785 = vmatpush1.bf16.msra.mxu0 %v1425
    %3786 = vmatprep.subr.bf16.mxu0 %v1428
    %3787 = vmatpush1.bf16.msra.mxu0 %v1427
    %3788 = vmatprep.subr.bf16.mxu0 %v1430
    %3789 = vmatpush1.bf16.msra.mxu0 %v1429
    %3790 = vmatprep.subr.bf16.mxu0 %v1432
    %3791 = vmatpush1.bf16.msra.mxu0 %v1431
    %3792 = vmatprep.subr.bf16.mxu0 %v1434
    %3793 = vmatpush1.bf16.msra.mxu0 %v1433
    %3794 = vmatprep.subr.bf16.mxu0 0
    %3795 = vmatpush1.bf16.msra.mxu0 0
    %3796 = vmatprep.subr.bf16.mxu0 0
    %3797 = vmatpush1.bf16.msra.mxu0 0
    %3798 = vmatprep.subr.bf16.mxu0 0
    %3799 = vmatpush1.bf16.msra.mxu0 0
    %3800 = vmatprep.subr.bf16.mxu0 0
    %3801 = vmatpush1.bf16.msra.mxu0 0
    %3802 = vmatprep.subr.bf16.mxu0 0
    %3803 = vmatpush1.bf16.msra.mxu0 0
    %3804 = vmatprep.subr.bf16.mxu0 0
    %3805 = vmatpush1.bf16.msra.mxu0 0
    %3806 = vmatprep.subr.bf16.mxu0 0
    %3807 = vmatpush1.bf16.msra.mxu0 0
    %3808 = vmatprep.mubr.bf16.mxu0 %v3774
    %3809 = vmatmul.mubr.bf16.gmra.mrb[0].mxu0 %v3764
    %v3810 = vpop.f32.mrb[0].mxu0
    %v3811 = vadd.f32 0.0, %v3810
    %v3812 = vpop.f32.mrb[0].mxu0
    %v3813 = vadd.f32 0.0, %v3812
    %v3814 = vpop.f32.mrb[0].mxu0
    %v3815 = vpop.f32.mrb[0].mxu0
    %3816 = vdwg.mxu0
    %v3817 = vadd.f32 %v3745, %v3811
    %v3818 = vadd.f32 %v3746, %v3813
    %v3819 = vmax.f32 %v3817, 0.0
    %v3820 = vmax.f32 %v3818, 0.0
    %v3821 = vpack.c.bf16 %v3819, %v3819
    %v3822 = vpack.c.bf16 %v3820, %v3820
    %3823 = vmatprep.subr.bf16.mxu0 %v139
    %3824 = vmatpush1.bf16.msra.mxu0 %v138
    %3825 = vmatprep.subr.bf16.mxu0 %v141
    %3826 = vmatpush1.bf16.msra.mxu0 %v140
    %3827 = vmatprep.subr.bf16.mxu0 %v143
    %3828 = vmatpush1.bf16.msra.mxu0 %v142
    %3829 = vmatprep.subr.bf16.mxu0 %v145
    %3830 = vmatpush1.bf16.msra.mxu0 %v144
    %3831 = vmatprep.subr.bf16.mxu0 %v147
    %3832 = vmatpush1.bf16.msra.mxu0 %v146
    %3833 = vmatprep.subr.bf16.mxu0 %v149
    %3834 = vmatpush1.bf16.msra.mxu0 %v148
    %3835 = vmatprep.subr.bf16.mxu0 %v151
    %3836 = vmatpush1.bf16.msra.mxu0 %v150
    %3837 = vmatprep.subr.bf16.mxu0 %v153
    %3838 = vmatpush1.bf16.msra.mxu0 %v152
    %3839 = vmatprep.subr.bf16.mxu0 %v155
    %3840 = vmatpush1.bf16.msra.mxu0 %v154
    %3841 = vmatprep.subr.bf16.mxu0 0
    %3842 = vmatpush1.bf16.msra.mxu0 0
    %3843 = vmatprep.subr.bf16.mxu0 0
    %3844 = vmatpush1.bf16.msra.mxu0 0
    %3845 = vmatprep.subr.bf16.mxu0 0
    %3846 = vmatpush1.bf16.msra.mxu0 0
    %3847 = vmatprep.subr.bf16.mxu0 0
    %3848 = vmatpush1.bf16.msra.mxu0 0
    %3849 = vmatprep.subr.bf16.mxu0 0
    %3850 = vmatpush1.bf16.msra.mxu0 0
    %3851 = vmatprep.subr.bf16.mxu0 0
    %3852 = vmatpush1.bf16.msra.mxu0 0
    %3853 = vmatprep.subr.bf16.mxu0 0
    %3854 = vmatpush1.bf16.msra.mxu0 0
    %3855 = vmatprep.mubr.bf16.mxu0 %v3558
    %3856 = vmatmul.mubr.bf16.gmra.mrb[0].mxu0 %v3548
    %v3857 = vpop.f32.mrb[0].mxu0
    %v3858 = vadd.f32 0.0, %v3857
    %v3859 = vpop.f32.mrb[0].mxu0
    %v3860 = vadd.f32 0.0, %v3859
    %v3861 = vpop.f32.mrb[0].mxu0
    %v3862 = vpop.f32.mrb[0].mxu0
    %3863 = vdwg.mxu0
    %v3864 = vadd.f32 %v223, %v3858
    %v3865 = vadd.f32 %v227, %v3860
    %3866 = vmatprep.subr.bf16.mxu0 %v332
    %3867 = vmatpush1.bf16.msra.mxu0 %v331
    %3868 = vmatprep.subr.bf16.mxu0 %v334
    %3869 = vmatpush1.bf16.msra.mxu0 %v333
    %3870 = vmatprep.subr.bf16.mxu0 %v336
    %3871 = vmatpush1.bf16.msra.mxu0 %v335
    %3872 = vmatprep.subr.bf16.mxu0 %v338
    %3873 = vmatpush1.bf16.msra.mxu0 %v337
    %3874 = vmatprep.subr.bf16.mxu0 %v340
    %3875 = vmatpush1.bf16.msra.mxu0 %v339
    %3876 = vmatprep.subr.bf16.mxu0 %v342
    %3877 = vmatpush1.bf16.msra.mxu0 %v341
    %3878 = vmatprep.subr.bf16.mxu0 %v344
    %3879 = vmatpush1.bf16.msra.mxu0 %v343
    %3880 = vmatprep.subr.bf16.mxu0 %v346
    %3881 = vmatpush1.bf16.msra.mxu0 %v345
    %3882 = vmatprep.subr.bf16.mxu0 %v348
    %3883 = vmatpush1.bf16.msra.mxu0 %v347
    %3884 = vmatprep.subr.bf16.mxu0 0
    %3885 = vmatpush1.bf16.msra.mxu0 0
    %3886 = vmatprep.subr.bf16.mxu0 0
    %3887 = vmatpush1.bf16.msra.mxu0 0
    %3888 = vmatprep.subr.bf16.mxu0 0
    %3889 = vmatpush1.bf16.msra.mxu0 0
    %3890 = vmatprep.subr.bf16.mxu0 0
    %3891 = vmatpush1.bf16.msra.mxu0 0
    %3892 = vmatprep.subr.bf16.mxu0 0
    %3893 = vmatpush1.bf16.msra.mxu0 0
    %3894 = vmatprep.subr.bf16.mxu0 0
    %3895 = vmatpush1.bf16.msra.mxu0 0
    %3896 = vmatprep.subr.bf16.mxu0 0
    %3897 = vmatpush1.bf16.msra.mxu0 0
    %3898 = vmatprep.mubr.bf16.mxu0 %v3630
    %3899 = vmatmul.mubr.bf16.gmra.mrb[0].mxu0 %v3620
    %v3900 = vpop.f32.mrb[0].mxu0
    %v3901 = vadd.f32 0.0, %v3900
    %v3902 = vpop.f32.mrb[0].mxu0
    %v3903 = vadd.f32 0.0, %v3902
    %v3904 = vpop.f32.mrb[0].mxu0
    %v3905 = vpop.f32.mrb[0].mxu0
    %3906 = vdwg.mxu0
    %v3907 = vadd.f32 %v3864, %v3901
    %v3908 = vadd.f32 %v3865, %v3903
    %3909 = vmatprep.subr.bf16.mxu0 %v513
    %3910 = vmatpush1.bf16.msra.mxu0 %v512
    %3911 = vmatprep.subr.bf16.mxu0 %v515
    %3912 = vmatpush1.bf16.msra.mxu0 %v514
    %3913 = vmatprep.subr.bf16.mxu0 %v517
    %3914 = vmatpush1.bf16.msra.mxu0 %v516
    %3915 = vmatprep.subr.bf16.mxu0 %v519
    %3916 = vmatpush1.bf16.msra.mxu0 %v518
    %3917 = vmatprep.subr.bf16.mxu0 %v521
    %3918 = vmatpush1.bf16.msra.mxu0 %v520
    %3919 = vmatprep.subr.bf16.mxu0 %v523
    %3920 = vmatpush1.bf16.msra.mxu0 %v522
    %3921 = vmatprep.subr.bf16.mxu0 %v525
    %3922 = vmatpush1.bf16.msra.mxu0 %v524
    %3923 = vmatprep.subr.bf16.mxu0 %v527
    %3924 = vmatpush1.bf16.msra.mxu0 %v526
    %3925 = vmatprep.subr.bf16.mxu0 %v529
    %3926 = vmatpush1.bf16.msra.mxu0 %v528
    %3927 = vmatprep.subr.bf16.mxu0 0
    %3928 = vmatpush1.bf16.msra.mxu0 0
    %3929 = vmatprep.subr.bf16.mxu0 0
    %3930 = vmatpush1.bf16.msra.mxu0 0
    %3931 = vmatprep.subr.bf16.mxu0 0
    %3932 = vmatpush1.bf16.msra.mxu0 0
    %3933 = vmatprep.subr.bf16.mxu0 0
    %3934 = vmatpush1.bf16.msra.mxu0 0
    %3935 = vmatprep.subr.bf16.mxu0 0
    %3936 = vmatpush1.bf16.msra.mxu0 0
    %3937 = vmatprep.subr.bf16.mxu0 0
    %3938 = vmatpush1.bf16.msra.mxu0 0
    %3939 = vmatprep.subr.bf16.mxu0 0
    %3940 = vmatpush1.bf16.msra.mxu0 0
    %3941 = vmatprep.mubr.bf16.mxu0 %v3702
    %3942 = vmatmul.mubr.bf16.gmra.mrb[0].mxu0 %v3692
    %v3943 = vpop.f32.mrb[0].mxu0
    %v3944 = vadd.f32 0.0, %v3943
    %v3945 = vpop.f32.mrb[0].mxu0
    %v3946 = vadd.f32 0.0, %v3945
    %v3947 = vpop.f32.mrb[0].mxu0
    %v3948 = vpop.f32.mrb[0].mxu0
    %3949 = vdwg.mxu0
    %v3950 = vadd.f32 %v3907, %v3944
    %v3951 = vadd.f32 %v3908, %v3946
    %3952 = vmatprep.subr.bf16.mxu0 %v694
    %3953 = vmatpush1.bf16.msra.mxu0 %v693
    %3954 = vmatprep.subr.bf16.mxu0 %v696
    %3955 = vmatpush1.bf16.msra.mxu0 %v695
    %3956 = vmatprep.subr.bf16.mxu0 %v698
    %3957 = vmatpush1.bf16.msra.mxu0 %v697
    %3958 = vmatprep.subr.bf16.mxu0 %v700
    %3959 = vmatpush1.bf16.msra.mxu0 %v699
    %3960 = vmatprep.subr.bf16.mxu0 %v702
    %3961 = vmatpush1.bf16.msra.mxu0 %v701
    %3962 = vmatprep.subr.bf16.mxu0 %v704
    %3963 = vmatpush1.bf16.msra.mxu0 %v703
    %3964 = vmatprep.subr.bf16.mxu0 %v706
    %3965 = vmatpush1.bf16.msra.mxu0 %v705
    %3966 = vmatprep.subr.bf16.mxu0 %v708
    %3967 = vmatpush1.bf16.msra.mxu0 %v707
    %3968 = vmatprep.subr.bf16.mxu0 %v710
    %3969 = vmatpush1.bf16.msra.mxu0 %v709
    %3970 = vmatprep.subr.bf16.mxu0 0
    %3971 = vmatpush1.bf16.msra.mxu0 0
    %3972 = vmatprep.subr.bf16.mxu0 0
    %3973 = vmatpush1.bf16.msra.mxu0 0
    %3974 = vmatprep.subr.bf16.mxu0 0
    %3975 = vmatpush1.bf16.msra.mxu0 0
    %3976 = vmatprep.subr.bf16.mxu0 0
    %3977 = vmatpush1.bf16.msra.mxu0 0
    %3978 = vmatprep.subr.bf16.mxu0 0
    %3979 = vmatpush1.bf16.msra.mxu0 0
    %3980 = vmatprep.subr.bf16.mxu0 0
    %3981 = vmatpush1.bf16.msra.mxu0 0
    %3982 = vmatprep.subr.bf16.mxu0 0
    %3983 = vmatpush1.bf16.msra.mxu0 0
    %3984 = vmatprep.mubr.bf16.mxu0 %v3774
    %3985 = vmatmul.mubr.bf16.gmra.mrb[0].mxu0 %v3764
    %v3986 = vpop.f32.mrb[0].mxu0
    %v3987 = vadd.f32 0.0, %v3986
    %v3988 = vpop.f32.mrb[0].mxu0
    %v3989 = vadd.f32 0.0, %v3988
    %v3990 = vpop.f32.mrb[0].mxu0
    %v3991 = vpop.f32.mrb[0].mxu0
    %3992 = vdwg.mxu0
    %v3993 = vadd.f32 %v3950, %v3987
    %v3994 = vadd.f32 %v3951, %v3989
    %s3995 = scalar_lea.vmem %s0, 56
    %v3996 = vld [vmem:[%s3995] sm:$0x3]
    %v3999 = vunpack.c.l.s4 1966171168
    %v4000 = vunpack.c.0.s8 %v3999
    %v4001 = vlaneseq
    %v4002 = vshrl.u32 %v4001, 7
    %v4003 = vsub.s32 %v4000, %v4002
    %v4004 = vrot.slane %v3996, %v4003
    %v4005 = vcombine.high %v4004, %v4004
    %v4007 = vunpack.c.l.s4 1966171168
    %v4008 = vunpack.c.0.s8 %v4007
    %v4009 = vlaneseq
    %v4010 = vshrl.u32 %v4009, 7
    %v4011 = vsub.s32 %v4008, %v4010
    %v4012 = vrot.slane %v4004, %v4011
    %v4014 = vunpack.c.l.s4 1966171168
    %v4015 = vunpack.c.0.s8 %v4014
    %v4016 = vlaneseq
    %v4017 = vshrl.u32 %v4016, 7
    %v4018 = vsub.s32 %v4015, %v4017
    %v4019 = vrot.slane %v4005, %v4018
    %v4022 = vsel %vm174, %v4019, 0
    %4024 = vmatprep.subr.bf16.mxu0 %v875
    %4025 = vmatpush1.bf16.msra.mxu0 %v874
    %4026 = vmatprep.subr.bf16.mxu0 %v877
    %4027 = vmatpush1.bf16.msra.mxu0 %v876
    %4028 = vmatprep.subr.bf16.mxu0 %v879
    %4029 = vmatpush1.bf16.msra.mxu0 %v878
    %4030 = vmatprep.subr.bf16.mxu0 %v881
    %4031 = vmatpush1.bf16.msra.mxu0 %v880
    %4032 = vmatprep.subr.bf16.mxu0 %v883
    %4033 = vmatpush1.bf16.msra.mxu0 %v882
    %4034 = vmatprep.subr.bf16.mxu0 %v885
    %4035 = vmatpush1.bf16.msra.mxu0 %v884
    %4036 = vmatprep.subr.bf16.mxu0 %v887
    %4037 = vmatpush1.bf16.msra.mxu0 %v886
    %4038 = vmatprep.subr.bf16.mxu0 %v889
    %4039 = vmatpush1.bf16.msra.mxu0 %v888
    %4040 = vmatprep.subr.bf16.mxu0 %v891
    %4041 = vmatpush1.bf16.msra.mxu0 %v890
    %4042 = vmatprep.subr.bf16.mxu0 0
    %4043 = vmatpush1.bf16.msra.mxu0 0
    %4044 = vmatprep.subr.bf16.mxu0 0
    %4045 = vmatpush1.bf16.msra.mxu0 0
    %4046 = vmatprep.subr.bf16.mxu0 0
    %4047 = vmatpush1.bf16.msra.mxu0 0
    %4048 = vmatprep.subr.bf16.mxu0 0
    %4049 = vmatpush1.bf16.msra.mxu0 0
    %4050 = vmatprep.subr.bf16.mxu0 0
    %4051 = vmatpush1.bf16.msra.mxu0 0
    %4052 = vmatprep.subr.bf16.mxu0 0
    %4053 = vmatpush1.bf16.msra.mxu0 0
    %4054 = vmatprep.subr.bf16.mxu0 0
    %4055 = vmatpush1.bf16.msra.mxu0 0
    %4056 = vmatprep.mubr.bf16.mxu0 %v4022
    %4057 = vmatmul.mubr.bf16.gmra.mrb[0].mxu0 %v4012
    %v4058 = vpop.f32.mrb[0].mxu0
    %v4059 = vadd.f32 0.0, %v4058
    %v4060 = vpop.f32.mrb[0].mxu0
    %v4061 = vadd.f32 0.0, %v4060
    %v4062 = vpop.f32.mrb[0].mxu0
    %v4063 = vpop.f32.mrb[0].mxu0
    %4064 = vdwg.mxu0
    %v4065 = vadd.f32 %v3993, %v4059
    %v4066 = vadd.f32 %v3994, %v4061
    %s4067 = scalar_lea.vmem %s0, 58
    %v4068 = vld [vmem:[%s4067] sm:$0x3]
    %v4071 = vunpack.c.l.s4 1966171168
    %v4072 = vunpack.c.0.s8 %v4071
    %v4073 = vlaneseq
    %v4074 = vshrl.u32 %v4073, 7
    %v4075 = vsub.s32 %v4072, %v4074
    %v4076 = vrot.slane %v4068, %v4075
    %v4077 = vcombine.high %v4076, %v4076
    %v4079 = vunpack.c.l.s4 1966171168
    %v4080 = vunpack.c.0.s8 %v4079
    %v4081 = vlaneseq
    %v4082 = vshrl.u32 %v4081, 7
    %v4083 = vsub.s32 %v4080, %v4082
    %v4084 = vrot.slane %v4076, %v4083
    %v4086 = vunpack.c.l.s4 1966171168
    %v4087 = vunpack.c.0.s8 %v4086
    %v4088 = vlaneseq
    %v4089 = vshrl.u32 %v4088, 7
    %v4090 = vsub.s32 %v4087, %v4089
    %v4091 = vrot.slane %v4077, %v4090
    %v4094 = vsel %vm174, %v4091, 0
    %4096 = vmatprep.subr.bf16.mxu0 %v1056
    %4097 = vmatpush1.bf16.msra.mxu0 %v1055
    %4098 = vmatprep.subr.bf16.mxu0 %v1058
    %4099 = vmatpush1.bf16.msra.mxu0 %v1057
    %4100 = vmatprep.subr.bf16.mxu0 %v1060
    %4101 = vmatpush1.bf16.msra.mxu0 %v1059
    %4102 = vmatprep.subr.bf16.mxu0 %v1062
    %4103 = vmatpush1.bf16.msra.mxu0 %v1061
    %4104 = vmatprep.subr.bf16.mxu0 %v1064
    %4105 = vmatpush1.bf16.msra.mxu0 %v1063
    %4106 = vmatprep.subr.bf16.mxu0 %v1066
    %4107 = vmatpush1.bf16.msra.mxu0 %v1065
    %4108 = vmatprep.subr.bf16.mxu0 %v1068
    %4109 = vmatpush1.bf16.msra.mxu0 %v1067
    %4110 = vmatprep.subr.bf16.mxu0 %v1070
    %4111 = vmatpush1.bf16.msra.mxu0 %v1069
    %4112 = vmatprep.subr.bf16.mxu0 %v1072
    %4113 = vmatpush1.bf16.msra.mxu0 %v1071
    %4114 = vmatprep.subr.bf16.mxu0 0
    %4115 = vmatpush1.bf16.msra.mxu0 0
    %4116 = vmatprep.subr.bf16.mxu0 0
    %4117 = vmatpush1.bf16.msra.mxu0 0
    %4118 = vmatprep.subr.bf16.mxu0 0
    %4119 = vmatpush1.bf16.msra.mxu0 0
    %4120 = vmatprep.subr.bf16.mxu0 0
    %4121 = vmatpush1.bf16.msra.mxu0 0
    %4122 = vmatprep.subr.bf16.mxu0 0
    %4123 = vmatpush1.bf16.msra.mxu0 0
    %4124 = vmatprep.subr.bf16.mxu0 0
    %4125 = vmatpush1.bf16.msra.mxu0 0
    %4126 = vmatprep.subr.bf16.mxu0 0
    %4127 = vmatpush1.bf16.msra.mxu0 0
    %4128 = vmatprep.mubr.bf16.mxu0 %v4094
    %4129 = vmatmul.mubr.bf16.gmra.mrb[0].mxu0 %v4084
    %v4130 = vpop.f32.mrb[0].mxu0
    %v4131 = vadd.f32 0.0, %v4130
    %v4132 = vpop.f32.mrb[0].mxu0
    %v4133 = vadd.f32 0.0, %v4132
    %v4134 = vpop.f32.mrb[0].mxu0
    %v4135 = vpop.f32.mrb[0].mxu0
    %4136 = vdwg.mxu0
    %v4137 = vadd.f32 %v4065, %v4131
    %v4138 = vadd.f32 %v4066, %v4133
    %s4139 = scalar_lea.vmem %s0, 60
    %v4140 = vld [vmem:[%s4139] sm:$0x3]
    %v4143 = vunpack.c.l.s4 1966171168
    %v4144 = vunpack.c.0.s8 %v4143
    %v4145 = vlaneseq
    %v4146 = vshrl.u32 %v4145, 7
    %v4147 = vsub.s32 %v4144, %v4146
    %v4148 = vrot.slane %v4140, %v4147
    %v4149 = vcombine.high %v4148, %v4148
    %v4151 = vunpack.c.l.s4 1966171168
    %v4152 = vunpack.c.0.s8 %v4151
    %v4153 = vlaneseq
    %v4154 = vshrl.u32 %v4153, 7
    %v4155 = vsub.s32 %v4152, %v4154
    %v4156 = vrot.slane %v4148, %v4155
    %v4158 = vunpack.c.l.s4 1966171168
    %v4159 = vunpack.c.0.s8 %v4158
    %v4160 = vlaneseq
    %v4161 = vshrl.u32 %v4160, 7
    %v4162 = vsub.s32 %v4159, %v4161
    %v4163 = vrot.slane %v4149, %v4162
    %v4166 = vsel %vm174, %v4163, 0
    %4168 = vmatprep.subr.bf16.mxu0 %v1237
    %4169 = vmatpush1.bf16.msra.mxu0 %v1236
    %4170 = vmatprep.subr.bf16.mxu0 %v1239
    %4171 = vmatpush1.bf16.msra.mxu0 %v1238
    %4172 = vmatprep.subr.bf16.mxu0 %v1241
    %4173 = vmatpush1.bf16.msra.mxu0 %v1240
    %4174 = vmatprep.subr.bf16.mxu0 %v1243
    %4175 = vmatpush1.bf16.msra.mxu0 %v1242
    %4176 = vmatprep.subr.bf16.mxu0 %v1245
    %4177 = vmatpush1.bf16.msra.mxu0 %v1244
    %4178 = vmatprep.subr.bf16.mxu0 %v1247
    %4179 = vmatpush1.bf16.msra.mxu0 %v1246
    %4180 = vmatprep.subr.bf16.mxu0 %v1249
    %4181 = vmatpush1.bf16.msra.mxu0 %v1248
    %4182 = vmatprep.subr.bf16.mxu0 %v1251
    %4183 = vmatpush1.bf16.msra.mxu0 %v1250
    %4184 = vmatprep.subr.bf16.mxu0 %v1253
    %4185 = vmatpush1.bf16.msra.mxu0 %v1252
    %4186 = vmatprep.subr.bf16.mxu0 0
    %4187 = vmatpush1.bf16.msra.mxu0 0
    %4188 = vmatprep.subr.bf16.mxu0 0
    %4189 = vmatpush1.bf16.msra.mxu0 0
    %4190 = vmatprep.subr.bf16.mxu0 0
    %4191 = vmatpush1.bf16.msra.mxu0 0
    %4192 = vmatprep.subr.bf16.mxu0 0
    %4193 = vmatpush1.bf16.msra.mxu0 0
    %4194 = vmatprep.subr.bf16.mxu0 0
    %4195 = vmatpush1.bf16.msra.mxu0 0
    %4196 = vmatprep.subr.bf16.mxu0 0
    %4197 = vmatpush1.bf16.msra.mxu0 0
    %4198 = vmatprep.subr.bf16.mxu0 0
    %4199 = vmatpush1.bf16.msra.mxu0 0
    %4200 = vmatprep.mubr.bf16.mxu0 %v4166
    %4201 = vmatmul.mubr.bf16.gmra.mrb[0].mxu0 %v4156
    %v4202 = vpop.f32.mrb[0].mxu0
    %v4203 = vadd.f32 0.0, %v4202
    %v4204 = vpop.f32.mrb[0].mxu0
    %v4205 = vadd.f32 0.0, %v4204
    %v4206 = vpop.f32.mrb[0].mxu0
    %v4207 = vpop.f32.mrb[0].mxu0
    %4208 = vdwg.mxu0
    %v4209 = vadd.f32 %v4137, %v4203
    %v4210 = vadd.f32 %v4138, %v4205
    %s4211 = scalar_lea.vmem %s0, 62
    %v4212 = vld [vmem:[%s4211] sm:$0x3]
    %v4215 = vunpack.c.l.s4 1966171168
    %v4216 = vunpack.c.0.s8 %v4215
    %v4217 = vlaneseq
    %v4218 = vshrl.u32 %v4217, 7
    %v4219 = vsub.s32 %v4216, %v4218
    %v4220 = vrot.slane %v4212, %v4219
    %v4221 = vcombine.high %v4220, %v4220
    %v4223 = vunpack.c.l.s4 1966171168
    %v4224 = vunpack.c.0.s8 %v4223
    %v4225 = vlaneseq
    %v4226 = vshrl.u32 %v4225, 7
    %v4227 = vsub.s32 %v4224, %v4226
    %v4228 = vrot.slane %v4220, %v4227
    %v4230 = vunpack.c.l.s4 1966171168
    %v4231 = vunpack.c.0.s8 %v4230
    %v4232 = vlaneseq
    %v4233 = vshrl.u32 %v4232, 7
    %v4234 = vsub.s32 %v4231, %v4233
    %v4235 = vrot.slane %v4221, %v4234
    %v4238 = vsel %vm174, %v4235, 0
    %4240 = vmatprep.subr.bf16.mxu0 %v1418
    %4241 = vmatpush1.bf16.msra.mxu0 %v1417
    %4242 = vmatprep.subr.bf16.mxu0 %v1420
    %4243 = vmatpush1.bf16.msra.mxu0 %v1419
    %4244 = vmatprep.subr.bf16.mxu0 %v1422
    %4245 = vmatpush1.bf16.msra.mxu0 %v1421
    %4246 = vmatprep.subr.bf16.mxu0 %v1424
    %4247 = vmatpush1.bf16.msra.mxu0 %v1423
    %4248 = vmatprep.subr.bf16.mxu0 %v1426
    %4249 = vmatpush1.bf16.msra.mxu0 %v1425
    %4250 = vmatprep.subr.bf16.mxu0 %v1428
    %4251 = vmatpush1.bf16.msra.mxu0 %v1427
    %4252 = vmatprep.subr.bf16.mxu0 %v1430
    %4253 = vmatpush1.bf16.msra.mxu0 %v1429
    %4254 = vmatprep.subr.bf16.mxu0 %v1432
    %4255 = vmatpush1.bf16.msra.mxu0 %v1431
    %4256 = vmatprep.subr.bf16.mxu0 %v1434
    %4257 = vmatpush1.bf16.msra.mxu0 %v1433
    %4258 = vmatprep.subr.bf16.mxu0 0
    %4259 = vmatpush1.bf16.msra.mxu0 0
    %4260 = vmatprep.subr.bf16.mxu0 0
    %4261 = vmatpush1.bf16.msra.mxu0 0
    %4262 = vmatprep.subr.bf16.mxu0 0
    %4263 = vmatpush1.bf16.msra.mxu0 0
    %4264 = vmatprep.subr.bf16.mxu0 0
    %4265 = vmatpush1.bf16.msra.mxu0 0
    %4266 = vmatprep.subr.bf16.mxu0 0
    %4267 = vmatpush1.bf16.msra.mxu0 0
    %4268 = vmatprep.subr.bf16.mxu0 0
    %4269 = vmatpush1.bf16.msra.mxu0 0
    %4270 = vmatprep.subr.bf16.mxu0 0
    %4271 = vmatpush1.bf16.msra.mxu0 0
    %4272 = vmatprep.mubr.bf16.mxu0 %v4238
    %4273 = vmatmul.mubr.bf16.gmra.mrb[0].mxu0 %v4228
    %v4274 = vpop.f32.mrb[0].mxu0
    %v4275 = vadd.f32 0.0, %v4274
    %v4276 = vpop.f32.mrb[0].mxu0
    %v4277 = vadd.f32 0.0, %v4276
    %v4278 = vpop.f32.mrb[0].mxu0
    %v4279 = vpop.f32.mrb[0].mxu0
    %4280 = vdwg.mxu0
    %v4281 = vadd.f32 %v4209, %v4275
    %v4282 = vadd.f32 %v4210, %v4277
    %v4283 = vmax.f32 %v4281, 0.0
    %v4284 = vmax.f32 %v4282, 0.0
    %v4285 = vpack.c.bf16 %v4283, %v4283
    %v4286 = vpack.c.bf16 %v4284, %v4284
    %4287 = vmatprep.subr.bf16.mxu0 %v139
    %4288 = vmatpush1.bf16.msra.mxu0 %v138
    %4289 = vmatprep.subr.bf16.mxu0 %v141
    %4290 = vmatpush1.bf16.msra.mxu0 %v140
    %4291 = vmatprep.subr.bf16.mxu0 %v143
    %4292 = vmatpush1.bf16.msra.mxu0 %v142
    %4293 = vmatprep.subr.bf16.mxu0 %v145
    %4294 = vmatpush1.bf16.msra.mxu0 %v144
    %4295 = vmatprep.subr.bf16.mxu0 %v147
    %4296 = vmatpush1.bf16.msra.mxu0 %v146
    %4297 = vmatprep.subr.bf16.mxu0 %v149
    %4298 = vmatpush1.bf16.msra.mxu0 %v148
    %4299 = vmatprep.subr.bf16.mxu0 %v151
    %4300 = vmatpush1.bf16.msra.mxu0 %v150
    %4301 = vmatprep.subr.bf16.mxu0 %v153
    %4302 = vmatpush1.bf16.msra.mxu0 %v152
    %4303 = vmatprep.subr.bf16.mxu0 %v155
    %4304 = vmatpush1.bf16.msra.mxu0 %v154
    %4305 = vmatprep.subr.bf16.mxu0 0
    %4306 = vmatpush1.bf16.msra.mxu0 0
    %4307 = vmatprep.subr.bf16.mxu0 0
    %4308 = vmatpush1.bf16.msra.mxu0 0
    %4309 = vmatprep.subr.bf16.mxu0 0
    %4310 = vmatpush1.bf16.msra.mxu0 0
    %4311 = vmatprep.subr.bf16.mxu0 0
    %4312 = vmatpush1.bf16.msra.mxu0 0
    %4313 = vmatprep.subr.bf16.mxu0 0
    %4314 = vmatpush1.bf16.msra.mxu0 0
    %4315 = vmatprep.subr.bf16.mxu0 0
    %4316 = vmatpush1.bf16.msra.mxu0 0
    %4317 = vmatprep.subr.bf16.mxu0 0
    %4318 = vmatpush1.bf16.msra.mxu0 0
    %4319 = vmatprep.mubr.bf16.mxu0 %v4022
    %4320 = vmatmul.mubr.bf16.gmra.mrb[0].mxu0 %v4012
    %v4321 = vpop.f32.mrb[0].mxu0
    %v4322 = vadd.f32 0.0, %v4321
    %v4323 = vpop.f32.mrb[0].mxu0
    %v4324 = vadd.f32 0.0, %v4323
    %v4325 = vpop.f32.mrb[0].mxu0
    %v4326 = vpop.f32.mrb[0].mxu0
    %4327 = vdwg.mxu0
    %v4328 = vadd.f32 %v223, %v4322
    %v4329 = vadd.f32 %v227, %v4324
    %4330 = vmatprep.subr.bf16.mxu0 %v332
    %4331 = vmatpush1.bf16.msra.mxu0 %v331
    %4332 = vmatprep.subr.bf16.mxu0 %v334
    %4333 = vmatpush1.bf16.msra.mxu0 %v333
    %4334 = vmatprep.subr.bf16.mxu0 %v336
    %4335 = vmatpush1.bf16.msra.mxu0 %v335
    %4336 = vmatprep.subr.bf16.mxu0 %v338
    %4337 = vmatpush1.bf16.msra.mxu0 %v337
    %4338 = vmatprep.subr.bf16.mxu0 %v340
    %4339 = vmatpush1.bf16.msra.mxu0 %v339
    %4340 = vmatprep.subr.bf16.mxu0 %v342
    %4341 = vmatpush1.bf16.msra.mxu0 %v341
    %4342 = vmatprep.subr.bf16.mxu0 %v344
    %4343 = vmatpush1.bf16.msra.mxu0 %v343
    %4344 = vmatprep.subr.bf16.mxu0 %v346
    %4345 = vmatpush1.bf16.msra.mxu0 %v345
    %4346 = vmatprep.subr.bf16.mxu0 %v348
    %4347 = vmatpush1.bf16.msra.mxu0 %v347
    %4348 = vmatprep.subr.bf16.mxu0 0
    %4349 = vmatpush1.bf16.msra.mxu0 0
    %4350 = vmatprep.subr.bf16.mxu0 0
    %4351 = vmatpush1.bf16.msra.mxu0 0
    %4352 = vmatprep.subr.bf16.mxu0 0
    %4353 = vmatpush1.bf16.msra.mxu0 0
    %4354 = vmatprep.subr.bf16.mxu0 0
    %4355 = vmatpush1.bf16.msra.mxu0 0
    %4356 = vmatprep.subr.bf16.mxu0 0
    %4357 = vmatpush1.bf16.msra.mxu0 0
    %4358 = vmatprep.subr.bf16.mxu0 0
    %4359 = vmatpush1.bf16.msra.mxu0 0
    %4360 = vmatprep.subr.bf16.mxu0 0
    %4361 = vmatpush1.bf16.msra.mxu0 0
    %4362 = vmatprep.mubr.bf16.mxu0 %v4094
    %4363 = vmatmul.mubr.bf16.gmra.mrb[0].mxu0 %v4084
    %v4364 = vpop.f32.mrb[0].mxu0
    %v4365 = vadd.f32 0.0, %v4364
    %v4366 = vpop.f32.mrb[0].mxu0
    %v4367 = vadd.f32 0.0, %v4366
    %v4368 = vpop.f32.mrb[0].mxu0
    %v4369 = vpop.f32.mrb[0].mxu0
    %4370 = vdwg.mxu0
    %v4371 = vadd.f32 %v4328, %v4365
    %v4372 = vadd.f32 %v4329, %v4367
    %4373 = vmatprep.subr.bf16.mxu0 %v513
    %4374 = vmatpush1.bf16.msra.mxu0 %v512
    %4375 = vmatprep.subr.bf16.mxu0 %v515
    %4376 = vmatpush1.bf16.msra.mxu0 %v514
    %4377 = vmatprep.subr.bf16.mxu0 %v517
    %4378 = vmatpush1.bf16.msra.mxu0 %v516
    %4379 = vmatprep.subr.bf16.mxu0 %v519
    %4380 = vmatpush1.bf16.msra.mxu0 %v518
    %4381 = vmatprep.subr.bf16.mxu0 %v521
    %4382 = vmatpush1.bf16.msra.mxu0 %v520
    %4383 = vmatprep.subr.bf16.mxu0 %v523
    %4384 = vmatpush1.bf16.msra.mxu0 %v522
    %4385 = vmatprep.subr.bf16.mxu0 %v525
    %4386 = vmatpush1.bf16.msra.mxu0 %v524
    %4387 = vmatprep.subr.bf16.mxu0 %v527
    %4388 = vmatpush1.bf16.msra.mxu0 %v526
    %4389 = vmatprep.subr.bf16.mxu0 %v529
    %4390 = vmatpush1.bf16.msra.mxu0 %v528
    %4391 = vmatprep.subr.bf16.mxu0 0
    %4392 = vmatpush1.bf16.msra.mxu0 0
    %4393 = vmatprep.subr.bf16.mxu0 0
    %4394 = vmatpush1.bf16.msra.mxu0 0
    %4395 = vmatprep.subr.bf16.mxu0 0
    %4396 = vmatpush1.bf16.msra.mxu0 0
    %4397 = vmatprep.subr.bf16.mxu0 0
    %4398 = vmatpush1.bf16.msra.mxu0 0
    %4399 = vmatprep.subr.bf16.mxu0 0
    %4400 = vmatpush1.bf16.msra.mxu0 0
    %4401 = vmatprep.subr.bf16.mxu0 0
    %4402 = vmatpush1.bf16.msra.mxu0 0
    %4403 = vmatprep.subr.bf16.mxu0 0
    %4404 = vmatpush1.bf16.msra.mxu0 0
    %4405 = vmatprep.mubr.bf16.mxu0 %v4166
    %4406 = vmatmul.mubr.bf16.gmra.mrb[0].mxu0 %v4156
    %v4407 = vpop.f32.mrb[0].mxu0
    %v4408 = vadd.f32 0.0, %v4407
    %v4409 = vpop.f32.mrb[0].mxu0
    %v4410 = vadd.f32 0.0, %v4409
    %v4411 = vpop.f32.mrb[0].mxu0
    %v4412 = vpop.f32.mrb[0].mxu0
    %4413 = vdwg.mxu0
    %v4414 = vadd.f32 %v4371, %v4408
    %v4415 = vadd.f32 %v4372, %v4410
    %4416 = vmatprep.subr.bf16.mxu0 %v694
    %4417 = vmatpush1.bf16.msra.mxu0 %v693
    %4418 = vmatprep.subr.bf16.mxu0 %v696
    %4419 = vmatpush1.bf16.msra.mxu0 %v695
    %4420 = vmatprep.subr.bf16.mxu0 %v698
    %4421 = vmatpush1.bf16.msra.mxu0 %v697
    %4422 = vmatprep.subr.bf16.mxu0 %v700
    %4423 = vmatpush1.bf16.msra.mxu0 %v699
    %4424 = vmatprep.subr.bf16.mxu0 %v702
    %4425 = vmatpush1.bf16.msra.mxu0 %v701
    %4426 = vmatprep.subr.bf16.mxu0 %v704
    %4427 = vmatpush1.bf16.msra.mxu0 %v703
    %4428 = vmatprep.subr.bf16.mxu0 %v706
    %4429 = vmatpush1.bf16.msra.mxu0 %v705
    %4430 = vmatprep.subr.bf16.mxu0 %v708
    %4431 = vmatpush1.bf16.msra.mxu0 %v707
    %4432 = vmatprep.subr.bf16.mxu0 %v710
    %4433 = vmatpush1.bf16.msra.mxu0 %v709
    %4434 = vmatprep.subr.bf16.mxu0 0
    %4435 = vmatpush1.bf16.msra.mxu0 0
    %4436 = vmatprep.subr.bf16.mxu0 0
    %4437 = vmatpush1.bf16.msra.mxu0 0
    %4438 = vmatprep.subr.bf16.mxu0 0
    %4439 = vmatpush1.bf16.msra.mxu0 0
    %4440 = vmatprep.subr.bf16.mxu0 0
    %4441 = vmatpush1.bf16.msra.mxu0 0
    %4442 = vmatprep.subr.bf16.mxu0 0
    %4443 = vmatpush1.bf16.msra.mxu0 0
    %4444 = vmatprep.subr.bf16.mxu0 0
    %4445 = vmatpush1.bf16.msra.mxu0 0
    %4446 = vmatprep.subr.bf16.mxu0 0
    %4447 = vmatpush1.bf16.msra.mxu0 0
    %4448 = vmatprep.mubr.bf16.mxu0 %v4238
    %4449 = vmatmul.mubr.bf16.gmra.mrb[0].mxu0 %v4228
    %v4450 = vpop.f32.mrb[0].mxu0
    %v4451 = vadd.f32 0.0, %v4450
    %v4452 = vpop.f32.mrb[0].mxu0
    %v4453 = vadd.f32 0.0, %v4452
    %v4454 = vpop.f32.mrb[0].mxu0
    %v4455 = vpop.f32.mrb[0].mxu0
    %4456 = vdwg.mxu0
    %v4457 = vadd.f32 %v4414, %v4451
    %v4458 = vadd.f32 %v4415, %v4453
    %s4459 = scalar_lea.vmem %s0, 64
    %v4460 = vld [vmem:[%s4459] sm:$0x3]
    %v4463 = vunpack.c.l.s4 1966171168
    %v4464 = vunpack.c.0.s8 %v4463
    %v4465 = vlaneseq
    %v4466 = vshrl.u32 %v4465, 7
    %v4467 = vsub.s32 %v4464, %v4466
    %v4468 = vrot.slane %v4460, %v4467
    %v4469 = vcombine.high %v4468, %v4468
    %v4471 = vunpack.c.l.s4 1966171168
    %v4472 = vunpack.c.0.s8 %v4471
    %v4473 = vlaneseq
    %v4474 = vshrl.u32 %v4473, 7
    %v4475 = vsub.s32 %v4472, %v4474
    %v4476 = vrot.slane %v4468, %v4475
    %v4478 = vunpack.c.l.s4 1966171168
    %v4479 = vunpack.c.0.s8 %v4478
    %v4480 = vlaneseq
    %v4481 = vshrl.u32 %v4480, 7
    %v4482 = vsub.s32 %v4479, %v4481
    %v4483 = vrot.slane %v4469, %v4482
    %v4486 = vsel %vm174, %v4483, 0
    %4488 = vmatprep.subr.bf16.mxu0 %v875
    %4489 = vmatpush1.bf16.msra.mxu0 %v874
    %4490 = vmatprep.subr.bf16.mxu0 %v877
    %4491 = vmatpush1.bf16.msra.mxu0 %v876
    %4492 = vmatprep.subr.bf16.mxu0 %v879
    %4493 = vmatpush1.bf16.msra.mxu0 %v878
    %4494 = vmatprep.subr.bf16.mxu0 %v881
    %4495 = vmatpush1.bf16.msra.mxu0 %v880
    %4496 = vmatprep.subr.bf16.mxu0 %v883
    %4497 = vmatpush1.bf16.msra.mxu0 %v882
    %4498 = vmatprep.subr.bf16.mxu0 %v885
    %4499 = vmatpush1.bf16.msra.mxu0 %v884
    %4500 = vmatprep.subr.bf16.mxu0 %v887
    %4501 = vmatpush1.bf16.msra.mxu0 %v886
    %4502 = vmatprep.subr.bf16.mxu0 %v889
    %4503 = vmatpush1.bf16.msra.mxu0 %v888
    %4504 = vmatprep.subr.bf16.mxu0 %v891
    %4505 = vmatpush1.bf16.msra.mxu0 %v890
    %4506 = vmatprep.subr.bf16.mxu0 0
    %4507 = vmatpush1.bf16.msra.mxu0 0
    %4508 = vmatprep.subr.bf16.mxu0 0
    %4509 = vmatpush1.bf16.msra.mxu0 0
    %4510 = vmatprep.subr.bf16.mxu0 0
    %4511 = vmatpush1.bf16.msra.mxu0 0
    %4512 = vmatprep.subr.bf16.mxu0 0
    %4513 = vmatpush1.bf16.msra.mxu0 0
    %4514 = vmatprep.subr.bf16.mxu0 0
    %4515 = vmatpush1.bf16.msra.mxu0 0
    %4516 = vmatprep.subr.bf16.mxu0 0
    %4517 = vmatpush1.bf16.msra.mxu0 0
    %4518 = vmatprep.subr.bf16.mxu0 0
    %4519 = vmatpush1.bf16.msra.mxu0 0
    %4520 = vmatprep.mubr.bf16.mxu0 %v4486
    %4521 = vmatmul.mubr.bf16.gmra.mrb[0].mxu0 %v4476
    %v4522 = vpop.f32.mrb[0].mxu0
    %v4523 = vadd.f32 0.0, %v4522
    %v4524 = vpop.f32.mrb[0].mxu0
    %v4525 = vadd.f32 0.0, %v4524
    %v4526 = vpop.f32.mrb[0].mxu0
    %v4527 = vpop.f32.mrb[0].mxu0
    %4528 = vdwg.mxu0
    %v4529 = vadd.f32 %v4457, %v4523
    %v4530 = vadd.f32 %v4458, %v4525
    %s4531 = scalar_lea.vmem %s0, 66
    %v4532 = vld [vmem:[%s4531] sm:$0x3]
    %v4535 = vunpack.c.l.s4 1966171168
    %v4536 = vunpack.c.0.s8 %v4535
    %v4537 = vlaneseq
    %v4538 = vshrl.u32 %v4537, 7
    %v4539 = vsub.s32 %v4536, %v4538
    %v4540 = vrot.slane %v4532, %v4539
    %v4541 = vcombine.high %v4540, %v4540
    %v4543 = vunpack.c.l.s4 1966171168
    %v4544 = vunpack.c.0.s8 %v4543
    %v4545 = vlaneseq
    %v4546 = vshrl.u32 %v4545, 7
    %v4547 = vsub.s32 %v4544, %v4546
    %v4548 = vrot.slane %v4540, %v4547
    %v4550 = vunpack.c.l.s4 1966171168
    %v4551 = vunpack.c.0.s8 %v4550
    %v4552 = vlaneseq
    %v4553 = vshrl.u32 %v4552, 7
    %v4554 = vsub.s32 %v4551, %v4553
    %v4555 = vrot.slane %v4541, %v4554
    %v4558 = vsel %vm174, %v4555, 0
    %4560 = vmatprep.subr.bf16.mxu0 %v1056
    %4561 = vmatpush1.bf16.msra.mxu0 %v1055
    %4562 = vmatprep.subr.bf16.mxu0 %v1058
    %4563 = vmatpush1.bf16.msra.mxu0 %v1057
    %4564 = vmatprep.subr.bf16.mxu0 %v1060
    %4565 = vmatpush1.bf16.msra.mxu0 %v1059
    %4566 = vmatprep.subr.bf16.mxu0 %v1062
    %4567 = vmatpush1.bf16.msra.mxu0 %v1061
    %4568 = vmatprep.subr.bf16.mxu0 %v1064
    %4569 = vmatpush1.bf16.msra.mxu0 %v1063
    %4570 = vmatprep.subr.bf16.mxu0 %v1066
    %4571 = vmatpush1.bf16.msra.mxu0 %v1065
    %4572 = vmatprep.subr.bf16.mxu0 %v1068
    %4573 = vmatpush1.bf16.msra.mxu0 %v1067
    %4574 = vmatprep.subr.bf16.mxu0 %v1070
    %4575 = vmatpush1.bf16.msra.mxu0 %v1069
    %4576 = vmatprep.subr.bf16.mxu0 %v1072
    %4577 = vmatpush1.bf16.msra.mxu0 %v1071
    %4578 = vmatprep.subr.bf16.mxu0 0
    %4579 = vmatpush1.bf16.msra.mxu0 0
    %4580 = vmatprep.subr.bf16.mxu0 0
    %4581 = vmatpush1.bf16.msra.mxu0 0
    %4582 = vmatprep.subr.bf16.mxu0 0
    %4583 = vmatpush1.bf16.msra.mxu0 0
    %4584 = vmatprep.subr.bf16.mxu0 0
    %4585 = vmatpush1.bf16.msra.mxu0 0
    %4586 = vmatprep.subr.bf16.mxu0 0
    %4587 = vmatpush1.bf16.msra.mxu0 0
    %4588 = vmatprep.subr.bf16.mxu0 0
    %4589 = vmatpush1.bf16.msra.mxu0 0
    %4590 = vmatprep.subr.bf16.mxu0 0
    %4591 = vmatpush1.bf16.msra.mxu0 0
    %4592 = vmatprep.mubr.bf16.mxu0 %v4558
    %4593 = vmatmul.mubr.bf16.gmra.mrb[0].mxu0 %v4548
    %v4594 = vpop.f32.mrb[0].mxu0
    %v4595 = vadd.f32 0.0, %v4594
    %v4596 = vpop.f32.mrb[0].mxu0
    %v4597 = vadd.f32 0.0, %v4596
    %v4598 = vpop.f32.mrb[0].mxu0
    %v4599 = vpop.f32.mrb[0].mxu0
    %4600 = vdwg.mxu0
    %v4601 = vadd.f32 %v4529, %v4595
    %v4602 = vadd.f32 %v4530, %v4597
    %s4603 = scalar_lea.vmem %s0, 68
    %v4604 = vld [vmem:[%s4603] sm:$0x3]
    %v4607 = vunpack.c.l.s4 1966171168
    %v4608 = vunpack.c.0.s8 %v4607
    %v4609 = vlaneseq
    %v4610 = vshrl.u32 %v4609, 7
    %v4611 = vsub.s32 %v4608, %v4610
    %v4612 = vrot.slane %v4604, %v4611
    %v4613 = vcombine.high %v4612, %v4612
    %v4615 = vunpack.c.l.s4 1966171168
    %v4616 = vunpack.c.0.s8 %v4615
    %v4617 = vlaneseq
    %v4618 = vshrl.u32 %v4617, 7
    %v4619 = vsub.s32 %v4616, %v4618
    %v4620 = vrot.slane %v4612, %v4619
    %v4622 = vunpack.c.l.s4 1966171168
    %v4623 = vunpack.c.0.s8 %v4622
    %v4624 = vlaneseq
    %v4625 = vshrl.u32 %v4624, 7
    %v4626 = vsub.s32 %v4623, %v4625
    %v4627 = vrot.slane %v4613, %v4626
    %v4630 = vsel %vm174, %v4627, 0
    %4632 = vmatprep.subr.bf16.mxu0 %v1237
    %4633 = vmatpush1.bf16.msra.mxu0 %v1236
    %4634 = vmatprep.subr.bf16.mxu0 %v1239
    %4635 = vmatpush1.bf16.msra.mxu0 %v1238
    %4636 = vmatprep.subr.bf16.mxu0 %v1241
    %4637 = vmatpush1.bf16.msra.mxu0 %v1240
    %4638 = vmatprep.subr.bf16.mxu0 %v1243
    %4639 = vmatpush1.bf16.msra.mxu0 %v1242
    %4640 = vmatprep.subr.bf16.mxu0 %v1245
    %4641 = vmatpush1.bf16.msra.mxu0 %v1244
    %4642 = vmatprep.subr.bf16.mxu0 %v1247
    %4643 = vmatpush1.bf16.msra.mxu0 %v1246
    %4644 = vmatprep.subr.bf16.mxu0 %v1249
    %4645 = vmatpush1.bf16.msra.mxu0 %v1248
    %4646 = vmatprep.subr.bf16.mxu0 %v1251
    %4647 = vmatpush1.bf16.msra.mxu0 %v1250
    %4648 = vmatprep.subr.bf16.mxu0 %v1253
    %4649 = vmatpush1.bf16.msra.mxu0 %v1252
    %4650 = vmatprep.subr.bf16.mxu0 0
    %4651 = vmatpush1.bf16.msra.mxu0 0
    %4652 = vmatprep.subr.bf16.mxu0 0
    %4653 = vmatpush1.bf16.msra.mxu0 0
    %4654 = vmatprep.subr.bf16.mxu0 0
    %4655 = vmatpush1.bf16.msra.mxu0 0
    %4656 = vmatprep.subr.bf16.mxu0 0
    %4657 = vmatpush1.bf16.msra.mxu0 0
    %4658 = vmatprep.subr.bf16.mxu0 0
    %4659 = vmatpush1.bf16.msra.mxu0 0
    %4660 = vmatprep.subr.bf16.mxu0 0
    %4661 = vmatpush1.bf16.msra.mxu0 0
    %4662 = vmatprep.subr.bf16.mxu0 0
    %4663 = vmatpush1.bf16.msra.mxu0 0
    %4664 = vmatprep.mubr.bf16.mxu0 %v4630
    %4665 = vmatmul.mubr.bf16.gmra.mrb[0].mxu0 %v4620
    %v4666 = vpop.f32.mrb[0].mxu0
    %v4667 = vadd.f32 0.0, %v4666
    %v4668 = vpop.f32.mrb[0].mxu0
    %v4669 = vadd.f32 0.0, %v4668
    %v4670 = vpop.f32.mrb[0].mxu0
    %v4671 = vpop.f32.mrb[0].mxu0
    %4672 = vdwg.mxu0
    %v4673 = vadd.f32 %v4601, %v4667
    %v4674 = vadd.f32 %v4602, %v4669
    %s4675 = scalar_lea.vmem %s0, 70
    %v4676 = vld [vmem:[%s4675] sm:$0x3]
    %v4679 = vunpack.c.l.s4 1966171168
    %v4680 = vunpack.c.0.s8 %v4679
    %v4681 = vlaneseq
    %v4682 = vshrl.u32 %v4681, 7
    %v4683 = vsub.s32 %v4680, %v4682
    %v4684 = vrot.slane %v4676, %v4683
    %v4685 = vcombine.high %v4684, %v4684
    %v4687 = vunpack.c.l.s4 1966171168
    %v4688 = vunpack.c.0.s8 %v4687
    %v4689 = vlaneseq
    %v4690 = vshrl.u32 %v4689, 7
    %v4691 = vsub.s32 %v4688, %v4690
    %v4692 = vrot.slane %v4684, %v4691
    %v4694 = vunpack.c.l.s4 1966171168
    %v4695 = vunpack.c.0.s8 %v4694
    %v4696 = vlaneseq
    %v4697 = vshrl.u32 %v4696, 7
    %v4698 = vsub.s32 %v4695, %v4697
    %v4699 = vrot.slane %v4685, %v4698
    %v4702 = vsel %vm174, %v4699, 0
    %4704 = vmatprep.subr.bf16.mxu0 %v1418
    %4705 = vmatpush1.bf16.msra.mxu0 %v1417
    %4706 = vmatprep.subr.bf16.mxu0 %v1420
    %4707 = vmatpush1.bf16.msra.mxu0 %v1419
    %4708 = vmatprep.subr.bf16.mxu0 %v1422
    %4709 = vmatpush1.bf16.msra.mxu0 %v1421
    %4710 = vmatprep.subr.bf16.mxu0 %v1424
    %4711 = vmatpush1.bf16.msra.mxu0 %v1423
    %4712 = vmatprep.subr.bf16.mxu0 %v1426
    %4713 = vmatpush1.bf16.msra.mxu0 %v1425
    %4714 = vmatprep.subr.bf16.mxu0 %v1428
    %4715 = vmatpush1.bf16.msra.mxu0 %v1427
    %4716 = vmatprep.subr.bf16.mxu0 %v1430
    %4717 = vmatpush1.bf16.msra.mxu0 %v1429
    %4718 = vmatprep.subr.bf16.mxu0 %v1432
    %4719 = vmatpush1.bf16.msra.mxu0 %v1431
    %4720 = vmatprep.subr.bf16.mxu0 %v1434
    %4721 = vmatpush1.bf16.msra.mxu0 %v1433
    %4722 = vmatprep.subr.bf16.mxu0 0
    %4723 = vmatpush1.bf16.msra.mxu0 0
    %4724 = vmatprep.subr.bf16.mxu0 0
    %4725 = vmatpush1.bf16.msra.mxu0 0
    %4726 = vmatprep.subr.bf16.mxu0 0
    %4727 = vmatpush1.bf16.msra.mxu0 0
    %4728 = vmatprep.subr.bf16.mxu0 0
    %4729 = vmatpush1.bf16.msra.mxu0 0
    %4730 = vmatprep.subr.bf16.mxu0 0
    %4731 = vmatpush1.bf16.msra.mxu0 0
    %4732 = vmatprep.subr.bf16.mxu0 0
    %4733 = vmatpush1.bf16.msra.mxu0 0
    %4734 = vmatprep.subr.bf16.mxu0 0
    %4735 = vmatpush1.bf16.msra.mxu0 0
    %4736 = vmatprep.mubr.bf16.mxu0 %v4702
    %4737 = vmatmul.mubr.bf16.gmra.mrb[0].mxu0 %v4692
    %v4738 = vpop.f32.mrb[0].mxu0
    %v4739 = vadd.f32 0.0, %v4738
    %v4740 = vpop.f32.mrb[0].mxu0
    %v4741 = vadd.f32 0.0, %v4740
    %v4742 = vpop.f32.mrb[0].mxu0
    %v4743 = vpop.f32.mrb[0].mxu0
    %4744 = vdwg.mxu0
    %v4745 = vadd.f32 %v4673, %v4739
    %v4746 = vadd.f32 %v4674, %v4741
    %v4747 = vmax.f32 %v4745, 0.0
    %v4748 = vmax.f32 %v4746, 0.0
    %v4749 = vpack.c.bf16 %v4747, %v4747
    %v4750 = vpack.c.bf16 %v4748, %v4748
    %v4751 = vld [vmem:[%s6] sm:$0x1]
    %v4752 = vld [vmem:[%s4] sm:$0x3]
    %v4753 = vld [vmem:[%s3] sm:$0xff]
    %v4754 = vld [vmem:[%s3 + $0x8] sm:$0xff]
    %v4755 = vld [vmem:[%s3 + $0x10] sm:$0xff]
    %v4756 = vld [vmem:[%s3 + $0x18] sm:$0xff]
    %v4757 = vld [vmem:[%s3 + $0x20] sm:$0xff]
    %v4758 = vld [vmem:[%s3 + $0x28] sm:$0xff]
    %v4759 = vld [vmem:[%s3 + $0x30] sm:$0xff]
    %v4760 = vld [vmem:[%s3 + $0x38] sm:$0xff]
    %v4761 = vld [vmem:[%s3 + $0x40] sm:$0xff]
    %v4762 = vld [vmem:[%s3 + $0x48] sm:$0xff]
    %v4763 = vld [vmem:[%s3 + $0x50] sm:$0xff]
    %v4764 = vld [vmem:[%s3 + $0x58] sm:$0xff]
    %v4765 = vld [vmem:[%s3 + $0x60] sm:$0xff]
    %v4766 = vld [vmem:[%s3 + $0x68] sm:$0xff]
    %v4767 = vld [vmem:[%s3 + $0x70] sm:$0xff]
    %v4768 = vld [vmem:[%s3 + $0x78] sm:$0xff]
    %v4769 = vld [vmem:[%s3 + $0x80] sm:$0xff]
    %v4770 = vld [vmem:[%s3 + $0x88] sm:$0xff]
    %v4771 = vld [vmem:[%s3 + $0x90] sm:$0xff]
    %v4772 = vld [vmem:[%s3 + $0x98] sm:$0xff]
    %v4773 = vld [vmem:[%s3 + $0xa0] sm:$0xff]
    %v4774 = vld [vmem:[%s3 + $0xa8] sm:$0xff]
    %v4775 = vld [vmem:[%s3 + $0xb0] sm:$0xff]
    %v4776 = vld [vmem:[%s3 + $0xb8] sm:$0xff]
    %v4777 = vld [vmem:[%s3 + $0xc0] sm:$0xff]
    %v4778 = vld [vmem:[%s3 + $0xc8] sm:$0xff]
    %v4779 = vld [vmem:[%s3 + $0xd0] sm:$0xff]
    %v4780 = vld [vmem:[%s3 + $0xd8] sm:$0xff]
    %v4781 = vld [vmem:[%s3 + $0xe0] sm:$0xff]
    %v4782 = vld [vmem:[%s3 + $0xe8] sm:$0xff]
    %v4783 = vld [vmem:[%s3 + $0xf0] sm:$0xff]
    %v4784 = vld [vmem:[%s3 + $0xf8] sm:$0xff]
    %v4817 = vunpack.c.l.b16 %v4753
    %v4818 = vunpack.c.h.b16 %v4753
    %v4819 = vunpack.c.l.b16 %v4754
    %v4820 = vunpack.c.h.b16 %v4754
    %v4821 = vunpack.c.l.b16 %v4755
    %v4822 = vunpack.c.h.b16 %v4755
    %v4823 = vunpack.c.l.b16 %v4756
    %v4824 = vunpack.c.h.b16 %v4756
    %v4825 = vunpack.c.l.b16 %v4757
    %v4826 = vunpack.c.h.b16 %v4757
    %v4827 = vunpack.c.l.b16 %v4758
    %v4828 = vunpack.c.h.b16 %v4758
    %v4829 = vunpack.c.l.b16 %v4759
    %v4830 = vunpack.c.h.b16 %v4759
    %v4831 = vunpack.c.l.b16 %v4760
    %v4832 = vunpack.c.h.b16 %v4760
    %v4833 = vunpack.c.l.b16 %v4761
    %v4834 = vunpack.c.h.b16 %v4761
    %v4835 = vunpack.c.l.b16 %v4762
    %v4836 = vunpack.c.h.b16 %v4762
    %v4837 = vunpack.c.l.b16 %v4763
    %v4838 = vunpack.c.h.b16 %v4763
    %v4839 = vunpack.c.l.b16 %v4764
    %v4840 = vunpack.c.h.b16 %v4764
    %v4841 = vunpack.c.l.b16 %v4765
    %v4842 = vunpack.c.h.b16 %v4765
    %v4843 = vunpack.c.l.b16 %v4766
    %v4844 = vunpack.c.h.b16 %v4766
    %v4845 = vunpack.c.l.b16 %v4767
    %v4846 = vunpack.c.h.b16 %v4767
    %v4847 = vunpack.c.l.b16 %v4768
    %v4848 = vunpack.c.h.b16 %v4768
    %v4849 = vunpack.c.l.b16 %v4769
    %v4850 = vunpack.c.h.b16 %v4769
    %v4851 = vunpack.c.l.b16 %v4770
    %v4852 = vunpack.c.h.b16 %v4770
    %v4853 = vunpack.c.l.b16 %v4771
    %v4854 = vunpack.c.h.b16 %v4771
    %v4855 = vunpack.c.l.b16 %v4772
    %v4856 = vunpack.c.h.b16 %v4772
    %v4857 = vunpack.c.l.b16 %v4773
    %v4858 = vunpack.c.h.b16 %v4773
    %v4859 = vunpack.c.l.b16 %v4774
    %v4860 = vunpack.c.h.b16 %v4774
    %v4861 = vunpack.c.l.b16 %v4775
    %v4862 = vunpack.c.h.b16 %v4775
    %v4863 = vunpack.c.l.b16 %v4776
    %v4864 = vunpack.c.h.b16 %v4776
    %v4865 = vunpack.c.l.b16 %v4777
    %v4866 = vunpack.c.h.b16 %v4777
    %v4867 = vunpack.c.l.b16 %v4778
    %v4868 = vunpack.c.h.b16 %v4778
    %v4869 = vunpack.c.l.b16 %v4779
    %v4870 = vunpack.c.h.b16 %v4779
    %v4871 = vunpack.c.l.b16 %v4780
    %v4872 = vunpack.c.h.b16 %v4780
    %v4873 = vunpack.c.l.b16 %v4781
    %v4874 = vunpack.c.h.b16 %v4781
    %v4875 = vunpack.c.l.b16 %v4782
    %v4876 = vunpack.c.h.b16 %v4782
    %v4877 = vunpack.c.l.b16 %v4783
    %v4878 = vunpack.c.h.b16 %v4783
    %v4879 = vunpack.c.l.b16 %v4784
    %v4880 = vunpack.c.h.b16 %v4784
    %v4881 = vpack.c.b16 %v4819, %v4817
    %v4882 = vpack.c.b16 %v4820, %v4818
    %v4883 = vpack.c.b16 %v4823, %v4821
    %v4884 = vpack.c.b16 %v4824, %v4822
    %v4885 = vpack.c.b16 %v4827, %v4825
    %v4886 = vpack.c.b16 %v4828, %v4826
    %v4887 = vpack.c.b16 %v4831, %v4829
    %v4888 = vpack.c.b16 %v4832, %v4830
    %v4889 = vpack.c.b16 %v4835, %v4833
    %v4890 = vpack.c.b16 %v4836, %v4834
    %v4891 = vpack.c.b16 %v4839, %v4837
    %v4892 = vpack.c.b16 %v4840, %v4838
    %v4893 = vpack.c.b16 %v4843, %v4841
    %v4894 = vpack.c.b16 %v4844, %v4842
    %v4895 = vpack.c.b16 %v4847, %v4845
    %v4896 = vpack.c.b16 %v4848, %v4846
    %v4897 = vpack.c.b16 %v4851, %v4849
    %v4898 = vpack.c.b16 %v4852, %v4850
    %v4899 = vpack.c.b16 %v4855, %v4853
    %v4900 = vpack.c.b16 %v4856, %v4854
    %v4901 = vpack.c.b16 %v4859, %v4857
    %v4902 = vpack.c.b16 %v4860, %v4858
    %v4903 = vpack.c.b16 %v4863, %v4861
    %v4904 = vpack.c.b16 %v4864, %v4862
    %v4905 = vpack.c.b16 %v4867, %v4865
    %v4906 = vpack.c.b16 %v4868, %v4866
    %v4907 = vpack.c.b16 %v4871, %v4869
    %v4908 = vpack.c.b16 %v4872, %v4870
    %v4909 = vpack.c.b16 %v4875, %v4873
    %v4910 = vpack.c.b16 %v4876, %v4874
    %v4911 = vpack.c.b16 %v4879, %v4877
    %v4912 = vpack.c.b16 %v4880, %v4878
    %4945 = vmatprep.subr.bf16.mxu0 %v4882
    %4946 = vmatpush1.bf16.msra.mxu0 %v4881
    %4947 = vmatprep.subr.bf16.mxu0 %v4884
    %4948 = vmatpush1.bf16.msra.mxu0 %v4883
    %4949 = vmatprep.subr.bf16.mxu0 %v4886
    %4950 = vmatpush1.bf16.msra.mxu0 %v4885
    %4951 = vmatprep.subr.bf16.mxu0 %v4888
    %4952 = vmatpush1.bf16.msra.mxu0 %v4887
    %4953 = vmatprep.subr.bf16.mxu0 %v4890
    %4954 = vmatpush1.bf16.msra.mxu0 %v4889
    %4955 = vmatprep.subr.bf16.mxu0 %v4892
    %4956 = vmatpush1.bf16.msra.mxu0 %v4891
    %4957 = vmatprep.subr.bf16.mxu0 %v4894
    %4958 = vmatpush1.bf16.msra.mxu0 %v4893
    %4959 = vmatprep.subr.bf16.mxu0 %v4896
    %4960 = vmatpush1.bf16.msra.mxu0 %v4895
    %4961 = vmatprep.subr.bf16.mxu0 %v4898
    %4962 = vmatpush1.bf16.msra.mxu0 %v4897
    %4963 = vmatprep.subr.bf16.mxu0 %v4900
    %4964 = vmatpush1.bf16.msra.mxu0 %v4899
    %4965 = vmatprep.subr.bf16.mxu0 %v4902
    %4966 = vmatpush1.bf16.msra.mxu0 %v4901
    %4967 = vmatprep.subr.bf16.mxu0 %v4904
    %4968 = vmatpush1.bf16.msra.mxu0 %v4903
    %4969 = vmatprep.subr.bf16.mxu0 %v4906
    %4970 = vmatpush1.bf16.msra.mxu0 %v4905
    %4971 = vmatprep.subr.bf16.mxu0 %v4908
    %4972 = vmatpush1.bf16.msra.mxu0 %v4907
    %4973 = vmatprep.subr.bf16.mxu0 %v4910
    %4974 = vmatpush1.bf16.msra.mxu0 %v4909
    %4975 = vmatprep.subr.bf16.mxu0 %v4912
    %4976 = vmatpush1.bf16.msra.mxu0 %v4911
    %4977 = vmatprep.mubr.bf16.mxu0 %v1502
    %4978 = vmatmul.mubr.bf16.gmra.mrb[0].mxu0 %v1501
    %v4979 = vpop.f32.mrb[0].mxu0
    %v4980 = vadd.f32 0.0, %v4979
    %v4981 = vpop.f32.mrb[0].mxu0
    %v4982 = vadd.f32 0.0, %v4981
    %v4983 = vpop.f32.mrb[0].mxu0
    %v4984 = vpop.f32.mrb[0].mxu0
    %4985 = vdwg.mxu0
    %v4987 = vlaneseq
    %v4988 = vshrl.u32 %v4987, 7
    %v4989 = vsub.s32 0, %v4988
    %v4990 = vrot.slane %v4752, %v4989
    %v4991 = vlaneseq
    %v4992 = vshrl.u32 %v4991, 7
    %v4993 = vsub.s32 1, %v4992
    %v4994 = vrot.slane %v4752, %v4993
    %v4997 = vadd.f32 %v4990, %v4980
    %v4998 = vadd.f32 %v4994, %v4982
    %s4999 = scalar_lea.vmem %s3, 256
    %v5000 = vld [vmem:[%s4999] sm:$0xff]
    %v5001 = vld [vmem:[%s4999 + $0x8] sm:$0xff]
    %v5002 = vld [vmem:[%s4999 + $0x10] sm:$0xff]
    %v5003 = vld [vmem:[%s4999 + $0x18] sm:$0xff]
    %v5004 = vld [vmem:[%s4999 + $0x20] sm:$0xff]
    %v5005 = vld [vmem:[%s4999 + $0x28] sm:$0xff]
    %v5006 = vld [vmem:[%s4999 + $0x30] sm:$0xff]
    %v5007 = vld [vmem:[%s4999 + $0x38] sm:$0xff]
    %v5008 = vld [vmem:[%s4999 + $0x40] sm:$0xff]
    %v5009 = vld [vmem:[%s4999 + $0x48] sm:$0xff]
    %v5010 = vld [vmem:[%s4999 + $0x50] sm:$0xff]
    %v5011 = vld [vmem:[%s4999 + $0x58] sm:$0xff]
    %v5012 = vld [vmem:[%s4999 + $0x60] sm:$0xff]
    %v5013 = vld [vmem:[%s4999 + $0x68] sm:$0xff]
    %v5014 = vld [vmem:[%s4999 + $0x70] sm:$0xff]
    %v5015 = vld [vmem:[%s4999 + $0x78] sm:$0xff]
    %v5016 = vld [vmem:[%s4999 + $0x80] sm:$0xff]
    %v5017 = vld [vmem:[%s4999 + $0x88] sm:$0xff]
    %v5018 = vld [vmem:[%s4999 + $0x90] sm:$0xff]
    %v5019 = vld [vmem:[%s4999 + $0x98] sm:$0xff]
    %v5020 = vld [vmem:[%s4999 + $0xa0] sm:$0xff]
    %v5021 = vld [vmem:[%s4999 + $0xa8] sm:$0xff]
    %v5022 = vld [vmem:[%s4999 + $0xb0] sm:$0xff]
    %v5023 = vld [vmem:[%s4999 + $0xb8] sm:$0xff]
    %v5024 = vld [vmem:[%s4999 + $0xc0] sm:$0xff]
    %v5025 = vld [vmem:[%s4999 + $0xc8] sm:$0xff]
    %v5026 = vld [vmem:[%s4999 + $0xd0] sm:$0xff]
    %v5027 = vld [vmem:[%s4999 + $0xd8] sm:$0xff]
    %v5028 = vld [vmem:[%s4999 + $0xe0] sm:$0xff]
    %v5029 = vld [vmem:[%s4999 + $0xe8] sm:$0xff]
    %v5030 = vld [vmem:[%s4999 + $0xf0] sm:$0xff]
    %v5031 = vld [vmem:[%s4999 + $0xf8] sm:$0xff]
    %v5064 = vunpack.c.l.b16 %v5000
    %v5065 = vunpack.c.h.b16 %v5000
    %v5066 = vunpack.c.l.b16 %v5001
    %v5067 = vunpack.c.h.b16 %v5001
    %v5068 = vunpack.c.l.b16 %v5002
    %v5069 = vunpack.c.h.b16 %v5002
    %v5070 = vunpack.c.l.b16 %v5003
    %v5071 = vunpack.c.h.b16 %v5003
    %v5072 = vunpack.c.l.b16 %v5004
    %v5073 = vunpack.c.h.b16 %v5004
    %v5074 = vunpack.c.l.b16 %v5005
    %v5075 = vunpack.c.h.b16 %v5005
    %v5076 = vunpack.c.l.b16 %v5006
    %v5077 = vunpack.c.h.b16 %v5006
    %v5078 = vunpack.c.l.b16 %v5007
    %v5079 = vunpack.c.h.b16 %v5007
    %v5080 = vunpack.c.l.b16 %v5008
    %v5081 = vunpack.c.h.b16 %v5008
    %v5082 = vunpack.c.l.b16 %v5009
    %v5083 = vunpack.c.h.b16 %v5009
    %v5084 = vunpack.c.l.b16 %v5010
    %v5085 = vunpack.c.h.b16 %v5010
    %v5086 = vunpack.c.l.b16 %v5011
    %v5087 = vunpack.c.h.b16 %v5011
    %v5088 = vunpack.c.l.b16 %v5012
    %v5089 = vunpack.c.h.b16 %v5012
    %v5090 = vunpack.c.l.b16 %v5013
    %v5091 = vunpack.c.h.b16 %v5013
    %v5092 = vunpack.c.l.b16 %v5014
    %v5093 = vunpack.c.h.b16 %v5014
    %v5094 = vunpack.c.l.b16 %v5015
    %v5095 = vunpack.c.h.b16 %v5015
    %v5096 = vunpack.c.l.b16 %v5016
    %v5097 = vunpack.c.h.b16 %v5016
    %v5098 = vunpack.c.l.b16 %v5017
    %v5099 = vunpack.c.h.b16 %v5017
    %v5100 = vunpack.c.l.b16 %v5018
    %v5101 = vunpack.c.h.b16 %v5018
    %v5102 = vunpack.c.l.b16 %v5019
    %v5103 = vunpack.c.h.b16 %v5019
    %v5104 = vunpack.c.l.b16 %v5020
    %v5105 = vunpack.c.h.b16 %v5020
    %v5106 = vunpack.c.l.b16 %v5021
    %v5107 = vunpack.c.h.b16 %v5021
    %v5108 = vunpack.c.l.b16 %v5022
    %v5109 = vunpack.c.h.b16 %v5022
    %v5110 = vunpack.c.l.b16 %v5023
    %v5111 = vunpack.c.h.b16 %v5023
    %v5112 = vunpack.c.l.b16 %v5024
    %v5113 = vunpack.c.h.b16 %v5024
    %v5114 = vunpack.c.l.b16 %v5025
    %v5115 = vunpack.c.h.b16 %v5025
    %v5116 = vunpack.c.l.b16 %v5026
    %v5117 = vunpack.c.h.b16 %v5026
    %v5118 = vunpack.c.l.b16 %v5027
    %v5119 = vunpack.c.h.b16 %v5027
    %v5120 = vunpack.c.l.b16 %v5028
    %v5121 = vunpack.c.h.b16 %v5028
    %v5122 = vunpack.c.l.b16 %v5029
    %v5123 = vunpack.c.h.b16 %v5029
    %v5124 = vunpack.c.l.b16 %v5030
    %v5125 = vunpack.c.h.b16 %v5030
    %v5126 = vunpack.c.l.b16 %v5031
    %v5127 = vunpack.c.h.b16 %v5031
    %v5128 = vpack.c.b16 %v5066, %v5064
    %v5129 = vpack.c.b16 %v5067, %v5065
    %v5130 = vpack.c.b16 %v5070, %v5068
    %v5131 = vpack.c.b16 %v5071, %v5069
    %v5132 = vpack.c.b16 %v5074, %v5072
    %v5133 = vpack.c.b16 %v5075, %v5073
    %v5134 = vpack.c.b16 %v5078, %v5076
    %v5135 = vpack.c.b16 %v5079, %v5077
    %v5136 = vpack.c.b16 %v5082, %v5080
    %v5137 = vpack.c.b16 %v5083, %v5081
    %v5138 = vpack.c.b16 %v5086, %v5084
    %v5139 = vpack.c.b16 %v5087, %v5085
    %v5140 = vpack.c.b16 %v5090, %v5088
    %v5141 = vpack.c.b16 %v5091, %v5089
    %v5142 = vpack.c.b16 %v5094, %v5092
    %v5143 = vpack.c.b16 %v5095, %v5093
    %v5144 = vpack.c.b16 %v5098, %v5096
    %v5145 = vpack.c.b16 %v5099, %v5097
    %v5146 = vpack.c.b16 %v5102, %v5100
    %v5147 = vpack.c.b16 %v5103, %v5101
    %v5148 = vpack.c.b16 %v5106, %v5104
    %v5149 = vpack.c.b16 %v5107, %v5105
    %v5150 = vpack.c.b16 %v5110, %v5108
    %v5151 = vpack.c.b16 %v5111, %v5109
    %v5152 = vpack.c.b16 %v5114, %v5112
    %v5153 = vpack.c.b16 %v5115, %v5113
    %v5154 = vpack.c.b16 %v5118, %v5116
    %v5155 = vpack.c.b16 %v5119, %v5117
    %v5156 = vpack.c.b16 %v5122, %v5120
    %v5157 = vpack.c.b16 %v5123, %v5121
    %v5158 = vpack.c.b16 %v5126, %v5124
    %v5159 = vpack.c.b16 %v5127, %v5125
    %5192 = vmatprep.subr.bf16.mxu0 %v5129
    %5193 = vmatpush1.bf16.msra.mxu0 %v5128
    %5194 = vmatprep.subr.bf16.mxu0 %v5131
    %5195 = vmatpush1.bf16.msra.mxu0 %v5130
    %5196 = vmatprep.subr.bf16.mxu0 %v5133
    %5197 = vmatpush1.bf16.msra.mxu0 %v5132
    %5198 = vmatprep.subr.bf16.mxu0 %v5135
    %5199 = vmatpush1.bf16.msra.mxu0 %v5134
    %5200 = vmatprep.subr.bf16.mxu0 %v5137
    %5201 = vmatpush1.bf16.msra.mxu0 %v5136
    %5202 = vmatprep.subr.bf16.mxu0 %v5139
    %5203 = vmatpush1.bf16.msra.mxu0 %v5138
    %5204 = vmatprep.subr.bf16.mxu0 %v5141
    %5205 = vmatpush1.bf16.msra.mxu0 %v5140
    %5206 = vmatprep.subr.bf16.mxu0 %v5143
    %5207 = vmatpush1.bf16.msra.mxu0 %v5142
    %5208 = vmatprep.subr.bf16.mxu0 %v5145
    %5209 = vmatpush1.bf16.msra.mxu0 %v5144
    %5210 = vmatprep.subr.bf16.mxu0 %v5147
    %5211 = vmatpush1.bf16.msra.mxu0 %v5146
    %5212 = vmatprep.subr.bf16.mxu0 %v5149
    %5213 = vmatpush1.bf16.msra.mxu0 %v5148
    %5214 = vmatprep.subr.bf16.mxu0 %v5151
    %5215 = vmatpush1.bf16.msra.mxu0 %v5150
    %5216 = vmatprep.subr.bf16.mxu0 %v5153
    %5217 = vmatpush1.bf16.msra.mxu0 %v5152
    %5218 = vmatprep.subr.bf16.mxu0 %v5155
    %5219 = vmatpush1.bf16.msra.mxu0 %v5154
    %5220 = vmatprep.subr.bf16.mxu0 %v5157
    %5221 = vmatpush1.bf16.msra.mxu0 %v5156
    %5222 = vmatprep.subr.bf16.mxu0 %v5159
    %5223 = vmatpush1.bf16.msra.mxu0 %v5158
    %5224 = vmatprep.mubr.bf16.mxu0 %v1966
    %5225 = vmatmul.mubr.bf16.gmra.mrb[0].mxu0 %v1965
    %v5226 = vpop.f32.mrb[0].mxu0
    %v5227 = vadd.f32 0.0, %v5226
    %v5228 = vpop.f32.mrb[0].mxu0
    %v5229 = vadd.f32 0.0, %v5228
    %v5230 = vpop.f32.mrb[0].mxu0
    %v5231 = vpop.f32.mrb[0].mxu0
    %5232 = vdwg.mxu0
    %v5233 = vadd.f32 %v4997, %v5227
    %v5234 = vadd.f32 %v4998, %v5229
    %s5235 = scalar_lea.vmem %s3, 512
    %v5236 = vld [vmem:[%s5235] sm:$0xff]
    %v5237 = vld [vmem:[%s5235 + $0x8] sm:$0xff]
    %v5238 = vld [vmem:[%s5235 + $0x10] sm:$0xff]
    %v5239 = vld [vmem:[%s5235 + $0x18] sm:$0xff]
    %v5240 = vld [vmem:[%s5235 + $0x20] sm:$0xff]
    %v5241 = vld [vmem:[%s5235 + $0x28] sm:$0xff]
    %v5242 = vld [vmem:[%s5235 + $0x30] sm:$0xff]
    %v5243 = vld [vmem:[%s5235 + $0x38] sm:$0xff]
    %v5244 = vld [vmem:[%s5235 + $0x40] sm:$0xff]
    %v5245 = vld [vmem:[%s5235 + $0x48] sm:$0xff]
    %v5246 = vld [vmem:[%s5235 + $0x50] sm:$0xff]
    %v5247 = vld [vmem:[%s5235 + $0x58] sm:$0xff]
    %v5248 = vld [vmem:[%s5235 + $0x60] sm:$0xff]
    %v5249 = vld [vmem:[%s5235 + $0x68] sm:$0xff]
    %v5250 = vld [vmem:[%s5235 + $0x70] sm:$0xff]
    %v5251 = vld [vmem:[%s5235 + $0x78] sm:$0xff]
    %v5252 = vld [vmem:[%s5235 + $0x80] sm:$0xff]
    %v5253 = vld [vmem:[%s5235 + $0x88] sm:$0xff]
    %v5254 = vld [vmem:[%s5235 + $0x90] sm:$0xff]
    %v5255 = vld [vmem:[%s5235 + $0x98] sm:$0xff]
    %v5256 = vld [vmem:[%s5235 + $0xa0] sm:$0xff]
    %v5257 = vld [vmem:[%s5235 + $0xa8] sm:$0xff]
    %v5258 = vld [vmem:[%s5235 + $0xb0] sm:$0xff]
    %v5259 = vld [vmem:[%s5235 + $0xb8] sm:$0xff]
    %v5260 = vld [vmem:[%s5235 + $0xc0] sm:$0xff]
    %v5261 = vld [vmem:[%s5235 + $0xc8] sm:$0xff]
    %v5262 = vld [vmem:[%s5235 + $0xd0] sm:$0xff]
    %v5263 = vld [vmem:[%s5235 + $0xd8] sm:$0xff]
    %v5264 = vld [vmem:[%s5235 + $0xe0] sm:$0xff]
    %v5265 = vld [vmem:[%s5235 + $0xe8] sm:$0xff]
    %v5266 = vld [vmem:[%s5235 + $0xf0] sm:$0xff]
    %v5267 = vld [vmem:[%s5235 + $0xf8] sm:$0xff]
    %v5300 = vunpack.c.l.b16 %v5236
    %v5301 = vunpack.c.h.b16 %v5236
    %v5302 = vunpack.c.l.b16 %v5237
    %v5303 = vunpack.c.h.b16 %v5237
    %v5304 = vunpack.c.l.b16 %v5238
    %v5305 = vunpack.c.h.b16 %v5238
    %v5306 = vunpack.c.l.b16 %v5239
    %v5307 = vunpack.c.h.b16 %v5239
    %v5308 = vunpack.c.l.b16 %v5240
    %v5309 = vunpack.c.h.b16 %v5240
    %v5310 = vunpack.c.l.b16 %v5241
    %v5311 = vunpack.c.h.b16 %v5241
    %v5312 = vunpack.c.l.b16 %v5242
    %v5313 = vunpack.c.h.b16 %v5242
    %v5314 = vunpack.c.l.b16 %v5243
    %v5315 = vunpack.c.h.b16 %v5243
    %v5316 = vunpack.c.l.b16 %v5244
    %v5317 = vunpack.c.h.b16 %v5244
    %v5318 = vunpack.c.l.b16 %v5245
    %v5319 = vunpack.c.h.b16 %v5245
    %v5320 = vunpack.c.l.b16 %v5246
    %v5321 = vunpack.c.h.b16 %v5246
    %v5322 = vunpack.c.l.b16 %v5247
    %v5323 = vunpack.c.h.b16 %v5247
    %v5324 = vunpack.c.l.b16 %v5248
    %v5325 = vunpack.c.h.b16 %v5248
    %v5326 = vunpack.c.l.b16 %v5249
    %v5327 = vunpack.c.h.b16 %v5249
    %v5328 = vunpack.c.l.b16 %v5250
    %v5329 = vunpack.c.h.b16 %v5250
    %v5330 = vunpack.c.l.b16 %v5251
    %v5331 = vunpack.c.h.b16 %v5251
    %v5332 = vunpack.c.l.b16 %v5252
    %v5333 = vunpack.c.h.b16 %v5252
    %v5334 = vunpack.c.l.b16 %v5253
    %v5335 = vunpack.c.h.b16 %v5253
    %v5336 = vunpack.c.l.b16 %v5254
    %v5337 = vunpack.c.h.b16 %v5254
    %v5338 = vunpack.c.l.b16 %v5255
    %v5339 = vunpack.c.h.b16 %v5255
    %v5340 = vunpack.c.l.b16 %v5256
    %v5341 = vunpack.c.h.b16 %v5256
    %v5342 = vunpack.c.l.b16 %v5257
    %v5343 = vunpack.c.h.b16 %v5257
    %v5344 = vunpack.c.l.b16 %v5258
    %v5345 = vunpack.c.h.b16 %v5258
    %v5346 = vunpack.c.l.b16 %v5259
    %v5347 = vunpack.c.h.b16 %v5259
    %v5348 = vunpack.c.l.b16 %v5260
    %v5349 = vunpack.c.h.b16 %v5260
    %v5350 = vunpack.c.l.b16 %v5261
    %v5351 = vunpack.c.h.b16 %v5261
    %v5352 = vunpack.c.l.b16 %v5262
    %v5353 = vunpack.c.h.b16 %v5262
    %v5354 = vunpack.c.l.b16 %v5263
    %v5355 = vunpack.c.h.b16 %v5263
    %v5356 = vunpack.c.l.b16 %v5264
    %v5357 = vunpack.c.h.b16 %v5264
    %v5358 = vunpack.c.l.b16 %v5265
    %v5359 = vunpack.c.h.b16 %v5265
    %v5360 = vunpack.c.l.b16 %v5266
    %v5361 = vunpack.c.h.b16 %v5266
    %v5362 = vunpack.c.l.b16 %v5267
    %v5363 = vunpack.c.h.b16 %v5267
    %v5364 = vpack.c.b16 %v5302, %v5300
    %v5365 = vpack.c.b16 %v5303, %v5301
    %v5366 = vpack.c.b16 %v5306, %v5304
    %v5367 = vpack.c.b16 %v5307, %v5305
    %v5368 = vpack.c.b16 %v5310, %v5308
    %v5369 = vpack.c.b16 %v5311, %v5309
    %v5370 = vpack.c.b16 %v5314, %v5312
    %v5371 = vpack.c.b16 %v5315, %v5313
    %v5372 = vpack.c.b16 %v5318, %v5316
    %v5373 = vpack.c.b16 %v5319, %v5317
    %v5374 = vpack.c.b16 %v5322, %v5320
    %v5375 = vpack.c.b16 %v5323, %v5321
    %v5376 = vpack.c.b16 %v5326, %v5324
    %v5377 = vpack.c.b16 %v5327, %v5325
    %v5378 = vpack.c.b16 %v5330, %v5328
    %v5379 = vpack.c.b16 %v5331, %v5329
    %v5380 = vpack.c.b16 %v5334, %v5332
    %v5381 = vpack.c.b16 %v5335, %v5333
    %v5382 = vpack.c.b16 %v5338, %v5336
    %v5383 = vpack.c.b16 %v5339, %v5337
    %v5384 = vpack.c.b16 %v5342, %v5340
    %v5385 = vpack.c.b16 %v5343, %v5341
    %v5386 = vpack.c.b16 %v5346, %v5344
    %v5387 = vpack.c.b16 %v5347, %v5345
    %v5388 = vpack.c.b16 %v5350, %v5348
    %v5389 = vpack.c.b16 %v5351, %v5349
    %v5390 = vpack.c.b16 %v5354, %v5352
    %v5391 = vpack.c.b16 %v5355, %v5353
    %v5392 = vpack.c.b16 %v5358, %v5356
    %v5393 = vpack.c.b16 %v5359, %v5357
    %v5394 = vpack.c.b16 %v5362, %v5360
    %v5395 = vpack.c.b16 %v5363, %v5361
    %5428 = vmatprep.subr.bf16.mxu0 %v5365
    %5429 = vmatpush1.bf16.msra.mxu0 %v5364
    %5430 = vmatprep.subr.bf16.mxu0 %v5367
    %5431 = vmatpush1.bf16.msra.mxu0 %v5366
    %5432 = vmatprep.subr.bf16.mxu0 %v5369
    %5433 = vmatpush1.bf16.msra.mxu0 %v5368
    %5434 = vmatprep.subr.bf16.mxu0 %v5371
    %5435 = vmatpush1.bf16.msra.mxu0 %v5370
    %5436 = vmatprep.subr.bf16.mxu0 %v5373
    %5437 = vmatpush1.bf16.msra.mxu0 %v5372
    %5438 = vmatprep.subr.bf16.mxu0 %v5375
    %5439 = vmatpush1.bf16.msra.mxu0 %v5374
    %5440 = vmatprep.subr.bf16.mxu0 %v5377
    %5441 = vmatpush1.bf16.msra.mxu0 %v5376
    %5442 = vmatprep.subr.bf16.mxu0 %v5379
    %5443 = vmatpush1.bf16.msra.mxu0 %v5378
    %5444 = vmatprep.subr.bf16.mxu0 %v5381
    %5445 = vmatpush1.bf16.msra.mxu0 %v5380
    %5446 = vmatprep.subr.bf16.mxu0 %v5383
    %5447 = vmatpush1.bf16.msra.mxu0 %v5382
    %5448 = vmatprep.subr.bf16.mxu0 %v5385
    %5449 = vmatpush1.bf16.msra.mxu0 %v5384
    %5450 = vmatprep.subr.bf16.mxu0 %v5387
    %5451 = vmatpush1.bf16.msra.mxu0 %v5386
    %5452 = vmatprep.subr.bf16.mxu0 %v5389
    %5453 = vmatpush1.bf16.msra.mxu0 %v5388
    %5454 = vmatprep.subr.bf16.mxu0 %v5391
    %5455 = vmatpush1.bf16.msra.mxu0 %v5390
    %5456 = vmatprep.subr.bf16.mxu0 %v5393
    %5457 = vmatpush1.bf16.msra.mxu0 %v5392
    %5458 = vmatprep.subr.bf16.mxu0 %v5395
    %5459 = vmatpush1.bf16.msra.mxu0 %v5394
    %5460 = vmatprep.mubr.bf16.mxu0 %v2430
    %5461 = vmatmul.mubr.bf16.gmra.mrb[0].mxu0 %v2429
    %v5462 = vpop.f32.mrb[0].mxu0
    %v5463 = vadd.f32 0.0, %v5462
    %v5464 = vpop.f32.mrb[0].mxu0
    %v5465 = vadd.f32 0.0, %v5464
    %v5466 = vpop.f32.mrb[0].mxu0
    %v5467 = vpop.f32.mrb[0].mxu0
    %5468 = vdwg.mxu0
    %v5469 = vadd.f32 %v5233, %v5463
    %v5470 = vadd.f32 %v5234, %v5465
    %s5471 = scalar_lea.vmem %s3, 768
    %v5472 = vld [vmem:[%s5471] sm:$0xff]
    %v5473 = vld [vmem:[%s5471 + $0x8] sm:$0xff]
    %v5474 = vld [vmem:[%s5471 + $0x10] sm:$0xff]
    %v5475 = vld [vmem:[%s5471 + $0x18] sm:$0xff]
    %v5476 = vld [vmem:[%s5471 + $0x20] sm:$0xff]
    %v5477 = vld [vmem:[%s5471 + $0x28] sm:$0xff]
    %v5478 = vld [vmem:[%s5471 + $0x30] sm:$0xff]
    %v5479 = vld [vmem:[%s5471 + $0x38] sm:$0xff]
    %v5480 = vld [vmem:[%s5471 + $0x40] sm:$0xff]
    %v5481 = vld [vmem:[%s5471 + $0x48] sm:$0xff]
    %v5482 = vld [vmem:[%s5471 + $0x50] sm:$0xff]
    %v5483 = vld [vmem:[%s5471 + $0x58] sm:$0xff]
    %v5484 = vld [vmem:[%s5471 + $0x60] sm:$0xff]
    %v5485 = vld [vmem:[%s5471 + $0x68] sm:$0xff]
    %v5486 = vld [vmem:[%s5471 + $0x70] sm:$0xff]
    %v5487 = vld [vmem:[%s5471 + $0x78] sm:$0xff]
    %v5488 = vld [vmem:[%s5471 + $0x80] sm:$0xff]
    %v5489 = vld [vmem:[%s5471 + $0x88] sm:$0xff]
    %v5490 = vld [vmem:[%s5471 + $0x90] sm:$0xff]
    %v5491 = vld [vmem:[%s5471 + $0x98] sm:$0xff]
    %v5492 = vld [vmem:[%s5471 + $0xa0] sm:$0xff]
    %v5493 = vld [vmem:[%s5471 + $0xa8] sm:$0xff]
    %v5494 = vld [vmem:[%s5471 + $0xb0] sm:$0xff]
    %v5495 = vld [vmem:[%s5471 + $0xb8] sm:$0xff]
    %v5496 = vld [vmem:[%s5471 + $0xc0] sm:$0xff]
    %v5497 = vld [vmem:[%s5471 + $0xc8] sm:$0xff]
    %v5498 = vld [vmem:[%s5471 + $0xd0] sm:$0xff]
    %v5499 = vld [vmem:[%s5471 + $0xd8] sm:$0xff]
    %v5500 = vld [vmem:[%s5471 + $0xe0] sm:$0xff]
    %v5501 = vld [vmem:[%s5471 + $0xe8] sm:$0xff]
    %v5502 = vld [vmem:[%s5471 + $0xf0] sm:$0xff]
    %v5503 = vld [vmem:[%s5471 + $0xf8] sm:$0xff]
    %v5536 = vunpack.c.l.b16 %v5472
    %v5537 = vunpack.c.h.b16 %v5472
    %v5538 = vunpack.c.l.b16 %v5473
    %v5539 = vunpack.c.h.b16 %v5473
    %v5540 = vunpack.c.l.b16 %v5474
    %v5541 = vunpack.c.h.b16 %v5474
    %v5542 = vunpack.c.l.b16 %v5475
    %v5543 = vunpack.c.h.b16 %v5475
    %v5544 = vunpack.c.l.b16 %v5476
    %v5545 = vunpack.c.h.b16 %v5476
    %v5546 = vunpack.c.l.b16 %v5477
    %v5547 = vunpack.c.h.b16 %v5477
    %v5548 = vunpack.c.l.b16 %v5478
    %v5549 = vunpack.c.h.b16 %v5478
    %v5550 = vunpack.c.l.b16 %v5479
    %v5551 = vunpack.c.h.b16 %v5479
    %v5552 = vunpack.c.l.b16 %v5480
    %v5553 = vunpack.c.h.b16 %v5480
    %v5554 = vunpack.c.l.b16 %v5481
    %v5555 = vunpack.c.h.b16 %v5481
    %v5556 = vunpack.c.l.b16 %v5482
    %v5557 = vunpack.c.h.b16 %v5482
    %v5558 = vunpack.c.l.b16 %v5483
    %v5559 = vunpack.c.h.b16 %v5483
    %v5560 = vunpack.c.l.b16 %v5484
    %v5561 = vunpack.c.h.b16 %v5484
    %v5562 = vunpack.c.l.b16 %v5485
    %v5563 = vunpack.c.h.b16 %v5485
    %v5564 = vunpack.c.l.b16 %v5486
    %v5565 = vunpack.c.h.b16 %v5486
    %v5566 = vunpack.c.l.b16 %v5487
    %v5567 = vunpack.c.h.b16 %v5487
    %v5568 = vunpack.c.l.b16 %v5488
    %v5569 = vunpack.c.h.b16 %v5488
    %v5570 = vunpack.c.l.b16 %v5489
    %v5571 = vunpack.c.h.b16 %v5489
    %v5572 = vunpack.c.l.b16 %v5490
    %v5573 = vunpack.c.h.b16 %v5490
    %v5574 = vunpack.c.l.b16 %v5491
    %v5575 = vunpack.c.h.b16 %v5491
    %v5576 = vunpack.c.l.b16 %v5492
    %v5577 = vunpack.c.h.b16 %v5492
    %v5578 = vunpack.c.l.b16 %v5493
    %v5579 = vunpack.c.h.b16 %v5493
    %v5580 = vunpack.c.l.b16 %v5494
    %v5581 = vunpack.c.h.b16 %v5494
    %v5582 = vunpack.c.l.b16 %v5495
    %v5583 = vunpack.c.h.b16 %v5495
    %v5584 = vunpack.c.l.b16 %v5496
    %v5585 = vunpack.c.h.b16 %v5496
    %v5586 = vunpack.c.l.b16 %v5497
    %v5587 = vunpack.c.h.b16 %v5497
    %v5588 = vunpack.c.l.b16 %v5498
    %v5589 = vunpack.c.h.b16 %v5498
    %v5590 = vunpack.c.l.b16 %v5499
    %v5591 = vunpack.c.h.b16 %v5499
    %v5592 = vunpack.c.l.b16 %v5500
    %v5593 = vunpack.c.h.b16 %v5500
    %v5594 = vunpack.c.l.b16 %v5501
    %v5595 = vunpack.c.h.b16 %v5501
    %v5596 = vunpack.c.l.b16 %v5502
    %v5597 = vunpack.c.h.b16 %v5502
    %v5598 = vunpack.c.l.b16 %v5503
    %v5599 = vunpack.c.h.b16 %v5503
    %v5600 = vpack.c.b16 %v5538, %v5536
    %v5601 = vpack.c.b16 %v5539, %v5537
    %v5602 = vpack.c.b16 %v5542, %v5540
    %v5603 = vpack.c.b16 %v5543, %v5541
    %v5604 = vpack.c.b16 %v5546, %v5544
    %v5605 = vpack.c.b16 %v5547, %v5545
    %v5606 = vpack.c.b16 %v5550, %v5548
    %v5607 = vpack.c.b16 %v5551, %v5549
    %v5608 = vpack.c.b16 %v5554, %v5552
    %v5609 = vpack.c.b16 %v5555, %v5553
    %v5610 = vpack.c.b16 %v5558, %v5556
    %v5611 = vpack.c.b16 %v5559, %v5557
    %v5612 = vpack.c.b16 %v5562, %v5560
    %v5613 = vpack.c.b16 %v5563, %v5561
    %v5614 = vpack.c.b16 %v5566, %v5564
    %v5615 = vpack.c.b16 %v5567, %v5565
    %v5616 = vpack.c.b16 %v5570, %v5568
    %v5617 = vpack.c.b16 %v5571, %v5569
    %v5618 = vpack.c.b16 %v5574, %v5572
    %v5619 = vpack.c.b16 %v5575, %v5573
    %v5620 = vpack.c.b16 %v5578, %v5576
    %v5621 = vpack.c.b16 %v5579, %v5577
    %v5622 = vpack.c.b16 %v5582, %v5580
    %v5623 = vpack.c.b16 %v5583, %v5581
    %v5624 = vpack.c.b16 %v5586, %v5584
    %v5625 = vpack.c.b16 %v5587, %v5585
    %v5626 = vpack.c.b16 %v5590, %v5588
    %v5627 = vpack.c.b16 %v5591, %v5589
    %v5628 = vpack.c.b16 %v5594, %v5592
    %v5629 = vpack.c.b16 %v5595, %v5593
    %v5630 = vpack.c.b16 %v5598, %v5596
    %v5631 = vpack.c.b16 %v5599, %v5597
    %5664 = vmatprep.subr.bf16.mxu0 %v5601
    %5665 = vmatpush1.bf16.msra.mxu0 %v5600
    %5666 = vmatprep.subr.bf16.mxu0 %v5603
    %5667 = vmatpush1.bf16.msra.mxu0 %v5602
    %5668 = vmatprep.subr.bf16.mxu0 %v5605
    %5669 = vmatpush1.bf16.msra.mxu0 %v5604
    %5670 = vmatprep.subr.bf16.mxu0 %v5607
    %5671 = vmatpush1.bf16.msra.mxu0 %v5606
    %5672 = vmatprep.subr.bf16.mxu0 %v5609
    %5673 = vmatpush1.bf16.msra.mxu0 %v5608
    %5674 = vmatprep.subr.bf16.mxu0 %v5611
    %5675 = vmatpush1.bf16.msra.mxu0 %v5610
    %5676 = vmatprep.subr.bf16.mxu0 %v5613
    %5677 = vmatpush1.bf16.msra.mxu0 %v5612
    %5678 = vmatprep.subr.bf16.mxu0 %v5615
    %5679 = vmatpush1.bf16.msra.mxu0 %v5614
    %5680 = vmatprep.subr.bf16.mxu0 %v5617
    %5681 = vmatpush1.bf16.msra.mxu0 %v5616
    %5682 = vmatprep.subr.bf16.mxu0 %v5619
    %5683 = vmatpush1.bf16.msra.mxu0 %v5618
    %5684 = vmatprep.subr.bf16.mxu0 %v5621
    %5685 = vmatpush1.bf16.msra.mxu0 %v5620
    %5686 = vmatprep.subr.bf16.mxu0 %v5623
    %5687 = vmatpush1.bf16.msra.mxu0 %v5622
    %5688 = vmatprep.subr.bf16.mxu0 %v5625
    %5689 = vmatpush1.bf16.msra.mxu0 %v5624
    %5690 = vmatprep.subr.bf16.mxu0 %v5627
    %5691 = vmatpush1.bf16.msra.mxu0 %v5626
    %5692 = vmatprep.subr.bf16.mxu0 %v5629
    %5693 = vmatpush1.bf16.msra.mxu0 %v5628
    %5694 = vmatprep.subr.bf16.mxu0 %v5631
    %5695 = vmatpush1.bf16.msra.mxu0 %v5630
    %5696 = vmatprep.mubr.bf16.mxu0 %v2894
    %5697 = vmatmul.mubr.bf16.gmra.mrb[0].mxu0 %v2893
    %v5698 = vpop.f32.mrb[0].mxu0
    %v5699 = vadd.f32 0.0, %v5698
    %v5700 = vpop.f32.mrb[0].mxu0
    %v5701 = vadd.f32 0.0, %v5700
    %v5702 = vpop.f32.mrb[0].mxu0
    %v5703 = vpop.f32.mrb[0].mxu0
    %5704 = vdwg.mxu0
    %v5705 = vadd.f32 %v5469, %v5699
    %v5706 = vadd.f32 %v5470, %v5701
    %v5707 = vmax.f32 %v5705, 0.0
    %v5708 = vmax.f32 %v5706, 0.0
    %v5709 = vpack.c.bf16 %v5707, %v5707
    %v5710 = vpack.c.bf16 %v5708, %v5708
    %v5711 = vld [vmem:[%s5] sm:$0xf]
    %v5712 = vld [vmem:[%s5 + $0x4] sm:$0xf]
    %v5713 = vld [vmem:[%s5 + $0x8] sm:$0xf]
    %v5714 = vld [vmem:[%s5 + $0xc] sm:$0xf]
    %v5715 = vld [vmem:[%s5 + $0x10] sm:$0xf]
    %v5716 = vld [vmem:[%s5 + $0x14] sm:$0xf]
    %v5717 = vld [vmem:[%s5 + $0x18] sm:$0xf]
    %v5718 = vld [vmem:[%s5 + $0x1c] sm:$0xf]
    %v5719 = vld [vmem:[%s5 + $0x20] sm:$0xf]
    %v5720 = vld [vmem:[%s5 + $0x24] sm:$0xf]
    %v5721 = vld [vmem:[%s5 + $0x28] sm:$0xf]
    %v5722 = vld [vmem:[%s5 + $0x2c] sm:$0xf]
    %v5723 = vld [vmem:[%s5 + $0x30] sm:$0xf]
    %v5724 = vld [vmem:[%s5 + $0x34] sm:$0xf]
    %v5725 = vld [vmem:[%s5 + $0x38] sm:$0xf]
    %v5726 = vld [vmem:[%s5 + $0x3c] sm:$0xf]
    %v5727 = vld [vmem:[%s5 + $0x40] sm:$0xf]
    %v5728 = vld [vmem:[%s5 + $0x44] sm:$0xf]
    %v5729 = vld [vmem:[%s5 + $0x48] sm:$0xf]
    %v5730 = vld [vmem:[%s5 + $0x4c] sm:$0xf]
    %v5731 = vld [vmem:[%s5 + $0x50] sm:$0xf]
    %v5732 = vld [vmem:[%s5 + $0x54] sm:$0xf]
    %v5733 = vld [vmem:[%s5 + $0x58] sm:$0xf]
    %v5734 = vld [vmem:[%s5 + $0x5c] sm:$0xf]
    %v5759 = vunpack.c.l.b16 %v5711
    %v5760 = vunpack.c.l.b16 %v5712
    %v5761 = vunpack.c.l.b16 %v5713
    %v5762 = vunpack.c.l.b16 %v5714
    %v5763 = vunpack.c.l.b16 %v5715
    %v5764 = vunpack.c.l.b16 %v5716
    %v5765 = vunpack.c.l.b16 %v5717
    %v5766 = vunpack.c.l.b16 %v5718
    %v5767 = vunpack.c.l.b16 %v5719
    %v5768 = vunpack.c.l.b16 %v5720
    %v5769 = vunpack.c.l.b16 %v5721
    %v5770 = vunpack.c.l.b16 %v5722
    %v5771 = vunpack.c.l.b16 %v5723
    %v5772 = vunpack.c.l.b16 %v5724
    %v5773 = vunpack.c.l.b16 %v5725
    %v5774 = vunpack.c.l.b16 %v5726
    %v5775 = vunpack.c.l.b16 %v5727
    %v5776 = vunpack.c.l.b16 %v5728
    %v5777 = vunpack.c.l.b16 %v5729
    %v5778 = vunpack.c.l.b16 %v5730
    %v5779 = vunpack.c.l.b16 %v5731
    %v5780 = vunpack.c.l.b16 %v5732
    %v5781 = vunpack.c.l.b16 %v5733
    %v5782 = vunpack.c.l.b16 %v5734
    %v5783 = vpack.c.b16 %v5760, %v5759
    %v5784 = vpack.c.b16 %v5762, %v5761
    %v5785 = vpack.c.b16 %v5764, %v5763
    %v5786 = vpack.c.b16 %v5766, %v5765
    %v5787 = vpack.c.b16 %v5768, %v5767
    %v5788 = vpack.c.b16 %v5770, %v5769
    %v5789 = vpack.c.b16 %v5772, %v5771
    %v5790 = vpack.c.b16 %v5774, %v5773
    %v5791 = vpack.c.b16 %v5776, %v5775
    %v5792 = vpack.c.b16 %v5778, %v5777
    %v5793 = vpack.c.b16 %v5780, %v5779
    %v5794 = vpack.c.b16 %v5782, %v5781
    %vm5807 = vcmask 523264
    %v5809 = vsel %vm5807, %v5710, 0
    %5811 = vmatprep.subr.bf16.mxu0 0
    %5812 = vmatpush1.bf16.msra.mxu0 %v5783
    %5813 = vmatprep.subr.bf16.mxu0 0
    %5814 = vmatpush1.bf16.msra.mxu0 %v5784
    %5815 = vmatprep.subr.bf16.mxu0 0
    %5816 = vmatpush1.bf16.msra.mxu0 %v5785
    %5817 = vmatprep.subr.bf16.mxu0 0
    %5818 = vmatpush1.bf16.msra.mxu0 %v5786
    %5819 = vmatprep.subr.bf16.mxu0 0
    %5820 = vmatpush1.bf16.msra.mxu0 %v5787
    %5821 = vmatprep.subr.bf16.mxu0 0
    %5822 = vmatpush1.bf16.msra.mxu0 %v5788
    %5823 = vmatprep.subr.bf16.mxu0 0
    %5824 = vmatpush1.bf16.msra.mxu0 %v5789
    %5825 = vmatprep.subr.bf16.mxu0 0
    %5826 = vmatpush1.bf16.msra.mxu0 %v5790
    %5827 = vmatprep.subr.bf16.mxu0 0
    %5828 = vmatpush1.bf16.msra.mxu0 %v5791
    %5829 = vmatprep.subr.bf16.mxu0 0
    %5830 = vmatpush1.bf16.msra.mxu0 %v5792
    %5831 = vmatprep.subr.bf16.mxu0 0
    %5832 = vmatpush1.bf16.msra.mxu0 %v5793
    %5833 = vmatprep.subr.bf16.mxu0 0
    %5834 = vmatpush1.bf16.msra.mxu0 %v5794
    %5835 = vmatprep.subr.bf16.mxu0 0
    %5836 = vmatpush1.bf16.msra.mxu0 0
    %5837 = vmatprep.subr.bf16.mxu0 0
    %5838 = vmatpush1.bf16.msra.mxu0 0
    %5839 = vmatprep.subr.bf16.mxu0 0
    %5840 = vmatpush1.bf16.msra.mxu0 0
    %5841 = vmatprep.subr.bf16.mxu0 0
    %5842 = vmatpush1.bf16.msra.mxu0 0
    %5843 = vmatprep.mubr.bf16.mxu0 %v5809
    %5844 = vmatmul.mubr.bf16.gmra.mrb[0].mxu0 %v5709
    %v5845 = vpop.f32.mrb[0].mxu0
    %v5846 = vadd.f32 0.0, %v5845
    %v5847 = vpop.f32.mrb[0].mxu0
    %v5848 = vpop.f32.mrb[0].mxu0
    %v5849 = vpop.f32.mrb[0].mxu0
    %5850 = vdwg.mxu0
    %v5852 = vlaneseq
    %v5853 = vshrl.u32 %v5852, 7
    %v5854 = vsub.s32 0, %v5853
    %v5855 = vrot.slane %v4751, %v5854
    %v5857 = vadd.f32 %v5855, %v5846
    %5858 = vmatprep.subr.bf16.mxu0 %v4882
    %5859 = vmatpush1.bf16.msra.mxu0 %v4881
    %5860 = vmatprep.subr.bf16.mxu0 %v4884
    %5861 = vmatpush1.bf16.msra.mxu0 %v4883
    %5862 = vmatprep.subr.bf16.mxu0 %v4886
    %5863 = vmatpush1.bf16.msra.mxu0 %v4885
    %5864 = vmatprep.subr.bf16.mxu0 %v4888
    %5865 = vmatpush1.bf16.msra.mxu0 %v4887
    %5866 = vmatprep.subr.bf16.mxu0 %v4890
    %5867 = vmatpush1.bf16.msra.mxu0 %v4889
    %5868 = vmatprep.subr.bf16.mxu0 %v4892
    %5869 = vmatpush1.bf16.msra.mxu0 %v4891
    %5870 = vmatprep.subr.bf16.mxu0 %v4894
    %5871 = vmatpush1.bf16.msra.mxu0 %v4893
    %5872 = vmatprep.subr.bf16.mxu0 %v4896
    %5873 = vmatpush1.bf16.msra.mxu0 %v4895
    %5874 = vmatprep.subr.bf16.mxu0 %v4898
    %5875 = vmatpush1.bf16.msra.mxu0 %v4897
    %5876 = vmatprep.subr.bf16.mxu0 %v4900
    %5877 = vmatpush1.bf16.msra.mxu0 %v4899
    %5878 = vmatprep.subr.bf16.mxu0 %v4902
    %5879 = vmatpush1.bf16.msra.mxu0 %v4901
    %5880 = vmatprep.subr.bf16.mxu0 %v4904
    %5881 = vmatpush1.bf16.msra.mxu0 %v4903
    %5882 = vmatprep.subr.bf16.mxu0 %v4906
    %5883 = vmatpush1.bf16.msra.mxu0 %v4905
    %5884 = vmatprep.subr.bf16.mxu0 %v4908
    %5885 = vmatpush1.bf16.msra.mxu0 %v4907
    %5886 = vmatprep.subr.bf16.mxu0 %v4910
    %5887 = vmatpush1.bf16.msra.mxu0 %v4909
    %5888 = vmatprep.subr.bf16.mxu0 %v4912
    %5889 = vmatpush1.bf16.msra.mxu0 %v4911
    %5890 = vmatprep.mubr.bf16.mxu0 %v2430
    %5891 = vmatmul.mubr.bf16.gmra.mrb[0].mxu0 %v2429
    %v5892 = vpop.f32.mrb[0].mxu0
    %v5893 = vadd.f32 0.0, %v5892
    %v5894 = vpop.f32.mrb[0].mxu0
    %v5895 = vadd.f32 0.0, %v5894
    %v5896 = vpop.f32.mrb[0].mxu0
    %v5897 = vpop.f32.mrb[0].mxu0
    %5898 = vdwg.mxu0
    %v5899 = vadd.f32 %v4990, %v5893
    %v5900 = vadd.f32 %v4994, %v5895
    %5901 = vmatprep.subr.bf16.mxu0 %v5129
    %5902 = vmatpush1.bf16.msra.mxu0 %v5128
    %5903 = vmatprep.subr.bf16.mxu0 %v5131
    %5904 = vmatpush1.bf16.msra.mxu0 %v5130
    %5905 = vmatprep.subr.bf16.mxu0 %v5133
    %5906 = vmatpush1.bf16.msra.mxu0 %v5132
    %5907 = vmatprep.subr.bf16.mxu0 %v5135
    %5908 = vmatpush1.bf16.msra.mxu0 %v5134
    %5909 = vmatprep.subr.bf16.mxu0 %v5137
    %5910 = vmatpush1.bf16.msra.mxu0 %v5136
    %5911 = vmatprep.subr.bf16.mxu0 %v5139
    %5912 = vmatpush1.bf16.msra.mxu0 %v5138
    %5913 = vmatprep.subr.bf16.mxu0 %v5141
    %5914 = vmatpush1.bf16.msra.mxu0 %v5140
    %5915 = vmatprep.subr.bf16.mxu0 %v5143
    %5916 = vmatpush1.bf16.msra.mxu0 %v5142
    %5917 = vmatprep.subr.bf16.mxu0 %v5145
    %5918 = vmatpush1.bf16.msra.mxu0 %v5144
    %5919 = vmatprep.subr.bf16.mxu0 %v5147
    %5920 = vmatpush1.bf16.msra.mxu0 %v5146
    %5921 = vmatprep.subr.bf16.mxu0 %v5149
    %5922 = vmatpush1.bf16.msra.mxu0 %v5148
    %5923 = vmatprep.subr.bf16.mxu0 %v5151
    %5924 = vmatpush1.bf16.msra.mxu0 %v5150
    %5925 = vmatprep.subr.bf16.mxu0 %v5153
    %5926 = vmatpush1.bf16.msra.mxu0 %v5152
    %5927 = vmatprep.subr.bf16.mxu0 %v5155
    %5928 = vmatpush1.bf16.msra.mxu0 %v5154
    %5929 = vmatprep.subr.bf16.mxu0 %v5157
    %5930 = vmatpush1.bf16.msra.mxu0 %v5156
    %5931 = vmatprep.subr.bf16.mxu0 %v5159
    %5932 = vmatpush1.bf16.msra.mxu0 %v5158
    %5933 = vmatprep.mubr.bf16.mxu0 %v2894
    %5934 = vmatmul.mubr.bf16.gmra.mrb[0].mxu0 %v2893
    %v5935 = vpop.f32.mrb[0].mxu0
    %v5936 = vadd.f32 0.0, %v5935
    %v5937 = vpop.f32.mrb[0].mxu0
    %v5938 = vadd.f32 0.0, %v5937
    %v5939 = vpop.f32.mrb[0].mxu0
    %v5940 = vpop.f32.mrb[0].mxu0
    %5941 = vdwg.mxu0
    %v5942 = vadd.f32 %v5899, %v5936
    %v5943 = vadd.f32 %v5900, %v5938
    %5944 = vmatprep.subr.bf16.mxu0 %v5365
    %5945 = vmatpush1.bf16.msra.mxu0 %v5364
    %5946 = vmatprep.subr.bf16.mxu0 %v5367
    %5947 = vmatpush1.bf16.msra.mxu0 %v5366
    %5948 = vmatprep.subr.bf16.mxu0 %v5369
    %5949 = vmatpush1.bf16.msra.mxu0 %v5368
    %5950 = vmatprep.subr.bf16.mxu0 %v5371
    %5951 = vmatpush1.bf16.msra.mxu0 %v5370
    %5952 = vmatprep.subr.bf16.mxu0 %v5373
    %5953 = vmatpush1.bf16.msra.mxu0 %v5372
    %5954 = vmatprep.subr.bf16.mxu0 %v5375
    %5955 = vmatpush1.bf16.msra.mxu0 %v5374
    %5956 = vmatprep.subr.bf16.mxu0 %v5377
    %5957 = vmatpush1.bf16.msra.mxu0 %v5376
    %5958 = vmatprep.subr.bf16.mxu0 %v5379
    %5959 = vmatpush1.bf16.msra.mxu0 %v5378
    %5960 = vmatprep.subr.bf16.mxu0 %v5381
    %5961 = vmatpush1.bf16.msra.mxu0 %v5380
    %5962 = vmatprep.subr.bf16.mxu0 %v5383
    %5963 = vmatpush1.bf16.msra.mxu0 %v5382
    %5964 = vmatprep.subr.bf16.mxu0 %v5385
    %5965 = vmatpush1.bf16.msra.mxu0 %v5384
    %5966 = vmatprep.subr.bf16.mxu0 %v5387
    %5967 = vmatpush1.bf16.msra.mxu0 %v5386
    %5968 = vmatprep.subr.bf16.mxu0 %v5389
    %5969 = vmatpush1.bf16.msra.mxu0 %v5388
    %5970 = vmatprep.subr.bf16.mxu0 %v5391
    %5971 = vmatpush1.bf16.msra.mxu0 %v5390
    %5972 = vmatprep.subr.bf16.mxu0 %v5393
    %5973 = vmatpush1.bf16.msra.mxu0 %v5392
    %5974 = vmatprep.subr.bf16.mxu0 %v5395
    %5975 = vmatpush1.bf16.msra.mxu0 %v5394
    %5976 = vmatprep.mubr.bf16.mxu0 %v3358
    %5977 = vmatmul.mubr.bf16.gmra.mrb[0].mxu0 %v3357
    %v5978 = vpop.f32.mrb[0].mxu0
    %v5979 = vadd.f32 0.0, %v5978
    %v5980 = vpop.f32.mrb[0].mxu0
    %v5981 = vadd.f32 0.0, %v5980
    %v5982 = vpop.f32.mrb[0].mxu0
    %v5983 = vpop.f32.mrb[0].mxu0
    %5984 = vdwg.mxu0
    %v5985 = vadd.f32 %v5942, %v5979
    %v5986 = vadd.f32 %v5943, %v5981
    %5987 = vmatprep.subr.bf16.mxu0 %v5601
    %5988 = vmatpush1.bf16.msra.mxu0 %v5600
    %5989 = vmatprep.subr.bf16.mxu0 %v5603
    %5990 = vmatpush1.bf16.msra.mxu0 %v5602
    %5991 = vmatprep.subr.bf16.mxu0 %v5605
    %5992 = vmatpush1.bf16.msra.mxu0 %v5604
    %5993 = vmatprep.subr.bf16.mxu0 %v5607
    %5994 = vmatpush1.bf16.msra.mxu0 %v5606
    %5995 = vmatprep.subr.bf16.mxu0 %v5609
    %5996 = vmatpush1.bf16.msra.mxu0 %v5608
    %5997 = vmatprep.subr.bf16.mxu0 %v5611
    %5998 = vmatpush1.bf16.msra.mxu0 %v5610
    %5999 = vmatprep.subr.bf16.mxu0 %v5613
    %6000 = vmatpush1.bf16.msra.mxu0 %v5612
    %6001 = vmatprep.subr.bf16.mxu0 %v5615
    %6002 = vmatpush1.bf16.msra.mxu0 %v5614
    %6003 = vmatprep.subr.bf16.mxu0 %v5617
    %6004 = vmatpush1.bf16.msra.mxu0 %v5616
    %6005 = vmatprep.subr.bf16.mxu0 %v5619
    %6006 = vmatpush1.bf16.msra.mxu0 %v5618
    %6007 = vmatprep.subr.bf16.mxu0 %v5621
    %6008 = vmatpush1.bf16.msra.mxu0 %v5620
    %6009 = vmatprep.subr.bf16.mxu0 %v5623
    %6010 = vmatpush1.bf16.msra.mxu0 %v5622
    %6011 = vmatprep.subr.bf16.mxu0 %v5625
    %6012 = vmatpush1.bf16.msra.mxu0 %v5624
    %6013 = vmatprep.subr.bf16.mxu0 %v5627
    %6014 = vmatpush1.bf16.msra.mxu0 %v5626
    %6015 = vmatprep.subr.bf16.mxu0 %v5629
    %6016 = vmatpush1.bf16.msra.mxu0 %v5628
    %6017 = vmatprep.subr.bf16.mxu0 %v5631
    %6018 = vmatpush1.bf16.msra.mxu0 %v5630
    %6019 = vmatprep.mubr.bf16.mxu0 %v3822
    %6020 = vmatmul.mubr.bf16.gmra.mrb[0].mxu0 %v3821
    %v6021 = vpop.f32.mrb[0].mxu0
    %v6022 = vadd.f32 0.0, %v6021
    %v6023 = vpop.f32.mrb[0].mxu0
    %v6024 = vadd.f32 0.0, %v6023
    %v6025 = vpop.f32.mrb[0].mxu0
    %v6026 = vpop.f32.mrb[0].mxu0
    %6027 = vdwg.mxu0
    %v6028 = vadd.f32 %v5985, %v6022
    %v6029 = vadd.f32 %v5986, %v6024
    %v6030 = vmax.f32 %v6028, 0.0
    %v6031 = vmax.f32 %v6029, 0.0
    %v6032 = vpack.c.bf16 %v6030, %v6030
    %v6033 = vpack.c.bf16 %v6031, %v6031
    %s6034 = scalar_lea.vmem %s5, 96
    %v6035 = vld [vmem:[%s6034] sm:$0xf]
    %v6036 = vld [vmem:[%s6034 + $0x4] sm:$0xf]
    %v6037 = vld [vmem:[%s6034 + $0x8] sm:$0xf]
    %v6038 = vld [vmem:[%s6034 + $0xc] sm:$0xf]
    %v6039 = vld [vmem:[%s6034 + $0x10] sm:$0xf]
    %v6040 = vld [vmem:[%s6034 + $0x14] sm:$0xf]
    %v6041 = vld [vmem:[%s6034 + $0x18] sm:$0xf]
    %v6042 = vld [vmem:[%s6034 + $0x1c] sm:$0xf]
    %v6043 = vld [vmem:[%s6034 + $0x20] sm:$0xf]
    %v6044 = vld [vmem:[%s6034 + $0x24] sm:$0xf]
    %v6045 = vld [vmem:[%s6034 + $0x28] sm:$0xf]
    %v6046 = vld [vmem:[%s6034 + $0x2c] sm:$0xf]
    %v6047 = vld [vmem:[%s6034 + $0x30] sm:$0xf]
    %v6048 = vld [vmem:[%s6034 + $0x34] sm:$0xf]
    %v6049 = vld [vmem:[%s6034 + $0x38] sm:$0xf]
    %v6050 = vld [vmem:[%s6034 + $0x3c] sm:$0xf]
    %v6051 = vld [vmem:[%s6034 + $0x40] sm:$0xf]
    %v6052 = vld [vmem:[%s6034 + $0x44] sm:$0xf]
    %v6053 = vld [vmem:[%s6034 + $0x48] sm:$0xf]
    %v6054 = vld [vmem:[%s6034 + $0x4c] sm:$0xf]
    %v6055 = vld [vmem:[%s6034 + $0x50] sm:$0xf]
    %v6056 = vld [vmem:[%s6034 + $0x54] sm:$0xf]
    %v6057 = vld [vmem:[%s6034 + $0x58] sm:$0xf]
    %v6058 = vld [vmem:[%s6034 + $0x5c] sm:$0xf]
    %v6083 = vunpack.c.l.b16 %v6035
    %v6084 = vunpack.c.l.b16 %v6036
    %v6085 = vunpack.c.l.b16 %v6037
    %v6086 = vunpack.c.l.b16 %v6038
    %v6087 = vunpack.c.l.b16 %v6039
    %v6088 = vunpack.c.l.b16 %v6040
    %v6089 = vunpack.c.l.b16 %v6041
    %v6090 = vunpack.c.l.b16 %v6042
    %v6091 = vunpack.c.l.b16 %v6043
    %v6092 = vunpack.c.l.b16 %v6044
    %v6093 = vunpack.c.l.b16 %v6045
    %v6094 = vunpack.c.l.b16 %v6046
    %v6095 = vunpack.c.l.b16 %v6047
    %v6096 = vunpack.c.l.b16 %v6048
    %v6097 = vunpack.c.l.b16 %v6049
    %v6098 = vunpack.c.l.b16 %v6050
    %v6099 = vunpack.c.l.b16 %v6051
    %v6100 = vunpack.c.l.b16 %v6052
    %v6101 = vunpack.c.l.b16 %v6053
    %v6102 = vunpack.c.l.b16 %v6054
    %v6103 = vunpack.c.l.b16 %v6055
    %v6104 = vunpack.c.l.b16 %v6056
    %v6105 = vunpack.c.l.b16 %v6057
    %v6106 = vunpack.c.l.b16 %v6058
    %v6107 = vpack.c.b16 %v6084, %v6083
    %v6108 = vpack.c.b16 %v6086, %v6085
    %v6109 = vpack.c.b16 %v6088, %v6087
    %v6110 = vpack.c.b16 %v6090, %v6089
    %v6111 = vpack.c.b16 %v6092, %v6091
    %v6112 = vpack.c.b16 %v6094, %v6093
    %v6113 = vpack.c.b16 %v6096, %v6095
    %v6114 = vpack.c.b16 %v6098, %v6097
    %v6115 = vpack.c.b16 %v6100, %v6099
    %v6116 = vpack.c.b16 %v6102, %v6101
    %v6117 = vpack.c.b16 %v6104, %v6103
    %v6118 = vpack.c.b16 %v6106, %v6105
    %v6132 = vsel %vm5807, %v6033, 0
    %6134 = vmatprep.subr.bf16.mxu0 0
    %6135 = vmatpush1.bf16.msra.mxu0 %v6107
    %6136 = vmatprep.subr.bf16.mxu0 0
    %6137 = vmatpush1.bf16.msra.mxu0 %v6108
    %6138 = vmatprep.subr.bf16.mxu0 0
    %6139 = vmatpush1.bf16.msra.mxu0 %v6109
    %6140 = vmatprep.subr.bf16.mxu0 0
    %6141 = vmatpush1.bf16.msra.mxu0 %v6110
    %6142 = vmatprep.subr.bf16.mxu0 0
    %6143 = vmatpush1.bf16.msra.mxu0 %v6111
    %6144 = vmatprep.subr.bf16.mxu0 0
    %6145 = vmatpush1.bf16.msra.mxu0 %v6112
    %6146 = vmatprep.subr.bf16.mxu0 0
    %6147 = vmatpush1.bf16.msra.mxu0 %v6113
    %6148 = vmatprep.subr.bf16.mxu0 0
    %6149 = vmatpush1.bf16.msra.mxu0 %v6114
    %6150 = vmatprep.subr.bf16.mxu0 0
    %6151 = vmatpush1.bf16.msra.mxu0 %v6115
    %6152 = vmatprep.subr.bf16.mxu0 0
    %6153 = vmatpush1.bf16.msra.mxu0 %v6116
    %6154 = vmatprep.subr.bf16.mxu0 0
    %6155 = vmatpush1.bf16.msra.mxu0 %v6117
    %6156 = vmatprep.subr.bf16.mxu0 0
    %6157 = vmatpush1.bf16.msra.mxu0 %v6118
    %6158 = vmatprep.subr.bf16.mxu0 0
    %6159 = vmatpush1.bf16.msra.mxu0 0
    %6160 = vmatprep.subr.bf16.mxu0 0
    %6161 = vmatpush1.bf16.msra.mxu0 0
    %6162 = vmatprep.subr.bf16.mxu0 0
    %6163 = vmatpush1.bf16.msra.mxu0 0
    %6164 = vmatprep.subr.bf16.mxu0 0
    %6165 = vmatpush1.bf16.msra.mxu0 0
    %6166 = vmatprep.mubr.bf16.mxu0 %v6132
    %6167 = vmatmul.mubr.bf16.gmra.mrb[0].mxu0 %v6032
    %v6168 = vpop.f32.mrb[0].mxu0
    %v6169 = vadd.f32 0.0, %v6168
    %v6170 = vpop.f32.mrb[0].mxu0
    %v6171 = vpop.f32.mrb[0].mxu0
    %v6172 = vpop.f32.mrb[0].mxu0
    %6173 = vdwg.mxu0
    %v6174 = vadd.f32 %v5857, %v6169
    %6175 = vmatprep.subr.bf16.mxu0 %v4882
    %6176 = vmatpush1.bf16.msra.mxu0 %v4881
    %6177 = vmatprep.subr.bf16.mxu0 %v4884
    %6178 = vmatpush1.bf16.msra.mxu0 %v4883
    %6179 = vmatprep.subr.bf16.mxu0 %v4886
    %6180 = vmatpush1.bf16.msra.mxu0 %v4885
    %6181 = vmatprep.subr.bf16.mxu0 %v4888
    %6182 = vmatpush1.bf16.msra.mxu0 %v4887
    %6183 = vmatprep.subr.bf16.mxu0 %v4890
    %6184 = vmatpush1.bf16.msra.mxu0 %v4889
    %6185 = vmatprep.subr.bf16.mxu0 %v4892
    %6186 = vmatpush1.bf16.msra.mxu0 %v4891
    %6187 = vmatprep.subr.bf16.mxu0 %v4894
    %6188 = vmatpush1.bf16.msra.mxu0 %v4893
    %6189 = vmatprep.subr.bf16.mxu0 %v4896
    %6190 = vmatpush1.bf16.msra.mxu0 %v4895
    %6191 = vmatprep.subr.bf16.mxu0 %v4898
    %6192 = vmatpush1.bf16.msra.mxu0 %v4897
    %6193 = vmatprep.subr.bf16.mxu0 %v4900
    %6194 = vmatpush1.bf16.msra.mxu0 %v4899
    %6195 = vmatprep.subr.bf16.mxu0 %v4902
    %6196 = vmatpush1.bf16.msra.mxu0 %v4901
    %6197 = vmatprep.subr.bf16.mxu0 %v4904
    %6198 = vmatpush1.bf16.msra.mxu0 %v4903
    %6199 = vmatprep.subr.bf16.mxu0 %v4906
    %6200 = vmatpush1.bf16.msra.mxu0 %v4905
    %6201 = vmatprep.subr.bf16.mxu0 %v4908
    %6202 = vmatpush1.bf16.msra.mxu0 %v4907
    %6203 = vmatprep.subr.bf16.mxu0 %v4910
    %6204 = vmatpush1.bf16.msra.mxu0 %v4909
    %6205 = vmatprep.subr.bf16.mxu0 %v4912
    %6206 = vmatpush1.bf16.msra.mxu0 %v4911
    %6207 = vmatprep.mubr.bf16.mxu0 %v3358
    %6208 = vmatmul.mubr.bf16.gmra.mrb[0].mxu0 %v3357
    %v6209 = vpop.f32.mrb[0].mxu0
    %v6210 = vadd.f32 0.0, %v6209
    %v6211 = vpop.f32.mrb[0].mxu0
    %v6212 = vadd.f32 0.0, %v6211
    %v6213 = vpop.f32.mrb[0].mxu0
    %v6214 = vpop.f32.mrb[0].mxu0
    %6215 = vdwg.mxu0
    %v6216 = vadd.f32 %v4990, %v6210
    %v6217 = vadd.f32 %v4994, %v6212
    %6218 = vmatprep.subr.bf16.mxu0 %v5129
    %6219 = vmatpush1.bf16.msra.mxu0 %v5128
    %6220 = vmatprep.subr.bf16.mxu0 %v5131
    %6221 = vmatpush1.bf16.msra.mxu0 %v5130
    %6222 = vmatprep.subr.bf16.mxu0 %v5133
    %6223 = vmatpush1.bf16.msra.mxu0 %v5132
    %6224 = vmatprep.subr.bf16.mxu0 %v5135
    %6225 = vmatpush1.bf16.msra.mxu0 %v5134
    %6226 = vmatprep.subr.bf16.mxu0 %v5137
    %6227 = vmatpush1.bf16.msra.mxu0 %v5136
    %6228 = vmatprep.subr.bf16.mxu0 %v5139
    %6229 = vmatpush1.bf16.msra.mxu0 %v5138
    %6230 = vmatprep.subr.bf16.mxu0 %v5141
    %6231 = vmatpush1.bf16.msra.mxu0 %v5140
    %6232 = vmatprep.subr.bf16.mxu0 %v5143
    %6233 = vmatpush1.bf16.msra.mxu0 %v5142
    %6234 = vmatprep.subr.bf16.mxu0 %v5145
    %6235 = vmatpush1.bf16.msra.mxu0 %v5144
    %6236 = vmatprep.subr.bf16.mxu0 %v5147
    %6237 = vmatpush1.bf16.msra.mxu0 %v5146
    %6238 = vmatprep.subr.bf16.mxu0 %v5149
    %6239 = vmatpush1.bf16.msra.mxu0 %v5148
    %6240 = vmatprep.subr.bf16.mxu0 %v5151
    %6241 = vmatpush1.bf16.msra.mxu0 %v5150
    %6242 = vmatprep.subr.bf16.mxu0 %v5153
    %6243 = vmatpush1.bf16.msra.mxu0 %v5152
    %6244 = vmatprep.subr.bf16.mxu0 %v5155
    %6245 = vmatpush1.bf16.msra.mxu0 %v5154
    %6246 = vmatprep.subr.bf16.mxu0 %v5157
    %6247 = vmatpush1.bf16.msra.mxu0 %v5156
    %6248 = vmatprep.subr.bf16.mxu0 %v5159
    %6249 = vmatpush1.bf16.msra.mxu0 %v5158
    %6250 = vmatprep.mubr.bf16.mxu0 %v3822
    %6251 = vmatmul.mubr.bf16.gmra.mrb[0].mxu0 %v3821
    %v6252 = vpop.f32.mrb[0].mxu0
    %v6253 = vadd.f32 0.0, %v6252
    %v6254 = vpop.f32.mrb[0].mxu0
    %v6255 = vadd.f32 0.0, %v6254
    %v6256 = vpop.f32.mrb[0].mxu0
    %v6257 = vpop.f32.mrb[0].mxu0
    %6258 = vdwg.mxu0
    %v6259 = vadd.f32 %v6216, %v6253
    %v6260 = vadd.f32 %v6217, %v6255
    %6261 = vmatprep.subr.bf16.mxu0 %v5365
    %6262 = vmatpush1.bf16.msra.mxu0 %v5364
    %6263 = vmatprep.subr.bf16.mxu0 %v5367
    %6264 = vmatpush1.bf16.msra.mxu0 %v5366
    %6265 = vmatprep.subr.bf16.mxu0 %v5369
    %6266 = vmatpush1.bf16.msra.mxu0 %v5368
    %6267 = vmatprep.subr.bf16.mxu0 %v5371
    %6268 = vmatpush1.bf16.msra.mxu0 %v5370
    %6269 = vmatprep.subr.bf16.mxu0 %v5373
    %6270 = vmatpush1.bf16.msra.mxu0 %v5372
    %6271 = vmatprep.subr.bf16.mxu0 %v5375
    %6272 = vmatpush1.bf16.msra.mxu0 %v5374
    %6273 = vmatprep.subr.bf16.mxu0 %v5377
    %6274 = vmatpush1.bf16.msra.mxu0 %v5376
    %6275 = vmatprep.subr.bf16.mxu0 %v5379
    %6276 = vmatpush1.bf16.msra.mxu0 %v5378
    %6277 = vmatprep.subr.bf16.mxu0 %v5381
    %6278 = vmatpush1.bf16.msra.mxu0 %v5380
    %6279 = vmatprep.subr.bf16.mxu0 %v5383
    %6280 = vmatpush1.bf16.msra.mxu0 %v5382
    %6281 = vmatprep.subr.bf16.mxu0 %v5385
    %6282 = vmatpush1.bf16.msra.mxu0 %v5384
    %6283 = vmatprep.subr.bf16.mxu0 %v5387
    %6284 = vmatpush1.bf16.msra.mxu0 %v5386
    %6285 = vmatprep.subr.bf16.mxu0 %v5389
    %6286 = vmatpush1.bf16.msra.mxu0 %v5388
    %6287 = vmatprep.subr.bf16.mxu0 %v5391
    %6288 = vmatpush1.bf16.msra.mxu0 %v5390
    %6289 = vmatprep.subr.bf16.mxu0 %v5393
    %6290 = vmatpush1.bf16.msra.mxu0 %v5392
    %6291 = vmatprep.subr.bf16.mxu0 %v5395
    %6292 = vmatpush1.bf16.msra.mxu0 %v5394
    %6293 = vmatprep.mubr.bf16.mxu0 %v4286
    %6294 = vmatmul.mubr.bf16.gmra.mrb[0].mxu0 %v4285
    %v6295 = vpop.f32.mrb[0].mxu0
    %v6296 = vadd.f32 0.0, %v6295
    %v6297 = vpop.f32.mrb[0].mxu0
    %v6298 = vadd.f32 0.0, %v6297
    %v6299 = vpop.f32.mrb[0].mxu0
    %v6300 = vpop.f32.mrb[0].mxu0
    %6301 = vdwg.mxu0
    %v6302 = vadd.f32 %v6259, %v6296
    %v6303 = vadd.f32 %v6260, %v6298
    %6304 = vmatprep.subr.bf16.mxu0 %v5601
    %6305 = vmatpush1.bf16.msra.mxu0 %v5600
    %6306 = vmatprep.subr.bf16.mxu0 %v5603
    %6307 = vmatpush1.bf16.msra.mxu0 %v5602
    %6308 = vmatprep.subr.bf16.mxu0 %v5605
    %6309 = vmatpush1.bf16.msra.mxu0 %v5604
    %6310 = vmatprep.subr.bf16.mxu0 %v5607
    %6311 = vmatpush1.bf16.msra.mxu0 %v5606
    %6312 = vmatprep.subr.bf16.mxu0 %v5609
    %6313 = vmatpush1.bf16.msra.mxu0 %v5608
    %6314 = vmatprep.subr.bf16.mxu0 %v5611
    %6315 = vmatpush1.bf16.msra.mxu0 %v5610
    %6316 = vmatprep.subr.bf16.mxu0 %v5613
    %6317 = vmatpush1.bf16.msra.mxu0 %v5612
    %6318 = vmatprep.subr.bf16.mxu0 %v5615
    %6319 = vmatpush1.bf16.msra.mxu0 %v5614
    %6320 = vmatprep.subr.bf16.mxu0 %v5617
    %6321 = vmatpush1.bf16.msra.mxu0 %v5616
    %6322 = vmatprep.subr.bf16.mxu0 %v5619
    %6323 = vmatpush1.bf16.msra.mxu0 %v5618
    %6324 = vmatprep.subr.bf16.mxu0 %v5621
    %6325 = vmatpush1.bf16.msra.mxu0 %v5620
    %6326 = vmatprep.subr.bf16.mxu0 %v5623
    %6327 = vmatpush1.bf16.msra.mxu0 %v5622
    %6328 = vmatprep.subr.bf16.mxu0 %v5625
    %6329 = vmatpush1.bf16.msra.mxu0 %v5624
    %6330 = vmatprep.subr.bf16.mxu0 %v5627
    %6331 = vmatpush1.bf16.msra.mxu0 %v5626
    %6332 = vmatprep.subr.bf16.mxu0 %v5629
    %6333 = vmatpush1.bf16.msra.mxu0 %v5628
    %6334 = vmatprep.subr.bf16.mxu0 %v5631
    %6335 = vmatpush1.bf16.msra.mxu0 %v5630
    %6336 = vmatprep.mubr.bf16.mxu0 %v4750
    %6337 = vmatmul.mubr.bf16.gmra.mrb[0].mxu0 %v4749
    %v6338 = vpop.f32.mrb[0].mxu0
    %v6339 = vadd.f32 0.0, %v6338
    %v6340 = vpop.f32.mrb[0].mxu0
    %v6341 = vadd.f32 0.0, %v6340
    %v6342 = vpop.f32.mrb[0].mxu0
    %v6343 = vpop.f32.mrb[0].mxu0
    %6344 = vdwg.mxu0
    %v6345 = vadd.f32 %v6302, %v6339
    %v6346 = vadd.f32 %v6303, %v6341
    %v6347 = vmax.f32 %v6345, 0.0
    %v6348 = vmax.f32 %v6346, 0.0
    %v6349 = vpack.c.bf16 %v6347, %v6347
    %v6350 = vpack.c.bf16 %v6348, %v6348
    %s6351 = scalar_lea.vmem %s5, 192
    %v6352 = vld [vmem:[%s6351] sm:$0xf]
    %v6353 = vld [vmem:[%s6351 + $0x4] sm:$0xf]
    %v6354 = vld [vmem:[%s6351 + $0x8] sm:$0xf]
    %v6355 = vld [vmem:[%s6351 + $0xc] sm:$0xf]
    %v6356 = vld [vmem:[%s6351 + $0x10] sm:$0xf]
    %v6357 = vld [vmem:[%s6351 + $0x14] sm:$0xf]
    %v6358 = vld [vmem:[%s6351 + $0x18] sm:$0xf]
    %v6359 = vld [vmem:[%s6351 + $0x1c] sm:$0xf]
    %v6360 = vld [vmem:[%s6351 + $0x20] sm:$0xf]
    %v6361 = vld [vmem:[%s6351 + $0x24] sm:$0xf]
    %v6362 = vld [vmem:[%s6351 + $0x28] sm:$0xf]
    %v6363 = vld [vmem:[%s6351 + $0x2c] sm:$0xf]
    %v6364 = vld [vmem:[%s6351 + $0x30] sm:$0xf]
    %v6365 = vld [vmem:[%s6351 + $0x34] sm:$0xf]
    %v6366 = vld [vmem:[%s6351 + $0x38] sm:$0xf]
    %v6367 = vld [vmem:[%s6351 + $0x3c] sm:$0xf]
    %v6368 = vld [vmem:[%s6351 + $0x40] sm:$0xf]
    %v6369 = vld [vmem:[%s6351 + $0x44] sm:$0xf]
    %v6370 = vld [vmem:[%s6351 + $0x48] sm:$0xf]
    %v6371 = vld [vmem:[%s6351 + $0x4c] sm:$0xf]
    %v6372 = vld [vmem:[%s6351 + $0x50] sm:$0xf]
    %v6373 = vld [vmem:[%s6351 + $0x54] sm:$0xf]
    %v6374 = vld [vmem:[%s6351 + $0x58] sm:$0xf]
    %v6375 = vld [vmem:[%s6351 + $0x5c] sm:$0xf]
    %v6400 = vunpack.c.l.b16 %v6352
    %v6401 = vunpack.c.l.b16 %v6353
    %v6402 = vunpack.c.l.b16 %v6354
    %v6403 = vunpack.c.l.b16 %v6355
    %v6404 = vunpack.c.l.b16 %v6356
    %v6405 = vunpack.c.l.b16 %v6357
    %v6406 = vunpack.c.l.b16 %v6358
    %v6407 = vunpack.c.l.b16 %v6359
    %v6408 = vunpack.c.l.b16 %v6360
    %v6409 = vunpack.c.l.b16 %v6361
    %v6410 = vunpack.c.l.b16 %v6362
    %v6411 = vunpack.c.l.b16 %v6363
    %v6412 = vunpack.c.l.b16 %v6364
    %v6413 = vunpack.c.l.b16 %v6365
    %v6414 = vunpack.c.l.b16 %v6366
    %v6415 = vunpack.c.l.b16 %v6367
    %v6416 = vunpack.c.l.b16 %v6368
    %v6417 = vunpack.c.l.b16 %v6369
    %v6418 = vunpack.c.l.b16 %v6370
    %v6419 = vunpack.c.l.b16 %v6371
    %v6420 = vunpack.c.l.b16 %v6372
    %v6421 = vunpack.c.l.b16 %v6373
    %v6422 = vunpack.c.l.b16 %v6374
    %v6423 = vunpack.c.l.b16 %v6375
    %v6424 = vpack.c.b16 %v6401, %v6400
    %v6425 = vpack.c.b16 %v6403, %v6402
    %v6426 = vpack.c.b16 %v6405, %v6404
    %v6427 = vpack.c.b16 %v6407, %v6406
    %v6428 = vpack.c.b16 %v6409, %v6408
    %v6429 = vpack.c.b16 %v6411, %v6410
    %v6430 = vpack.c.b16 %v6413, %v6412
    %v6431 = vpack.c.b16 %v6415, %v6414
    %v6432 = vpack.c.b16 %v6417, %v6416
    %v6433 = vpack.c.b16 %v6419, %v6418
    %v6434 = vpack.c.b16 %v6421, %v6420
    %v6435 = vpack.c.b16 %v6423, %v6422
    %v6449 = vsel %vm5807, %v6350, 0
    %6451 = vmatprep.subr.bf16.mxu0 0
    %6452 = vmatpush1.bf16.msra.mxu0 %v6424
    %6453 = vmatprep.subr.bf16.mxu0 0
    %6454 = vmatpush1.bf16.msra.mxu0 %v6425
    %6455 = vmatprep.subr.bf16.mxu0 0
    %6456 = vmatpush1.bf16.msra.mxu0 %v6426
    %6457 = vmatprep.subr.bf16.mxu0 0
    %6458 = vmatpush1.bf16.msra.mxu0 %v6427
    %6459 = vmatprep.subr.bf16.mxu0 0
    %6460 = vmatpush1.bf16.msra.mxu0 %v6428
    %6461 = vmatprep.subr.bf16.mxu0 0
    %6462 = vmatpush1.bf16.msra.mxu0 %v6429
    %6463 = vmatprep.subr.bf16.mxu0 0
    %6464 = vmatpush1.bf16.msra.mxu0 %v6430
    %6465 = vmatprep.subr.bf16.mxu0 0
    %6466 = vmatpush1.bf16.msra.mxu0 %v6431
    %6467 = vmatprep.subr.bf16.mxu0 0
    %6468 = vmatpush1.bf16.msra.mxu0 %v6432
    %6469 = vmatprep.subr.bf16.mxu0 0
    %6470 = vmatpush1.bf16.msra.mxu0 %v6433
    %6471 = vmatprep.subr.bf16.mxu0 0
    %6472 = vmatpush1.bf16.msra.mxu0 %v6434
    %6473 = vmatprep.subr.bf16.mxu0 0
    %6474 = vmatpush1.bf16.msra.mxu0 %v6435
    %6475 = vmatprep.subr.bf16.mxu0 0
    %6476 = vmatpush1.bf16.msra.mxu0 0
    %6477 = vmatprep.subr.bf16.mxu0 0
    %6478 = vmatpush1.bf16.msra.mxu0 0
    %6479 = vmatprep.subr.bf16.mxu0 0
    %6480 = vmatpush1.bf16.msra.mxu0 0
    %6481 = vmatprep.subr.bf16.mxu0 0
    %6482 = vmatpush1.bf16.msra.mxu0 0
    %6483 = vmatprep.mubr.bf16.mxu0 %v6449
    %6484 = vmatmul.mubr.bf16.gmra.mrb[0].mxu0 %v6349
    %v6485 = vpop.f32.mrb[0].mxu0
    %v6486 = vadd.f32 0.0, %v6485
    %v6487 = vpop.f32.mrb[0].mxu0
    %v6488 = vpop.f32.mrb[0].mxu0
    %v6489 = vpop.f32.mrb[0].mxu0
    %6490 = vdwg.mxu0
    %v6491 = vadd.f32 %v6174, %v6486
    %v6492 = vmax.f32 %v6491, 0.0
    %v6493 = vpack.c.bf16 %v6492, %v6492
    %v6494 = vld [vmem:[%s7] sm:$0xf]
    %v6495 = vld [vmem:[%s7 + $0x4] sm:$0xf]
    %v6496 = vld [vmem:[%s7 + $0x8] sm:$0xf]
    %v6497 = vld [vmem:[%s7 + $0xc] sm:$0xf]
    %v6498 = vld [vmem:[%s7 + $0x10] sm:$0xf]
    %v6499 = vld [vmem:[%s7 + $0x14] sm:$0xf]
    %v6500 = vld [vmem:[%s7 + $0x18] sm:$0xf]
    %v6501 = vld [vmem:[%s7 + $0x1c] sm:$0xf]
    %v6502 = vld [vmem:[%s8] sm:$0x1]
    %v6504 = vlaneseq
    %v6505 = vshrl.u32 %v6504, 7
    %v6506 = vsub.s32 0, %v6505
    %v6507 = vrot.slane %v6502, %v6506
    %v6517 = vunpack.c.l.b16 %v6494
    %v6518 = vunpack.c.l.b16 %v6495
    %v6519 = vunpack.c.l.b16 %v6496
    %v6520 = vunpack.c.l.b16 %v6497
    %v6521 = vunpack.c.l.b16 %v6498
    %v6522 = vunpack.c.l.b16 %v6499
    %v6523 = vunpack.c.l.b16 %v6500
    %v6524 = vunpack.c.l.b16 %v6501
    %v6525 = vpack.c.b16 %v6518, %v6517
    %v6526 = vpack.c.b16 %v6520, %v6519
    %v6527 = vpack.c.b16 %v6522, %v6521
    %v6528 = vpack.c.b16 %v6524, %v6523
    %v6534 = vsel %vm5807, %v6493, 0
    %6536 = vmatprep.subr.bf16.mxu0 0
    %6537 = vmatpush1.bf16.msra.mxu0 %v6525
    %6538 = vmatprep.subr.bf16.mxu0 0
    %6539 = vmatpush1.bf16.msra.mxu0 %v6526
    %6540 = vmatprep.subr.bf16.mxu0 0
    %6541 = vmatpush1.bf16.msra.mxu0 %v6527
    %6542 = vmatprep.subr.bf16.mxu0 0
    %6543 = vmatpush1.bf16.msra.mxu0 %v6528
    %6544 = vmatprep.subr.bf16.mxu0 0
    %6545 = vmatpush1.bf16.msra.mxu0 0
    %6546 = vmatprep.subr.bf16.mxu0 0
    %6547 = vmatpush1.bf16.msra.mxu0 0
    %6548 = vmatprep.subr.bf16.mxu0 0
    %6549 = vmatpush1.bf16.msra.mxu0 0
    %6550 = vmatprep.subr.bf16.mxu0 0
    %6551 = vmatpush1.bf16.msra.mxu0 0
    %6552 = vmatprep.subr.bf16.mxu0 0
    %6553 = vmatpush1.bf16.msra.mxu0 0
    %6554 = vmatprep.subr.bf16.mxu0 0
    %6555 = vmatpush1.bf16.msra.mxu0 0
    %6556 = vmatprep.subr.bf16.mxu0 0
    %6557 = vmatpush1.bf16.msra.mxu0 0
    %6558 = vmatprep.subr.bf16.mxu0 0
    %6559 = vmatpush1.bf16.msra.mxu0 0
    %6560 = vmatprep.subr.bf16.mxu0 0
    %6561 = vmatpush1.bf16.msra.mxu0 0
    %6562 = vmatprep.subr.bf16.mxu0 0
    %6563 = vmatpush1.bf16.msra.mxu0 0
    %6564 = vmatprep.subr.bf16.mxu0 0
    %6565 = vmatpush1.bf16.msra.mxu0 0
    %6566 = vmatprep.subr.bf16.mxu0 0
    %6567 = vmatpush1.bf16.msra.mxu0 0
    %6568 = vmatprep.mubr.bf16.mxu0 0
    %6569 = vmatmul.mubr.bf16.gmra.mrb[0].mxu0 %v6534
    %v6570 = vpop.f32.mrb[0].mxu0
    %v6571 = vadd.f32 %v6507, %v6570
    %v6572 = vpop.f32.mrb[0].mxu0
    %v6573 = vpop.f32.mrb[0].mxu0
    %v6574 = vpop.f32.mrb[0].mxu0
    %6575 = vdwg.mxu0
    %v6576 = vmax.f32 %v6571, 0.0
    %v6577 = vpack.c.bf16 %v6576, %v6576
    %v6578 = vld [vmem:[%s9] sm:$0xf]
    %v6579 = vld [vmem:[%s9 + $0x4] sm:$0xf]
    %v6580 = vld [vmem:[%s9 + $0x8] sm:$0xf]
    %v6581 = vld [vmem:[%s9 + $0xc] sm:$0xf]
    %v6582 = vld [vmem:[%s10] sm:$0x1]
    %v6584 = vlaneseq
    %v6585 = vshrl.u32 %v6584, 7
    %v6586 = vsub.s32 0, %v6585
    %v6587 = vrot.slane %v6582, %v6586
    %v6593 = vunpack.c.l.b16 %v6578
    %v6594 = vunpack.c.l.b16 %v6579
    %v6595 = vunpack.c.l.b16 %v6580
    %v6596 = vunpack.c.l.b16 %v6581
    %v6597 = vpack.c.b16 %v6594, %v6593
    %v6598 = vpack.c.b16 %v6596, %v6595
    %vm6601 = vcmask 261120
    %v6603 = vsel %vm6601, %v6577, 0
    %6605 = vmatprep.subr.bf16.mxu0 0
    %6606 = vmatpush1.bf16.msra.mxu0 %v6597
    %6607 = vmatprep.subr.bf16.mxu0 0
    %6608 = vmatpush1.bf16.msra.mxu0 %v6598
    %6609 = vmatprep.subr.bf16.mxu0 0
    %6610 = vmatpush1.bf16.msra.mxu0 0
    %6611 = vmatprep.subr.bf16.mxu0 0
    %6612 = vmatpush1.bf16.msra.mxu0 0
    %6613 = vmatprep.subr.bf16.mxu0 0
    %6614 = vmatpush1.bf16.msra.mxu0 0
    %6615 = vmatprep.subr.bf16.mxu0 0
    %6616 = vmatpush1.bf16.msra.mxu0 0
    %6617 = vmatprep.subr.bf16.mxu0 0
    %6618 = vmatpush1.bf16.msra.mxu0 0
    %6619 = vmatprep.subr.bf16.mxu0 0
    %6620 = vmatpush1.bf16.msra.mxu0 0
    %6621 = vmatprep.subr.bf16.mxu0 0
    %6622 = vmatpush1.bf16.msra.mxu0 0
    %6623 = vmatprep.subr.bf16.mxu0 0
    %6624 = vmatpush1.bf16.msra.mxu0 0
    %6625 = vmatprep.subr.bf16.mxu0 0
    %6626 = vmatpush1.bf16.msra.mxu0 0
    %6627 = vmatprep.subr.bf16.mxu0 0
    %6628 = vmatpush1.bf16.msra.mxu0 0
    %6629 = vmatprep.subr.bf16.mxu0 0
    %6630 = vmatpush1.bf16.msra.mxu0 0
    %6631 = vmatprep.subr.bf16.mxu0 0
    %6632 = vmatpush1.bf16.msra.mxu0 0
    %6633 = vmatprep.subr.bf16.mxu0 0
    %6634 = vmatpush1.bf16.msra.mxu0 0
    %6635 = vmatprep.subr.bf16.mxu0 0
    %6636 = vmatpush1.bf16.msra.mxu0 0
    %6637 = vmatprep.mubr.bf16.mxu0 0
    %6638 = vmatmul.mubr.bf16.gmra.mrb[0].mxu0 %v6603
    %v6639 = vpop.f32.mrb[0].mxu0
    %v6640 = vadd.f32 %v6587, %v6639
    %v6641 = vpop.f32.mrb[0].mxu0
    %v6642 = vpop.f32.mrb[0].mxu0
    %v6643 = vpop.f32.mrb[0].mxu0
    %6644 = vdwg.mxu0
    %6646 = vset.pattern.permute.xlu0 6
    %6647 = vperm.xlu0 %6646, %v6640
    %v6648 = vpop.permute.xlu0 %6647
    %v6650 = vadd.f32 %v6648, %v6640
    %vm6651 = vcmask 41984
    %v6652 = vsel %vm6651, %v6640, 0.0
    %6653 = vadd.xlane.f32.xlu0 %v6652
    %v6654 = vpop.xlane.xlu0 %6653
    %v6655 = vrcp.pop 6.0
    %v6656 = vmul.f32 %v6654, %v6655
    %v6657 = vsub.f32 %v6650, %v6656
    %6658 = vst.msk [vmem:[#allocation2] sm:$0x3] %vm6651, %v6657
    // Predicated region
    $region46: #{forward.1} parent=1 // pred_check
      _
    $region47: #{forward.1} parent=1 // pred_check_branch
      %6660 = sbr.rel (0) target = $region49
    $region48: #{forward.1} parent=1 // pred_region
      %s6662 = ssub.s32 32, 32
      %6663 = vsyncadd [#allocation3], %s6662
      %s6665 = sshll.u32 [#allocation2], 4
      %s6666 = int_to_ptr.vmem [resolvable:$true] %s6665
      %6668 = dma.vmem_to_hbm [thread:$0]  %s6666, 32, %s11, [#allocation3]
    $region49: #{forward.1} parent=1 // pred_fallthru
      _
    // Predicated region
    $region50: #{forward.1} parent=1 // pred_check
      _
    $region51: #{forward.1} parent=1 // pred_check_branch
      %6670 = sbr.rel (0) target = $region53
    $region52: #{forward.1} parent=1 // pred_region
      %6671 = dma.done [#allocation3], 32
    $region53: #{forward.1} parent=1 // pred_fallthru
      _
    %6672 = vsyncpa [#allocation3], 1

</llo_original>
